<compile_context>
chip_gen: v7x
topology: tpu7x:2x2x1
jax: 0.10.0
libtpu: 0.0.40
codegen_flags: <defaults>
</compile_context>

<pallas_src>
import functools
import numpy as np
import jax
import jax.numpy as jnp
from jax.experimental import pallas as pl
from jax.experimental.pallas import tpu as pltpu

# ---------------- synthetic deterministic config ----------------
VOCAB     = 100
DIM       = 32      # cfg.dim == cfg.max_len
SEQ       = 8       # seq_len <= cfg.max_len
BATCH     = 2
LABELS    = 4       # cfg.label_size
STEM_C    = 8       # mini-resnet channel width
RESNET_FC = 16      # resnet_model.fc.out_features
EPS       = 1e-12   # LayerNorm variance_epsilon


# ---------------- the fused kernel ----------------
def _fused_kernel(ids_ref, tok_ref, posf_ref, posb_ref, mm_ref, g_ref, b_ref,
                  w0_ref, b0_ref, w1_ref, b1_ref, w2_ref, b2_ref,
                  smask_ref, pool_ref, rw_ref, rb_ref, fw_ref, fb_ref,
                  o_ref, xpad_ref, *, bs, dim, n, pad, eps):
    """Entire Word_Resnet forward on VMEM-resident data.

    xpad_ref: (C, n + 2*pad) f32 scratch; columns [pad, pad+n) hold the flat
    (channel, b*S*D) activation, the halo columns stay zero so 3x3-conv taps
    can be read as plain shifted slices.
    """
    # zero the staging buffer once (halo columns + unused stem channels)
    xpad_ref[...] = jnp.zeros_like(xpad_ref)

    # ---- Dynamic_embeddings: token gather as a one-hot MXU matmul ----
    ids = ids_ref[...]                                           # (bs, 1) int32
    vpad = tok_ref.shape[0]
    onehot = (jax.lax.broadcasted_iota(jnp.int32, (bs, vpad), 1) == ids
              ).astype(jnp.float32)                              # (bs, vpad)
    tok = jnp.dot(onehot, tok_ref[...],
                  preferred_element_type=jnp.float32)            # (bs, dim)

    gamma = g_ref[...]                                           # (1, dim)
    beta = b_ref[...]

    def layernorm(x):                                            # TF-style LN
        u = jnp.mean(x, axis=-1, keepdims=True)
        d = x - u
        s = jnp.mean(d * d, axis=-1, keepdims=True)
        return d * jax.lax.rsqrt(s + eps) * gamma + beta

    chans = (layernorm(tok + posf_ref[...]),      # forward_embedding
             layernorm(tok * mm_ref[...]),        # mask_embedding (no pos)
             layernorm(tok + posb_ref[...]))      # backward_embedding

    # ---- scatter the three (bs, dim) channels into the flat (C, n) layout ----
    # manual row-store "reshape": avoids lane-crossing vector reshapes.
    for c, ch in enumerate(chans):
        for r in range(bs):
            xpad_ref[c:c + 1, pad + r * dim: pad + (r + 1) * dim] = ch[r:r + 1, :]

    smask = smask_ref[...]                                       # (9, n) tap-validity

    # ---- 3x3 conv = 9 shifted-slice matmuls accumulated in registers ----
    def conv3x3(taps_ref, bias_ref, residual=None, relu=True):
        out = None
        for k in range(9):                                       # tap (dh, dw)
            off = (k // 3 - 1) * dim + (k % 3 - 1)
            sh = xpad_ref[:, pad + off: pad + off + n]           # (C, n) shifted view
            if k != 4:                                           # center tap needs no mask
                sh = sh * smask[k:k + 1, :]
            contrib = jnp.dot(taps_ref[k], sh,
                              preferred_element_type=jnp.float32)
            out = contrib if out is None else out + contrib
        out = out + bias_ref[...]                                # (C, 1) broadcast
        if residual is not None:                                 # fused skip connection
            out = out + residual
        return jnp.maximum(out, 0.0) if relu else out

    h = conv3x3(w0_ref, b0_ref)                                  # stem (Cin padded 3->8)
    xpad_ref[:, pad: pad + n] = h
    y = conv3x3(w1_ref, b1_ref)                                  # block conv1
    xpad_ref[:, pad: pad + n] = y
    h = conv3x3(w2_ref, b2_ref, residual=h)                      # block conv2 + skip + ReLU

    # ---- global avg-pool folded into a matmul, then resnet.fc and final fc ----
    pooled = jax.lax.dot_general(pool_ref[...], h,
                                 (((1,), (1,)), ((), ())),
                                 preferred_element_type=jnp.float32)   # (B, C)
    h1 = jnp.dot(pooled, rw_ref[...],
                 preferred_element_type=jnp.float32) + rb_ref[...]     # (B, F1)
    o_ref[...] = jnp.dot(h1, fw_ref[...],
                         preferred_element_type=jnp.float32) + fb_ref[...]  # (B, L)


# ---------------- wrapper (parameter packing + pallas_call) ----------------
def word_resnet_forward(x_ids, params):
    B, S = x_ids.shape
    D = params["tok_embed"].shape[1]
    C = params["conv_stem_w"].shape[0]
    L = params["fc_w"].shape[1]
    BS, N = B * S, B * S * D
    PAD = 2 * D                              # halo >= D + 1 on each side
    VPAD = 128                               # vocab rows padded to an MXU-friendly K
    f32 = jnp.float32

    ids_col = x_ids.reshape(BS, 1).astype(jnp.int32)

    vocab = params["tok_embed"].shape[0]
    tok_tab = jnp.zeros((VPAD, D), f32).at[:vocab].set(params["tok_embed"])

    posf = params["pos_embed"][:S]
    posb = posf[::-1]
    posf_t = jnp.tile(posf, (B, 1))                              # (BS, D)
    posb_t = jnp.tile(posb, (B, 1))

    # np.random batch-row masking (int(B*0.15)==0 rows for B==2; replace=True
    # kept to match np.random.choice defaults in the reference)
    n_mask = int(B * 0.15)
    row_keep = np.ones((B,), np.float32)
    if n_mask > 0:
        row_keep[np.random.RandomState(0).choice(B, n_mask)] = 0.0
    mm = jnp.asarray(np.repeat(row_keep, S)[:, None])            # (BS, 1)

    def taps(w, cin_pad):
        cout, cin = w.shape[0], w.shape[1]
        t = jnp.transpose(w, (2, 3, 0, 1)).reshape(9, cout, cin)  # tap-major
        if cin < cin_pad:                                         # zero-pad K (3 -> 8)
            t = jnp.concatenate(
                [t, jnp.zeros((9, cout, cin_pad - cin), f32)], axis=-1)
        return t

    w0, w1, w2 = (taps(params["conv_stem_w"], C),
                  taps(params["conv1_w"], C),
                  taps(params["conv2_w"], C))
    b0 = params["conv_stem_b"].reshape(C, 1)
    b1 = params["conv1_b"].reshape(C, 1)
    b2 = params["conv2_b"].reshape(C, 1)

    # tap-validity masks for the flat (C, B*S*D) conv layout
    flat = np.arange(N)
    hh, ww = (flat // D) % S, flat % D
    smasks = jnp.asarray(np.stack(
        [(((hh + a - 1) >= 0) & ((hh + a - 1) < S)
          & ((ww + b - 1) >= 0) & ((ww + b - 1) < D)).astype(np.float32)
         for a in range(3) for b in range(3)]))                  # (9, N)

    # per-batch mean pooling expressed as a matmul (adaptive avg-pool folded in)
    pool_sel = jnp.asarray(
        (flat[None, :] // (S * D) == np.arange(B)[:, None]).astype(np.float32)
        / float(S * D))                                          # (B, N)

    gamma = params["ln_gamma"].reshape(1, D)
    beta = params["ln_beta"].reshape(1, D)
    rfc_b = params["res_fc_b"].reshape(1, -1)
    fc_b = params["fc_b"].reshape(1, -1)

    kernel = functools.partial(_fused_kernel, bs=BS, dim=D, n=N, pad=PAD, eps=EPS)
    vmem = pl.BlockSpec(memory_space=pltpu.MemorySpace.VMEM)
    # TODO(synk): if B/S are scaled up, add a grid axis marked "parallel" over
    # spatial tiles so v7x's second TensorCore shares the work; at this size a
    # single gridless invocation is the right call.
    return pl.pallas_call(
        kernel,
        out_shape=jax.ShapeDtypeStruct((B, L), f32),
        in_specs=[vmem] * 19,
        out_specs=vmem,
        scratch_shapes=[pltpu.VMEM((C, N + 2 * PAD), f32)],
    )(ids_col, tok_tab, posf_t, posb_t, mm, gamma, beta,
      w0, b0, w1, b1, w2, b2, smasks, pool_sel,
      params["res_fc_w"], rfc_b, params["fc_w"], fc_b)


# ---------------- pure-JAX reference (for an in-script sanity check) ----------------
def reference_forward(x_ids, params):
    B, S = x_ids.shape
    D = params["tok_embed"].shape[1]
    hp = jax.lax.Precision.HIGHEST
    tok = params["tok_embed"][x_ids]                             # (B, S, D)
    posf = params["pos_embed"][:S]
    posb = posf[::-1]
    n_mask = int(B * 0.15)
    row_keep = np.ones((B,), np.float32)
    if n_mask > 0:
        row_keep[np.random.RandomState(0).choice(B, n_mask)] = 0.0
    e = jnp.stack([tok + posf[None],
                   tok * jnp.asarray(row_keep)[:, None, None],
                   tok + posb[None]], axis=1)                    # (B, 3, S, D)
    u = e.mean(-1, keepdims=True)
    s = ((e - u) ** 2).mean(-1, keepdims=True)
    e = (e - u) / jnp.sqrt(s + EPS)
    e = e * params["ln_gamma"].reshape(1, 1, 1, D) + params["ln_beta"].reshape(1, 1, 1, D)

    def conv(x, w, b):
        y = jax.lax.conv_general_dilated(
            x, w, (1, 1), [(1, 1), (1, 1)],
            dimension_numbers=("NCHW", "OIHW", "NCHW"), precision=hp)
        return y + b.reshape(1, -1, 1, 1)

    h = jnp.maximum(conv(e, params["conv_stem_w"], params["conv_stem_b"]), 0.0)
    y = jnp.maximum(conv(h, params["conv1_w"], params["conv1_b"]), 0.0)
    y = conv(y, params["conv2_w"], params["conv2_b"])
    h = jnp.maximum(y + h, 0.0)
    pooled = h.mean(axis=(2, 3))                                 # (B, C)
    h1 = jnp.dot(pooled, params["res_fc_w"], precision=hp) + params["res_fc_b"]
    return jnp.dot(h1, params["fc_w"], precision=hp) + params["fc_b"]


# ---------------- main ----------------
if __name__ == "__main__":
    key = jax.random.PRNGKey(0)
    ks = jax.random.split(key, 12)
    params = {
        "tok_embed":   jax.random.normal(ks[0], (VOCAB, DIM), jnp.float32) * 0.1,
        "pos_embed":   jax.random.normal(ks[1], (DIM, DIM), jnp.float32) * 0.1,
        "ln_gamma":    jnp.ones((DIM,), jnp.float32),
        "ln_beta":     jnp.zeros((DIM,), jnp.float32),
        "conv_stem_w": jax.random.normal(ks[2], (STEM_C, 3, 3, 3), jnp.float32) * 0.1,
        "conv_stem_b": jnp.zeros((STEM_C,), jnp.float32),
        "conv1_w":     jax.random.normal(ks[3], (STEM_C, STEM_C, 3, 3), jnp.float32) * 0.1,
        "conv1_b":     jnp.zeros((STEM_C,), jnp.float32),
        "conv2_w":     jax.random.normal(ks[4], (STEM_C, STEM_C, 3, 3), jnp.float32) * 0.1,
        "conv2_b":     jnp.zeros((STEM_C,), jnp.float32),
        "res_fc_w":    jax.random.normal(ks[5], (STEM_C, RESNET_FC), jnp.float32) * 0.1,
        "res_fc_b":    jax.random.normal(ks[6], (RESNET_FC,), jnp.float32) * 0.01,
        "fc_w":        jax.random.normal(ks[7], (RESNET_FC, LABELS), jnp.float32) * 0.1,
        "fc_b":        jax.random.normal(ks[8], (LABELS,), jnp.float32) * 0.01,
    }
    x_ids = jax.random.randint(ks[9], (BATCH, SEQ), 0, VOCAB, dtype=jnp.int32)

    out = jax.jit(word_resnet_forward)(x_ids, params)
    out = jax.block_until_ready(out)
    assert out.shape == (BATCH, LABELS)
    assert bool(jnp.all(jnp.isfinite(out)))

    ref = reference_forward(x_ids, params)
    max_diff = float(jnp.max(jnp.abs(out - ref)))
    assert bool(jnp.allclose(out, ref, atol=2e-2, rtol=2e-2)), max_diff

    print("KERNEL_OK")
</pallas_src>

<mosaic_0001>
module attributes {stable_mosaic.version = 11 : i64} {
  func.func @_fused_kernel(%arg0: memref<16x1xi32, #tpu.memory_space<vmem>>, %arg1: memref<128x32xf32, #tpu.memory_space<vmem>>, %arg2: memref<16x32xf32, #tpu.memory_space<vmem>>, %arg3: memref<16x32xf32, #tpu.memory_space<vmem>>, %arg4: memref<16x1xf32, #tpu.memory_space<vmem>>, %arg5: memref<1x32xf32, #tpu.memory_space<vmem>>, %arg6: memref<1x32xf32, #tpu.memory_space<vmem>>, %arg7: memref<9x8x8xf32, #tpu.memory_space<vmem>>, %arg8: memref<8x1xf32, #tpu.memory_space<vmem>>, %arg9: memref<9x8x8xf32, #tpu.memory_space<vmem>>, %arg10: memref<8x1xf32, #tpu.memory_space<vmem>>, %arg11: memref<9x8x8xf32, #tpu.memory_space<vmem>>, %arg12: memref<8x1xf32, #tpu.memory_space<vmem>>, %arg13: memref<9x512xf32, #tpu.memory_space<vmem>>, %arg14: memref<2x512xf32, #tpu.memory_space<vmem>>, %arg15: memref<8x16xf32, #tpu.memory_space<vmem>>, %arg16: memref<1x16xf32, #tpu.memory_space<vmem>>, %arg17: memref<16x4xf32, #tpu.memory_space<vmem>>, %arg18: memref<1x4xf32, #tpu.memory_space<vmem>>, %arg19: memref<2x4xf32, #tpu.memory_space<vmem>>, %arg20: memref<8x640xf32, #tpu.memory_space<vmem>>) attributes {dimension_semantics = [], scalar_prefetch = 0 : i64, scratch_operands = 1 : i64, tpu.core_type = #tpu.core_type<tc>} {
    %cst = arith.constant 0.000000e+00 : f32
    %0 = vector.broadcast %cst : f32 to vector<8x640xf32>
    %c0 = arith.constant 0 : index
    %c0_0 = arith.constant 0 : index
    %1 = vector.load %arg20[%c0, %c0_0] : memref<8x640xf32, #tpu.memory_space<vmem>>, vector<8x640xf32>
    tpu.vector_store %arg20[%c0, %c0_0], %0 {strides = array<i32>} : memref<8x640xf32, #tpu.memory_space<vmem>>, vector<8x640xf32>,
    %c0_1 = arith.constant 0 : index
    %c0_2 = arith.constant 0 : index
    %2 = vector.load %arg0[%c0_1, %c0_2] : memref<16x1xi32, #tpu.memory_space<vmem>>, vector<16x1xi32>
    %3 = tpu.iota {dimensions = array<i32: 1>} : vector<16x128xi32>
    %4 = vector.broadcast %2 : vector<16x1xi32> to vector<16x128xi32>
    %5 = arith.cmpi eq, %3, %4 : vector<16x128xi32>
    %6 = arith.extui %5 : vector<16x128xi1> to vector<16x128xi32>
    %7 = arith.sitofp %6 : vector<16x128xi32> to vector<16x128xf32>
    %c0_3 = arith.constant 0 : index
    %c0_4 = arith.constant 0 : index
    %8 = vector.load %arg1[%c0_3, %c0_4] : memref<128x32xf32, #tpu.memory_space<vmem>>, vector<128x32xf32>
    %cst_5 = arith.constant dense<0.000000e+00> : vector<16x32xf32>
    %9 = tpu.matmul %7, %8, %cst_5 {dimension_numbers = #tpu.dot_dimension_numbers<[1], [0], [0], [1], [0, 0, 1, 1], [], []>} : vector<16x128xf32>, vector<128x32xf32>, vector<16x32xf32> -> vector<16x32xf32>
    %c0_6 = arith.constant 0 : index
    %c0_7 = arith.constant 0 : index
    %10 = vector.load %arg5[%c0_6, %c0_7] : memref<1x32xf32, #tpu.memory_space<vmem>>, vector<1x32xf32>
    %c0_8 = arith.constant 0 : index
    %c0_9 = arith.constant 0 : index
    %11 = vector.load %arg6[%c0_8, %c0_9] : memref<1x32xf32, #tpu.memory_space<vmem>>, vector<1x32xf32>
    %c0_10 = arith.constant 0 : index
    %c0_11 = arith.constant 0 : index
    %12 = vector.load %arg2[%c0_10, %c0_11] : memref<16x32xf32, #tpu.memory_space<vmem>>, vector<16x32xf32>
    %13 = arith.addf %9, %12 : vector<16x32xf32>
    %cst_12 = arith.constant dense<0.000000e+00> : vector<16xf32>
    %14 = vector.multi_reduction <add>, %13, %cst_12 [1] : vector<16x32xf32> to vector<16xf32>
    %15 = vector.shape_cast %14 : vector<16xf32> to vector<16x1xf32>
    %cst_13 = arith.constant 3.200000e+01 : f32
    %16 = vector.broadcast %cst_13 : f32 to vector<16x1xf32>
    %17 = arith.divf %15, %16 : vector<16x1xf32>
    %18 = vector.broadcast %17 : vector<16x1xf32> to vector<16x32xf32>
    %19 = arith.subf %13, %18 : vector<16x32xf32>
    %20 = arith.mulf %19, %19 : vector<16x32xf32>
    %cst_14 = arith.constant dense<0.000000e+00> : vector<16xf32>
    %21 = vector.multi_reduction <add>, %20, %cst_14 [1] : vector<16x32xf32> to vector<16xf32>
    %22 = vector.shape_cast %21 : vector<16xf32> to vector<16x1xf32>
    %cst_15 = arith.constant 3.200000e+01 : f32
    %23 = vector.broadcast %cst_15 : f32 to vector<16x1xf32>
    %24 = arith.divf %22, %23 : vector<16x1xf32>
    %cst_16 = arith.constant 9.99999996E-13 : f32
    %25 = vector.broadcast %cst_16 : f32 to vector<16x1xf32>
    %26 = arith.addf %24, %25 : vector<16x1xf32>
    %27 = math.rsqrt %26 : vector<16x1xf32>
    %28 = vector.broadcast %27 : vector<16x1xf32> to vector<16x32xf32>
    %29 = arith.mulf %19, %28 : vector<16x32xf32>
    %30 = vector.broadcast %10 : vector<1x32xf32> to vector<16x32xf32>
    %31 = arith.mulf %29, %30 : vector<16x32xf32>
    %32 = vector.broadcast %11 : vector<1x32xf32> to vector<16x32xf32>
    %33 = arith.addf %31, %32 : vector<16x32xf32>
    %c0_17 = arith.constant 0 : index
    %c0_18 = arith.constant 0 : index
    %34 = vector.load %arg4[%c0_17, %c0_18] : memref<16x1xf32, #tpu.memory_space<vmem>>, vector<16x1xf32>
    %35 = vector.broadcast %34 : vector<16x1xf32> to vector<16x32xf32>
    %36 = arith.mulf %9, %35 : vector<16x32xf32>
    %cst_19 = arith.constant dense<0.000000e+00> : vector<16xf32>
    %37 = vector.multi_reduction <add>, %36, %cst_19 [1] : vector<16x32xf32> to vector<16xf32>
    %38 = vector.shape_cast %37 : vector<16xf32> to vector<16x1xf32>
    %cst_20 = arith.constant 3.200000e+01 : f32
    %39 = vector.broadcast %cst_20 : f32 to vector<16x1xf32>
    %40 = arith.divf %38, %39 : vector<16x1xf32>
    %41 = vector.broadcast %40 : vector<16x1xf32> to vector<16x32xf32>
    %42 = arith.subf %36, %41 : vector<16x32xf32>
    %43 = arith.mulf %42, %42 : vector<16x32xf32>
    %cst_21 = arith.constant dense<0.000000e+00> : vector<16xf32>
    %44 = vector.multi_reduction <add>, %43, %cst_21 [1] : vector<16x32xf32> to vector<16xf32>
    %45 = vector.shape_cast %44 : vector<16xf32> to vector<16x1xf32>
    %cst_22 = arith.constant 3.200000e+01 : f32
    %46 = vector.broadcast %cst_22 : f32 to vector<16x1xf32>
    %47 = arith.divf %45, %46 : vector<16x1xf32>
    %cst_23 = arith.constant 9.99999996E-13 : f32
    %48 = vector.broadcast %cst_23 : f32 to vector<16x1xf32>
    %49 = arith.addf %47, %48 : vector<16x1xf32>
    %50 = math.rsqrt %49 : vector<16x1xf32>
    %51 = vector.broadcast %50 : vector<16x1xf32> to vector<16x32xf32>
    %52 = arith.mulf %42, %51 : vector<16x32xf32>
    %53 = vector.broadcast %10 : vector<1x32xf32> to vector<16x32xf32>
    %54 = arith.mulf %52, %53 : vector<16x32xf32>
    %55 = vector.broadcast %11 : vector<1x32xf32> to vector<16x32xf32>
    %56 = arith.addf %54, %55 : vector<16x32xf32>
    %c0_24 = arith.constant 0 : index
    %c0_25 = arith.constant 0 : index
    %57 = vector.load %arg3[%c0_24, %c0_25] : memref<16x32xf32, #tpu.memory_space<vmem>>, vector<16x32xf32>
    %58 = arith.addf %9, %57 : vector<16x32xf32>
    %cst_26 = arith.constant dense<0.000000e+00> : vector<16xf32>
    %59 = vector.multi_reduction <add>, %58, %cst_26 [1] : vector<16x32xf32> to vector<16xf32>
    %60 = vector.shape_cast %59 : vector<16xf32> to vector<16x1xf32>
    %cst_27 = arith.constant 3.200000e+01 : f32
    %61 = vector.broadcast %cst_27 : f32 to vector<16x1xf32>
    %62 = arith.divf %60, %61 : vector<16x1xf32>
    %63 = vector.broadcast %62 : vector<16x1xf32> to vector<16x32xf32>
    %64 = arith.subf %58, %63 : vector<16x32xf32>
    %65 = arith.mulf %64, %64 : vector<16x32xf32>
    %cst_28 = arith.constant dense<0.000000e+00> : vector<16xf32>
    %66 = vector.multi_reduction <add>, %65, %cst_28 [1] : vector<16x32xf32> to vector<16xf32>
    %67 = vector.shape_cast %66 : vector<16xf32> to vector<16x1xf32>
    %cst_29 = arith.constant 3.200000e+01 : f32
    %68 = vector.broadcast %cst_29 : f32 to vector<16x1xf32>
    %69 = arith.divf %67, %68 : vector<16x1xf32>
    %cst_30 = arith.constant 9.99999996E-13 : f32
    %70 = vector.broadcast %cst_30 : f32 to vector<16x1xf32>
    %71 = arith.addf %69, %70 : vector<16x1xf32>
    %72 = math.rsqrt %71 : vector<16x1xf32>
    %73 = vector.broadcast %72 : vector<16x1xf32> to vector<16x32xf32>
    %74 = arith.mulf %64, %73 : vector<16x32xf32>
    %75 = vector.broadcast %10 : vector<1x32xf32> to vector<16x32xf32>
    %76 = arith.mulf %74, %75 : vector<16x32xf32>
    %77 = vector.broadcast %11 : vector<1x32xf32> to vector<16x32xf32>
    %78 = arith.addf %76, %77 : vector<16x32xf32>
    %79 = vector.extract_strided_slice %33 {offsets = [0, 0], sizes = [1, 32], strides = [1, 1]} : vector<16x32xf32> to vector<1x32xf32>
    %c0_31 = arith.constant 0 : index
    %c64 = arith.constant 64 : index
    %80 = vector.load %arg20[%c0_31, %c64] : memref<8x640xf32, #tpu.memory_space<vmem>>, vector<1x32xf32>
    tpu.vector_store %arg20[%c0_31, %c64], %79 {strides = array<i32>} : memref<8x640xf32, #tpu.memory_space<vmem>>, vector<1x32xf32>,
    %81 = vector.extract_strided_slice %33 {offsets = [1, 0], sizes = [1, 32], strides = [1, 1]} : vector<16x32xf32> to vector<1x32xf32>
    %c0_32 = arith.constant 0 : index
    %c96 = arith.constant 96 : index
    %82 = vector.load %arg20[%c0_32, %c96] : memref<8x640xf32, #tpu.memory_space<vmem>>, vector<1x32xf32>
    tpu.vector_store %arg20[%c0_32, %c96], %81 {strides = array<i32>} : memref<8x640xf32, #tpu.memory_space<vmem>>, vector<1x32xf32>,
    %83 = vector.extract_strided_slice %33 {offsets = [2, 0], sizes = [1, 32], strides = [1, 1]} : vector<16x32xf32> to vector<1x32xf32>
    %c0_33 = arith.constant 0 : index
    %c128 = arith.constant 128 : index
    %84 = vector.load %arg20[%c0_33, %c128] : memref<8x640xf32, #tpu.memory_space<vmem>>, vector<1x32xf32>
    tpu.vector_store %arg20[%c0_33, %c128], %83 {strides = array<i32>} : memref<8x640xf32, #tpu.memory_space<vmem>>, vector<1x32xf32>,
    %85 = vector.extract_strided_slice %33 {offsets = [3, 0], sizes = [1, 32], strides = [1, 1]} : vector<16x32xf32> to vector<1x32xf32>
    %c0_34 = arith.constant 0 : index
    %c160 = arith.constant 160 : index
    %86 = vector.load %arg20[%c0_34, %c160] : memref<8x640xf32, #tpu.memory_space<vmem>>, vector<1x32xf32>
    tpu.vector_store %arg20[%c0_34, %c160], %85 {strides = array<i32>} : memref<8x640xf32, #tpu.memory_space<vmem>>, vector<1x32xf32>,
    %87 = vector.extract_strided_slice %33 {offsets = [4, 0], sizes = [1, 32], strides = [1, 1]} : vector<16x32xf32> to vector<1x32xf32>
    %c0_35 = arith.constant 0 : index
    %c192 = arith.constant 192 : index
    %88 = vector.load %arg20[%c0_35, %c192] : memref<8x640xf32, #tpu.memory_space<vmem>>, vector<1x32xf32>
    tpu.vector_store %arg20[%c0_35, %c192], %87 {strides = array<i32>} : memref<8x640xf32, #tpu.memory_space<vmem>>, vector<1x32xf32>,
    %89 = vector.extract_strided_slice %33 {offsets = [5, 0], sizes = [1, 32], strides = [1, 1]} : vector<16x32xf32> to vector<1x32xf32>
    %c0_36 = arith.constant 0 : index
    %c224 = arith.constant 224 : index
    %90 = vector.load %arg20[%c0_36, %c224] : memref<8x640xf32, #tpu.memory_space<vmem>>, vector<1x32xf32>
    tpu.vector_store %arg20[%c0_36, %c224], %89 {strides = array<i32>} : memref<8x640xf32, #tpu.memory_space<vmem>>, vector<1x32xf32>,
    %91 = vector.extract_strided_slice %33 {offsets = [6, 0], sizes = [1, 32], strides = [1, 1]} : vector<16x32xf32> to vector<1x32xf32>
    %c0_37 = arith.constant 0 : index
    %c256 = arith.constant 256 : index
    %92 = vector.load %arg20[%c0_37, %c256] : memref<8x640xf32, #tpu.memory_space<vmem>>, vector<1x32xf32>
    tpu.vector_store %arg20[%c0_37, %c256], %91 {strides = array<i32>} : memref<8x640xf32, #tpu.memory_space<vmem>>, vector<1x32xf32>,
    %93 = vector.extract_strided_slice %33 {offsets = [7, 0], sizes = [1, 32], strides = [1, 1]} : vector<16x32xf32> to vector<1x32xf32>
    %c0_38 = arith.constant 0 : index
    %c288 = arith.constant 288 : index
    %94 = vector.load %arg20[%c0_38, %c288] : memref<8x640xf32, #tpu.memory_space<vmem>>, vector<1x32xf32>
    tpu.vector_store %arg20[%c0_38, %c288], %93 {strides = array<i32>} : memref<8x640xf32, #tpu.memory_space<vmem>>, vector<1x32xf32>,
    %95 = vector.extract_strided_slice %33 {offsets = [8, 0], sizes = [1, 32], strides = [1, 1]} : vector<16x32xf32> to vector<1x32xf32>
    %c0_39 = arith.constant 0 : index
    %c320 = arith.constant 320 : index
    %96 = vector.load %arg20[%c0_39, %c320] : memref<8x640xf32, #tpu.memory_space<vmem>>, vector<1x32xf32>
    tpu.vector_store %arg20[%c0_39, %c320], %95 {strides = array<i32>} : memref<8x640xf32, #tpu.memory_space<vmem>>, vector<1x32xf32>,
    %97 = vector.extract_strided_slice %33 {offsets = [9, 0], sizes = [1, 32], strides = [1, 1]} : vector<16x32xf32> to vector<1x32xf32>
    %c0_40 = arith.constant 0 : index
    %c352 = arith.constant 352 : index
    %98 = vector.load %arg20[%c0_40, %c352] : memref<8x640xf32, #tpu.memory_space<vmem>>, vector<1x32xf32>
    tpu.vector_store %arg20[%c0_40, %c352], %97 {strides = array<i32>} : memref<8x640xf32, #tpu.memory_space<vmem>>, vector<1x32xf32>,
    %99 = vector.extract_strided_slice %33 {offsets = [10, 0], sizes = [1, 32], strides = [1, 1]} : vector<16x32xf32> to vector<1x32xf32>
    %c0_41 = arith.constant 0 : index
    %c384 = arith.constant 384 : index
    %100 = vector.load %arg20[%c0_41, %c384] : memref<8x640xf32, #tpu.memory_space<vmem>>, vector<1x32xf32>
    tpu.vector_store %arg20[%c0_41, %c384], %99 {strides = array<i32>} : memref<8x640xf32, #tpu.memory_space<vmem>>, vector<1x32xf32>,
    %101 = vector.extract_strided_slice %33 {offsets = [11, 0], sizes = [1, 32], strides = [1, 1]} : vector<16x32xf32> to vector<1x32xf32>
    %c0_42 = arith.constant 0 : index
    %c416 = arith.constant 416 : index
    %102 = vector.load %arg20[%c0_42, %c416] : memref<8x640xf32, #tpu.memory_space<vmem>>, vector<1x32xf32>
    tpu.vector_store %arg20[%c0_42, %c416], %101 {strides = array<i32>} : memref<8x640xf32, #tpu.memory_space<vmem>>, vector<1x32xf32>,
    %103 = vector.extract_strided_slice %33 {offsets = [12, 0], sizes = [1, 32], strides = [1, 1]} : vector<16x32xf32> to vector<1x32xf32>
    %c0_43 = arith.constant 0 : index
    %c448 = arith.constant 448 : index
    %104 = vector.load %arg20[%c0_43, %c448] : memref<8x640xf32, #tpu.memory_space<vmem>>, vector<1x32xf32>
    tpu.vector_store %arg20[%c0_43, %c448], %103 {strides = array<i32>} : memref<8x640xf32, #tpu.memory_space<vmem>>, vector<1x32xf32>,
    %105 = vector.extract_strided_slice %33 {offsets = [13, 0], sizes = [1, 32], strides = [1, 1]} : vector<16x32xf32> to vector<1x32xf32>
    %c0_44 = arith.constant 0 : index
    %c480 = arith.constant 480 : index
    %106 = vector.load %arg20[%c0_44, %c480] : memref<8x640xf32, #tpu.memory_space<vmem>>, vector<1x32xf32>
    tpu.vector_store %arg20[%c0_44, %c480], %105 {strides = array<i32>} : memref<8x640xf32, #tpu.memory_space<vmem>>, vector<1x32xf32>,
    %107 = vector.extract_strided_slice %33 {offsets = [14, 0], sizes = [1, 32], strides = [1, 1]} : vector<16x32xf32> to vector<1x32xf32>
    %c0_45 = arith.constant 0 : index
    %c512 = arith.constant 512 : index
    %108 = vector.load %arg20[%c0_45, %c512] : memref<8x640xf32, #tpu.memory_space<vmem>>, vector<1x32xf32>
    tpu.vector_store %arg20[%c0_45, %c512], %107 {strides = array<i32>} : memref<8x640xf32, #tpu.memory_space<vmem>>, vector<1x32xf32>,
    %109 = vector.extract_strided_slice %33 {offsets = [15, 0], sizes = [1, 32], strides = [1, 1]} : vector<16x32xf32> to vector<1x32xf32>
    %c0_46 = arith.constant 0 : index
    %c544 = arith.constant 544 : index
    %110 = vector.load %arg20[%c0_46, %c544] : memref<8x640xf32, #tpu.memory_space<vmem>>, vector<1x32xf32>
    tpu.vector_store %arg20[%c0_46, %c544], %109 {strides = array<i32>} : memref<8x640xf32, #tpu.memory_space<vmem>>, vector<1x32xf32>,
    %111 = vector.extract_strided_slice %56 {offsets = [0, 0], sizes = [1, 32], strides = [1, 1]} : vector<16x32xf32> to vector<1x32xf32>
    %c1 = arith.constant 1 : index
    %c64_47 = arith.constant 64 : index
    %112 = vector.load %arg20[%c1, %c64_47] : memref<8x640xf32, #tpu.memory_space<vmem>>, vector<1x32xf32>
    tpu.vector_store %arg20[%c1, %c64_47], %111 {strides = array<i32>} : memref<8x640xf32, #tpu.memory_space<vmem>>, vector<1x32xf32>,
    %113 = vector.extract_strided_slice %56 {offsets = [1, 0], sizes = [1, 32], strides = [1, 1]} : vector<16x32xf32> to vector<1x32xf32>
    %c1_48 = arith.constant 1 : index
    %c96_49 = arith.constant 96 : index
    %114 = vector.load %arg20[%c1_48, %c96_49] : memref<8x640xf32, #tpu.memory_space<vmem>>, vector<1x32xf32>
    tpu.vector_store %arg20[%c1_48, %c96_49], %113 {strides = array<i32>} : memref<8x640xf32, #tpu.memory_space<vmem>>, vector<1x32xf32>,
    %115 = vector.extract_strided_slice %56 {offsets = [2, 0], sizes = [1, 32], strides = [1, 1]} : vector<16x32xf32> to vector<1x32xf32>
    %c1_50 = arith.constant 1 : index
    %c128_51 = arith.constant 128 : index
    %116 = vector.load %arg20[%c1_50, %c128_51] : memref<8x640xf32, #tpu.memory_space<vmem>>, vector<1x32xf32>
    tpu.vector_store %arg20[%c1_50, %c128_51], %115 {strides = array<i32>} : memref<8x640xf32, #tpu.memory_space<vmem>>, vector<1x32xf32>,
    %117 = vector.extract_strided_slice %56 {offsets = [3, 0], sizes = [1, 32], strides = [1, 1]} : vector<16x32xf32> to vector<1x32xf32>
    %c1_52 = arith.constant 1 : index
    %c160_53 = arith.constant 160 : index
    %118 = vector.load %arg20[%c1_52, %c160_53] : memref<8x640xf32, #tpu.memory_space<vmem>>, vector<1x32xf32>
    tpu.vector_store %arg20[%c1_52, %c160_53], %117 {strides = array<i32>} : memref<8x640xf32, #tpu.memory_space<vmem>>, vector<1x32xf32>,
    %119 = vector.extract_strided_slice %56 {offsets = [4, 0], sizes = [1, 32], strides = [1, 1]} : vector<16x32xf32> to vector<1x32xf32>
    %c1_54 = arith.constant 1 : index
    %c192_55 = arith.constant 192 : index
    %120 = vector.load %arg20[%c1_54, %c192_55] : memref<8x640xf32, #tpu.memory_space<vmem>>, vector<1x32xf32>
    tpu.vector_store %arg20[%c1_54, %c192_55], %119 {strides = array<i32>} : memref<8x640xf32, #tpu.memory_space<vmem>>, vector<1x32xf32>,
    %121 = vector.extract_strided_slice %56 {offsets = [5, 0], sizes = [1, 32], strides = [1, 1]} : vector<16x32xf32> to vector<1x32xf32>
    %c1_56 = arith.constant 1 : index
    %c224_57 = arith.constant 224 : index
    %122 = vector.load %arg20[%c1_56, %c224_57] : memref<8x640xf32, #tpu.memory_space<vmem>>, vector<1x32xf32>
    tpu.vector_store %arg20[%c1_56, %c224_57], %121 {strides = array<i32>} : memref<8x640xf32, #tpu.memory_space<vmem>>, vector<1x32xf32>,
    %123 = vector.extract_strided_slice %56 {offsets = [6, 0], sizes = [1, 32], strides = [1, 1]} : vector<16x32xf32> to vector<1x32xf32>
    %c1_58 = arith.constant 1 : index
    %c256_59 = arith.constant 256 : index
    %124 = vector.load %arg20[%c1_58, %c256_59] : memref<8x640xf32, #tpu.memory_space<vmem>>, vector<1x32xf32>
    tpu.vector_store %arg20[%c1_58, %c256_59], %123 {strides = array<i32>} : memref<8x640xf32, #tpu.memory_space<vmem>>, vector<1x32xf32>,
    %125 = vector.extract_strided_slice %56 {offsets = [7, 0], sizes = [1, 32], strides = [1, 1]} : vector<16x32xf32> to vector<1x32xf32>
    %c1_60 = arith.constant 1 : index
    %c288_61 = arith.constant 288 : index
    %126 = vector.load %arg20[%c1_60, %c288_61] : memref<8x640xf32, #tpu.memory_space<vmem>>, vector<1x32xf32>
    tpu.vector_store %arg20[%c1_60, %c288_61], %125 {strides = array<i32>} : memref<8x640xf32, #tpu.memory_space<vmem>>, vector<1x32xf32>,
    %127 = vector.extract_strided_slice %56 {offsets = [8, 0], sizes = [1, 32], strides = [1, 1]} : vector<16x32xf32> to vector<1x32xf32>
    %c1_62 = arith.constant 1 : index
    %c320_63 = arith.constant 320 : index
    %128 = vector.load %arg20[%c1_62, %c320_63] : memref<8x640xf32, #tpu.memory_space<vmem>>, vector<1x32xf32>
    tpu.vector_store %arg20[%c1_62, %c320_63], %127 {strides = array<i32>} : memref<8x640xf32, #tpu.memory_space<vmem>>, vector<1x32xf32>,
    %129 = vector.extract_strided_slice %56 {offsets = [9, 0], sizes = [1, 32], strides = [1, 1]} : vector<16x32xf32> to vector<1x32xf32>
    %c1_64 = arith.constant 1 : index
    %c352_65 = arith.constant 352 : index
    %130 = vector.load %arg20[%c1_64, %c352_65] : memref<8x640xf32, #tpu.memory_space<vmem>>, vector<1x32xf32>
    tpu.vector_store %arg20[%c1_64, %c352_65], %129 {strides = array<i32>} : memref<8x640xf32, #tpu.memory_space<vmem>>, vector<1x32xf32>,
    %131 = vector.extract_strided_slice %56 {offsets = [10, 0], sizes = [1, 32], strides = [1, 1]} : vector<16x32xf32> to vector<1x32xf32>
    %c1_66 = arith.constant 1 : index
    %c384_67 = arith.constant 384 : index
    %132 = vector.load %arg20[%c1_66, %c384_67] : memref<8x640xf32, #tpu.memory_space<vmem>>, vector<1x32xf32>
    tpu.vector_store %arg20[%c1_66, %c384_67], %131 {strides = array<i32>} : memref<8x640xf32, #tpu.memory_space<vmem>>, vector<1x32xf32>,
    %133 = vector.extract_strided_slice %56 {offsets = [11, 0], sizes = [1, 32], strides = [1, 1]} : vector<16x32xf32> to vector<1x32xf32>
    %c1_68 = arith.constant 1 : index
    %c416_69 = arith.constant 416 : index
    %134 = vector.load %arg20[%c1_68, %c416_69] : memref<8x640xf32, #tpu.memory_space<vmem>>, vector<1x32xf32>
    tpu.vector_store %arg20[%c1_68, %c416_69], %133 {strides = array<i32>} : memref<8x640xf32, #tpu.memory_space<vmem>>, vector<1x32xf32>,
    %135 = vector.extract_strided_slice %56 {offsets = [12, 0], sizes = [1, 32], strides = [1, 1]} : vector<16x32xf32> to vector<1x32xf32>
    %c1_70 = arith.constant 1 : index
    %c448_71 = arith.constant 448 : index
    %136 = vector.load %arg20[%c1_70, %c448_71] : memref<8x640xf32, #tpu.memory_space<vmem>>, vector<1x32xf32>
    tpu.vector_store %arg20[%c1_70, %c448_71], %135 {strides = array<i32>} : memref<8x640xf32, #tpu.memory_space<vmem>>, vector<1x32xf32>,
    %137 = vector.extract_strided_slice %56 {offsets = [13, 0], sizes = [1, 32], strides = [1, 1]} : vector<16x32xf32> to vector<1x32xf32>
    %c1_72 = arith.constant 1 : index
    %c480_73 = arith.constant 480 : index
    %138 = vector.load %arg20[%c1_72, %c480_73] : memref<8x640xf32, #tpu.memory_space<vmem>>, vector<1x32xf32>
    tpu.vector_store %arg20[%c1_72, %c480_73], %137 {strides = array<i32>} : memref<8x640xf32, #tpu.memory_space<vmem>>, vector<1x32xf32>,
    %139 = vector.extract_strided_slice %56 {offsets = [14, 0], sizes = [1, 32], strides = [1, 1]} : vector<16x32xf32> to vector<1x32xf32>
    %c1_74 = arith.constant 1 : index
    %c512_75 = arith.constant 512 : index
    %140 = vector.load %arg20[%c1_74, %c512_75] : memref<8x640xf32, #tpu.memory_space<vmem>>, vector<1x32xf32>
    tpu.vector_store %arg20[%c1_74, %c512_75], %139 {strides = array<i32>} : memref<8x640xf32, #tpu.memory_space<vmem>>, vector<1x32xf32>,
    %141 = vector.extract_strided_slice %56 {offsets = [15, 0], sizes = [1, 32], strides = [1, 1]} : vector<16x32xf32> to vector<1x32xf32>
    %c1_76 = arith.constant 1 : index
    %c544_77 = arith.constant 544 : index
    %142 = vector.load %arg20[%c1_76, %c544_77] : memref<8x640xf32, #tpu.memory_space<vmem>>, vector<1x32xf32>
    tpu.vector_store %arg20[%c1_76, %c544_77], %141 {strides = array<i32>} : memref<8x640xf32, #tpu.memory_space<vmem>>, vector<1x32xf32>,
    %143 = vector.extract_strided_slice %78 {offsets = [0, 0], sizes = [1, 32], strides = [1, 1]} : vector<16x32xf32> to vector<1x32xf32>
    %c2 = arith.constant 2 : index
    %c64_78 = arith.constant 64 : index
    %144 = vector.load %arg20[%c2, %c64_78] : memref<8x640xf32, #tpu.memory_space<vmem>>, vector<1x32xf32>
    tpu.vector_store %arg20[%c2, %c64_78], %143 {strides = array<i32>} : memref<8x640xf32, #tpu.memory_space<vmem>>, vector<1x32xf32>,
    %145 = vector.extract_strided_slice %78 {offsets = [1, 0], sizes = [1, 32], strides = [1, 1]} : vector<16x32xf32> to vector<1x32xf32>
    %c2_79 = arith.constant 2 : index
    %c96_80 = arith.constant 96 : index
    %146 = vector.load %arg20[%c2_79, %c96_80] : memref<8x640xf32, #tpu.memory_space<vmem>>, vector<1x32xf32>
    tpu.vector_store %arg20[%c2_79, %c96_80], %145 {strides = array<i32>} : memref<8x640xf32, #tpu.memory_space<vmem>>, vector<1x32xf32>,
    %147 = vector.extract_strided_slice %78 {offsets = [2, 0], sizes = [1, 32], strides = [1, 1]} : vector<16x32xf32> to vector<1x32xf32>
    %c2_81 = arith.constant 2 : index
    %c128_82 = arith.constant 128 : index
    %148 = vector.load %arg20[%c2_81, %c128_82] : memref<8x640xf32, #tpu.memory_space<vmem>>, vector<1x32xf32>
    tpu.vector_store %arg20[%c2_81, %c128_82], %147 {strides = array<i32>} : memref<8x640xf32, #tpu.memory_space<vmem>>, vector<1x32xf32>,
    %149 = vector.extract_strided_slice %78 {offsets = [3, 0], sizes = [1, 32], strides = [1, 1]} : vector<16x32xf32> to vector<1x32xf32>
    %c2_83 = arith.constant 2 : index
    %c160_84 = arith.constant 160 : index
    %150 = vector.load %arg20[%c2_83, %c160_84] : memref<8x640xf32, #tpu.memory_space<vmem>>, vector<1x32xf32>
    tpu.vector_store %arg20[%c2_83, %c160_84], %149 {strides = array<i32>} : memref<8x640xf32, #tpu.memory_space<vmem>>, vector<1x32xf32>,
    %151 = vector.extract_strided_slice %78 {offsets = [4, 0], sizes = [1, 32], strides = [1, 1]} : vector<16x32xf32> to vector<1x32xf32>
    %c2_85 = arith.constant 2 : index
    %c192_86 = arith.constant 192 : index
    %152 = vector.load %arg20[%c2_85, %c192_86] : memref<8x640xf32, #tpu.memory_space<vmem>>, vector<1x32xf32>
    tpu.vector_store %arg20[%c2_85, %c192_86], %151 {strides = array<i32>} : memref<8x640xf32, #tpu.memory_space<vmem>>, vector<1x32xf32>,
    %153 = vector.extract_strided_slice %78 {offsets = [5, 0], sizes = [1, 32], strides = [1, 1]} : vector<16x32xf32> to vector<1x32xf32>
    %c2_87 = arith.constant 2 : index
    %c224_88 = arith.constant 224 : index
    %154 = vector.load %arg20[%c2_87, %c224_88] : memref<8x640xf32, #tpu.memory_space<vmem>>, vector<1x32xf32>
    tpu.vector_store %arg20[%c2_87, %c224_88], %153 {strides = array<i32>} : memref<8x640xf32, #tpu.memory_space<vmem>>, vector<1x32xf32>,
    %155 = vector.extract_strided_slice %78 {offsets = [6, 0], sizes = [1, 32], strides = [1, 1]} : vector<16x32xf32> to vector<1x32xf32>
    %c2_89 = arith.constant 2 : index
    %c256_90 = arith.constant 256 : index
    %156 = vector.load %arg20[%c2_89, %c256_90] : memref<8x640xf32, #tpu.memory_space<vmem>>, vector<1x32xf32>
    tpu.vector_store %arg20[%c2_89, %c256_90], %155 {strides = array<i32>} : memref<8x640xf32, #tpu.memory_space<vmem>>, vector<1x32xf32>,
    %157 = vector.extract_strided_slice %78 {offsets = [7, 0], sizes = [1, 32], strides = [1, 1]} : vector<16x32xf32> to vector<1x32xf32>
    %c2_91 = arith.constant 2 : index
    %c288_92 = arith.constant 288 : index
    %158 = vector.load %arg20[%c2_91, %c288_92] : memref<8x640xf32, #tpu.memory_space<vmem>>, vector<1x32xf32>
    tpu.vector_store %arg20[%c2_91, %c288_92], %157 {strides = array<i32>} : memref<8x640xf32, #tpu.memory_space<vmem>>, vector<1x32xf32>,
    %159 = vector.extract_strided_slice %78 {offsets = [8, 0], sizes = [1, 32], strides = [1, 1]} : vector<16x32xf32> to vector<1x32xf32>
    %c2_93 = arith.constant 2 : index
    %c320_94 = arith.constant 320 : index
    %160 = vector.load %arg20[%c2_93, %c320_94] : memref<8x640xf32, #tpu.memory_space<vmem>>, vector<1x32xf32>
    tpu.vector_store %arg20[%c2_93, %c320_94], %159 {strides = array<i32>} : memref<8x640xf32, #tpu.memory_space<vmem>>, vector<1x32xf32>,
    %161 = vector.extract_strided_slice %78 {offsets = [9, 0], sizes = [1, 32], strides = [1, 1]} : vector<16x32xf32> to vector<1x32xf32>
    %c2_95 = arith.constant 2 : index
    %c352_96 = arith.constant 352 : index
    %162 = vector.load %arg20[%c2_95, %c352_96] : memref<8x640xf32, #tpu.memory_space<vmem>>, vector<1x32xf32>
    tpu.vector_store %arg20[%c2_95, %c352_96], %161 {strides = array<i32>} : memref<8x640xf32, #tpu.memory_space<vmem>>, vector<1x32xf32>,
    %163 = vector.extract_strided_slice %78 {offsets = [10, 0], sizes = [1, 32], strides = [1, 1]} : vector<16x32xf32> to vector<1x32xf32>
    %c2_97 = arith.constant 2 : index
    %c384_98 = arith.constant 384 : index
    %164 = vector.load %arg20[%c2_97, %c384_98] : memref<8x640xf32, #tpu.memory_space<vmem>>, vector<1x32xf32>
    tpu.vector_store %arg20[%c2_97, %c384_98], %163 {strides = array<i32>} : memref<8x640xf32, #tpu.memory_space<vmem>>, vector<1x32xf32>,
    %165 = vector.extract_strided_slice %78 {offsets = [11, 0], sizes = [1, 32], strides = [1, 1]} : vector<16x32xf32> to vector<1x32xf32>
    %c2_99 = arith.constant 2 : index
    %c416_100 = arith.constant 416 : index
    %166 = vector.load %arg20[%c2_99, %c416_100] : memref<8x640xf32, #tpu.memory_space<vmem>>, vector<1x32xf32>
    tpu.vector_store %arg20[%c2_99, %c416_100], %165 {strides = array<i32>} : memref<8x640xf32, #tpu.memory_space<vmem>>, vector<1x32xf32>,
    %167 = vector.extract_strided_slice %78 {offsets = [12, 0], sizes = [1, 32], strides = [1, 1]} : vector<16x32xf32> to vector<1x32xf32>
    %c2_101 = arith.constant 2 : index
    %c448_102 = arith.constant 448 : index
    %168 = vector.load %arg20[%c2_101, %c448_102] : memref<8x640xf32, #tpu.memory_space<vmem>>, vector<1x32xf32>
    tpu.vector_store %arg20[%c2_101, %c448_102], %167 {strides = array<i32>} : memref<8x640xf32, #tpu.memory_space<vmem>>, vector<1x32xf32>,
    %169 = vector.extract_strided_slice %78 {offsets = [13, 0], sizes = [1, 32], strides = [1, 1]} : vector<16x32xf32> to vector<1x32xf32>
    %c2_103 = arith.constant 2 : index
    %c480_104 = arith.constant 480 : index
    %170 = vector.load %arg20[%c2_103, %c480_104] : memref<8x640xf32, #tpu.memory_space<vmem>>, vector<1x32xf32>
    tpu.vector_store %arg20[%c2_103, %c480_104], %169 {strides = array<i32>} : memref<8x640xf32, #tpu.memory_space<vmem>>, vector<1x32xf32>,
    %171 = vector.extract_strided_slice %78 {offsets = [14, 0], sizes = [1, 32], strides = [1, 1]} : vector<16x32xf32> to vector<1x32xf32>
    %c2_105 = arith.constant 2 : index
    %c512_106 = arith.constant 512 : index
    %172 = vector.load %arg20[%c2_105, %c512_106] : memref<8x640xf32, #tpu.memory_space<vmem>>, vector<1x32xf32>
    tpu.vector_store %arg20[%c2_105, %c512_106], %171 {strides = array<i32>} : memref<8x640xf32, #tpu.memory_space<vmem>>, vector<1x32xf32>,
    %173 = vector.extract_strided_slice %78 {offsets = [15, 0], sizes = [1, 32], strides = [1, 1]} : vector<16x32xf32> to vector<1x32xf32>
    %c2_107 = arith.constant 2 : index
    %c544_108 = arith.constant 544 : index
    %174 = vector.load %arg20[%c2_107, %c544_108] : memref<8x640xf32, #tpu.memory_space<vmem>>, vector<1x32xf32>
    tpu.vector_store %arg20[%c2_107, %c544_108], %173 {strides = array<i32>} : memref<8x640xf32, #tpu.memory_space<vmem>>, vector<1x32xf32>,
    %c0_109 = arith.constant 0 : index
    %c0_110 = arith.constant 0 : index
    %175 = vector.load %arg13[%c0_109, %c0_110] : memref<9x512xf32, #tpu.memory_space<vmem>>, vector<9x512xf32>
    %c0_111 = arith.constant 0 : index
    %c31 = arith.constant 31 : index
    %176 = vector.load %arg20[%c0_111, %c31] : memref<8x640xf32, #tpu.memory_space<vmem>>, vector<8x512xf32>
    %177 = vector.extract_strided_slice %175 {offsets = [0, 0], sizes = [1, 512], strides = [1, 1]} : vector<9x512xf32> to vector<1x512xf32>
    %178 = vector.broadcast %177 : vector<1x512xf32> to vector<8x512xf32>
    %179 = arith.mulf %176, %178 : vector<8x512xf32>
    %c0_112 = arith.constant 0 : index
    %c0_113 = arith.constant 0 : index
    %c0_114 = arith.constant 0 : index
    %180 = vector.load %arg7[%c0_112, %c0_113, %c0_114] : memref<9x8x8xf32, #tpu.memory_space<vmem>>, vector<1x8x8xf32>
    %181 = vector.shape_cast %180 : vector<1x8x8xf32> to vector<8x8xf32>
    %cst_115 = arith.constant dense<0.000000e+00> : vector<8x512xf32>
    %182 = tpu.matmul %181, %179, %cst_115 {dimension_numbers = #tpu.dot_dimension_numbers<[1], [0], [0], [1], [0, 0, 1, 1], [], []>} : vector<8x8xf32>, vector<8x512xf32>, vector<8x512xf32> -> vector<8x512xf32>
    %c0_116 = arith.constant 0 : index
    %c32 = arith.constant 32 : index
    %183 = vector.load %arg20[%c0_116, %c32] : memref<8x640xf32, #tpu.memory_space<vmem>>, vector<8x512xf32>
    %184 = vector.extract_strided_slice %175 {offsets = [1, 0], sizes = [1, 512], strides = [1, 1]} : vector<9x512xf32> to vector<1x512xf32>
    %185 = vector.broadcast %184 : vector<1x512xf32> to vector<8x512xf32>
    %186 = arith.mulf %183, %185 : vector<8x512xf32>
    %c1_117 = arith.constant 1 : index
    %c0_118 = arith.constant 0 : index
    %c0_119 = arith.constant 0 : index
    %187 = vector.load %arg7[%c1_117, %c0_118, %c0_119] : memref<9x8x8xf32, #tpu.memory_space<vmem>>, vector<1x8x8xf32>
    %188 = vector.shape_cast %187 : vector<1x8x8xf32> to vector<8x8xf32>
    %cst_120 = arith.constant dense<0.000000e+00> : vector<8x512xf32>
    %189 = tpu.matmul %188, %186, %cst_120 {dimension_numbers = #tpu.dot_dimension_numbers<[1], [0], [0], [1], [0, 0, 1, 1], [], []>} : vector<8x8xf32>, vector<8x512xf32>, vector<8x512xf32> -> vector<8x512xf32>
    %190 = arith.addf %182, %189 : vector<8x512xf32>
    %c0_121 = arith.constant 0 : index
    %c33 = arith.constant 33 : index
    %191 = vector.load %arg20[%c0_121, %c33] : memref<8x640xf32, #tpu.memory_space<vmem>>, vector<8x512xf32>
    %192 = vector.extract_strided_slice %175 {offsets = [2, 0], sizes = [1, 512], strides = [1, 1]} : vector<9x512xf32> to vector<1x512xf32>
    %193 = vector.broadcast %192 : vector<1x512xf32> to vector<8x512xf32>
    %194 = arith.mulf %191, %193 : vector<8x512xf32>
    %c2_122 = arith.constant 2 : index
    %c0_123 = arith.constant 0 : index
    %c0_124 = arith.constant 0 : index
    %195 = vector.load %arg7[%c2_122, %c0_123, %c0_124] : memref<9x8x8xf32, #tpu.memory_space<vmem>>, vector<1x8x8xf32>
    %196 = vector.shape_cast %195 : vector<1x8x8xf32> to vector<8x8xf32>
    %cst_125 = arith.constant dense<0.000000e+00> : vector<8x512xf32>
    %197 = tpu.matmul %196, %194, %cst_125 {dimension_numbers = #tpu.dot_dimension_numbers<[1], [0], [0], [1], [0, 0, 1, 1], [], []>} : vector<8x8xf32>, vector<8x512xf32>, vector<8x512xf32> -> vector<8x512xf32>
    %198 = arith.addf %190, %197 : vector<8x512xf32>
    %c0_126 = arith.constant 0 : index
    %c63 = arith.constant 63 : index
    %199 = vector.load %arg20[%c0_126, %c63] : memref<8x640xf32, #tpu.memory_space<vmem>>, vector<8x512xf32>
    %200 = vector.extract_strided_slice %175 {offsets = [3, 0], sizes = [1, 512], strides = [1, 1]} : vector<9x512xf32> to vector<1x512xf32>
    %201 = vector.broadcast %200 : vector<1x512xf32> to vector<8x512xf32>
    %202 = arith.mulf %199, %201 : vector<8x512xf32>
    %c3 = arith.constant 3 : index
    %c0_127 = arith.constant 0 : index
    %c0_128 = arith.constant 0 : index
    %203 = vector.load %arg7[%c3, %c0_127, %c0_128] : memref<9x8x8xf32, #tpu.memory_space<vmem>>, vector<1x8x8xf32>
    %204 = vector.shape_cast %203 : vector<1x8x8xf32> to vector<8x8xf32>
    %cst_129 = arith.constant dense<0.000000e+00> : vector<8x512xf32>
    %205 = tpu.matmul %204, %202, %cst_129 {dimension_numbers = #tpu.dot_dimension_numbers<[1], [0], [0], [1], [0, 0, 1, 1], [], []>} : vector<8x8xf32>, vector<8x512xf32>, vector<8x512xf32> -> vector<8x512xf32>
    %206 = arith.addf %198, %205 : vector<8x512xf32>
    %c0_130 = arith.constant 0 : index
    %c64_131 = arith.constant 64 : index
    %207 = vector.load %arg20[%c0_130, %c64_131] : memref<8x640xf32, #tpu.memory_space<vmem>>, vector<8x512xf32>
    %c4 = arith.constant 4 : index
    %c0_132 = arith.constant 0 : index
    %c0_133 = arith.constant 0 : index
    %208 = vector.load %arg7[%c4, %c0_132, %c0_133] : memref<9x8x8xf32, #tpu.memory_space<vmem>>, vector<1x8x8xf32>
    %209 = vector.shape_cast %208 : vector<1x8x8xf32> to vector<8x8xf32>
    %cst_134 = arith.constant dense<0.000000e+00> : vector<8x512xf32>
    %210 = tpu.matmul %209, %207, %cst_134 {dimension_numbers = #tpu.dot_dimension_numbers<[1], [0], [0], [1], [0, 0, 1, 1], [], []>} : vector<8x8xf32>, vector<8x512xf32>, vector<8x512xf32> -> vector<8x512xf32>
    %211 = arith.addf %206, %210 : vector<8x512xf32>
    %c0_135 = arith.constant 0 : index
    %c65 = arith.constant 65 : index
    %212 = vector.load %arg20[%c0_135, %c65] : memref<8x640xf32, #tpu.memory_space<vmem>>, vector<8x512xf32>
    %213 = vector.extract_strided_slice %175 {offsets = [5, 0], sizes = [1, 512], strides = [1, 1]} : vector<9x512xf32> to vector<1x512xf32>
    %214 = vector.broadcast %213 : vector<1x512xf32> to vector<8x512xf32>
    %215 = arith.mulf %212, %214 : vector<8x512xf32>
    %c5 = arith.constant 5 : index
    %c0_136 = arith.constant 0 : index
    %c0_137 = arith.constant 0 : index
    %216 = vector.load %arg7[%c5, %c0_136, %c0_137] : memref<9x8x8xf32, #tpu.memory_space<vmem>>, vector<1x8x8xf32>
    %217 = vector.shape_cast %216 : vector<1x8x8xf32> to vector<8x8xf32>
    %cst_138 = arith.constant dense<0.000000e+00> : vector<8x512xf32>
    %218 = tpu.matmul %217, %215, %cst_138 {dimension_numbers = #tpu.dot_dimension_numbers<[1], [0], [0], [1], [0, 0, 1, 1], [], []>} : vector<8x8xf32>, vector<8x512xf32>, vector<8x512xf32> -> vector<8x512xf32>
    %219 = arith.addf %211, %218 : vector<8x512xf32>
    %c0_139 = arith.constant 0 : index
    %c95 = arith.constant 95 : index
    %220 = vector.load %arg20[%c0_139, %c95] : memref<8x640xf32, #tpu.memory_space<vmem>>, vector<8x512xf32>
    %221 = vector.extract_strided_slice %175 {offsets = [6, 0], sizes = [1, 512], strides = [1, 1]} : vector<9x512xf32> to vector<1x512xf32>
    %222 = vector.broadcast %221 : vector<1x512xf32> to vector<8x512xf32>
    %223 = arith.mulf %220, %222 : vector<8x512xf32>
    %c6 = arith.constant 6 : index
    %c0_140 = arith.constant 0 : index
    %c0_141 = arith.constant 0 : index
    %224 = vector.load %arg7[%c6, %c0_140, %c0_141] : memref<9x8x8xf32, #tpu.memory_space<vmem>>, vector<1x8x8xf32>
    %225 = vector.shape_cast %224 : vector<1x8x8xf32> to vector<8x8xf32>
    %cst_142 = arith.constant dense<0.000000e+00> : vector<8x512xf32>
    %226 = tpu.matmul %225, %223, %cst_142 {dimension_numbers = #tpu.dot_dimension_numbers<[1], [0], [0], [1], [0, 0, 1, 1], [], []>} : vector<8x8xf32>, vector<8x512xf32>, vector<8x512xf32> -> vector<8x512xf32>
    %227 = arith.addf %219, %226 : vector<8x512xf32>
    %c0_143 = arith.constant 0 : index
    %c96_144 = arith.constant 96 : index
    %228 = vector.load %arg20[%c0_143, %c96_144] : memref<8x640xf32, #tpu.memory_space<vmem>>, vector<8x512xf32>
    %229 = vector.extract_strided_slice %175 {offsets = [7, 0], sizes = [1, 512], strides = [1, 1]} : vector<9x512xf32> to vector<1x512xf32>
    %230 = vector.broadcast %229 : vector<1x512xf32> to vector<8x512xf32>
    %231 = arith.mulf %228, %230 : vector<8x512xf32>
    %c7 = arith.constant 7 : index
    %c0_145 = arith.constant 0 : index
    %c0_146 = arith.constant 0 : index
    %232 = vector.load %arg7[%c7, %c0_145, %c0_146] : memref<9x8x8xf32, #tpu.memory_space<vmem>>, vector<1x8x8xf32>
    %233 = vector.shape_cast %232 : vector<1x8x8xf32> to vector<8x8xf32>
    %cst_147 = arith.constant dense<0.000000e+00> : vector<8x512xf32>
    %234 = tpu.matmul %233, %231, %cst_147 {dimension_numbers = #tpu.dot_dimension_numbers<[1], [0], [0], [1], [0, 0, 1, 1], [], []>} : vector<8x8xf32>, vector<8x512xf32>, vector<8x512xf32> -> vector<8x512xf32>
    %235 = arith.addf %227, %234 : vector<8x512xf32>
    %c0_148 = arith.constant 0 : index
    %c97 = arith.constant 97 : index
    %236 = vector.load %arg20[%c0_148, %c97] : memref<8x640xf32, #tpu.memory_space<vmem>>, vector<8x512xf32>
    %237 = vector.extract_strided_slice %175 {offsets = [8, 0], sizes = [1, 512], strides = [1, 1]} : vector<9x512xf32> to vector<1x512xf32>
    %238 = vector.broadcast %237 : vector<1x512xf32> to vector<8x512xf32>
    %239 = arith.mulf %236, %238 : vector<8x512xf32>
    %c8 = arith.constant 8 : index
    %c0_149 = arith.constant 0 : index
    %c0_150 = arith.constant 0 : index
    %240 = vector.load %arg7[%c8, %c0_149, %c0_150] : memref<9x8x8xf32, #tpu.memory_space<vmem>>, vector<1x8x8xf32>
    %241 = vector.shape_cast %240 : vector<1x8x8xf32> to vector<8x8xf32>
    %cst_151 = arith.constant dense<0.000000e+00> : vector<8x512xf32>
    %242 = tpu.matmul %241, %239, %cst_151 {dimension_numbers = #tpu.dot_dimension_numbers<[1], [0], [0], [1], [0, 0, 1, 1], [], []>} : vector<8x8xf32>, vector<8x512xf32>, vector<8x512xf32> -> vector<8x512xf32>
    %243 = arith.addf %235, %242 : vector<8x512xf32>
    %c0_152 = arith.constant 0 : index
    %c0_153 = arith.constant 0 : index
    %244 = vector.load %arg8[%c0_152, %c0_153] : memref<8x1xf32, #tpu.memory_space<vmem>>, vector<8x1xf32>
    %245 = vector.broadcast %244 : vector<8x1xf32> to vector<8x512xf32>
    %246 = arith.addf %243, %245 : vector<8x512xf32>
    %cst_154 = arith.constant 0.000000e+00 : f32
    %247 = vector.broadcast %cst_154 : f32 to vector<8x512xf32>
    %248 = arith.maximumf %246, %247 : vector<8x512xf32>
    %c0_155 = arith.constant 0 : index
    %c64_156 = arith.constant 64 : index
    %249 = vector.load %arg20[%c0_155, %c64_156] : memref<8x640xf32, #tpu.memory_space<vmem>>, vector<8x512xf32>
    tpu.vector_store %arg20[%c0_155, %c64_156], %248 {strides = array<i32>} : memref<8x640xf32, #tpu.memory_space<vmem>>, vector<8x512xf32>,
    %c0_157 = arith.constant 0 : index
    %c31_158 = arith.constant 31 : index
    %250 = vector.load %arg20[%c0_157, %c31_158] : memref<8x640xf32, #tpu.memory_space<vmem>>, vector<8x512xf32>
    %251 = vector.extract_strided_slice %175 {offsets = [0, 0], sizes = [1, 512], strides = [1, 1]} : vector<9x512xf32> to vector<1x512xf32>
    %252 = vector.broadcast %251 : vector<1x512xf32> to vector<8x512xf32>
    %253 = arith.mulf %250, %252 : vector<8x512xf32>
    %c0_159 = arith.constant 0 : index
    %c0_160 = arith.constant 0 : index
    %c0_161 = arith.constant 0 : index
    %254 = vector.load %arg9[%c0_159, %c0_160, %c0_161] : memref<9x8x8xf32, #tpu.memory_space<vmem>>, vector<1x8x8xf32>
    %255 = vector.shape_cast %254 : vector<1x8x8xf32> to vector<8x8xf32>
    %cst_162 = arith.constant dense<0.000000e+00> : vector<8x512xf32>
    %256 = tpu.matmul %255, %253, %cst_162 {dimension_numbers = #tpu.dot_dimension_numbers<[1], [0], [0], [1], [0, 0, 1, 1], [], []>} : vector<8x8xf32>, vector<8x512xf32>, vector<8x512xf32> -> vector<8x512xf32>
    %c0_163 = arith.constant 0 : index
    %c32_164 = arith.constant 32 : index
    %257 = vector.load %arg20[%c0_163, %c32_164] : memref<8x640xf32, #tpu.memory_space<vmem>>, vector<8x512xf32>
    %258 = vector.extract_strided_slice %175 {offsets = [1, 0], sizes = [1, 512], strides = [1, 1]} : vector<9x512xf32> to vector<1x512xf32>
    %259 = vector.broadcast %258 : vector<1x512xf32> to vector<8x512xf32>
    %260 = arith.mulf %257, %259 : vector<8x512xf32>
    %c1_165 = arith.constant 1 : index
    %c0_166 = arith.constant 0 : index
    %c0_167 = arith.constant 0 : index
    %261 = vector.load %arg9[%c1_165, %c0_166, %c0_167] : memref<9x8x8xf32, #tpu.memory_space<vmem>>, vector<1x8x8xf32>
    %262 = vector.shape_cast %261 : vector<1x8x8xf32> to vector<8x8xf32>
    %cst_168 = arith.constant dense<0.000000e+00> : vector<8x512xf32>
    %263 = tpu.matmul %262, %260, %cst_168 {dimension_numbers = #tpu.dot_dimension_numbers<[1], [0], [0], [1], [0, 0, 1, 1], [], []>} : vector<8x8xf32>, vector<8x512xf32>, vector<8x512xf32> -> vector<8x512xf32>
    %264 = arith.addf %256, %263 : vector<8x512xf32>
    %c0_169 = arith.constant 0 : index
    %c33_170 = arith.constant 33 : index
    %265 = vector.load %arg20[%c0_169, %c33_170] : memref<8x640xf32, #tpu.memory_space<vmem>>, vector<8x512xf32>
    %266 = vector.extract_strided_slice %175 {offsets = [2, 0], sizes = [1, 512], strides = [1, 1]} : vector<9x512xf32> to vector<1x512xf32>
    %267 = vector.broadcast %266 : vector<1x512xf32> to vector<8x512xf32>
    %268 = arith.mulf %265, %267 : vector<8x512xf32>
    %c2_171 = arith.constant 2 : index
    %c0_172 = arith.constant 0 : index
    %c0_173 = arith.constant 0 : index
    %269 = vector.load %arg9[%c2_171, %c0_172, %c0_173] : memref<9x8x8xf32, #tpu.memory_space<vmem>>, vector<1x8x8xf32>
    %270 = vector.shape_cast %269 : vector<1x8x8xf32> to vector<8x8xf32>
    %cst_174 = arith.constant dense<0.000000e+00> : vector<8x512xf32>
    %271 = tpu.matmul %270, %268, %cst_174 {dimension_numbers = #tpu.dot_dimension_numbers<[1], [0], [0], [1], [0, 0, 1, 1], [], []>} : vector<8x8xf32>, vector<8x512xf32>, vector<8x512xf32> -> vector<8x512xf32>
    %272 = arith.addf %264, %271 : vector<8x512xf32>
    %c0_175 = arith.constant 0 : index
    %c63_176 = arith.constant 63 : index
    %273 = vector.load %arg20[%c0_175, %c63_176] : memref<8x640xf32, #tpu.memory_space<vmem>>, vector<8x512xf32>
    %274 = vector.extract_strided_slice %175 {offsets = [3, 0], sizes = [1, 512], strides = [1, 1]} : vector<9x512xf32> to vector<1x512xf32>
    %275 = vector.broadcast %274 : vector<1x512xf32> to vector<8x512xf32>
    %276 = arith.mulf %273, %275 : vector<8x512xf32>
    %c3_177 = arith.constant 3 : index
    %c0_178 = arith.constant 0 : index
    %c0_179 = arith.constant 0 : index
    %277 = vector.load %arg9[%c3_177, %c0_178, %c0_179] : memref<9x8x8xf32, #tpu.memory_space<vmem>>, vector<1x8x8xf32>
    %278 = vector.shape_cast %277 : vector<1x8x8xf32> to vector<8x8xf32>
    %cst_180 = arith.constant dense<0.000000e+00> : vector<8x512xf32>
    %279 = tpu.matmul %278, %276, %cst_180 {dimension_numbers = #tpu.dot_dimension_numbers<[1], [0], [0], [1], [0, 0, 1, 1], [], []>} : vector<8x8xf32>, vector<8x512xf32>, vector<8x512xf32> -> vector<8x512xf32>
    %280 = arith.addf %272, %279 : vector<8x512xf32>
    %c0_181 = arith.constant 0 : index
    %c64_182 = arith.constant 64 : index
    %281 = vector.load %arg20[%c0_181, %c64_182] : memref<8x640xf32, #tpu.memory_space<vmem>>, vector<8x512xf32>
    %c4_183 = arith.constant 4 : index
    %c0_184 = arith.constant 0 : index
    %c0_185 = arith.constant 0 : index
    %282 = vector.load %arg9[%c4_183, %c0_184, %c0_185] : memref<9x8x8xf32, #tpu.memory_space<vmem>>, vector<1x8x8xf32>
    %283 = vector.shape_cast %282 : vector<1x8x8xf32> to vector<8x8xf32>
    %cst_186 = arith.constant dense<0.000000e+00> : vector<8x512xf32>
    %284 = tpu.matmul %283, %281, %cst_186 {dimension_numbers = #tpu.dot_dimension_numbers<[1], [0], [0], [1], [0, 0, 1, 1], [], []>} : vector<8x8xf32>, vector<8x512xf32>, vector<8x512xf32> -> vector<8x512xf32>
    %285 = arith.addf %280, %284 : vector<8x512xf32>
    %c0_187 = arith.constant 0 : index
    %c65_188 = arith.constant 65 : index
    %286 = vector.load %arg20[%c0_187, %c65_188] : memref<8x640xf32, #tpu.memory_space<vmem>>, vector<8x512xf32>
    %287 = vector.extract_strided_slice %175 {offsets = [5, 0], sizes = [1, 512], strides = [1, 1]} : vector<9x512xf32> to vector<1x512xf32>
    %288 = vector.broadcast %287 : vector<1x512xf32> to vector<8x512xf32>
    %289 = arith.mulf %286, %288 : vector<8x512xf32>
    %c5_189 = arith.constant 5 : index
    %c0_190 = arith.constant 0 : index
    %c0_191 = arith.constant 0 : index
    %290 = vector.load %arg9[%c5_189, %c0_190, %c0_191] : memref<9x8x8xf32, #tpu.memory_space<vmem>>, vector<1x8x8xf32>
    %291 = vector.shape_cast %290 : vector<1x8x8xf32> to vector<8x8xf32>
    %cst_192 = arith.constant dense<0.000000e+00> : vector<8x512xf32>
    %292 = tpu.matmul %291, %289, %cst_192 {dimension_numbers = #tpu.dot_dimension_numbers<[1], [0], [0], [1], [0, 0, 1, 1], [], []>} : vector<8x8xf32>, vector<8x512xf32>, vector<8x512xf32> -> vector<8x512xf32>
    %293 = arith.addf %285, %292 : vector<8x512xf32>
    %c0_193 = arith.constant 0 : index
    %c95_194 = arith.constant 95 : index
    %294 = vector.load %arg20[%c0_193, %c95_194] : memref<8x640xf32, #tpu.memory_space<vmem>>, vector<8x512xf32>
    %295 = vector.extract_strided_slice %175 {offsets = [6, 0], sizes = [1, 512], strides = [1, 1]} : vector<9x512xf32> to vector<1x512xf32>
    %296 = vector.broadcast %295 : vector<1x512xf32> to vector<8x512xf32>
    %297 = arith.mulf %294, %296 : vector<8x512xf32>
    %c6_195 = arith.constant 6 : index
    %c0_196 = arith.constant 0 : index
    %c0_197 = arith.constant 0 : index
    %298 = vector.load %arg9[%c6_195, %c0_196, %c0_197] : memref<9x8x8xf32, #tpu.memory_space<vmem>>, vector<1x8x8xf32>
    %299 = vector.shape_cast %298 : vector<1x8x8xf32> to vector<8x8xf32>
    %cst_198 = arith.constant dense<0.000000e+00> : vector<8x512xf32>
    %300 = tpu.matmul %299, %297, %cst_198 {dimension_numbers = #tpu.dot_dimension_numbers<[1], [0], [0], [1], [0, 0, 1, 1], [], []>} : vector<8x8xf32>, vector<8x512xf32>, vector<8x512xf32> -> vector<8x512xf32>
    %301 = arith.addf %293, %300 : vector<8x512xf32>
    %c0_199 = arith.constant 0 : index
    %c96_200 = arith.constant 96 : index
    %302 = vector.load %arg20[%c0_199, %c96_200] : memref<8x640xf32, #tpu.memory_space<vmem>>, vector<8x512xf32>
    %303 = vector.extract_strided_slice %175 {offsets = [7, 0], sizes = [1, 512], strides = [1, 1]} : vector<9x512xf32> to vector<1x512xf32>
    %304 = vector.broadcast %303 : vector<1x512xf32> to vector<8x512xf32>
    %305 = arith.mulf %302, %304 : vector<8x512xf32>
    %c7_201 = arith.constant 7 : index
    %c0_202 = arith.constant 0 : index
    %c0_203 = arith.constant 0 : index
    %306 = vector.load %arg9[%c7_201, %c0_202, %c0_203] : memref<9x8x8xf32, #tpu.memory_space<vmem>>, vector<1x8x8xf32>
    %307 = vector.shape_cast %306 : vector<1x8x8xf32> to vector<8x8xf32>
    %cst_204 = arith.constant dense<0.000000e+00> : vector<8x512xf32>
    %308 = tpu.matmul %307, %305, %cst_204 {dimension_numbers = #tpu.dot_dimension_numbers<[1], [0], [0], [1], [0, 0, 1, 1], [], []>} : vector<8x8xf32>, vector<8x512xf32>, vector<8x512xf32> -> vector<8x512xf32>
    %309 = arith.addf %301, %308 : vector<8x512xf32>
    %c0_205 = arith.constant 0 : index
    %c97_206 = arith.constant 97 : index
    %310 = vector.load %arg20[%c0_205, %c97_206] : memref<8x640xf32, #tpu.memory_space<vmem>>, vector<8x512xf32>
    %311 = vector.extract_strided_slice %175 {offsets = [8, 0], sizes = [1, 512], strides = [1, 1]} : vector<9x512xf32> to vector<1x512xf32>
    %312 = vector.broadcast %311 : vector<1x512xf32> to vector<8x512xf32>
    %313 = arith.mulf %310, %312 : vector<8x512xf32>
    %c8_207 = arith.constant 8 : index
    %c0_208 = arith.constant 0 : index
    %c0_209 = arith.constant 0 : index
    %314 = vector.load %arg9[%c8_207, %c0_208, %c0_209] : memref<9x8x8xf32, #tpu.memory_space<vmem>>, vector<1x8x8xf32>
    %315 = vector.shape_cast %314 : vector<1x8x8xf32> to vector<8x8xf32>
    %cst_210 = arith.constant dense<0.000000e+00> : vector<8x512xf32>
    %316 = tpu.matmul %315, %313, %cst_210 {dimension_numbers = #tpu.dot_dimension_numbers<[1], [0], [0], [1], [0, 0, 1, 1], [], []>} : vector<8x8xf32>, vector<8x512xf32>, vector<8x512xf32> -> vector<8x512xf32>
    %317 = arith.addf %309, %316 : vector<8x512xf32>
    %c0_211 = arith.constant 0 : index
    %c0_212 = arith.constant 0 : index
    %318 = vector.load %arg10[%c0_211, %c0_212] : memref<8x1xf32, #tpu.memory_space<vmem>>, vector<8x1xf32>
    %319 = vector.broadcast %318 : vector<8x1xf32> to vector<8x512xf32>
    %320 = arith.addf %317, %319 : vector<8x512xf32>
    %cst_213 = arith.constant 0.000000e+00 : f32
    %321 = vector.broadcast %cst_213 : f32 to vector<8x512xf32>
    %322 = arith.maximumf %320, %321 : vector<8x512xf32>
    %c0_214 = arith.constant 0 : index
    %c64_215 = arith.constant 64 : index
    %323 = vector.load %arg20[%c0_214, %c64_215] : memref<8x640xf32, #tpu.memory_space<vmem>>, vector<8x512xf32>
    tpu.vector_store %arg20[%c0_214, %c64_215], %322 {strides = array<i32>} : memref<8x640xf32, #tpu.memory_space<vmem>>, vector<8x512xf32>,
    %c0_216 = arith.constant 0 : index
    %c31_217 = arith.constant 31 : index
    %324 = vector.load %arg20[%c0_216, %c31_217] : memref<8x640xf32, #tpu.memory_space<vmem>>, vector<8x512xf32>
    %325 = vector.extract_strided_slice %175 {offsets = [0, 0], sizes = [1, 512], strides = [1, 1]} : vector<9x512xf32> to vector<1x512xf32>
    %326 = vector.broadcast %325 : vector<1x512xf32> to vector<8x512xf32>
    %327 = arith.mulf %324, %326 : vector<8x512xf32>
    %c0_218 = arith.constant 0 : index
    %c0_219 = arith.constant 0 : index
    %c0_220 = arith.constant 0 : index
    %328 = vector.load %arg11[%c0_218, %c0_219, %c0_220] : memref<9x8x8xf32, #tpu.memory_space<vmem>>, vector<1x8x8xf32>
    %329 = vector.shape_cast %328 : vector<1x8x8xf32> to vector<8x8xf32>
    %cst_221 = arith.constant dense<0.000000e+00> : vector<8x512xf32>
    %330 = tpu.matmul %329, %327, %cst_221 {dimension_numbers = #tpu.dot_dimension_numbers<[1], [0], [0], [1], [0, 0, 1, 1], [], []>} : vector<8x8xf32>, vector<8x512xf32>, vector<8x512xf32> -> vector<8x512xf32>
    %c0_222 = arith.constant 0 : index
    %c32_223 = arith.constant 32 : index
    %331 = vector.load %arg20[%c0_222, %c32_223] : memref<8x640xf32, #tpu.memory_space<vmem>>, vector<8x512xf32>
    %332 = vector.extract_strided_slice %175 {offsets = [1, 0], sizes = [1, 512], strides = [1, 1]} : vector<9x512xf32> to vector<1x512xf32>
    %333 = vector.broadcast %332 : vector<1x512xf32> to vector<8x512xf32>
    %334 = arith.mulf %331, %333 : vector<8x512xf32>
    %c1_224 = arith.constant 1 : index
    %c0_225 = arith.constant 0 : index
    %c0_226 = arith.constant 0 : index
    %335 = vector.load %arg11[%c1_224, %c0_225, %c0_226] : memref<9x8x8xf32, #tpu.memory_space<vmem>>, vector<1x8x8xf32>
    %336 = vector.shape_cast %335 : vector<1x8x8xf32> to vector<8x8xf32>
    %cst_227 = arith.constant dense<0.000000e+00> : vector<8x512xf32>
    %337 = tpu.matmul %336, %334, %cst_227 {dimension_numbers = #tpu.dot_dimension_numbers<[1], [0], [0], [1], [0, 0, 1, 1], [], []>} : vector<8x8xf32>, vector<8x512xf32>, vector<8x512xf32> -> vector<8x512xf32>
    %338 = arith.addf %330, %337 : vector<8x512xf32>
    %c0_228 = arith.constant 0 : index
    %c33_229 = arith.constant 33 : index
    %339 = vector.load %arg20[%c0_228, %c33_229] : memref<8x640xf32, #tpu.memory_space<vmem>>, vector<8x512xf32>
    %340 = vector.extract_strided_slice %175 {offsets = [2, 0], sizes = [1, 512], strides = [1, 1]} : vector<9x512xf32> to vector<1x512xf32>
    %341 = vector.broadcast %340 : vector<1x512xf32> to vector<8x512xf32>
    %342 = arith.mulf %339, %341 : vector<8x512xf32>
    %c2_230 = arith.constant 2 : index
    %c0_231 = arith.constant 0 : index
    %c0_232 = arith.constant 0 : index
    %343 = vector.load %arg11[%c2_230, %c0_231, %c0_232] : memref<9x8x8xf32, #tpu.memory_space<vmem>>, vector<1x8x8xf32>
    %344 = vector.shape_cast %343 : vector<1x8x8xf32> to vector<8x8xf32>
    %cst_233 = arith.constant dense<0.000000e+00> : vector<8x512xf32>
    %345 = tpu.matmul %344, %342, %cst_233 {dimension_numbers = #tpu.dot_dimension_numbers<[1], [0], [0], [1], [0, 0, 1, 1], [], []>} : vector<8x8xf32>, vector<8x512xf32>, vector<8x512xf32> -> vector<8x512xf32>
    %346 = arith.addf %338, %345 : vector<8x512xf32>
    %c0_234 = arith.constant 0 : index
    %c63_235 = arith.constant 63 : index
    %347 = vector.load %arg20[%c0_234, %c63_235] : memref<8x640xf32, #tpu.memory_space<vmem>>, vector<8x512xf32>
    %348 = vector.extract_strided_slice %175 {offsets = [3, 0], sizes = [1, 512], strides = [1, 1]} : vector<9x512xf32> to vector<1x512xf32>
    %349 = vector.broadcast %348 : vector<1x512xf32> to vector<8x512xf32>
    %350 = arith.mulf %347, %349 : vector<8x512xf32>
    %c3_236 = arith.constant 3 : index
    %c0_237 = arith.constant 0 : index
    %c0_238 = arith.constant 0 : index
    %351 = vector.load %arg11[%c3_236, %c0_237, %c0_238] : memref<9x8x8xf32, #tpu.memory_space<vmem>>, vector<1x8x8xf32>
    %352 = vector.shape_cast %351 : vector<1x8x8xf32> to vector<8x8xf32>
    %cst_239 = arith.constant dense<0.000000e+00> : vector<8x512xf32>
    %353 = tpu.matmul %352, %350, %cst_239 {dimension_numbers = #tpu.dot_dimension_numbers<[1], [0], [0], [1], [0, 0, 1, 1], [], []>} : vector<8x8xf32>, vector<8x512xf32>, vector<8x512xf32> -> vector<8x512xf32>
    %354 = arith.addf %346, %353 : vector<8x512xf32>
    %c0_240 = arith.constant 0 : index
    %c64_241 = arith.constant 64 : index
    %355 = vector.load %arg20[%c0_240, %c64_241] : memref<8x640xf32, #tpu.memory_space<vmem>>, vector<8x512xf32>
    %c4_242 = arith.constant 4 : index
    %c0_243 = arith.constant 0 : index
    %c0_244 = arith.constant 0 : index
    %356 = vector.load %arg11[%c4_242, %c0_243, %c0_244] : memref<9x8x8xf32, #tpu.memory_space<vmem>>, vector<1x8x8xf32>
    %357 = vector.shape_cast %356 : vector<1x8x8xf32> to vector<8x8xf32>
    %cst_245 = arith.constant dense<0.000000e+00> : vector<8x512xf32>
    %358 = tpu.matmul %357, %355, %cst_245 {dimension_numbers = #tpu.dot_dimension_numbers<[1], [0], [0], [1], [0, 0, 1, 1], [], []>} : vector<8x8xf32>, vector<8x512xf32>, vector<8x512xf32> -> vector<8x512xf32>
    %359 = arith.addf %354, %358 : vector<8x512xf32>
    %c0_246 = arith.constant 0 : index
    %c65_247 = arith.constant 65 : index
    %360 = vector.load %arg20[%c0_246, %c65_247] : memref<8x640xf32, #tpu.memory_space<vmem>>, vector<8x512xf32>
    %361 = vector.extract_strided_slice %175 {offsets = [5, 0], sizes = [1, 512], strides = [1, 1]} : vector<9x512xf32> to vector<1x512xf32>
    %362 = vector.broadcast %361 : vector<1x512xf32> to vector<8x512xf32>
    %363 = arith.mulf %360, %362 : vector<8x512xf32>
    %c5_248 = arith.constant 5 : index
    %c0_249 = arith.constant 0 : index
    %c0_250 = arith.constant 0 : index
    %364 = vector.load %arg11[%c5_248, %c0_249, %c0_250] : memref<9x8x8xf32, #tpu.memory_space<vmem>>, vector<1x8x8xf32>
    %365 = vector.shape_cast %364 : vector<1x8x8xf32> to vector<8x8xf32>
    %cst_251 = arith.constant dense<0.000000e+00> : vector<8x512xf32>
    %366 = tpu.matmul %365, %363, %cst_251 {dimension_numbers = #tpu.dot_dimension_numbers<[1], [0], [0], [1], [0, 0, 1, 1], [], []>} : vector<8x8xf32>, vector<8x512xf32>, vector<8x512xf32> -> vector<8x512xf32>
    %367 = arith.addf %359, %366 : vector<8x512xf32>
    %c0_252 = arith.constant 0 : index
    %c95_253 = arith.constant 95 : index
    %368 = vector.load %arg20[%c0_252, %c95_253] : memref<8x640xf32, #tpu.memory_space<vmem>>, vector<8x512xf32>
    %369 = vector.extract_strided_slice %175 {offsets = [6, 0], sizes = [1, 512], strides = [1, 1]} : vector<9x512xf32> to vector<1x512xf32>
    %370 = vector.broadcast %369 : vector<1x512xf32> to vector<8x512xf32>
    %371 = arith.mulf %368, %370 : vector<8x512xf32>
    %c6_254 = arith.constant 6 : index
    %c0_255 = arith.constant 0 : index
    %c0_256 = arith.constant 0 : index
    %372 = vector.load %arg11[%c6_254, %c0_255, %c0_256] : memref<9x8x8xf32, #tpu.memory_space<vmem>>, vector<1x8x8xf32>
    %373 = vector.shape_cast %372 : vector<1x8x8xf32> to vector<8x8xf32>
    %cst_257 = arith.constant dense<0.000000e+00> : vector<8x512xf32>
    %374 = tpu.matmul %373, %371, %cst_257 {dimension_numbers = #tpu.dot_dimension_numbers<[1], [0], [0], [1], [0, 0, 1, 1], [], []>} : vector<8x8xf32>, vector<8x512xf32>, vector<8x512xf32> -> vector<8x512xf32>
    %375 = arith.addf %367, %374 : vector<8x512xf32>
    %c0_258 = arith.constant 0 : index
    %c96_259 = arith.constant 96 : index
    %376 = vector.load %arg20[%c0_258, %c96_259] : memref<8x640xf32, #tpu.memory_space<vmem>>, vector<8x512xf32>
    %377 = vector.extract_strided_slice %175 {offsets = [7, 0], sizes = [1, 512], strides = [1, 1]} : vector<9x512xf32> to vector<1x512xf32>
    %378 = vector.broadcast %377 : vector<1x512xf32> to vector<8x512xf32>
    %379 = arith.mulf %376, %378 : vector<8x512xf32>
    %c7_260 = arith.constant 7 : index
    %c0_261 = arith.constant 0 : index
    %c0_262 = arith.constant 0 : index
    %380 = vector.load %arg11[%c7_260, %c0_261, %c0_262] : memref<9x8x8xf32, #tpu.memory_space<vmem>>, vector<1x8x8xf32>
    %381 = vector.shape_cast %380 : vector<1x8x8xf32> to vector<8x8xf32>
    %cst_263 = arith.constant dense<0.000000e+00> : vector<8x512xf32>
    %382 = tpu.matmul %381, %379, %cst_263 {dimension_numbers = #tpu.dot_dimension_numbers<[1], [0], [0], [1], [0, 0, 1, 1], [], []>} : vector<8x8xf32>, vector<8x512xf32>, vector<8x512xf32> -> vector<8x512xf32>
    %383 = arith.addf %375, %382 : vector<8x512xf32>
    %c0_264 = arith.constant 0 : index
    %c97_265 = arith.constant 97 : index
    %384 = vector.load %arg20[%c0_264, %c97_265] : memref<8x640xf32, #tpu.memory_space<vmem>>, vector<8x512xf32>
    %385 = vector.extract_strided_slice %175 {offsets = [8, 0], sizes = [1, 512], strides = [1, 1]} : vector<9x512xf32> to vector<1x512xf32>
    %386 = vector.broadcast %385 : vector<1x512xf32> to vector<8x512xf32>
    %387 = arith.mulf %384, %386 : vector<8x512xf32>
    %c8_266 = arith.constant 8 : index
    %c0_267 = arith.constant 0 : index
    %c0_268 = arith.constant 0 : index
    %388 = vector.load %arg11[%c8_266, %c0_267, %c0_268] : memref<9x8x8xf32, #tpu.memory_space<vmem>>, vector<1x8x8xf32>
    %389 = vector.shape_cast %388 : vector<1x8x8xf32> to vector<8x8xf32>
    %cst_269 = arith.constant dense<0.000000e+00> : vector<8x512xf32>
    %390 = tpu.matmul %389, %387, %cst_269 {dimension_numbers = #tpu.dot_dimension_numbers<[1], [0], [0], [1], [0, 0, 1, 1], [], []>} : vector<8x8xf32>, vector<8x512xf32>, vector<8x512xf32> -> vector<8x512xf32>
    %391 = arith.addf %383, %390 : vector<8x512xf32>
    %c0_270 = arith.constant 0 : index
    %c0_271 = arith.constant 0 : index
    %392 = vector.load %arg12[%c0_270, %c0_271] : memref<8x1xf32, #tpu.memory_space<vmem>>, vector<8x1xf32>
    %393 = vector.broadcast %392 : vector<8x1xf32> to vector<8x512xf32>
    %394 = arith.addf %391, %393 : vector<8x512xf32>
    %395 = arith.addf %394, %248 : vector<8x512xf32>
    %cst_272 = arith.constant 0.000000e+00 : f32
    %396 = vector.broadcast %cst_272 : f32 to vector<8x512xf32>
    %397 = arith.maximumf %395, %396 : vector<8x512xf32>
    %c0_273 = arith.constant 0 : index
    %c0_274 = arith.constant 0 : index
    %398 = vector.load %arg14[%c0_273, %c0_274] : memref<2x512xf32, #tpu.memory_space<vmem>>, vector<2x512xf32>
    %cst_275 = arith.constant dense<0.000000e+00> : vector<2x8xf32>
    %399 = tpu.matmul %398, %397, %cst_275 {dimension_numbers = #tpu.dot_dimension_numbers<[1], [1], [0], [0], [0, 0, 1, 0], [], []>} : vector<2x512xf32>, vector<8x512xf32>, vector<2x8xf32> -> vector<2x8xf32>
    %c0_276 = arith.constant 0 : index
    %c0_277 = arith.constant 0 : index
    %400 = vector.load %arg15[%c0_276, %c0_277] : memref<8x16xf32, #tpu.memory_space<vmem>>, vector<8x16xf32>
    %cst_278 = arith.constant dense<0.000000e+00> : vector<2x16xf32>
    %401 = tpu.matmul %399, %400, %cst_278 {dimension_numbers = #tpu.dot_dimension_numbers<[1], [0], [0], [1], [0, 0, 1, 1], [], []>} : vector<2x8xf32>, vector<8x16xf32>, vector<2x16xf32> -> vector<2x16xf32>
    %c0_279 = arith.constant 0 : index
    %c0_280 = arith.constant 0 : index
    %402 = vector.load %arg16[%c0_279, %c0_280] : memref<1x16xf32, #tpu.memory_space<vmem>>, vector<1x16xf32>
    %403 = vector.broadcast %402 : vector<1x16xf32> to vector<2x16xf32>
    %404 = arith.addf %401, %403 : vector<2x16xf32>
    %c0_281 = arith.constant 0 : index
    %c0_282 = arith.constant 0 : index
    %405 = vector.load %arg17[%c0_281, %c0_282] : memref<16x4xf32, #tpu.memory_space<vmem>>, vector<16x4xf32>
    %cst_283 = arith.constant dense<0.000000e+00> : vector<2x4xf32>
    %406 = tpu.matmul %404, %405, %cst_283 {dimension_numbers = #tpu.dot_dimension_numbers<[1], [0], [0], [1], [0, 0, 1, 1], [], []>} : vector<2x16xf32>, vector<16x4xf32>, vector<2x4xf32> -> vector<2x4xf32>
    %c0_284 = arith.constant 0 : index
    %c0_285 = arith.constant 0 : index
    %407 = vector.load %arg18[%c0_284, %c0_285] : memref<1x4xf32, #tpu.memory_space<vmem>>, vector<1x4xf32>
    %408 = vector.broadcast %407 : vector<1x4xf32> to vector<2x4xf32>
    %409 = arith.addf %406, %408 : vector<2x4xf32>
    %c0_286 = arith.constant 0 : index
    %c0_287 = arith.constant 0 : index
    %410 = vector.load %arg19[%c0_286, %c0_287] : memref<2x4xf32, #tpu.memory_space<vmem>>, vector<2x4xf32>
    tpu.vector_store %arg19[%c0_286, %c0_287], %409 {strides = array<i32>} : memref<2x4xf32, #tpu.memory_space<vmem>>, vector<2x4xf32>,
    return
  }
}

</mosaic_0001>

<llo_original>
// kernel: word_resnet_forward.1
$region0: #{word_resnet_forward.1}
  #allocation0 [shape = 'u32[]', space=smem, size = 0x4, offset = 0x4, fixed_abs, tag = 'smem constant byte address 0x4 - core index']
  #allocation1 [shape = 'u32[144,128]{1,0:T(1,128)}', space=vmem, size = 0x12000, scoped, tag = 'internal scratch']
  #allocation2 [shape = 'f32[8,640]{1,0:T(8,128)}', space=vmem, size = 0x5000, scoped, tag = 'scratch operand']
  %s0 = inlined_call_operand.vmem [shape: s32[16,1], index: 0, kind: input, shape index: {}]
  %s1 = inlined_call_operand.vmem [shape: f32[128,32], index: 1, kind: input, shape index: {}]
  %s2 = inlined_call_operand.vmem [shape: f32[16,32], index: 2, kind: input, shape index: {}]
  %s3 = inlined_call_operand.vmem [shape: f32[16,32], index: 3, kind: input, shape index: {}]
  %s4 = inlined_call_operand.vmem [shape: f32[16,1], index: 4, kind: input, shape index: {}]
  %s5 = inlined_call_operand.vmem [shape: f32[1,32], index: 5, kind: input, shape index: {}]
  %s6 = inlined_call_operand.vmem [shape: f32[1,32], index: 6, kind: input, shape index: {}]
  %s7 = inlined_call_operand.vmem [shape: f32[9,8,8], index: 7, kind: input, shape index: {}]
  %s8 = inlined_call_operand.vmem [shape: f32[8,1], index: 8, kind: input, shape index: {}]
  %s9 = inlined_call_operand.vmem [shape: f32[9,8,8], index: 9, kind: input, shape index: {}]
  %s10 = inlined_call_operand.vmem [shape: f32[8,1], index: 10, kind: input, shape index: {}]
  %s11 = inlined_call_operand.vmem [shape: f32[9,8,8], index: 11, kind: input, shape index: {}]
  %s12 = inlined_call_operand.vmem [shape: f32[8,1], index: 12, kind: input, shape index: {}]
  %s13 = inlined_call_operand.vmem [shape: f32[9,512], index: 13, kind: input, shape index: {}]
  %s14 = inlined_call_operand.vmem [shape: f32[2,512], index: 14, kind: input, shape index: {}]
  %s15 = inlined_call_operand.vmem [shape: f32[8,16], index: 15, kind: input, shape index: {}]
  %s16 = inlined_call_operand.vmem [shape: f32[1,16], index: 16, kind: input, shape index: {}]
  %s17 = inlined_call_operand.vmem [shape: f32[16,4], index: 17, kind: input, shape index: {}]
  %s18 = inlined_call_operand.vmem [shape: f32[1,4], index: 18, kind: input, shape index: {}]
  %s19 = inlined_call_operand.hbm [shape: f32[2,4], index: 19, kind: output, shape index: {}]
  %s20 = sld [smem:[#allocation0]]
  $region86: #{word_resnet_forward.1} parent=0
    _
  %s22 = ssub.s32 1, %s20
  %s23 = scalar_select 0, %s22, %s20
  $region1: #{word_resnet_forward.1} parent=0
    #allocation3 [shape = 'u8[1024]{0}', space=vmem, size = 0x400, scoped, tag = 'output window, operand 0, single buffered']
    #allocation4 [shape = 's32[1]{0}', space=sflag, size = 0x4, scoped, tag = 'scoped memory for word_resnet_forward.1']
    %24 = vsyncpa [#allocation4], 0
    // Predicated region
    $region2: #{word_resnet_forward.1} parent=1 // pred_check
      _
    $region3: #{word_resnet_forward.1} parent=1 // pred_check_branch
      %26 = sbr.rel (0) target = $region5
    $region4: #{word_resnet_forward.1} parent=1 // pred_region
      _
    $region5: #{word_resnet_forward.1} parent=1 // pred_fallthru
      _
    // Predicated region
    $region6: #{word_resnet_forward.1} parent=1 // pred_check
      _
    $region7: #{word_resnet_forward.1} parent=1 // pred_check_branch
      %28 = sbr.rel (0) target = $region9
    $region8: #{word_resnet_forward.1} parent=1 // pred_region
      _
    $region9: #{word_resnet_forward.1} parent=1 // pred_fallthru
      _
    // Predicated region
    $region10: #{word_resnet_forward.1} parent=1 // pred_check
      _
    $region11: #{word_resnet_forward.1} parent=1 // pred_check_branch
      %30 = sbr.rel (0) target = $region13
    $region12: #{word_resnet_forward.1} parent=1 // pred_region
      _
    $region13: #{word_resnet_forward.1} parent=1 // pred_fallthru
      _
    // Predicated region
    $region14: #{word_resnet_forward.1} parent=1 // pred_check
      _
    $region15: #{word_resnet_forward.1} parent=1 // pred_check_branch
      %32 = sbr.rel (0) target = $region17
    $region16: #{word_resnet_forward.1} parent=1 // pred_region
      _
    $region17: #{word_resnet_forward.1} parent=1 // pred_fallthru
      _
    // Predicated region
    $region18: #{word_resnet_forward.1} parent=1 // pred_check
      _
    $region19: #{word_resnet_forward.1} parent=1 // pred_check_branch
      %34 = sbr.rel (0) target = $region21
    $region20: #{word_resnet_forward.1} parent=1 // pred_region
      _
    $region21: #{word_resnet_forward.1} parent=1 // pred_fallthru
      _
    // Predicated region
    $region22: #{word_resnet_forward.1} parent=1 // pred_check
      _
    $region23: #{word_resnet_forward.1} parent=1 // pred_check_branch
      %36 = sbr.rel (0) target = $region25
    $region24: #{word_resnet_forward.1} parent=1 // pred_region
      _
    $region25: #{word_resnet_forward.1} parent=1 // pred_fallthru
      _
    // Predicated region
    $region26: #{word_resnet_forward.1} parent=1 // pred_check
      _
    $region27: #{word_resnet_forward.1} parent=1 // pred_check_branch
      %38 = sbr.rel (0) target = $region29
    $region28: #{word_resnet_forward.1} parent=1 // pred_region
      _
    $region29: #{word_resnet_forward.1} parent=1 // pred_fallthru
      _
    // Predicated region
    $region30: #{word_resnet_forward.1} parent=1 // pred_check
      _
    $region31: #{word_resnet_forward.1} parent=1 // pred_check_branch
      %40 = sbr.rel (0) target = $region33
    $region32: #{word_resnet_forward.1} parent=1 // pred_region
      _
    $region33: #{word_resnet_forward.1} parent=1 // pred_fallthru
      _
    // Predicated region
    $region34: #{word_resnet_forward.1} parent=1 // pred_check
      _
    $region35: #{word_resnet_forward.1} parent=1 // pred_check_branch
      %42 = sbr.rel (0) target = $region37
    $region36: #{word_resnet_forward.1} parent=1 // pred_region
      _
    $region37: #{word_resnet_forward.1} parent=1 // pred_fallthru
      _
    // Predicated region
    $region38: #{word_resnet_forward.1} parent=1 // pred_check
      _
    $region39: #{word_resnet_forward.1} parent=1 // pred_check_branch
      %44 = sbr.rel (0) target = $region41
    $region40: #{word_resnet_forward.1} parent=1 // pred_region
      _
    $region41: #{word_resnet_forward.1} parent=1 // pred_fallthru
      _
    // Predicated region
    $region42: #{word_resnet_forward.1} parent=1 // pred_check
      _
    $region43: #{word_resnet_forward.1} parent=1 // pred_check_branch
      %46 = sbr.rel (0) target = $region45
    $region44: #{word_resnet_forward.1} parent=1 // pred_region
      _
    $region45: #{word_resnet_forward.1} parent=1 // pred_fallthru
      _
    // Predicated region
    $region46: #{word_resnet_forward.1} parent=1 // pred_check
      _
    $region47: #{word_resnet_forward.1} parent=1 // pred_check_branch
      %48 = sbr.rel (0) target = $region49
    $region48: #{word_resnet_forward.1} parent=1 // pred_region
      _
    $region49: #{word_resnet_forward.1} parent=1 // pred_fallthru
      _
    // Predicated region
    $region50: #{word_resnet_forward.1} parent=1 // pred_check
      _
    $region51: #{word_resnet_forward.1} parent=1 // pred_check_branch
      %50 = sbr.rel (0) target = $region53
    $region52: #{word_resnet_forward.1} parent=1 // pred_region
      _
    $region53: #{word_resnet_forward.1} parent=1 // pred_fallthru
      _
    // Predicated region
    $region54: #{word_resnet_forward.1} parent=1 // pred_check
      _
    $region55: #{word_resnet_forward.1} parent=1 // pred_check_branch
      %52 = sbr.rel (0) target = $region57
    $region56: #{word_resnet_forward.1} parent=1 // pred_region
      _
    $region57: #{word_resnet_forward.1} parent=1 // pred_fallthru
      _
    // Predicated region
    $region58: #{word_resnet_forward.1} parent=1 // pred_check
      _
    $region59: #{word_resnet_forward.1} parent=1 // pred_check_branch
      %54 = sbr.rel (0) target = $region61
    $region60: #{word_resnet_forward.1} parent=1 // pred_region
      _
    $region61: #{word_resnet_forward.1} parent=1 // pred_fallthru
      _
    // Predicated region
    $region62: #{word_resnet_forward.1} parent=1 // pred_check
      _
    $region63: #{word_resnet_forward.1} parent=1 // pred_check_branch
      %56 = sbr.rel (0) target = $region65
    $region64: #{word_resnet_forward.1} parent=1 // pred_region
      _
    $region65: #{word_resnet_forward.1} parent=1 // pred_fallthru
      _
    // Predicated region
    $region66: #{word_resnet_forward.1} parent=1 // pred_check
      _
    $region67: #{word_resnet_forward.1} parent=1 // pred_check_branch
      %58 = sbr.rel (0) target = $region69
    $region68: #{word_resnet_forward.1} parent=1 // pred_region
      _
    $region69: #{word_resnet_forward.1} parent=1 // pred_fallthru
      _
    // Predicated region
    $region70: #{word_resnet_forward.1} parent=1 // pred_check
      _
    $region71: #{word_resnet_forward.1} parent=1 // pred_check_branch
      %60 = sbr.rel (0) target = $region73
    $region72: #{word_resnet_forward.1} parent=1 // pred_region
      _
    $region73: #{word_resnet_forward.1} parent=1 // pred_fallthru
      _
    // Predicated region
    $region74: #{word_resnet_forward.1} parent=1 // pred_check
      _
    $region75: #{word_resnet_forward.1} parent=1 // pred_check_branch
      %62 = sbr.rel (0) target = $region77
    $region76: #{word_resnet_forward.1} parent=1 // pred_region
      _
    $region77: #{word_resnet_forward.1} parent=1 // pred_fallthru
      _
    %63 = vst [vmem:[#allocation2] sm:$0xff] 0.0
    %64 = vst [vmem:[#allocation2 + $0x8] sm:$0xff] 0.0
    %65 = vst [vmem:[#allocation2 + $0x10] sm:$0xff] 0.0
    %66 = vst [vmem:[#allocation2 + $0x18] sm:$0xff] 0.0
    %67 = vst [vmem:[#allocation2 + $0x20] sm:$0xff] 0.0
    %v68 = vld [vmem:[%s0] sm:$0xff]
    %v69 = vld [vmem:[%s0 + $0x8] sm:$0xff]
    %v70 = vlaneseq
    %v71 = vand.u32 %v70, 127
    %72 = vset.pattern.permute.xlu0 0
    %73 = vperm.xlu0 %72, %v68
    %v74 = vpop.permute.xlu0 %73
    %75 = vset.pattern.permute.xlu0 0
    %76 = vperm.xlu0 %75, %v69
    %v77 = vpop.permute.xlu0 %76
    %vm78 = vcmp.eq.s32.totalorder %v71, %v74
    %vm79 = vcmp.eq.s32.totalorder %v71, %v77
    %v80 = vsel %vm78, 1, 0
    %v81 = vsel %vm79, 1, 0
    %v82 = vcvt.s32.f32 %v80
    %v83 = vcvt.s32.f32 %v81
    %v84 = vld [vmem:[%s1] sm:$0xff]
    %v85 = vld [vmem:[%s1 + $0x8] sm:$0xff]
    %v86 = vld [vmem:[%s1 + $0x10] sm:$0xff]
    %v87 = vld [vmem:[%s1 + $0x18] sm:$0xff]
    %v88 = vld [vmem:[%s1 + $0x20] sm:$0xff]
    %v89 = vld [vmem:[%s1 + $0x28] sm:$0xff]
    %v90 = vld [vmem:[%s1 + $0x30] sm:$0xff]
    %v91 = vld [vmem:[%s1 + $0x38] sm:$0xff]
    %v92 = vld [vmem:[%s1 + $0x40] sm:$0xff]
    %v93 = vld [vmem:[%s1 + $0x48] sm:$0xff]
    %v94 = vld [vmem:[%s1 + $0x50] sm:$0xff]
    %v95 = vld [vmem:[%s1 + $0x58] sm:$0xff]
    %v96 = vld [vmem:[%s1 + $0x60] sm:$0xff]
    %v97 = vld [vmem:[%s1 + $0x68] sm:$0xff]
    %v98 = vld [vmem:[%s1 + $0x70] sm:$0xff]
    %v99 = vld [vmem:[%s1 + $0x78] sm:$0xff]
    %100 = vmatprep.subr.mxu0 0.0
    %101 = vmatpush1.msra.mxu0 %v84
    %102 = vmatprep.subr.mxu0 0.0
    %103 = vmatpush1.msra.mxu0 %v85
    %104 = vmatprep.subr.mxu0 0.0
    %105 = vmatpush1.msra.mxu0 %v86
    %106 = vmatprep.subr.mxu0 0.0
    %107 = vmatpush1.msra.mxu0 %v87
    %108 = vmatprep.subr.mxu0 0.0
    %109 = vmatpush1.msra.mxu0 %v88
    %110 = vmatprep.subr.mxu0 0.0
    %111 = vmatpush1.msra.mxu0 %v89
    %112 = vmatprep.subr.mxu0 0.0
    %113 = vmatpush1.msra.mxu0 %v90
    %114 = vmatprep.subr.mxu0 0.0
    %115 = vmatpush1.msra.mxu0 %v91
    %116 = vmatprep.subr.mxu0 0.0
    %117 = vmatpush1.msra.mxu0 %v92
    %118 = vmatprep.subr.mxu0 0.0
    %119 = vmatpush1.msra.mxu0 %v93
    %120 = vmatprep.subr.mxu0 0.0
    %121 = vmatpush1.msra.mxu0 %v94
    %122 = vmatprep.subr.mxu0 0.0
    %123 = vmatpush1.msra.mxu0 %v95
    %124 = vmatprep.subr.mxu0 0.0
    %125 = vmatpush1.msra.mxu0 %v96
    %126 = vmatprep.subr.mxu0 0.0
    %127 = vmatpush1.msra.mxu0 %v97
    %128 = vmatprep.subr.mxu0 0.0
    %129 = vmatpush1.msra.mxu0 %v98
    %130 = vmatprep.subr.mxu0 0.0
    %131 = vmatpush1.msra.mxu0 %v99
    %132 = vmatprep.subr.mxu0 0.0
    %133 = vmatpush1.msra.mxu0 0.0
    %134 = vmatprep.subr.mxu0 0.0
    %135 = vmatpush1.msra.mxu0 0.0
    %136 = vmatprep.subr.mxu0 0.0
    %137 = vmatpush1.msra.mxu0 0.0
    %138 = vmatprep.subr.mxu0 0.0
    %139 = vmatpush1.msra.mxu0 0.0
    %140 = vmatprep.subr.mxu0 0.0
    %141 = vmatpush1.msra.mxu0 0.0
    %142 = vmatprep.subr.mxu0 0.0
    %143 = vmatpush1.msra.mxu0 0.0
    %144 = vmatprep.subr.mxu0 0.0
    %145 = vmatpush1.msra.mxu0 0.0
    %146 = vmatprep.subr.mxu0 0.0
    %147 = vmatpush1.msra.mxu0 0.0
    %148 = vmatprep.subr.mxu0 0.0
    %149 = vmatpush1.msra.mxu0 0.0
    %150 = vmatprep.subr.mxu0 0.0
    %151 = vmatpush1.msra.mxu0 0.0
    %152 = vmatprep.subr.mxu0 0.0
    %153 = vmatpush1.msra.mxu0 0.0
    %154 = vmatprep.subr.mxu0 0.0
    %155 = vmatpush1.msra.mxu0 0.0
    %156 = vmatprep.subr.mxu0 0.0
    %157 = vmatpush1.msra.mxu0 0.0
    %158 = vmatprep.subr.mxu0 0.0
    %159 = vmatpush1.msra.mxu0 0.0
    %160 = vmatprep.subr.mxu0 0.0
    %161 = vmatpush1.msra.mxu0 0.0
    %162 = vmatprep.subr.mxu0 0.0
    %163 = vmatpush1.msra.mxu0 0.0
    %164 = vmatprep.mubr.f32.mxu0 0.0
    %165 = vmatmul.mubr.f32.gmra.mrb[0].mxu0 %v82
    %v166 = vpop.f32.mrb[0].mxu0
    %v167 = vadd.f32 0.0, %v166
    %v168 = vpop.f32.mrb[0].mxu0
    %169 = vmatprep.mubr.f32.mxu0 0.0
    %170 = vmatmul.mubr.f32.gmra.mrb[0].mxu0 %v83
    %v171 = vpop.f32.mrb[0].mxu0
    %v172 = vadd.f32 0.0, %v171
    %v173 = vpop.f32.mrb[0].mxu0
    %174 = vdwg.mxu0
    %v175 = vld [vmem:[%s5] sm:$0x1]
    %v176 = vld [vmem:[%s6] sm:$0x1]
    %v177 = vld [vmem:[%s2] sm:$0xff]
    %v178 = vld [vmem:[%s2 + $0x8] sm:$0xff]
    %v179 = vadd.f32 %v167, %v177
    %v180 = vadd.f32 %v172, %v178
    %vm181 = vcmask 261120
    %v182 = vsel %vm181, %v179, 0.0
    %183 = vadd.xlane.f32.xlu0 %v182
    %v184 = vpop.xlane.xlu0 %183
    %v185 = vsel %vm181, %v180, 0.0
    %186 = vadd.xlane.f32.xlu0 %v185
    %v187 = vpop.xlane.xlu0 %186
    %v188 = vrcp.pop 32.0
    %v189 = vmul.f32 %v184, %v188
    %v190 = vmul.f32 %v187, %v188
    %v191 = vsub.f32 %v179, %v189
    %v192 = vsub.f32 %v180, %v190
    %v193 = vmul.f32 %v191, %v191
    %v194 = vmul.f32 %v192, %v192
    %v195 = vsel %vm181, %v193, 0.0
    %196 = vadd.xlane.f32.xlu0 %v195
    %v197 = vpop.xlane.xlu0 %196
    %v198 = vsel %vm181, %v194, 0.0
    %199 = vadd.xlane.f32.xlu0 %v198
    %v200 = vpop.xlane.xlu0 %199
    %v201 = vmul.f32 %v197, %v188
    %v202 = vmul.f32 %v200, %v188
    %v203 = vadd.f32 %v201, 1e-12
    %v204 = vadd.f32 %v202, 1e-12
    %v205 = vrsqrt.pop %v203
    %v206 = vrsqrt.pop %v204
    %v207 = vmul.f32 %v191, %v205
    %v208 = vmul.f32 %v192, %v206
    %v210 = vlaneseq
    %v211 = vshrl.u32 %v210, 7
    %v212 = vsub.s32 0, %v211
    %v213 = vrot.slane %v175, %v212
    %v215 = vmul.f32 %v207, %v213
    %v216 = vmul.f32 %v208, %v213
    %v218 = vlaneseq
    %v219 = vshrl.u32 %v218, 7
    %v220 = vsub.s32 0, %v219
    %v221 = vrot.slane %v176, %v220
    %v223 = vadd.f32 %v215, %v221
    %v224 = vadd.f32 %v216, %v221
    %v225 = vld [vmem:[%s4] sm:$0xff]
    %v226 = vld [vmem:[%s4 + $0x8] sm:$0xff]
    %228 = vset.pattern.permute.xlu0 0
    %229 = vperm.xlu0 %228, %v225
    %v230 = vpop.permute.xlu0 %229
    %233 = vset.pattern.permute.xlu0 0
    %234 = vperm.xlu0 %233, %v226
    %v235 = vpop.permute.xlu0 %234
    %v237 = vmul.f32 %v167, %v230
    %v238 = vmul.f32 %v172, %v235
    %v239 = vsel %vm181, %v237, 0.0
    %240 = vadd.xlane.f32.xlu0 %v239
    %v241 = vpop.xlane.xlu0 %240
    %v242 = vsel %vm181, %v238, 0.0
    %243 = vadd.xlane.f32.xlu0 %v242
    %v244 = vpop.xlane.xlu0 %243
    %v245 = vmul.f32 %v241, %v188
    %v246 = vmul.f32 %v244, %v188
    %v247 = vsub.f32 %v237, %v245
    %v248 = vsub.f32 %v238, %v246
    %v249 = vmul.f32 %v247, %v247
    %v250 = vmul.f32 %v248, %v248
    %v251 = vsel %vm181, %v249, 0.0
    %252 = vadd.xlane.f32.xlu0 %v251
    %v253 = vpop.xlane.xlu0 %252
    %v254 = vsel %vm181, %v250, 0.0
    %255 = vadd.xlane.f32.xlu0 %v254
    %v256 = vpop.xlane.xlu0 %255
    %v257 = vmul.f32 %v253, %v188
    %v258 = vmul.f32 %v256, %v188
    %v259 = vadd.f32 %v257, 1e-12
    %v260 = vadd.f32 %v258, 1e-12
    %v261 = vrsqrt.pop %v259
    %v262 = vrsqrt.pop %v260
    %v263 = vmul.f32 %v247, %v261
    %v264 = vmul.f32 %v248, %v262
    %v265 = vmul.f32 %v263, %v213
    %v266 = vmul.f32 %v264, %v213
    %v267 = vadd.f32 %v265, %v221
    %v268 = vadd.f32 %v266, %v221
    %v269 = vld [vmem:[%s3] sm:$0xff]
    %v270 = vld [vmem:[%s3 + $0x8] sm:$0xff]
    %v271 = vadd.f32 %v167, %v269
    %v272 = vadd.f32 %v172, %v270
    %v273 = vsel %vm181, %v271, 0.0
    %274 = vadd.xlane.f32.xlu0 %v273
    %v275 = vpop.xlane.xlu0 %274
    %v276 = vsel %vm181, %v272, 0.0
    %277 = vadd.xlane.f32.xlu0 %v276
    %v278 = vpop.xlane.xlu0 %277
    %v279 = vmul.f32 %v275, %v188
    %v280 = vmul.f32 %v278, %v188
    %v281 = vsub.f32 %v271, %v279
    %v282 = vsub.f32 %v272, %v280
    %v283 = vmul.f32 %v281, %v281
    %v284 = vmul.f32 %v282, %v282
    %v285 = vsel %vm181, %v283, 0.0
    %286 = vadd.xlane.f32.xlu0 %v285
    %v287 = vpop.xlane.xlu0 %286
    %v288 = vsel %vm181, %v284, 0.0
    %289 = vadd.xlane.f32.xlu0 %v288
    %v290 = vpop.xlane.xlu0 %289
    %v291 = vmul.f32 %v287, %v188
    %v292 = vmul.f32 %v290, %v188
    %v293 = vadd.f32 %v291, 1e-12
    %v294 = vadd.f32 %v292, 1e-12
    %v295 = vrsqrt.pop %v293
    %v296 = vrsqrt.pop %v294
    %v297 = vmul.f32 %v281, %v295
    %v298 = vmul.f32 %v282, %v296
    %v299 = vmul.f32 %v297, %v213
    %v300 = vmul.f32 %v298, %v213
    %v301 = vadd.f32 %v299, %v221
    %v302 = vadd.f32 %v300, %v221
    %304 = vrot.lane.b32.xlu0 %v223, 64
    %v305 = vpop.permute.xlu0 %304
    %vm307 = vcmask 778752
    %308 = vst.msk [vmem:[#allocation2] sm:$0x1] %vm307, %v305
    %v309 = vrot.slane %v223, 1
    %310 = vrot.lane.b32.xlu0 %v309, 96
    %v311 = vpop.permute.xlu0 %310
    %vm313 = vcmask 1041152
    %314 = vst.msk [vmem:[#allocation2] sm:$0x1] %vm313, %v311
    %v315 = vrot.slane %v223, 2
    %vm317 = vcmask 253952
    %318 = vst.msk [vmem:[#allocation2 + $0x8] sm:$0x1] %vm317, %v315
    %v319 = vrot.slane %v223, 3
    %320 = vrot.lane.b32.xlu0 %v319, 32
    %v321 = vpop.permute.xlu0 %320
    %vm323 = vcmask 516352
    %324 = vst.msk [vmem:[#allocation2 + $0x8] sm:$0x1] %vm323, %v321
    %v325 = vrot.slane %v223, 4
    %326 = vrot.lane.b32.xlu0 %v325, 64
    %v327 = vpop.permute.xlu0 %326
    %329 = vst.msk [vmem:[#allocation2 + $0x8] sm:$0x1] %vm307, %v327
    %v330 = vrot.slane %v223, 5
    %331 = vrot.lane.b32.xlu0 %v330, 96
    %v332 = vpop.permute.xlu0 %331
    %334 = vst.msk [vmem:[#allocation2 + $0x8] sm:$0x1] %vm313, %v332
    %v335 = vrot.slane %v223, 6
    %337 = vst.msk [vmem:[#allocation2 + $0x10] sm:$0x1] %vm317, %v335
    %v338 = vrot.slane %v223, 7
    %339 = vrot.lane.b32.xlu0 %v338, 32
    %v340 = vpop.permute.xlu0 %339
    %342 = vst.msk [vmem:[#allocation2 + $0x10] sm:$0x1] %vm323, %v340
    %344 = vrot.lane.b32.xlu0 %v224, 64
    %v345 = vpop.permute.xlu0 %344
    %347 = vst.msk [vmem:[#allocation2 + $0x10] sm:$0x1] %vm307, %v345
    %v348 = vrot.slane %v224, 1
    %349 = vrot.lane.b32.xlu0 %v348, 96
    %v350 = vpop.permute.xlu0 %349
    %352 = vst.msk [vmem:[#allocation2 + $0x10] sm:$0x1] %vm313, %v350
    %v353 = vrot.slane %v224, 2
    %355 = vst.msk [vmem:[#allocation2 + $0x18] sm:$0x1] %vm317, %v353
    %v356 = vrot.slane %v224, 3
    %357 = vrot.lane.b32.xlu0 %v356, 32
    %v358 = vpop.permute.xlu0 %357
    %360 = vst.msk [vmem:[#allocation2 + $0x18] sm:$0x1] %vm323, %v358
    %v361 = vrot.slane %v224, 4
    %362 = vrot.lane.b32.xlu0 %v361, 64
    %v363 = vpop.permute.xlu0 %362
    %365 = vst.msk [vmem:[#allocation2 + $0x18] sm:$0x1] %vm307, %v363
    %v366 = vrot.slane %v224, 5
    %367 = vrot.lane.b32.xlu0 %v366, 96
    %v368 = vpop.permute.xlu0 %367
    %370 = vst.msk [vmem:[#allocation2 + $0x18] sm:$0x1] %vm313, %v368
    %v371 = vrot.slane %v224, 6
    %373 = vst.msk [vmem:[#allocation2 + $0x20] sm:$0x1] %vm317, %v371
    %v374 = vrot.slane %v224, 7
    %375 = vrot.lane.b32.xlu0 %v374, 32
    %v376 = vpop.permute.xlu0 %375
    %378 = vst.msk [vmem:[#allocation2 + $0x20] sm:$0x1] %vm323, %v376
    %380 = vrot.lane.b32.xlu0 %v267, 64
    %v381 = vpop.permute.xlu0 %380
    %383 = vst.msk [vmem:[#allocation2 + $0x1] sm:$0x1] %vm307, %v381
    %v384 = vrot.slane %v267, 1
    %385 = vrot.lane.b32.xlu0 %v384, 96
    %v386 = vpop.permute.xlu0 %385
    %388 = vst.msk [vmem:[#allocation2 + $0x1] sm:$0x1] %vm313, %v386
    %v389 = vrot.slane %v267, 2
    %391 = vst.msk [vmem:[#allocation2 + $0x9] sm:$0x1] %vm317, %v389
    %v392 = vrot.slane %v267, 3
    %393 = vrot.lane.b32.xlu0 %v392, 32
    %v394 = vpop.permute.xlu0 %393
    %396 = vst.msk [vmem:[#allocation2 + $0x9] sm:$0x1] %vm323, %v394
    %v397 = vrot.slane %v267, 4
    %398 = vrot.lane.b32.xlu0 %v397, 64
    %v399 = vpop.permute.xlu0 %398
    %401 = vst.msk [vmem:[#allocation2 + $0x9] sm:$0x1] %vm307, %v399
    %v402 = vrot.slane %v267, 5
    %403 = vrot.lane.b32.xlu0 %v402, 96
    %v404 = vpop.permute.xlu0 %403
    %406 = vst.msk [vmem:[#allocation2 + $0x9] sm:$0x1] %vm313, %v404
    %v407 = vrot.slane %v267, 6
    %409 = vst.msk [vmem:[#allocation2 + $0x11] sm:$0x1] %vm317, %v407
    %v410 = vrot.slane %v267, 7
    %411 = vrot.lane.b32.xlu0 %v410, 32
    %v412 = vpop.permute.xlu0 %411
    %414 = vst.msk [vmem:[#allocation2 + $0x11] sm:$0x1] %vm323, %v412
    %416 = vrot.lane.b32.xlu0 %v268, 64
    %v417 = vpop.permute.xlu0 %416
    %419 = vst.msk [vmem:[#allocation2 + $0x11] sm:$0x1] %vm307, %v417
    %v420 = vrot.slane %v268, 1
    %421 = vrot.lane.b32.xlu0 %v420, 96
    %v422 = vpop.permute.xlu0 %421
    %424 = vst.msk [vmem:[#allocation2 + $0x11] sm:$0x1] %vm313, %v422
    %v425 = vrot.slane %v268, 2
    %427 = vst.msk [vmem:[#allocation2 + $0x19] sm:$0x1] %vm317, %v425
    %v428 = vrot.slane %v268, 3
    %429 = vrot.lane.b32.xlu0 %v428, 32
    %v430 = vpop.permute.xlu0 %429
    %432 = vst.msk [vmem:[#allocation2 + $0x19] sm:$0x1] %vm323, %v430
    %v433 = vrot.slane %v268, 4
    %434 = vrot.lane.b32.xlu0 %v433, 64
    %v435 = vpop.permute.xlu0 %434
    %437 = vst.msk [vmem:[#allocation2 + $0x19] sm:$0x1] %vm307, %v435
    %v438 = vrot.slane %v268, 5
    %439 = vrot.lane.b32.xlu0 %v438, 96
    %v440 = vpop.permute.xlu0 %439
    %442 = vst.msk [vmem:[#allocation2 + $0x19] sm:$0x1] %vm313, %v440
    %v443 = vrot.slane %v268, 6
    %445 = vst.msk [vmem:[#allocation2 + $0x21] sm:$0x1] %vm317, %v443
    %v446 = vrot.slane %v268, 7
    %447 = vrot.lane.b32.xlu0 %v446, 32
    %v448 = vpop.permute.xlu0 %447
    %450 = vst.msk [vmem:[#allocation2 + $0x21] sm:$0x1] %vm323, %v448
    %452 = vrot.lane.b32.xlu0 %v301, 64
    %v453 = vpop.permute.xlu0 %452
    %455 = vst.msk [vmem:[#allocation2 + $0x2] sm:$0x1] %vm307, %v453
    %v456 = vrot.slane %v301, 1
    %457 = vrot.lane.b32.xlu0 %v456, 96
    %v458 = vpop.permute.xlu0 %457
    %460 = vst.msk [vmem:[#allocation2 + $0x2] sm:$0x1] %vm313, %v458
    %v461 = vrot.slane %v301, 2
    %463 = vst.msk [vmem:[#allocation2 + $0xa] sm:$0x1] %vm317, %v461
    %v464 = vrot.slane %v301, 3
    %465 = vrot.lane.b32.xlu0 %v464, 32
    %v466 = vpop.permute.xlu0 %465
    %468 = vst.msk [vmem:[#allocation2 + $0xa] sm:$0x1] %vm323, %v466
    %v469 = vrot.slane %v301, 4
    %470 = vrot.lane.b32.xlu0 %v469, 64
    %v471 = vpop.permute.xlu0 %470
    %473 = vst.msk [vmem:[#allocation2 + $0xa] sm:$0x1] %vm307, %v471
    %v474 = vrot.slane %v301, 5
    %475 = vrot.lane.b32.xlu0 %v474, 96
    %v476 = vpop.permute.xlu0 %475
    %478 = vst.msk [vmem:[#allocation2 + $0xa] sm:$0x1] %vm313, %v476
    %v479 = vrot.slane %v301, 6
    %481 = vst.msk [vmem:[#allocation2 + $0x12] sm:$0x1] %vm317, %v479
    %v482 = vrot.slane %v301, 7
    %483 = vrot.lane.b32.xlu0 %v482, 32
    %v484 = vpop.permute.xlu0 %483
    %486 = vst.msk [vmem:[#allocation2 + $0x12] sm:$0x1] %vm323, %v484
    %488 = vrot.lane.b32.xlu0 %v302, 64
    %v489 = vpop.permute.xlu0 %488
    %491 = vst.msk [vmem:[#allocation2 + $0x12] sm:$0x1] %vm307, %v489
    %v492 = vrot.slane %v302, 1
    %493 = vrot.lane.b32.xlu0 %v492, 96
    %v494 = vpop.permute.xlu0 %493
    %496 = vst.msk [vmem:[#allocation2 + $0x12] sm:$0x1] %vm313, %v494
    %v497 = vrot.slane %v302, 2
    %499 = vst.msk [vmem:[#allocation2 + $0x1a] sm:$0x1] %vm317, %v497
    %v500 = vrot.slane %v302, 3
    %501 = vrot.lane.b32.xlu0 %v500, 32
    %v502 = vpop.permute.xlu0 %501
    %504 = vst.msk [vmem:[#allocation2 + $0x1a] sm:$0x1] %vm323, %v502
    %v505 = vrot.slane %v302, 4
    %506 = vrot.lane.b32.xlu0 %v505, 64
    %v507 = vpop.permute.xlu0 %506
    %509 = vst.msk [vmem:[#allocation2 + $0x1a] sm:$0x1] %vm307, %v507
    %v510 = vrot.slane %v302, 5
    %511 = vrot.lane.b32.xlu0 %v510, 96
    %v512 = vpop.permute.xlu0 %511
    %514 = vst.msk [vmem:[#allocation2 + $0x1a] sm:$0x1] %vm313, %v512
    %v515 = vrot.slane %v302, 6
    %517 = vst.msk [vmem:[#allocation2 + $0x22] sm:$0x1] %vm317, %v515
    %v518 = vrot.slane %v302, 7
    %519 = vrot.lane.b32.xlu0 %v518, 32
    %v520 = vpop.permute.xlu0 %519
    %522 = vst.msk [vmem:[#allocation2 + $0x22] sm:$0x1] %vm323, %v520
    %v523 = vld [vmem:[%s13] sm:$0xff]
    %v524 = vld [vmem:[%s13 + $0x8] sm:$0xff]
    %v525 = vld [vmem:[%s13 + $0x10] sm:$0xff]
    %v526 = vld [vmem:[%s13 + $0x18] sm:$0xff]
    %v527 = vld [vmem:[%s13 + $0x20] sm:$0x1]
    %v528 = vld [vmem:[%s13 + $0x28] sm:$0x1]
    %v529 = vld [vmem:[%s13 + $0x30] sm:$0x1]
    %v530 = vld [vmem:[%s13 + $0x38] sm:$0x1]
    %v531 = vld [vmem:[#allocation2] sm:$0xff]
    %v532 = vld [vmem:[#allocation2 + $0x8] sm:$0xff]
    %v533 = vld [vmem:[#allocation2 + $0x10] sm:$0xff]
    %v534 = vld [vmem:[#allocation2 + $0x18] sm:$0xff]
    %v535 = vld [vmem:[#allocation2 + $0x20] sm:$0xff]
    %v536 = vlaneseq
    %v537 = vshrl.u32 %v536, 7
    %v538 = vsub.s32 0, %v537
    %v539 = vrot.slane %v523, %v538
    %v540 = vlaneseq
    %v541 = vshrl.u32 %v540, 7
    %v542 = vsub.s32 0, %v541
    %v543 = vrot.slane %v524, %v542
    %v544 = vlaneseq
    %v545 = vshrl.u32 %v544, 7
    %v546 = vsub.s32 0, %v545
    %v547 = vrot.slane %v525, %v546
    %v548 = vlaneseq
    %v549 = vshrl.u32 %v548, 7
    %v550 = vsub.s32 0, %v549
    %v551 = vrot.slane %v526, %v550
    %556 = vrot.lane.b32.xlu0 %v539, 31
    %v557 = vpop.permute.xlu0 %556
    %558 = vrot.lane.b32.xlu0 %v543, 31
    %v559 = vpop.permute.xlu0 %558
    %560 = vrot.lane.b32.xlu0 %v547, 31
    %v561 = vpop.permute.xlu0 %560
    %562 = vrot.lane.b32.xlu0 %v551, 31
    %v563 = vpop.permute.xlu0 %562
    %vm564 = vcmask 252928
    %v565 = vsel %vm564, %v557, %v559
    %v566 = vsel %vm564, %v559, %v561
    %v567 = vsel %vm564, %v561, %v563
    %v573 = vmul.f32 %v531, %v557
    %v574 = vmul.f32 %v532, %v565
    %v575 = vmul.f32 %v533, %v566
    %v576 = vmul.f32 %v534, %v567
    %v577 = vmul.f32 %v535, %v563
    %v578 = vld [vmem:[%s7] sm:$0xff]
    %v579 = vlaneseq
    %v580 = vshrl.u32 %v579, 7
    %v581 = vsub.s32 1, %v580
    %v582 = vrot.slane %v523, %v581
    %v583 = vlaneseq
    %v584 = vshrl.u32 %v583, 7
    %v585 = vsub.s32 1, %v584
    %v586 = vrot.slane %v524, %v585
    %v587 = vlaneseq
    %v588 = vshrl.u32 %v587, 7
    %v589 = vsub.s32 1, %v588
    %v590 = vrot.slane %v525, %v589
    %v591 = vlaneseq
    %v592 = vshrl.u32 %v591, 7
    %v593 = vsub.s32 1, %v592
    %v594 = vrot.slane %v526, %v593
    %599 = vrot.lane.b32.xlu0 %v582, 32
    %v600 = vpop.permute.xlu0 %599
    %601 = vrot.lane.b32.xlu0 %v586, 32
    %v602 = vpop.permute.xlu0 %601
    %603 = vrot.lane.b32.xlu0 %v590, 32
    %v604 = vpop.permute.xlu0 %603
    %605 = vrot.lane.b32.xlu0 %v594, 32
    %v606 = vpop.permute.xlu0 %605
    %v607 = vsel %vm181, %v600, %v602
    %v608 = vsel %vm181, %v602, %v604
    %v609 = vsel %vm181, %v604, %v606
    %v615 = vmul.f32 %v531, %v600
    %v616 = vmul.f32 %v532, %v607
    %v617 = vmul.f32 %v533, %v608
    %v618 = vmul.f32 %v534, %v609
    %v619 = vmul.f32 %v535, %v606
    %s620 = scalar_lea.vmem %s7, 8
    %v621 = vld [vmem:[%s620] sm:$0xff]
    %627 = vrot.lane.b32.xlu0 %v615, 96
    %v628 = vpop.permute.xlu0 %627
    %629 = vrot.lane.b32.xlu0 %v616, 96
    %v630 = vpop.permute.xlu0 %629
    %631 = vrot.lane.b32.xlu0 %v617, 96
    %v632 = vpop.permute.xlu0 %631
    %633 = vrot.lane.b32.xlu0 %v618, 96
    %v634 = vpop.permute.xlu0 %633
    %635 = vrot.lane.b32.xlu0 %v619, 96
    %v636 = vpop.permute.xlu0 %635
    %vm637 = vcmask 785408
    %v638 = vsel %vm637, %v628, %v630
    %v639 = vsel %vm637, %v630, %v632
    %v640 = vsel %vm637, %v632, %v634
    %v641 = vsel %vm637, %v634, %v636
    %vm646 = vcmask 64512
    %v648 = vsel %vm646, %v621, 0
    %650 = vmatprep.subr.mxu0 %v639
    %651 = vmatpush1.msra.mxu0 %v638
    %652 = vmatprep.subr.mxu0 0.0
    %653 = vmatpush1.msra.mxu0 0.0
    %654 = vmatprep.subr.mxu0 0.0
    %655 = vmatpush1.msra.mxu0 0.0
    %656 = vmatprep.subr.mxu0 0.0
    %657 = vmatpush1.msra.mxu0 0.0
    %658 = vmatprep.subr.mxu0 0.0
    %659 = vmatpush1.msra.mxu0 0.0
    %660 = vmatprep.subr.mxu0 0.0
    %661 = vmatpush1.msra.mxu0 0.0
    %662 = vmatprep.subr.mxu0 0.0
    %663 = vmatpush1.msra.mxu0 0.0
    %664 = vmatprep.subr.mxu0 0.0
    %665 = vmatpush1.msra.mxu0 0.0
    %666 = vmatprep.subr.mxu0 0.0
    %667 = vmatpush1.msra.mxu0 0.0
    %668 = vmatprep.subr.mxu0 0.0
    %669 = vmatpush1.msra.mxu0 0.0
    %670 = vmatprep.subr.mxu0 0.0
    %671 = vmatpush1.msra.mxu0 0.0
    %672 = vmatprep.subr.mxu0 0.0
    %673 = vmatpush1.msra.mxu0 0.0
    %674 = vmatprep.subr.mxu0 0.0
    %675 = vmatpush1.msra.mxu0 0.0
    %676 = vmatprep.subr.mxu0 0.0
    %677 = vmatpush1.msra.mxu0 0.0
    %678 = vmatprep.subr.mxu0 0.0
    %679 = vmatpush1.msra.mxu0 0.0
    %680 = vmatprep.subr.mxu0 0.0
    %681 = vmatpush1.msra.mxu0 0.0
    %682 = vmatprep.subr.mxu0 0.0
    %683 = vmatpush1.msra.mxu0 0.0
    %684 = vmatprep.subr.mxu0 0.0
    %685 = vmatpush1.msra.mxu0 0.0
    %686 = vmatprep.subr.mxu0 0.0
    %687 = vmatpush1.msra.mxu0 0.0
    %688 = vmatprep.subr.mxu0 0.0
    %689 = vmatpush1.msra.mxu0 0.0
    %690 = vmatprep.subr.mxu0 0.0
    %691 = vmatpush1.msra.mxu0 0.0
    %692 = vmatprep.subr.mxu0 0.0
    %693 = vmatpush1.msra.mxu0 0.0
    %694 = vmatprep.subr.mxu0 0.0
    %695 = vmatpush1.msra.mxu0 0.0
    %696 = vmatprep.subr.mxu0 0.0
    %697 = vmatpush1.msra.mxu0 0.0
    %698 = vmatprep.subr.mxu0 0.0
    %699 = vmatpush1.msra.mxu0 0.0
    %700 = vmatprep.subr.mxu0 0.0
    %701 = vmatpush1.msra.mxu0 0.0
    %702 = vmatprep.subr.mxu0 0.0
    %703 = vmatpush1.msra.mxu0 0.0
    %704 = vmatprep.subr.mxu0 0.0
    %705 = vmatpush1.msra.mxu0 0.0
    %706 = vmatprep.subr.mxu0 0.0
    %707 = vmatpush1.msra.mxu0 0.0
    %708 = vmatprep.subr.mxu0 0.0
    %709 = vmatpush1.msra.mxu0 0.0
    %710 = vmatprep.subr.mxu0 0.0
    %711 = vmatpush1.msra.mxu0 0.0
    %712 = vmatprep.subr.mxu0 0.0
    %713 = vmatpush1.msra.mxu0 0.0
    %714 = vmatprep.mubr.f32.mxu0 0.0
    %715 = vmatmul.mubr.f32.gmra.mrb[0].mxu0 %v648
    %v716 = vpop.f32.mrb[0].mxu0
    %v717 = vadd.f32 0.0, %v716
    %v718 = vpop.f32.mrb[0].mxu0
    %v719 = vadd.f32 0.0, %v718
    %720 = vdwg.mxu0
    %721 = vmatprep.subr.mxu0 %v641
    %722 = vmatpush1.msra.mxu0 %v640
    %723 = vmatprep.subr.mxu0 0.0
    %724 = vmatpush1.msra.mxu0 0.0
    %725 = vmatprep.subr.mxu0 0.0
    %726 = vmatpush1.msra.mxu0 0.0
    %727 = vmatprep.subr.mxu0 0.0
    %728 = vmatpush1.msra.mxu0 0.0
    %729 = vmatprep.subr.mxu0 0.0
    %730 = vmatpush1.msra.mxu0 0.0
    %731 = vmatprep.subr.mxu0 0.0
    %732 = vmatpush1.msra.mxu0 0.0
    %733 = vmatprep.subr.mxu0 0.0
    %734 = vmatpush1.msra.mxu0 0.0
    %735 = vmatprep.subr.mxu0 0.0
    %736 = vmatpush1.msra.mxu0 0.0
    %737 = vmatprep.subr.mxu0 0.0
    %738 = vmatpush1.msra.mxu0 0.0
    %739 = vmatprep.subr.mxu0 0.0
    %740 = vmatpush1.msra.mxu0 0.0
    %741 = vmatprep.subr.mxu0 0.0
    %742 = vmatpush1.msra.mxu0 0.0
    %743 = vmatprep.subr.mxu0 0.0
    %744 = vmatpush1.msra.mxu0 0.0
    %745 = vmatprep.subr.mxu0 0.0
    %746 = vmatpush1.msra.mxu0 0.0
    %747 = vmatprep.subr.mxu0 0.0
    %748 = vmatpush1.msra.mxu0 0.0
    %749 = vmatprep.subr.mxu0 0.0
    %750 = vmatpush1.msra.mxu0 0.0
    %751 = vmatprep.subr.mxu0 0.0
    %752 = vmatpush1.msra.mxu0 0.0
    %753 = vmatprep.subr.mxu0 0.0
    %754 = vmatpush1.msra.mxu0 0.0
    %755 = vmatprep.subr.mxu0 0.0
    %756 = vmatpush1.msra.mxu0 0.0
    %757 = vmatprep.subr.mxu0 0.0
    %758 = vmatpush1.msra.mxu0 0.0
    %759 = vmatprep.subr.mxu0 0.0
    %760 = vmatpush1.msra.mxu0 0.0
    %761 = vmatprep.subr.mxu0 0.0
    %762 = vmatpush1.msra.mxu0 0.0
    %763 = vmatprep.subr.mxu0 0.0
    %764 = vmatpush1.msra.mxu0 0.0
    %765 = vmatprep.subr.mxu0 0.0
    %766 = vmatpush1.msra.mxu0 0.0
    %767 = vmatprep.subr.mxu0 0.0
    %768 = vmatpush1.msra.mxu0 0.0
    %769 = vmatprep.subr.mxu0 0.0
    %770 = vmatpush1.msra.mxu0 0.0
    %771 = vmatprep.subr.mxu0 0.0
    %772 = vmatpush1.msra.mxu0 0.0
    %773 = vmatprep.subr.mxu0 0.0
    %774 = vmatpush1.msra.mxu0 0.0
    %775 = vmatprep.subr.mxu0 0.0
    %776 = vmatpush1.msra.mxu0 0.0
    %777 = vmatprep.subr.mxu0 0.0
    %778 = vmatpush1.msra.mxu0 0.0
    %779 = vmatprep.subr.mxu0 0.0
    %780 = vmatpush1.msra.mxu0 0.0
    %781 = vmatprep.subr.mxu0 0.0
    %782 = vmatpush1.msra.mxu0 0.0
    %783 = vmatprep.subr.mxu0 0.0
    %784 = vmatpush1.msra.mxu0 0.0
    %785 = vmatprep.mubr.f32.mxu0 0.0
    %786 = vmatmul.mubr.f32.gmra.mrb[0].mxu0 %v648
    %v787 = vpop.f32.mrb[0].mxu0
    %v788 = vadd.f32 0.0, %v787
    %v789 = vpop.f32.mrb[0].mxu0
    %v790 = vadd.f32 0.0, %v789
    %791 = vdwg.mxu0
    %797 = vrot.lane.b32.xlu0 %v573, 97
    %v798 = vpop.permute.xlu0 %797
    %799 = vrot.lane.b32.xlu0 %v574, 97
    %v800 = vpop.permute.xlu0 %799
    %801 = vrot.lane.b32.xlu0 %v575, 97
    %v802 = vpop.permute.xlu0 %801
    %803 = vrot.lane.b32.xlu0 %v576, 97
    %v804 = vpop.permute.xlu0 %803
    %805 = vrot.lane.b32.xlu0 %v577, 97
    %v806 = vpop.permute.xlu0 %805
    %vm807 = vcmask 793600
    %v808 = vsel %vm807, %v798, %v800
    %v809 = vsel %vm807, %v800, %v802
    %v810 = vsel %vm807, %v802, %v804
    %v811 = vsel %vm807, %v804, %v806
    %v817 = vsel %vm646, %v578, 0
    %819 = vmatprep.subr.mxu0 %v809
    %820 = vmatpush1.msra.mxu0 %v808
    %821 = vmatprep.subr.mxu0 0.0
    %822 = vmatpush1.msra.mxu0 0.0
    %823 = vmatprep.subr.mxu0 0.0
    %824 = vmatpush1.msra.mxu0 0.0
    %825 = vmatprep.subr.mxu0 0.0
    %826 = vmatpush1.msra.mxu0 0.0
    %827 = vmatprep.subr.mxu0 0.0
    %828 = vmatpush1.msra.mxu0 0.0
    %829 = vmatprep.subr.mxu0 0.0
    %830 = vmatpush1.msra.mxu0 0.0
    %831 = vmatprep.subr.mxu0 0.0
    %832 = vmatpush1.msra.mxu0 0.0
    %833 = vmatprep.subr.mxu0 0.0
    %834 = vmatpush1.msra.mxu0 0.0
    %835 = vmatprep.subr.mxu0 0.0
    %836 = vmatpush1.msra.mxu0 0.0
    %837 = vmatprep.subr.mxu0 0.0
    %838 = vmatpush1.msra.mxu0 0.0
    %839 = vmatprep.subr.mxu0 0.0
    %840 = vmatpush1.msra.mxu0 0.0
    %841 = vmatprep.subr.mxu0 0.0
    %842 = vmatpush1.msra.mxu0 0.0
    %843 = vmatprep.subr.mxu0 0.0
    %844 = vmatpush1.msra.mxu0 0.0
    %845 = vmatprep.subr.mxu0 0.0
    %846 = vmatpush1.msra.mxu0 0.0
    %847 = vmatprep.subr.mxu0 0.0
    %848 = vmatpush1.msra.mxu0 0.0
    %849 = vmatprep.subr.mxu0 0.0
    %850 = vmatpush1.msra.mxu0 0.0
    %851 = vmatprep.subr.mxu0 0.0
    %852 = vmatpush1.msra.mxu0 0.0
    %853 = vmatprep.subr.mxu0 0.0
    %854 = vmatpush1.msra.mxu0 0.0
    %855 = vmatprep.subr.mxu0 0.0
    %856 = vmatpush1.msra.mxu0 0.0
    %857 = vmatprep.subr.mxu0 0.0
    %858 = vmatpush1.msra.mxu0 0.0
    %859 = vmatprep.subr.mxu0 0.0
    %860 = vmatpush1.msra.mxu0 0.0
    %861 = vmatprep.subr.mxu0 0.0
    %862 = vmatpush1.msra.mxu0 0.0
    %863 = vmatprep.subr.mxu0 0.0
    %864 = vmatpush1.msra.mxu0 0.0
    %865 = vmatprep.subr.mxu0 0.0
    %866 = vmatpush1.msra.mxu0 0.0
    %867 = vmatprep.subr.mxu0 0.0
    %868 = vmatpush1.msra.mxu0 0.0
    %869 = vmatprep.subr.mxu0 0.0
    %870 = vmatpush1.msra.mxu0 0.0
    %871 = vmatprep.subr.mxu0 0.0
    %872 = vmatpush1.msra.mxu0 0.0
    %873 = vmatprep.subr.mxu0 0.0
    %874 = vmatpush1.msra.mxu0 0.0
    %875 = vmatprep.subr.mxu0 0.0
    %876 = vmatpush1.msra.mxu0 0.0
    %877 = vmatprep.subr.mxu0 0.0
    %878 = vmatpush1.msra.mxu0 0.0
    %879 = vmatprep.subr.mxu0 0.0
    %880 = vmatpush1.msra.mxu0 0.0
    %881 = vmatprep.subr.mxu0 0.0
    %882 = vmatpush1.msra.mxu0 0.0
    %883 = vmatprep.mubr.f32.mxu0 0.0
    %884 = vmatmul.mubr.f32.gmra.mrb[0].mxu0 %v817
    %v885 = vpop.f32.mrb[0].mxu0
    %v886 = vadd.f32 %v717, %v885
    %v887 = vpop.f32.mrb[0].mxu0
    %v888 = vadd.f32 %v719, %v887
    %889 = vdwg.mxu0
    %890 = vmatprep.subr.mxu0 %v811
    %891 = vmatpush1.msra.mxu0 %v810
    %892 = vmatprep.subr.mxu0 0.0
    %893 = vmatpush1.msra.mxu0 0.0
    %894 = vmatprep.subr.mxu0 0.0
    %895 = vmatpush1.msra.mxu0 0.0
    %896 = vmatprep.subr.mxu0 0.0
    %897 = vmatpush1.msra.mxu0 0.0
    %898 = vmatprep.subr.mxu0 0.0
    %899 = vmatpush1.msra.mxu0 0.0
    %900 = vmatprep.subr.mxu0 0.0
    %901 = vmatpush1.msra.mxu0 0.0
    %902 = vmatprep.subr.mxu0 0.0
    %903 = vmatpush1.msra.mxu0 0.0
    %904 = vmatprep.subr.mxu0 0.0
    %905 = vmatpush1.msra.mxu0 0.0
    %906 = vmatprep.subr.mxu0 0.0
    %907 = vmatpush1.msra.mxu0 0.0
    %908 = vmatprep.subr.mxu0 0.0
    %909 = vmatpush1.msra.mxu0 0.0
    %910 = vmatprep.subr.mxu0 0.0
    %911 = vmatpush1.msra.mxu0 0.0
    %912 = vmatprep.subr.mxu0 0.0
    %913 = vmatpush1.msra.mxu0 0.0
    %914 = vmatprep.subr.mxu0 0.0
    %915 = vmatpush1.msra.mxu0 0.0
    %916 = vmatprep.subr.mxu0 0.0
    %917 = vmatpush1.msra.mxu0 0.0
    %918 = vmatprep.subr.mxu0 0.0
    %919 = vmatpush1.msra.mxu0 0.0
    %920 = vmatprep.subr.mxu0 0.0
    %921 = vmatpush1.msra.mxu0 0.0
    %922 = vmatprep.subr.mxu0 0.0
    %923 = vmatpush1.msra.mxu0 0.0
    %924 = vmatprep.subr.mxu0 0.0
    %925 = vmatpush1.msra.mxu0 0.0
    %926 = vmatprep.subr.mxu0 0.0
    %927 = vmatpush1.msra.mxu0 0.0
    %928 = vmatprep.subr.mxu0 0.0
    %929 = vmatpush1.msra.mxu0 0.0
    %930 = vmatprep.subr.mxu0 0.0
    %931 = vmatpush1.msra.mxu0 0.0
    %932 = vmatprep.subr.mxu0 0.0
    %933 = vmatpush1.msra.mxu0 0.0
    %934 = vmatprep.subr.mxu0 0.0
    %935 = vmatpush1.msra.mxu0 0.0
    %936 = vmatprep.subr.mxu0 0.0
    %937 = vmatpush1.msra.mxu0 0.0
    %938 = vmatprep.subr.mxu0 0.0
    %939 = vmatpush1.msra.mxu0 0.0
    %940 = vmatprep.subr.mxu0 0.0
    %941 = vmatpush1.msra.mxu0 0.0
    %942 = vmatprep.subr.mxu0 0.0
    %943 = vmatpush1.msra.mxu0 0.0
    %944 = vmatprep.subr.mxu0 0.0
    %945 = vmatpush1.msra.mxu0 0.0
    %946 = vmatprep.subr.mxu0 0.0
    %947 = vmatpush1.msra.mxu0 0.0
    %948 = vmatprep.subr.mxu0 0.0
    %949 = vmatpush1.msra.mxu0 0.0
    %950 = vmatprep.subr.mxu0 0.0
    %951 = vmatpush1.msra.mxu0 0.0
    %952 = vmatprep.subr.mxu0 0.0
    %953 = vmatpush1.msra.mxu0 0.0
    %954 = vmatprep.mubr.f32.mxu0 0.0
    %955 = vmatmul.mubr.f32.gmra.mrb[0].mxu0 %v817
    %v956 = vpop.f32.mrb[0].mxu0
    %v957 = vadd.f32 %v788, %v956
    %v958 = vpop.f32.mrb[0].mxu0
    %v959 = vadd.f32 %v790, %v958
    %960 = vdwg.mxu0
    %v961 = vlaneseq
    %v962 = vshrl.u32 %v961, 7
    %v963 = vsub.s32 2, %v962
    %v964 = vrot.slane %v523, %v963
    %v965 = vlaneseq
    %v966 = vshrl.u32 %v965, 7
    %v967 = vsub.s32 2, %v966
    %v968 = vrot.slane %v524, %v967
    %v969 = vlaneseq
    %v970 = vshrl.u32 %v969, 7
    %v971 = vsub.s32 2, %v970
    %v972 = vrot.slane %v525, %v971
    %v973 = vlaneseq
    %v974 = vshrl.u32 %v973, 7
    %v975 = vsub.s32 2, %v974
    %v976 = vrot.slane %v526, %v975
    %981 = vrot.lane.b32.xlu0 %v964, 33
    %v982 = vpop.permute.xlu0 %981
    %983 = vrot.lane.b32.xlu0 %v968, 33
    %v984 = vpop.permute.xlu0 %983
    %985 = vrot.lane.b32.xlu0 %v972, 33
    %v986 = vpop.permute.xlu0 %985
    %987 = vrot.lane.b32.xlu0 %v976, 33
    %v988 = vpop.permute.xlu0 %987
    %vm989 = vcmask 269312
    %v990 = vsel %vm989, %v982, %v984
    %v991 = vsel %vm989, %v984, %v986
    %v992 = vsel %vm989, %v986, %v988
    %v998 = vmul.f32 %v531, %v982
    %v999 = vmul.f32 %v532, %v990
    %v1000 = vmul.f32 %v533, %v991
    %v1001 = vmul.f32 %v534, %v992
    %v1002 = vmul.f32 %v535, %v988
    %s1003 = scalar_lea.vmem %s7, 16
    %v1004 = vld [vmem:[%s1003] sm:$0xff]
    %1010 = vrot.lane.b32.xlu0 %v998, 95
    %v1011 = vpop.permute.xlu0 %1010
    %1012 = vrot.lane.b32.xlu0 %v999, 95
    %v1013 = vpop.permute.xlu0 %1012
    %1014 = vrot.lane.b32.xlu0 %v1000, 95
    %v1015 = vpop.permute.xlu0 %1014
    %1016 = vrot.lane.b32.xlu0 %v1001, 95
    %v1017 = vpop.permute.xlu0 %1016
    %1018 = vrot.lane.b32.xlu0 %v1002, 95
    %v1019 = vpop.permute.xlu0 %1018
    %vm1020 = vcmask 777216
    %v1021 = vsel %vm1020, %v1011, %v1013
    %v1022 = vsel %vm1020, %v1013, %v1015
    %v1023 = vsel %vm1020, %v1015, %v1017
    %v1024 = vsel %vm1020, %v1017, %v1019
    %v1030 = vsel %vm646, %v1004, 0
    %1032 = vmatprep.subr.mxu0 %v1022
    %1033 = vmatpush1.msra.mxu0 %v1021
    %1034 = vmatprep.subr.mxu0 0.0
    %1035 = vmatpush1.msra.mxu0 0.0
    %1036 = vmatprep.subr.mxu0 0.0
    %1037 = vmatpush1.msra.mxu0 0.0
    %1038 = vmatprep.subr.mxu0 0.0
    %1039 = vmatpush1.msra.mxu0 0.0
    %1040 = vmatprep.subr.mxu0 0.0
    %1041 = vmatpush1.msra.mxu0 0.0
    %1042 = vmatprep.subr.mxu0 0.0
    %1043 = vmatpush1.msra.mxu0 0.0
    %1044 = vmatprep.subr.mxu0 0.0
    %1045 = vmatpush1.msra.mxu0 0.0
    %1046 = vmatprep.subr.mxu0 0.0
    %1047 = vmatpush1.msra.mxu0 0.0
    %1048 = vmatprep.subr.mxu0 0.0
    %1049 = vmatpush1.msra.mxu0 0.0
    %1050 = vmatprep.subr.mxu0 0.0
    %1051 = vmatpush1.msra.mxu0 0.0
    %1052 = vmatprep.subr.mxu0 0.0
    %1053 = vmatpush1.msra.mxu0 0.0
    %1054 = vmatprep.subr.mxu0 0.0
    %1055 = vmatpush1.msra.mxu0 0.0
    %1056 = vmatprep.subr.mxu0 0.0
    %1057 = vmatpush1.msra.mxu0 0.0
    %1058 = vmatprep.subr.mxu0 0.0
    %1059 = vmatpush1.msra.mxu0 0.0
    %1060 = vmatprep.subr.mxu0 0.0
    %1061 = vmatpush1.msra.mxu0 0.0
    %1062 = vmatprep.subr.mxu0 0.0
    %1063 = vmatpush1.msra.mxu0 0.0
    %1064 = vmatprep.subr.mxu0 0.0
    %1065 = vmatpush1.msra.mxu0 0.0
    %1066 = vmatprep.subr.mxu0 0.0
    %1067 = vmatpush1.msra.mxu0 0.0
    %1068 = vmatprep.subr.mxu0 0.0
    %1069 = vmatpush1.msra.mxu0 0.0
    %1070 = vmatprep.subr.mxu0 0.0
    %1071 = vmatpush1.msra.mxu0 0.0
    %1072 = vmatprep.subr.mxu0 0.0
    %1073 = vmatpush1.msra.mxu0 0.0
    %1074 = vmatprep.subr.mxu0 0.0
    %1075 = vmatpush1.msra.mxu0 0.0
    %1076 = vmatprep.subr.mxu0 0.0
    %1077 = vmatpush1.msra.mxu0 0.0
    %1078 = vmatprep.subr.mxu0 0.0
    %1079 = vmatpush1.msra.mxu0 0.0
    %1080 = vmatprep.subr.mxu0 0.0
    %1081 = vmatpush1.msra.mxu0 0.0
    %1082 = vmatprep.subr.mxu0 0.0
    %1083 = vmatpush1.msra.mxu0 0.0
    %1084 = vmatprep.subr.mxu0 0.0
    %1085 = vmatpush1.msra.mxu0 0.0
    %1086 = vmatprep.subr.mxu0 0.0
    %1087 = vmatpush1.msra.mxu0 0.0
    %1088 = vmatprep.subr.mxu0 0.0
    %1089 = vmatpush1.msra.mxu0 0.0
    %1090 = vmatprep.subr.mxu0 0.0
    %1091 = vmatpush1.msra.mxu0 0.0
    %1092 = vmatprep.subr.mxu0 0.0
    %1093 = vmatpush1.msra.mxu0 0.0
    %1094 = vmatprep.subr.mxu0 0.0
    %1095 = vmatpush1.msra.mxu0 0.0
    %1096 = vmatprep.mubr.f32.mxu0 0.0
    %1097 = vmatmul.mubr.f32.gmra.mrb[0].mxu0 %v1030
    %v1098 = vpop.f32.mrb[0].mxu0
    %v1099 = vadd.f32 0.0, %v1098
    %v1100 = vpop.f32.mrb[0].mxu0
    %v1101 = vadd.f32 0.0, %v1100
    %1102 = vdwg.mxu0
    %1103 = vmatprep.subr.mxu0 %v1024
    %1104 = vmatpush1.msra.mxu0 %v1023
    %1105 = vmatprep.subr.mxu0 0.0
    %1106 = vmatpush1.msra.mxu0 0.0
    %1107 = vmatprep.subr.mxu0 0.0
    %1108 = vmatpush1.msra.mxu0 0.0
    %1109 = vmatprep.subr.mxu0 0.0
    %1110 = vmatpush1.msra.mxu0 0.0
    %1111 = vmatprep.subr.mxu0 0.0
    %1112 = vmatpush1.msra.mxu0 0.0
    %1113 = vmatprep.subr.mxu0 0.0
    %1114 = vmatpush1.msra.mxu0 0.0
    %1115 = vmatprep.subr.mxu0 0.0
    %1116 = vmatpush1.msra.mxu0 0.0
    %1117 = vmatprep.subr.mxu0 0.0
    %1118 = vmatpush1.msra.mxu0 0.0
    %1119 = vmatprep.subr.mxu0 0.0
    %1120 = vmatpush1.msra.mxu0 0.0
    %1121 = vmatprep.subr.mxu0 0.0
    %1122 = vmatpush1.msra.mxu0 0.0
    %1123 = vmatprep.subr.mxu0 0.0
    %1124 = vmatpush1.msra.mxu0 0.0
    %1125 = vmatprep.subr.mxu0 0.0
    %1126 = vmatpush1.msra.mxu0 0.0
    %1127 = vmatprep.subr.mxu0 0.0
    %1128 = vmatpush1.msra.mxu0 0.0
    %1129 = vmatprep.subr.mxu0 0.0
    %1130 = vmatpush1.msra.mxu0 0.0
    %1131 = vmatprep.subr.mxu0 0.0
    %1132 = vmatpush1.msra.mxu0 0.0
    %1133 = vmatprep.subr.mxu0 0.0
    %1134 = vmatpush1.msra.mxu0 0.0
    %1135 = vmatprep.subr.mxu0 0.0
    %1136 = vmatpush1.msra.mxu0 0.0
    %1137 = vmatprep.subr.mxu0 0.0
    %1138 = vmatpush1.msra.mxu0 0.0
    %1139 = vmatprep.subr.mxu0 0.0
    %1140 = vmatpush1.msra.mxu0 0.0
    %1141 = vmatprep.subr.mxu0 0.0
    %1142 = vmatpush1.msra.mxu0 0.0
    %1143 = vmatprep.subr.mxu0 0.0
    %1144 = vmatpush1.msra.mxu0 0.0
    %1145 = vmatprep.subr.mxu0 0.0
    %1146 = vmatpush1.msra.mxu0 0.0
    %1147 = vmatprep.subr.mxu0 0.0
    %1148 = vmatpush1.msra.mxu0 0.0
    %1149 = vmatprep.subr.mxu0 0.0
    %1150 = vmatpush1.msra.mxu0 0.0
    %1151 = vmatprep.subr.mxu0 0.0
    %1152 = vmatpush1.msra.mxu0 0.0
    %1153 = vmatprep.subr.mxu0 0.0
    %1154 = vmatpush1.msra.mxu0 0.0
    %1155 = vmatprep.subr.mxu0 0.0
    %1156 = vmatpush1.msra.mxu0 0.0
    %1157 = vmatprep.subr.mxu0 0.0
    %1158 = vmatpush1.msra.mxu0 0.0
    %1159 = vmatprep.subr.mxu0 0.0
    %1160 = vmatpush1.msra.mxu0 0.0
    %1161 = vmatprep.subr.mxu0 0.0
    %1162 = vmatpush1.msra.mxu0 0.0
    %1163 = vmatprep.subr.mxu0 0.0
    %1164 = vmatpush1.msra.mxu0 0.0
    %1165 = vmatprep.subr.mxu0 0.0
    %1166 = vmatpush1.msra.mxu0 0.0
    %1167 = vmatprep.mubr.f32.mxu0 0.0
    %1168 = vmatmul.mubr.f32.gmra.mrb[0].mxu0 %v1030
    %v1169 = vpop.f32.mrb[0].mxu0
    %v1170 = vadd.f32 0.0, %v1169
    %v1171 = vpop.f32.mrb[0].mxu0
    %v1172 = vadd.f32 0.0, %v1171
    %1173 = vdwg.mxu0
    %v1174 = vadd.f32 %v886, %v1099
    %v1175 = vadd.f32 %v888, %v1101
    %v1176 = vadd.f32 %v957, %v1170
    %v1177 = vadd.f32 %v959, %v1172
    %v1178 = vlaneseq
    %v1179 = vshrl.u32 %v1178, 7
    %v1180 = vsub.s32 3, %v1179
    %v1181 = vrot.slane %v523, %v1180
    %v1182 = vlaneseq
    %v1183 = vshrl.u32 %v1182, 7
    %v1184 = vsub.s32 3, %v1183
    %v1185 = vrot.slane %v524, %v1184
    %v1186 = vlaneseq
    %v1187 = vshrl.u32 %v1186, 7
    %v1188 = vsub.s32 3, %v1187
    %v1189 = vrot.slane %v525, %v1188
    %v1190 = vlaneseq
    %v1191 = vshrl.u32 %v1190, 7
    %v1192 = vsub.s32 3, %v1191
    %v1193 = vrot.slane %v526, %v1192
    %1198 = vrot.lane.b32.xlu0 %v1181, 63
    %v1199 = vpop.permute.xlu0 %1198
    %1200 = vrot.lane.b32.xlu0 %v1185, 63
    %v1201 = vpop.permute.xlu0 %1200
    %1202 = vrot.lane.b32.xlu0 %v1189, 63
    %v1203 = vpop.permute.xlu0 %1202
    %1204 = vrot.lane.b32.xlu0 %v1193, 63
    %v1205 = vpop.permute.xlu0 %1204
    %vm1206 = vcmask 515072
    %v1207 = vsel %vm1206, %v1199, %v1201
    %v1208 = vsel %vm1206, %v1201, %v1203
    %v1209 = vsel %vm1206, %v1203, %v1205
    %v1215 = vmul.f32 %v531, %v1199
    %v1216 = vmul.f32 %v532, %v1207
    %v1217 = vmul.f32 %v533, %v1208
    %v1218 = vmul.f32 %v534, %v1209
    %v1219 = vmul.f32 %v535, %v1205
    %s1220 = scalar_lea.vmem %s7, 24
    %v1221 = vld [vmem:[%s1220] sm:$0xff]
    %1227 = vrot.lane.b32.xlu0 %v1215, 65
    %v1228 = vpop.permute.xlu0 %1227
    %1229 = vrot.lane.b32.xlu0 %v1216, 65
    %v1230 = vpop.permute.xlu0 %1229
    %1231 = vrot.lane.b32.xlu0 %v1217, 65
    %v1232 = vpop.permute.xlu0 %1231
    %1233 = vrot.lane.b32.xlu0 %v1218, 65
    %v1234 = vpop.permute.xlu0 %1233
    %1235 = vrot.lane.b32.xlu0 %v1219, 65
    %v1236 = vpop.permute.xlu0 %1235
    %vm1237 = vcmask 531456
    %v1238 = vsel %vm1237, %v1228, %v1230
    %v1239 = vsel %vm1237, %v1230, %v1232
    %v1240 = vsel %vm1237, %v1232, %v1234
    %v1241 = vsel %vm1237, %v1234, %v1236
    %v1247 = vsel %vm646, %v1221, 0
    %1249 = vmatprep.subr.mxu0 %v1239
    %1250 = vmatpush1.msra.mxu0 %v1238
    %1251 = vmatprep.subr.mxu0 0.0
    %1252 = vmatpush1.msra.mxu0 0.0
    %1253 = vmatprep.subr.mxu0 0.0
    %1254 = vmatpush1.msra.mxu0 0.0
    %1255 = vmatprep.subr.mxu0 0.0
    %1256 = vmatpush1.msra.mxu0 0.0
    %1257 = vmatprep.subr.mxu0 0.0
    %1258 = vmatpush1.msra.mxu0 0.0
    %1259 = vmatprep.subr.mxu0 0.0
    %1260 = vmatpush1.msra.mxu0 0.0
    %1261 = vmatprep.subr.mxu0 0.0
    %1262 = vmatpush1.msra.mxu0 0.0
    %1263 = vmatprep.subr.mxu0 0.0
    %1264 = vmatpush1.msra.mxu0 0.0
    %1265 = vmatprep.subr.mxu0 0.0
    %1266 = vmatpush1.msra.mxu0 0.0
    %1267 = vmatprep.subr.mxu0 0.0
    %1268 = vmatpush1.msra.mxu0 0.0
    %1269 = vmatprep.subr.mxu0 0.0
    %1270 = vmatpush1.msra.mxu0 0.0
    %1271 = vmatprep.subr.mxu0 0.0
    %1272 = vmatpush1.msra.mxu0 0.0
    %1273 = vmatprep.subr.mxu0 0.0
    %1274 = vmatpush1.msra.mxu0 0.0
    %1275 = vmatprep.subr.mxu0 0.0
    %1276 = vmatpush1.msra.mxu0 0.0
    %1277 = vmatprep.subr.mxu0 0.0
    %1278 = vmatpush1.msra.mxu0 0.0
    %1279 = vmatprep.subr.mxu0 0.0
    %1280 = vmatpush1.msra.mxu0 0.0
    %1281 = vmatprep.subr.mxu0 0.0
    %1282 = vmatpush1.msra.mxu0 0.0
    %1283 = vmatprep.subr.mxu0 0.0
    %1284 = vmatpush1.msra.mxu0 0.0
    %1285 = vmatprep.subr.mxu0 0.0
    %1286 = vmatpush1.msra.mxu0 0.0
    %1287 = vmatprep.subr.mxu0 0.0
    %1288 = vmatpush1.msra.mxu0 0.0
    %1289 = vmatprep.subr.mxu0 0.0
    %1290 = vmatpush1.msra.mxu0 0.0
    %1291 = vmatprep.subr.mxu0 0.0
    %1292 = vmatpush1.msra.mxu0 0.0
    %1293 = vmatprep.subr.mxu0 0.0
    %1294 = vmatpush1.msra.mxu0 0.0
    %1295 = vmatprep.subr.mxu0 0.0
    %1296 = vmatpush1.msra.mxu0 0.0
    %1297 = vmatprep.subr.mxu0 0.0
    %1298 = vmatpush1.msra.mxu0 0.0
    %1299 = vmatprep.subr.mxu0 0.0
    %1300 = vmatpush1.msra.mxu0 0.0
    %1301 = vmatprep.subr.mxu0 0.0
    %1302 = vmatpush1.msra.mxu0 0.0
    %1303 = vmatprep.subr.mxu0 0.0
    %1304 = vmatpush1.msra.mxu0 0.0
    %1305 = vmatprep.subr.mxu0 0.0
    %1306 = vmatpush1.msra.mxu0 0.0
    %1307 = vmatprep.subr.mxu0 0.0
    %1308 = vmatpush1.msra.mxu0 0.0
    %1309 = vmatprep.subr.mxu0 0.0
    %1310 = vmatpush1.msra.mxu0 0.0
    %1311 = vmatprep.subr.mxu0 0.0
    %1312 = vmatpush1.msra.mxu0 0.0
    %1313 = vmatprep.mubr.f32.mxu0 0.0
    %1314 = vmatmul.mubr.f32.gmra.mrb[0].mxu0 %v1247
    %v1315 = vpop.f32.mrb[0].mxu0
    %v1316 = vadd.f32 0.0, %v1315
    %v1317 = vpop.f32.mrb[0].mxu0
    %v1318 = vadd.f32 0.0, %v1317
    %1319 = vdwg.mxu0
    %1320 = vmatprep.subr.mxu0 %v1241
    %1321 = vmatpush1.msra.mxu0 %v1240
    %1322 = vmatprep.subr.mxu0 0.0
    %1323 = vmatpush1.msra.mxu0 0.0
    %1324 = vmatprep.subr.mxu0 0.0
    %1325 = vmatpush1.msra.mxu0 0.0
    %1326 = vmatprep.subr.mxu0 0.0
    %1327 = vmatpush1.msra.mxu0 0.0
    %1328 = vmatprep.subr.mxu0 0.0
    %1329 = vmatpush1.msra.mxu0 0.0
    %1330 = vmatprep.subr.mxu0 0.0
    %1331 = vmatpush1.msra.mxu0 0.0
    %1332 = vmatprep.subr.mxu0 0.0
    %1333 = vmatpush1.msra.mxu0 0.0
    %1334 = vmatprep.subr.mxu0 0.0
    %1335 = vmatpush1.msra.mxu0 0.0
    %1336 = vmatprep.subr.mxu0 0.0
    %1337 = vmatpush1.msra.mxu0 0.0
    %1338 = vmatprep.subr.mxu0 0.0
    %1339 = vmatpush1.msra.mxu0 0.0
    %1340 = vmatprep.subr.mxu0 0.0
    %1341 = vmatpush1.msra.mxu0 0.0
    %1342 = vmatprep.subr.mxu0 0.0
    %1343 = vmatpush1.msra.mxu0 0.0
    %1344 = vmatprep.subr.mxu0 0.0
    %1345 = vmatpush1.msra.mxu0 0.0
    %1346 = vmatprep.subr.mxu0 0.0
    %1347 = vmatpush1.msra.mxu0 0.0
    %1348 = vmatprep.subr.mxu0 0.0
    %1349 = vmatpush1.msra.mxu0 0.0
    %1350 = vmatprep.subr.mxu0 0.0
    %1351 = vmatpush1.msra.mxu0 0.0
    %1352 = vmatprep.subr.mxu0 0.0
    %1353 = vmatpush1.msra.mxu0 0.0
    %1354 = vmatprep.subr.mxu0 0.0
    %1355 = vmatpush1.msra.mxu0 0.0
    %1356 = vmatprep.subr.mxu0 0.0
    %1357 = vmatpush1.msra.mxu0 0.0
    %1358 = vmatprep.subr.mxu0 0.0
    %1359 = vmatpush1.msra.mxu0 0.0
    %1360 = vmatprep.subr.mxu0 0.0
    %1361 = vmatpush1.msra.mxu0 0.0
    %1362 = vmatprep.subr.mxu0 0.0
    %1363 = vmatpush1.msra.mxu0 0.0
    %1364 = vmatprep.subr.mxu0 0.0
    %1365 = vmatpush1.msra.mxu0 0.0
    %1366 = vmatprep.subr.mxu0 0.0
    %1367 = vmatpush1.msra.mxu0 0.0
    %1368 = vmatprep.subr.mxu0 0.0
    %1369 = vmatpush1.msra.mxu0 0.0
    %1370 = vmatprep.subr.mxu0 0.0
    %1371 = vmatpush1.msra.mxu0 0.0
    %1372 = vmatprep.subr.mxu0 0.0
    %1373 = vmatpush1.msra.mxu0 0.0
    %1374 = vmatprep.subr.mxu0 0.0
    %1375 = vmatpush1.msra.mxu0 0.0
    %1376 = vmatprep.subr.mxu0 0.0
    %1377 = vmatpush1.msra.mxu0 0.0
    %1378 = vmatprep.subr.mxu0 0.0
    %1379 = vmatpush1.msra.mxu0 0.0
    %1380 = vmatprep.subr.mxu0 0.0
    %1381 = vmatpush1.msra.mxu0 0.0
    %1382 = vmatprep.subr.mxu0 0.0
    %1383 = vmatpush1.msra.mxu0 0.0
    %1384 = vmatprep.mubr.f32.mxu0 0.0
    %1385 = vmatmul.mubr.f32.gmra.mrb[0].mxu0 %v1247
    %v1386 = vpop.f32.mrb[0].mxu0
    %v1387 = vadd.f32 0.0, %v1386
    %v1388 = vpop.f32.mrb[0].mxu0
    %v1389 = vadd.f32 0.0, %v1388
    %1390 = vdwg.mxu0
    %v1391 = vadd.f32 %v1174, %v1316
    %v1392 = vadd.f32 %v1175, %v1318
    %v1393 = vadd.f32 %v1176, %v1387
    %v1394 = vadd.f32 %v1177, %v1389
    %s1395 = scalar_lea.vmem %s7, 32
    %v1396 = vld [vmem:[%s1395] sm:$0xff]
    %1402 = vrot.lane.b32.xlu0 %v531, 64
    %v1403 = vpop.permute.xlu0 %1402
    %1404 = vrot.lane.b32.xlu0 %v532, 64
    %v1405 = vpop.permute.xlu0 %1404
    %1406 = vrot.lane.b32.xlu0 %v533, 64
    %v1407 = vpop.permute.xlu0 %1406
    %1408 = vrot.lane.b32.xlu0 %v534, 64
    %v1409 = vpop.permute.xlu0 %1408
    %1410 = vrot.lane.b32.xlu0 %v535, 64
    %v1411 = vpop.permute.xlu0 %1410
    %vm1412 = vcmask 523264
    %v1413 = vsel %vm1412, %v1403, %v1405
    %v1414 = vsel %vm1412, %v1405, %v1407
    %v1415 = vsel %vm1412, %v1407, %v1409
    %v1416 = vsel %vm1412, %v1409, %v1411
    %v1422 = vsel %vm646, %v1396, 0
    %1424 = vmatprep.subr.mxu0 %v1414
    %1425 = vmatpush1.msra.mxu0 %v1413
    %1426 = vmatprep.subr.mxu0 0.0
    %1427 = vmatpush1.msra.mxu0 0.0
    %1428 = vmatprep.subr.mxu0 0.0
    %1429 = vmatpush1.msra.mxu0 0.0
    %1430 = vmatprep.subr.mxu0 0.0
    %1431 = vmatpush1.msra.mxu0 0.0
    %1432 = vmatprep.subr.mxu0 0.0
    %1433 = vmatpush1.msra.mxu0 0.0
    %1434 = vmatprep.subr.mxu0 0.0
    %1435 = vmatpush1.msra.mxu0 0.0
    %1436 = vmatprep.subr.mxu0 0.0
    %1437 = vmatpush1.msra.mxu0 0.0
    %1438 = vmatprep.subr.mxu0 0.0
    %1439 = vmatpush1.msra.mxu0 0.0
    %1440 = vmatprep.subr.mxu0 0.0
    %1441 = vmatpush1.msra.mxu0 0.0
    %1442 = vmatprep.subr.mxu0 0.0
    %1443 = vmatpush1.msra.mxu0 0.0
    %1444 = vmatprep.subr.mxu0 0.0
    %1445 = vmatpush1.msra.mxu0 0.0
    %1446 = vmatprep.subr.mxu0 0.0
    %1447 = vmatpush1.msra.mxu0 0.0
    %1448 = vmatprep.subr.mxu0 0.0
    %1449 = vmatpush1.msra.mxu0 0.0
    %1450 = vmatprep.subr.mxu0 0.0
    %1451 = vmatpush1.msra.mxu0 0.0
    %1452 = vmatprep.subr.mxu0 0.0
    %1453 = vmatpush1.msra.mxu0 0.0
    %1454 = vmatprep.subr.mxu0 0.0
    %1455 = vmatpush1.msra.mxu0 0.0
    %1456 = vmatprep.subr.mxu0 0.0
    %1457 = vmatpush1.msra.mxu0 0.0
    %1458 = vmatprep.subr.mxu0 0.0
    %1459 = vmatpush1.msra.mxu0 0.0
    %1460 = vmatprep.subr.mxu0 0.0
    %1461 = vmatpush1.msra.mxu0 0.0
    %1462 = vmatprep.subr.mxu0 0.0
    %1463 = vmatpush1.msra.mxu0 0.0
    %1464 = vmatprep.subr.mxu0 0.0
    %1465 = vmatpush1.msra.mxu0 0.0
    %1466 = vmatprep.subr.mxu0 0.0
    %1467 = vmatpush1.msra.mxu0 0.0
    %1468 = vmatprep.subr.mxu0 0.0
    %1469 = vmatpush1.msra.mxu0 0.0
    %1470 = vmatprep.subr.mxu0 0.0
    %1471 = vmatpush1.msra.mxu0 0.0
    %1472 = vmatprep.subr.mxu0 0.0
    %1473 = vmatpush1.msra.mxu0 0.0
    %1474 = vmatprep.subr.mxu0 0.0
    %1475 = vmatpush1.msra.mxu0 0.0
    %1476 = vmatprep.subr.mxu0 0.0
    %1477 = vmatpush1.msra.mxu0 0.0
    %1478 = vmatprep.subr.mxu0 0.0
    %1479 = vmatpush1.msra.mxu0 0.0
    %1480 = vmatprep.subr.mxu0 0.0
    %1481 = vmatpush1.msra.mxu0 0.0
    %1482 = vmatprep.subr.mxu0 0.0
    %1483 = vmatpush1.msra.mxu0 0.0
    %1484 = vmatprep.subr.mxu0 0.0
    %1485 = vmatpush1.msra.mxu0 0.0
    %1486 = vmatprep.subr.mxu0 0.0
    %1487 = vmatpush1.msra.mxu0 0.0
    %1488 = vmatprep.mubr.f32.mxu0 0.0
    %1489 = vmatmul.mubr.f32.gmra.mrb[0].mxu0 %v1422
    %v1490 = vpop.f32.mrb[0].mxu0
    %v1491 = vadd.f32 0.0, %v1490
    %v1492 = vpop.f32.mrb[0].mxu0
    %v1493 = vadd.f32 0.0, %v1492
    %1494 = vdwg.mxu0
    %1495 = vmatprep.subr.mxu0 %v1416
    %1496 = vmatpush1.msra.mxu0 %v1415
    %1497 = vmatprep.subr.mxu0 0.0
    %1498 = vmatpush1.msra.mxu0 0.0
    %1499 = vmatprep.subr.mxu0 0.0
    %1500 = vmatpush1.msra.mxu0 0.0
    %1501 = vmatprep.subr.mxu0 0.0
    %1502 = vmatpush1.msra.mxu0 0.0
    %1503 = vmatprep.subr.mxu0 0.0
    %1504 = vmatpush1.msra.mxu0 0.0
    %1505 = vmatprep.subr.mxu0 0.0
    %1506 = vmatpush1.msra.mxu0 0.0
    %1507 = vmatprep.subr.mxu0 0.0
    %1508 = vmatpush1.msra.mxu0 0.0
    %1509 = vmatprep.subr.mxu0 0.0
    %1510 = vmatpush1.msra.mxu0 0.0
    %1511 = vmatprep.subr.mxu0 0.0
    %1512 = vmatpush1.msra.mxu0 0.0
    %1513 = vmatprep.subr.mxu0 0.0
    %1514 = vmatpush1.msra.mxu0 0.0
    %1515 = vmatprep.subr.mxu0 0.0
    %1516 = vmatpush1.msra.mxu0 0.0
    %1517 = vmatprep.subr.mxu0 0.0
    %1518 = vmatpush1.msra.mxu0 0.0
    %1519 = vmatprep.subr.mxu0 0.0
    %1520 = vmatpush1.msra.mxu0 0.0
    %1521 = vmatprep.subr.mxu0 0.0
    %1522 = vmatpush1.msra.mxu0 0.0
    %1523 = vmatprep.subr.mxu0 0.0
    %1524 = vmatpush1.msra.mxu0 0.0
    %1525 = vmatprep.subr.mxu0 0.0
    %1526 = vmatpush1.msra.mxu0 0.0
    %1527 = vmatprep.subr.mxu0 0.0
    %1528 = vmatpush1.msra.mxu0 0.0
    %1529 = vmatprep.subr.mxu0 0.0
    %1530 = vmatpush1.msra.mxu0 0.0
    %1531 = vmatprep.subr.mxu0 0.0
    %1532 = vmatpush1.msra.mxu0 0.0
    %1533 = vmatprep.subr.mxu0 0.0
    %1534 = vmatpush1.msra.mxu0 0.0
    %1535 = vmatprep.subr.mxu0 0.0
    %1536 = vmatpush1.msra.mxu0 0.0
    %1537 = vmatprep.subr.mxu0 0.0
    %1538 = vmatpush1.msra.mxu0 0.0
    %1539 = vmatprep.subr.mxu0 0.0
    %1540 = vmatpush1.msra.mxu0 0.0
    %1541 = vmatprep.subr.mxu0 0.0
    %1542 = vmatpush1.msra.mxu0 0.0
    %1543 = vmatprep.subr.mxu0 0.0
    %1544 = vmatpush1.msra.mxu0 0.0
    %1545 = vmatprep.subr.mxu0 0.0
    %1546 = vmatpush1.msra.mxu0 0.0
    %1547 = vmatprep.subr.mxu0 0.0
    %1548 = vmatpush1.msra.mxu0 0.0
    %1549 = vmatprep.subr.mxu0 0.0
    %1550 = vmatpush1.msra.mxu0 0.0
    %1551 = vmatprep.subr.mxu0 0.0
    %1552 = vmatpush1.msra.mxu0 0.0
    %1553 = vmatprep.subr.mxu0 0.0
    %1554 = vmatpush1.msra.mxu0 0.0
    %1555 = vmatprep.subr.mxu0 0.0
    %1556 = vmatpush1.msra.mxu0 0.0
    %1557 = vmatprep.subr.mxu0 0.0
    %1558 = vmatpush1.msra.mxu0 0.0
    %1559 = vmatprep.mubr.f32.mxu0 0.0
    %1560 = vmatmul.mubr.f32.gmra.mrb[0].mxu0 %v1422
    %v1561 = vpop.f32.mrb[0].mxu0
    %v1562 = vadd.f32 0.0, %v1561
    %v1563 = vpop.f32.mrb[0].mxu0
    %v1564 = vadd.f32 0.0, %v1563
    %1565 = vdwg.mxu0
    %v1566 = vadd.f32 %v1391, %v1491
    %v1567 = vadd.f32 %v1392, %v1493
    %v1568 = vadd.f32 %v1393, %v1562
    %v1569 = vadd.f32 %v1394, %v1564
    %v1570 = vlaneseq
    %v1571 = vshrl.u32 %v1570, 7
    %v1572 = vsub.s32 5, %v1571
    %v1573 = vrot.slane %v523, %v1572
    %v1574 = vlaneseq
    %v1575 = vshrl.u32 %v1574, 7
    %v1576 = vsub.s32 5, %v1575
    %v1577 = vrot.slane %v524, %v1576
    %v1578 = vlaneseq
    %v1579 = vshrl.u32 %v1578, 7
    %v1580 = vsub.s32 5, %v1579
    %v1581 = vrot.slane %v525, %v1580
    %v1582 = vlaneseq
    %v1583 = vshrl.u32 %v1582, 7
    %v1584 = vsub.s32 5, %v1583
    %v1585 = vrot.slane %v526, %v1584
    %1590 = vrot.lane.b32.xlu0 %v1573, 65
    %v1591 = vpop.permute.xlu0 %1590
    %1592 = vrot.lane.b32.xlu0 %v1577, 65
    %v1593 = vpop.permute.xlu0 %1592
    %1594 = vrot.lane.b32.xlu0 %v1581, 65
    %v1595 = vpop.permute.xlu0 %1594
    %1596 = vrot.lane.b32.xlu0 %v1585, 65
    %v1597 = vpop.permute.xlu0 %1596
    %v1598 = vsel %vm1237, %v1591, %v1593
    %v1599 = vsel %vm1237, %v1593, %v1595
    %v1600 = vsel %vm1237, %v1595, %v1597
    %v1606 = vmul.f32 %v531, %v1591
    %v1607 = vmul.f32 %v532, %v1598
    %v1608 = vmul.f32 %v533, %v1599
    %v1609 = vmul.f32 %v534, %v1600
    %v1610 = vmul.f32 %v535, %v1597
    %s1611 = scalar_lea.vmem %s7, 40
    %v1612 = vld [vmem:[%s1611] sm:$0xff]
    %1618 = vrot.lane.b32.xlu0 %v1606, 63
    %v1619 = vpop.permute.xlu0 %1618
    %1620 = vrot.lane.b32.xlu0 %v1607, 63
    %v1621 = vpop.permute.xlu0 %1620
    %1622 = vrot.lane.b32.xlu0 %v1608, 63
    %v1623 = vpop.permute.xlu0 %1622
    %1624 = vrot.lane.b32.xlu0 %v1609, 63
    %v1625 = vpop.permute.xlu0 %1624
    %1626 = vrot.lane.b32.xlu0 %v1610, 63
    %v1627 = vpop.permute.xlu0 %1626
    %v1628 = vsel %vm1206, %v1619, %v1621
    %v1629 = vsel %vm1206, %v1621, %v1623
    %v1630 = vsel %vm1206, %v1623, %v1625
    %v1631 = vsel %vm1206, %v1625, %v1627
    %v1637 = vsel %vm646, %v1612, 0
    %1639 = vmatprep.subr.mxu0 %v1629
    %1640 = vmatpush1.msra.mxu0 %v1628
    %1641 = vmatprep.subr.mxu0 0.0
    %1642 = vmatpush1.msra.mxu0 0.0
    %1643 = vmatprep.subr.mxu0 0.0
    %1644 = vmatpush1.msra.mxu0 0.0
    %1645 = vmatprep.subr.mxu0 0.0
    %1646 = vmatpush1.msra.mxu0 0.0
    %1647 = vmatprep.subr.mxu0 0.0
    %1648 = vmatpush1.msra.mxu0 0.0
    %1649 = vmatprep.subr.mxu0 0.0
    %1650 = vmatpush1.msra.mxu0 0.0
    %1651 = vmatprep.subr.mxu0 0.0
    %1652 = vmatpush1.msra.mxu0 0.0
    %1653 = vmatprep.subr.mxu0 0.0
    %1654 = vmatpush1.msra.mxu0 0.0
    %1655 = vmatprep.subr.mxu0 0.0
    %1656 = vmatpush1.msra.mxu0 0.0
    %1657 = vmatprep.subr.mxu0 0.0
    %1658 = vmatpush1.msra.mxu0 0.0
    %1659 = vmatprep.subr.mxu0 0.0
    %1660 = vmatpush1.msra.mxu0 0.0
    %1661 = vmatprep.subr.mxu0 0.0
    %1662 = vmatpush1.msra.mxu0 0.0
    %1663 = vmatprep.subr.mxu0 0.0
    %1664 = vmatpush1.msra.mxu0 0.0
    %1665 = vmatprep.subr.mxu0 0.0
    %1666 = vmatpush1.msra.mxu0 0.0
    %1667 = vmatprep.subr.mxu0 0.0
    %1668 = vmatpush1.msra.mxu0 0.0
    %1669 = vmatprep.subr.mxu0 0.0
    %1670 = vmatpush1.msra.mxu0 0.0
    %1671 = vmatprep.subr.mxu0 0.0
    %1672 = vmatpush1.msra.mxu0 0.0
    %1673 = vmatprep.subr.mxu0 0.0
    %1674 = vmatpush1.msra.mxu0 0.0
    %1675 = vmatprep.subr.mxu0 0.0
    %1676 = vmatpush1.msra.mxu0 0.0
    %1677 = vmatprep.subr.mxu0 0.0
    %1678 = vmatpush1.msra.mxu0 0.0
    %1679 = vmatprep.subr.mxu0 0.0
    %1680 = vmatpush1.msra.mxu0 0.0
    %1681 = vmatprep.subr.mxu0 0.0
    %1682 = vmatpush1.msra.mxu0 0.0
    %1683 = vmatprep.subr.mxu0 0.0
    %1684 = vmatpush1.msra.mxu0 0.0
    %1685 = vmatprep.subr.mxu0 0.0
    %1686 = vmatpush1.msra.mxu0 0.0
    %1687 = vmatprep.subr.mxu0 0.0
    %1688 = vmatpush1.msra.mxu0 0.0
    %1689 = vmatprep.subr.mxu0 0.0
    %1690 = vmatpush1.msra.mxu0 0.0
    %1691 = vmatprep.subr.mxu0 0.0
    %1692 = vmatpush1.msra.mxu0 0.0
    %1693 = vmatprep.subr.mxu0 0.0
    %1694 = vmatpush1.msra.mxu0 0.0
    %1695 = vmatprep.subr.mxu0 0.0
    %1696 = vmatpush1.msra.mxu0 0.0
    %1697 = vmatprep.subr.mxu0 0.0
    %1698 = vmatpush1.msra.mxu0 0.0
    %1699 = vmatprep.subr.mxu0 0.0
    %1700 = vmatpush1.msra.mxu0 0.0
    %1701 = vmatprep.subr.mxu0 0.0
    %1702 = vmatpush1.msra.mxu0 0.0
    %1703 = vmatprep.mubr.f32.mxu0 0.0
    %1704 = vmatmul.mubr.f32.gmra.mrb[0].mxu0 %v1637
    %v1705 = vpop.f32.mrb[0].mxu0
    %v1706 = vadd.f32 0.0, %v1705
    %v1707 = vpop.f32.mrb[0].mxu0
    %v1708 = vadd.f32 0.0, %v1707
    %1709 = vdwg.mxu0
    %1710 = vmatprep.subr.mxu0 %v1631
    %1711 = vmatpush1.msra.mxu0 %v1630
    %1712 = vmatprep.subr.mxu0 0.0
    %1713 = vmatpush1.msra.mxu0 0.0
    %1714 = vmatprep.subr.mxu0 0.0
    %1715 = vmatpush1.msra.mxu0 0.0
    %1716 = vmatprep.subr.mxu0 0.0
    %1717 = vmatpush1.msra.mxu0 0.0
    %1718 = vmatprep.subr.mxu0 0.0
    %1719 = vmatpush1.msra.mxu0 0.0
    %1720 = vmatprep.subr.mxu0 0.0
    %1721 = vmatpush1.msra.mxu0 0.0
    %1722 = vmatprep.subr.mxu0 0.0
    %1723 = vmatpush1.msra.mxu0 0.0
    %1724 = vmatprep.subr.mxu0 0.0
    %1725 = vmatpush1.msra.mxu0 0.0
    %1726 = vmatprep.subr.mxu0 0.0
    %1727 = vmatpush1.msra.mxu0 0.0
    %1728 = vmatprep.subr.mxu0 0.0
    %1729 = vmatpush1.msra.mxu0 0.0
    %1730 = vmatprep.subr.mxu0 0.0
    %1731 = vmatpush1.msra.mxu0 0.0
    %1732 = vmatprep.subr.mxu0 0.0
    %1733 = vmatpush1.msra.mxu0 0.0
    %1734 = vmatprep.subr.mxu0 0.0
    %1735 = vmatpush1.msra.mxu0 0.0
    %1736 = vmatprep.subr.mxu0 0.0
    %1737 = vmatpush1.msra.mxu0 0.0
    %1738 = vmatprep.subr.mxu0 0.0
    %1739 = vmatpush1.msra.mxu0 0.0
    %1740 = vmatprep.subr.mxu0 0.0
    %1741 = vmatpush1.msra.mxu0 0.0
    %1742 = vmatprep.subr.mxu0 0.0
    %1743 = vmatpush1.msra.mxu0 0.0
    %1744 = vmatprep.subr.mxu0 0.0
    %1745 = vmatpush1.msra.mxu0 0.0
    %1746 = vmatprep.subr.mxu0 0.0
    %1747 = vmatpush1.msra.mxu0 0.0
    %1748 = vmatprep.subr.mxu0 0.0
    %1749 = vmatpush1.msra.mxu0 0.0
    %1750 = vmatprep.subr.mxu0 0.0
    %1751 = vmatpush1.msra.mxu0 0.0
    %1752 = vmatprep.subr.mxu0 0.0
    %1753 = vmatpush1.msra.mxu0 0.0
    %1754 = vmatprep.subr.mxu0 0.0
    %1755 = vmatpush1.msra.mxu0 0.0
    %1756 = vmatprep.subr.mxu0 0.0
    %1757 = vmatpush1.msra.mxu0 0.0
    %1758 = vmatprep.subr.mxu0 0.0
    %1759 = vmatpush1.msra.mxu0 0.0
    %1760 = vmatprep.subr.mxu0 0.0
    %1761 = vmatpush1.msra.mxu0 0.0
    %1762 = vmatprep.subr.mxu0 0.0
    %1763 = vmatpush1.msra.mxu0 0.0
    %1764 = vmatprep.subr.mxu0 0.0
    %1765 = vmatpush1.msra.mxu0 0.0
    %1766 = vmatprep.subr.mxu0 0.0
    %1767 = vmatpush1.msra.mxu0 0.0
    %1768 = vmatprep.subr.mxu0 0.0
    %1769 = vmatpush1.msra.mxu0 0.0
    %1770 = vmatprep.subr.mxu0 0.0
    %1771 = vmatpush1.msra.mxu0 0.0
    %1772 = vmatprep.subr.mxu0 0.0
    %1773 = vmatpush1.msra.mxu0 0.0
    %1774 = vmatprep.mubr.f32.mxu0 0.0
    %1775 = vmatmul.mubr.f32.gmra.mrb[0].mxu0 %v1637
    %v1776 = vpop.f32.mrb[0].mxu0
    %v1777 = vadd.f32 0.0, %v1776
    %v1778 = vpop.f32.mrb[0].mxu0
    %v1779 = vadd.f32 0.0, %v1778
    %1780 = vdwg.mxu0
    %v1781 = vadd.f32 %v1566, %v1706
    %v1782 = vadd.f32 %v1567, %v1708
    %v1783 = vadd.f32 %v1568, %v1777
    %v1784 = vadd.f32 %v1569, %v1779
    %v1785 = vlaneseq
    %v1786 = vshrl.u32 %v1785, 7
    %v1787 = vsub.s32 6, %v1786
    %v1788 = vrot.slane %v523, %v1787
    %v1789 = vlaneseq
    %v1790 = vshrl.u32 %v1789, 7
    %v1791 = vsub.s32 6, %v1790
    %v1792 = vrot.slane %v524, %v1791
    %v1793 = vlaneseq
    %v1794 = vshrl.u32 %v1793, 7
    %v1795 = vsub.s32 6, %v1794
    %v1796 = vrot.slane %v525, %v1795
    %v1797 = vlaneseq
    %v1798 = vshrl.u32 %v1797, 7
    %v1799 = vsub.s32 6, %v1798
    %v1800 = vrot.slane %v526, %v1799
    %1805 = vrot.lane.b32.xlu0 %v1788, 95
    %v1806 = vpop.permute.xlu0 %1805
    %1807 = vrot.lane.b32.xlu0 %v1792, 95
    %v1808 = vpop.permute.xlu0 %1807
    %1809 = vrot.lane.b32.xlu0 %v1796, 95
    %v1810 = vpop.permute.xlu0 %1809
    %1811 = vrot.lane.b32.xlu0 %v1800, 95
    %v1812 = vpop.permute.xlu0 %1811
    %v1813 = vsel %vm1020, %v1806, %v1808
    %v1814 = vsel %vm1020, %v1808, %v1810
    %v1815 = vsel %vm1020, %v1810, %v1812
    %v1821 = vmul.f32 %v531, %v1806
    %v1822 = vmul.f32 %v532, %v1813
    %v1823 = vmul.f32 %v533, %v1814
    %v1824 = vmul.f32 %v534, %v1815
    %v1825 = vmul.f32 %v535, %v1812
    %s1826 = scalar_lea.vmem %s7, 48
    %v1827 = vld [vmem:[%s1826] sm:$0xff]
    %1833 = vrot.lane.b32.xlu0 %v1821, 33
    %v1834 = vpop.permute.xlu0 %1833
    %1835 = vrot.lane.b32.xlu0 %v1822, 33
    %v1836 = vpop.permute.xlu0 %1835
    %1837 = vrot.lane.b32.xlu0 %v1823, 33
    %v1838 = vpop.permute.xlu0 %1837
    %1839 = vrot.lane.b32.xlu0 %v1824, 33
    %v1840 = vpop.permute.xlu0 %1839
    %1841 = vrot.lane.b32.xlu0 %v1825, 33
    %v1842 = vpop.permute.xlu0 %1841
    %v1843 = vsel %vm989, %v1834, %v1836
    %v1844 = vsel %vm989, %v1836, %v1838
    %v1845 = vsel %vm989, %v1838, %v1840
    %v1846 = vsel %vm989, %v1840, %v1842
    %v1852 = vsel %vm646, %v1827, 0
    %1854 = vmatprep.subr.mxu0 %v1844
    %1855 = vmatpush1.msra.mxu0 %v1843
    %1856 = vmatprep.subr.mxu0 0.0
    %1857 = vmatpush1.msra.mxu0 0.0
    %1858 = vmatprep.subr.mxu0 0.0
    %1859 = vmatpush1.msra.mxu0 0.0
    %1860 = vmatprep.subr.mxu0 0.0
    %1861 = vmatpush1.msra.mxu0 0.0
    %1862 = vmatprep.subr.mxu0 0.0
    %1863 = vmatpush1.msra.mxu0 0.0
    %1864 = vmatprep.subr.mxu0 0.0
    %1865 = vmatpush1.msra.mxu0 0.0
    %1866 = vmatprep.subr.mxu0 0.0
    %1867 = vmatpush1.msra.mxu0 0.0
    %1868 = vmatprep.subr.mxu0 0.0
    %1869 = vmatpush1.msra.mxu0 0.0
    %1870 = vmatprep.subr.mxu0 0.0
    %1871 = vmatpush1.msra.mxu0 0.0
    %1872 = vmatprep.subr.mxu0 0.0
    %1873 = vmatpush1.msra.mxu0 0.0
    %1874 = vmatprep.subr.mxu0 0.0
    %1875 = vmatpush1.msra.mxu0 0.0
    %1876 = vmatprep.subr.mxu0 0.0
    %1877 = vmatpush1.msra.mxu0 0.0
    %1878 = vmatprep.subr.mxu0 0.0
    %1879 = vmatpush1.msra.mxu0 0.0
    %1880 = vmatprep.subr.mxu0 0.0
    %1881 = vmatpush1.msra.mxu0 0.0
    %1882 = vmatprep.subr.mxu0 0.0
    %1883 = vmatpush1.msra.mxu0 0.0
    %1884 = vmatprep.subr.mxu0 0.0
    %1885 = vmatpush1.msra.mxu0 0.0
    %1886 = vmatprep.subr.mxu0 0.0
    %1887 = vmatpush1.msra.mxu0 0.0
    %1888 = vmatprep.subr.mxu0 0.0
    %1889 = vmatpush1.msra.mxu0 0.0
    %1890 = vmatprep.subr.mxu0 0.0
    %1891 = vmatpush1.msra.mxu0 0.0
    %1892 = vmatprep.subr.mxu0 0.0
    %1893 = vmatpush1.msra.mxu0 0.0
    %1894 = vmatprep.subr.mxu0 0.0
    %1895 = vmatpush1.msra.mxu0 0.0
    %1896 = vmatprep.subr.mxu0 0.0
    %1897 = vmatpush1.msra.mxu0 0.0
    %1898 = vmatprep.subr.mxu0 0.0
    %1899 = vmatpush1.msra.mxu0 0.0
    %1900 = vmatprep.subr.mxu0 0.0
    %1901 = vmatpush1.msra.mxu0 0.0
    %1902 = vmatprep.subr.mxu0 0.0
    %1903 = vmatpush1.msra.mxu0 0.0
    %1904 = vmatprep.subr.mxu0 0.0
    %1905 = vmatpush1.msra.mxu0 0.0
    %1906 = vmatprep.subr.mxu0 0.0
    %1907 = vmatpush1.msra.mxu0 0.0
    %1908 = vmatprep.subr.mxu0 0.0
    %1909 = vmatpush1.msra.mxu0 0.0
    %1910 = vmatprep.subr.mxu0 0.0
    %1911 = vmatpush1.msra.mxu0 0.0
    %1912 = vmatprep.subr.mxu0 0.0
    %1913 = vmatpush1.msra.mxu0 0.0
    %1914 = vmatprep.subr.mxu0 0.0
    %1915 = vmatpush1.msra.mxu0 0.0
    %1916 = vmatprep.subr.mxu0 0.0
    %1917 = vmatpush1.msra.mxu0 0.0
    %1918 = vmatprep.mubr.f32.mxu0 0.0
    %1919 = vmatmul.mubr.f32.gmra.mrb[0].mxu0 %v1852
    %v1920 = vpop.f32.mrb[0].mxu0
    %v1921 = vadd.f32 0.0, %v1920
    %v1922 = vpop.f32.mrb[0].mxu0
    %v1923 = vadd.f32 0.0, %v1922
    %1924 = vdwg.mxu0
    %1925 = vmatprep.subr.mxu0 %v1846
    %1926 = vmatpush1.msra.mxu0 %v1845
    %1927 = vmatprep.subr.mxu0 0.0
    %1928 = vmatpush1.msra.mxu0 0.0
    %1929 = vmatprep.subr.mxu0 0.0
    %1930 = vmatpush1.msra.mxu0 0.0
    %1931 = vmatprep.subr.mxu0 0.0
    %1932 = vmatpush1.msra.mxu0 0.0
    %1933 = vmatprep.subr.mxu0 0.0
    %1934 = vmatpush1.msra.mxu0 0.0
    %1935 = vmatprep.subr.mxu0 0.0
    %1936 = vmatpush1.msra.mxu0 0.0
    %1937 = vmatprep.subr.mxu0 0.0
    %1938 = vmatpush1.msra.mxu0 0.0
    %1939 = vmatprep.subr.mxu0 0.0
    %1940 = vmatpush1.msra.mxu0 0.0
    %1941 = vmatprep.subr.mxu0 0.0
    %1942 = vmatpush1.msra.mxu0 0.0
    %1943 = vmatprep.subr.mxu0 0.0
    %1944 = vmatpush1.msra.mxu0 0.0
    %1945 = vmatprep.subr.mxu0 0.0
    %1946 = vmatpush1.msra.mxu0 0.0
    %1947 = vmatprep.subr.mxu0 0.0
    %1948 = vmatpush1.msra.mxu0 0.0
    %1949 = vmatprep.subr.mxu0 0.0
    %1950 = vmatpush1.msra.mxu0 0.0
    %1951 = vmatprep.subr.mxu0 0.0
    %1952 = vmatpush1.msra.mxu0 0.0
    %1953 = vmatprep.subr.mxu0 0.0
    %1954 = vmatpush1.msra.mxu0 0.0
    %1955 = vmatprep.subr.mxu0 0.0
    %1956 = vmatpush1.msra.mxu0 0.0
    %1957 = vmatprep.subr.mxu0 0.0
    %1958 = vmatpush1.msra.mxu0 0.0
    %1959 = vmatprep.subr.mxu0 0.0
    %1960 = vmatpush1.msra.mxu0 0.0
    %1961 = vmatprep.subr.mxu0 0.0
    %1962 = vmatpush1.msra.mxu0 0.0
    %1963 = vmatprep.subr.mxu0 0.0
    %1964 = vmatpush1.msra.mxu0 0.0
    %1965 = vmatprep.subr.mxu0 0.0
    %1966 = vmatpush1.msra.mxu0 0.0
    %1967 = vmatprep.subr.mxu0 0.0
    %1968 = vmatpush1.msra.mxu0 0.0
    %1969 = vmatprep.subr.mxu0 0.0
    %1970 = vmatpush1.msra.mxu0 0.0
    %1971 = vmatprep.subr.mxu0 0.0
    %1972 = vmatpush1.msra.mxu0 0.0
    %1973 = vmatprep.subr.mxu0 0.0
    %1974 = vmatpush1.msra.mxu0 0.0
    %1975 = vmatprep.subr.mxu0 0.0
    %1976 = vmatpush1.msra.mxu0 0.0
    %1977 = vmatprep.subr.mxu0 0.0
    %1978 = vmatpush1.msra.mxu0 0.0
    %1979 = vmatprep.subr.mxu0 0.0
    %1980 = vmatpush1.msra.mxu0 0.0
    %1981 = vmatprep.subr.mxu0 0.0
    %1982 = vmatpush1.msra.mxu0 0.0
    %1983 = vmatprep.subr.mxu0 0.0
    %1984 = vmatpush1.msra.mxu0 0.0
    %1985 = vmatprep.subr.mxu0 0.0
    %1986 = vmatpush1.msra.mxu0 0.0
    %1987 = vmatprep.subr.mxu0 0.0
    %1988 = vmatpush1.msra.mxu0 0.0
    %1989 = vmatprep.mubr.f32.mxu0 0.0
    %1990 = vmatmul.mubr.f32.gmra.mrb[0].mxu0 %v1852
    %v1991 = vpop.f32.mrb[0].mxu0
    %v1992 = vadd.f32 0.0, %v1991
    %v1993 = vpop.f32.mrb[0].mxu0
    %v1994 = vadd.f32 0.0, %v1993
    %1995 = vdwg.mxu0
    %v1996 = vadd.f32 %v1781, %v1921
    %v1997 = vadd.f32 %v1782, %v1923
    %v1998 = vadd.f32 %v1783, %v1992
    %v1999 = vadd.f32 %v1784, %v1994
    %v2000 = vlaneseq
    %v2001 = vshrl.u32 %v2000, 7
    %v2002 = vsub.s32 7, %v2001
    %v2003 = vrot.slane %v523, %v2002
    %v2004 = vlaneseq
    %v2005 = vshrl.u32 %v2004, 7
    %v2006 = vsub.s32 7, %v2005
    %v2007 = vrot.slane %v524, %v2006
    %v2008 = vlaneseq
    %v2009 = vshrl.u32 %v2008, 7
    %v2010 = vsub.s32 7, %v2009
    %v2011 = vrot.slane %v525, %v2010
    %v2012 = vlaneseq
    %v2013 = vshrl.u32 %v2012, 7
    %v2014 = vsub.s32 7, %v2013
    %v2015 = vrot.slane %v526, %v2014
    %2020 = vrot.lane.b32.xlu0 %v2003, 96
    %v2021 = vpop.permute.xlu0 %2020
    %2022 = vrot.lane.b32.xlu0 %v2007, 96
    %v2023 = vpop.permute.xlu0 %2022
    %2024 = vrot.lane.b32.xlu0 %v2011, 96
    %v2025 = vpop.permute.xlu0 %2024
    %2026 = vrot.lane.b32.xlu0 %v2015, 96
    %v2027 = vpop.permute.xlu0 %2026
    %v2028 = vsel %vm637, %v2021, %v2023
    %v2029 = vsel %vm637, %v2023, %v2025
    %v2030 = vsel %vm637, %v2025, %v2027
    %v2036 = vmul.f32 %v531, %v2021
    %v2037 = vmul.f32 %v532, %v2028
    %v2038 = vmul.f32 %v533, %v2029
    %v2039 = vmul.f32 %v534, %v2030
    %v2040 = vmul.f32 %v535, %v2027
    %s2041 = scalar_lea.vmem %s7, 56
    %v2042 = vld [vmem:[%s2041] sm:$0xff]
    %2048 = vrot.lane.b32.xlu0 %v2036, 32
    %v2049 = vpop.permute.xlu0 %2048
    %2050 = vrot.lane.b32.xlu0 %v2037, 32
    %v2051 = vpop.permute.xlu0 %2050
    %2052 = vrot.lane.b32.xlu0 %v2038, 32
    %v2053 = vpop.permute.xlu0 %2052
    %2054 = vrot.lane.b32.xlu0 %v2039, 32
    %v2055 = vpop.permute.xlu0 %2054
    %2056 = vrot.lane.b32.xlu0 %v2040, 32
    %v2057 = vpop.permute.xlu0 %2056
    %v2058 = vsel %vm181, %v2049, %v2051
    %v2059 = vsel %vm181, %v2051, %v2053
    %v2060 = vsel %vm181, %v2053, %v2055
    %v2061 = vsel %vm181, %v2055, %v2057
    %v2067 = vsel %vm646, %v2042, 0
    %2069 = vmatprep.subr.mxu0 %v2059
    %2070 = vmatpush1.msra.mxu0 %v2058
    %2071 = vmatprep.subr.mxu0 0.0
    %2072 = vmatpush1.msra.mxu0 0.0
    %2073 = vmatprep.subr.mxu0 0.0
    %2074 = vmatpush1.msra.mxu0 0.0
    %2075 = vmatprep.subr.mxu0 0.0
    %2076 = vmatpush1.msra.mxu0 0.0
    %2077 = vmatprep.subr.mxu0 0.0
    %2078 = vmatpush1.msra.mxu0 0.0
    %2079 = vmatprep.subr.mxu0 0.0
    %2080 = vmatpush1.msra.mxu0 0.0
    %2081 = vmatprep.subr.mxu0 0.0
    %2082 = vmatpush1.msra.mxu0 0.0
    %2083 = vmatprep.subr.mxu0 0.0
    %2084 = vmatpush1.msra.mxu0 0.0
    %2085 = vmatprep.subr.mxu0 0.0
    %2086 = vmatpush1.msra.mxu0 0.0
    %2087 = vmatprep.subr.mxu0 0.0
    %2088 = vmatpush1.msra.mxu0 0.0
    %2089 = vmatprep.subr.mxu0 0.0
    %2090 = vmatpush1.msra.mxu0 0.0
    %2091 = vmatprep.subr.mxu0 0.0
    %2092 = vmatpush1.msra.mxu0 0.0
    %2093 = vmatprep.subr.mxu0 0.0
    %2094 = vmatpush1.msra.mxu0 0.0
    %2095 = vmatprep.subr.mxu0 0.0
    %2096 = vmatpush1.msra.mxu0 0.0
    %2097 = vmatprep.subr.mxu0 0.0
    %2098 = vmatpush1.msra.mxu0 0.0
    %2099 = vmatprep.subr.mxu0 0.0
    %2100 = vmatpush1.msra.mxu0 0.0
    %2101 = vmatprep.subr.mxu0 0.0
    %2102 = vmatpush1.msra.mxu0 0.0
    %2103 = vmatprep.subr.mxu0 0.0
    %2104 = vmatpush1.msra.mxu0 0.0
    %2105 = vmatprep.subr.mxu0 0.0
    %2106 = vmatpush1.msra.mxu0 0.0
    %2107 = vmatprep.subr.mxu0 0.0
    %2108 = vmatpush1.msra.mxu0 0.0
    %2109 = vmatprep.subr.mxu0 0.0
    %2110 = vmatpush1.msra.mxu0 0.0
    %2111 = vmatprep.subr.mxu0 0.0
    %2112 = vmatpush1.msra.mxu0 0.0
    %2113 = vmatprep.subr.mxu0 0.0
    %2114 = vmatpush1.msra.mxu0 0.0
    %2115 = vmatprep.subr.mxu0 0.0
    %2116 = vmatpush1.msra.mxu0 0.0
    %2117 = vmatprep.subr.mxu0 0.0
    %2118 = vmatpush1.msra.mxu0 0.0
    %2119 = vmatprep.subr.mxu0 0.0
    %2120 = vmatpush1.msra.mxu0 0.0
    %2121 = vmatprep.subr.mxu0 0.0
    %2122 = vmatpush1.msra.mxu0 0.0
    %2123 = vmatprep.subr.mxu0 0.0
    %2124 = vmatpush1.msra.mxu0 0.0
    %2125 = vmatprep.subr.mxu0 0.0
    %2126 = vmatpush1.msra.mxu0 0.0
    %2127 = vmatprep.subr.mxu0 0.0
    %2128 = vmatpush1.msra.mxu0 0.0
    %2129 = vmatprep.subr.mxu0 0.0
    %2130 = vmatpush1.msra.mxu0 0.0
    %2131 = vmatprep.subr.mxu0 0.0
    %2132 = vmatpush1.msra.mxu0 0.0
    %2133 = vmatprep.mubr.f32.mxu0 0.0
    %2134 = vmatmul.mubr.f32.gmra.mrb[0].mxu0 %v2067
    %v2135 = vpop.f32.mrb[0].mxu0
    %v2136 = vadd.f32 0.0, %v2135
    %v2137 = vpop.f32.mrb[0].mxu0
    %v2138 = vadd.f32 0.0, %v2137
    %2139 = vdwg.mxu0
    %2140 = vmatprep.subr.mxu0 %v2061
    %2141 = vmatpush1.msra.mxu0 %v2060
    %2142 = vmatprep.subr.mxu0 0.0
    %2143 = vmatpush1.msra.mxu0 0.0
    %2144 = vmatprep.subr.mxu0 0.0
    %2145 = vmatpush1.msra.mxu0 0.0
    %2146 = vmatprep.subr.mxu0 0.0
    %2147 = vmatpush1.msra.mxu0 0.0
    %2148 = vmatprep.subr.mxu0 0.0
    %2149 = vmatpush1.msra.mxu0 0.0
    %2150 = vmatprep.subr.mxu0 0.0
    %2151 = vmatpush1.msra.mxu0 0.0
    %2152 = vmatprep.subr.mxu0 0.0
    %2153 = vmatpush1.msra.mxu0 0.0
    %2154 = vmatprep.subr.mxu0 0.0
    %2155 = vmatpush1.msra.mxu0 0.0
    %2156 = vmatprep.subr.mxu0 0.0
    %2157 = vmatpush1.msra.mxu0 0.0
    %2158 = vmatprep.subr.mxu0 0.0
    %2159 = vmatpush1.msra.mxu0 0.0
    %2160 = vmatprep.subr.mxu0 0.0
    %2161 = vmatpush1.msra.mxu0 0.0
    %2162 = vmatprep.subr.mxu0 0.0
    %2163 = vmatpush1.msra.mxu0 0.0
    %2164 = vmatprep.subr.mxu0 0.0
    %2165 = vmatpush1.msra.mxu0 0.0
    %2166 = vmatprep.subr.mxu0 0.0
    %2167 = vmatpush1.msra.mxu0 0.0
    %2168 = vmatprep.subr.mxu0 0.0
    %2169 = vmatpush1.msra.mxu0 0.0
    %2170 = vmatprep.subr.mxu0 0.0
    %2171 = vmatpush1.msra.mxu0 0.0
    %2172 = vmatprep.subr.mxu0 0.0
    %2173 = vmatpush1.msra.mxu0 0.0
    %2174 = vmatprep.subr.mxu0 0.0
    %2175 = vmatpush1.msra.mxu0 0.0
    %2176 = vmatprep.subr.mxu0 0.0
    %2177 = vmatpush1.msra.mxu0 0.0
    %2178 = vmatprep.subr.mxu0 0.0
    %2179 = vmatpush1.msra.mxu0 0.0
    %2180 = vmatprep.subr.mxu0 0.0
    %2181 = vmatpush1.msra.mxu0 0.0
    %2182 = vmatprep.subr.mxu0 0.0
    %2183 = vmatpush1.msra.mxu0 0.0
    %2184 = vmatprep.subr.mxu0 0.0
    %2185 = vmatpush1.msra.mxu0 0.0
    %2186 = vmatprep.subr.mxu0 0.0
    %2187 = vmatpush1.msra.mxu0 0.0
    %2188 = vmatprep.subr.mxu0 0.0
    %2189 = vmatpush1.msra.mxu0 0.0
    %2190 = vmatprep.subr.mxu0 0.0
    %2191 = vmatpush1.msra.mxu0 0.0
    %2192 = vmatprep.subr.mxu0 0.0
    %2193 = vmatpush1.msra.mxu0 0.0
    %2194 = vmatprep.subr.mxu0 0.0
    %2195 = vmatpush1.msra.mxu0 0.0
    %2196 = vmatprep.subr.mxu0 0.0
    %2197 = vmatpush1.msra.mxu0 0.0
    %2198 = vmatprep.subr.mxu0 0.0
    %2199 = vmatpush1.msra.mxu0 0.0
    %2200 = vmatprep.subr.mxu0 0.0
    %2201 = vmatpush1.msra.mxu0 0.0
    %2202 = vmatprep.subr.mxu0 0.0
    %2203 = vmatpush1.msra.mxu0 0.0
    %2204 = vmatprep.mubr.f32.mxu0 0.0
    %2205 = vmatmul.mubr.f32.gmra.mrb[0].mxu0 %v2067
    %v2206 = vpop.f32.mrb[0].mxu0
    %v2207 = vadd.f32 0.0, %v2206
    %v2208 = vpop.f32.mrb[0].mxu0
    %v2209 = vadd.f32 0.0, %v2208
    %2210 = vdwg.mxu0
    %v2211 = vadd.f32 %v1996, %v2136
    %v2212 = vadd.f32 %v1997, %v2138
    %v2213 = vadd.f32 %v1998, %v2207
    %v2214 = vadd.f32 %v1999, %v2209
    %v2215 = vlaneseq
    %v2216 = vshrl.u32 %v2215, 7
    %v2217 = vsub.s32 0, %v2216
    %v2218 = vrot.slane %v527, %v2217
    %v2219 = vlaneseq
    %v2220 = vshrl.u32 %v2219, 7
    %v2221 = vsub.s32 0, %v2220
    %v2222 = vrot.slane %v528, %v2221
    %v2223 = vlaneseq
    %v2224 = vshrl.u32 %v2223, 7
    %v2225 = vsub.s32 0, %v2224
    %v2226 = vrot.slane %v529, %v2225
    %v2227 = vlaneseq
    %v2228 = vshrl.u32 %v2227, 7
    %v2229 = vsub.s32 0, %v2228
    %v2230 = vrot.slane %v530, %v2229
    %2235 = vrot.lane.b32.xlu0 %v2218, 97
    %v2236 = vpop.permute.xlu0 %2235
    %2237 = vrot.lane.b32.xlu0 %v2222, 97
    %v2238 = vpop.permute.xlu0 %2237
    %2239 = vrot.lane.b32.xlu0 %v2226, 97
    %v2240 = vpop.permute.xlu0 %2239
    %2241 = vrot.lane.b32.xlu0 %v2230, 97
    %v2242 = vpop.permute.xlu0 %2241
    %v2243 = vsel %vm807, %v2236, %v2238
    %v2244 = vsel %vm807, %v2238, %v2240
    %v2245 = vsel %vm807, %v2240, %v2242
    %v2251 = vmul.f32 %v531, %v2236
    %v2252 = vmul.f32 %v532, %v2243
    %v2253 = vmul.f32 %v533, %v2244
    %v2254 = vmul.f32 %v534, %v2245
    %v2255 = vmul.f32 %v535, %v2242
    %s2256 = scalar_lea.vmem %s7, 64
    %v2257 = vld [vmem:[%s2256] sm:$0xff]
    %2263 = vrot.lane.b32.xlu0 %v2251, 31
    %v2264 = vpop.permute.xlu0 %2263
    %2265 = vrot.lane.b32.xlu0 %v2252, 31
    %v2266 = vpop.permute.xlu0 %2265
    %2267 = vrot.lane.b32.xlu0 %v2253, 31
    %v2268 = vpop.permute.xlu0 %2267
    %2269 = vrot.lane.b32.xlu0 %v2254, 31
    %v2270 = vpop.permute.xlu0 %2269
    %2271 = vrot.lane.b32.xlu0 %v2255, 31
    %v2272 = vpop.permute.xlu0 %2271
    %v2273 = vsel %vm564, %v2264, %v2266
    %v2274 = vsel %vm564, %v2266, %v2268
    %v2275 = vsel %vm564, %v2268, %v2270
    %v2276 = vsel %vm564, %v2270, %v2272
    %v2282 = vsel %vm646, %v2257, 0
    %2284 = vmatprep.subr.mxu0 %v2274
    %2285 = vmatpush1.msra.mxu0 %v2273
    %2286 = vmatprep.subr.mxu0 0.0
    %2287 = vmatpush1.msra.mxu0 0.0
    %2288 = vmatprep.subr.mxu0 0.0
    %2289 = vmatpush1.msra.mxu0 0.0
    %2290 = vmatprep.subr.mxu0 0.0
    %2291 = vmatpush1.msra.mxu0 0.0
    %2292 = vmatprep.subr.mxu0 0.0
    %2293 = vmatpush1.msra.mxu0 0.0
    %2294 = vmatprep.subr.mxu0 0.0
    %2295 = vmatpush1.msra.mxu0 0.0
    %2296 = vmatprep.subr.mxu0 0.0
    %2297 = vmatpush1.msra.mxu0 0.0
    %2298 = vmatprep.subr.mxu0 0.0
    %2299 = vmatpush1.msra.mxu0 0.0
    %2300 = vmatprep.subr.mxu0 0.0
    %2301 = vmatpush1.msra.mxu0 0.0
    %2302 = vmatprep.subr.mxu0 0.0
    %2303 = vmatpush1.msra.mxu0 0.0
    %2304 = vmatprep.subr.mxu0 0.0
    %2305 = vmatpush1.msra.mxu0 0.0
    %2306 = vmatprep.subr.mxu0 0.0
    %2307 = vmatpush1.msra.mxu0 0.0
    %2308 = vmatprep.subr.mxu0 0.0
    %2309 = vmatpush1.msra.mxu0 0.0
    %2310 = vmatprep.subr.mxu0 0.0
    %2311 = vmatpush1.msra.mxu0 0.0
    %2312 = vmatprep.subr.mxu0 0.0
    %2313 = vmatpush1.msra.mxu0 0.0
    %2314 = vmatprep.subr.mxu0 0.0
    %2315 = vmatpush1.msra.mxu0 0.0
    %2316 = vmatprep.subr.mxu0 0.0
    %2317 = vmatpush1.msra.mxu0 0.0
    %2318 = vmatprep.subr.mxu0 0.0
    %2319 = vmatpush1.msra.mxu0 0.0
    %2320 = vmatprep.subr.mxu0 0.0
    %2321 = vmatpush1.msra.mxu0 0.0
    %2322 = vmatprep.subr.mxu0 0.0
    %2323 = vmatpush1.msra.mxu0 0.0
    %2324 = vmatprep.subr.mxu0 0.0
    %2325 = vmatpush1.msra.mxu0 0.0
    %2326 = vmatprep.subr.mxu0 0.0
    %2327 = vmatpush1.msra.mxu0 0.0
    %2328 = vmatprep.subr.mxu0 0.0
    %2329 = vmatpush1.msra.mxu0 0.0
    %2330 = vmatprep.subr.mxu0 0.0
    %2331 = vmatpush1.msra.mxu0 0.0
    %2332 = vmatprep.subr.mxu0 0.0
    %2333 = vmatpush1.msra.mxu0 0.0
    %2334 = vmatprep.subr.mxu0 0.0
    %2335 = vmatpush1.msra.mxu0 0.0
    %2336 = vmatprep.subr.mxu0 0.0
    %2337 = vmatpush1.msra.mxu0 0.0
    %2338 = vmatprep.subr.mxu0 0.0
    %2339 = vmatpush1.msra.mxu0 0.0
    %2340 = vmatprep.subr.mxu0 0.0
    %2341 = vmatpush1.msra.mxu0 0.0
    %2342 = vmatprep.subr.mxu0 0.0
    %2343 = vmatpush1.msra.mxu0 0.0
    %2344 = vmatprep.subr.mxu0 0.0
    %2345 = vmatpush1.msra.mxu0 0.0
    %2346 = vmatprep.subr.mxu0 0.0
    %2347 = vmatpush1.msra.mxu0 0.0
    %2348 = vmatprep.mubr.f32.mxu0 0.0
    %2349 = vmatmul.mubr.f32.gmra.mrb[0].mxu0 %v2282
    %v2350 = vpop.f32.mrb[0].mxu0
    %v2351 = vadd.f32 0.0, %v2350
    %v2352 = vpop.f32.mrb[0].mxu0
    %v2353 = vadd.f32 0.0, %v2352
    %2354 = vdwg.mxu0
    %2355 = vmatprep.subr.mxu0 %v2276
    %2356 = vmatpush1.msra.mxu0 %v2275
    %2357 = vmatprep.subr.mxu0 0.0
    %2358 = vmatpush1.msra.mxu0 0.0
    %2359 = vmatprep.subr.mxu0 0.0
    %2360 = vmatpush1.msra.mxu0 0.0
    %2361 = vmatprep.subr.mxu0 0.0
    %2362 = vmatpush1.msra.mxu0 0.0
    %2363 = vmatprep.subr.mxu0 0.0
    %2364 = vmatpush1.msra.mxu0 0.0
    %2365 = vmatprep.subr.mxu0 0.0
    %2366 = vmatpush1.msra.mxu0 0.0
    %2367 = vmatprep.subr.mxu0 0.0
    %2368 = vmatpush1.msra.mxu0 0.0
    %2369 = vmatprep.subr.mxu0 0.0
    %2370 = vmatpush1.msra.mxu0 0.0
    %2371 = vmatprep.subr.mxu0 0.0
    %2372 = vmatpush1.msra.mxu0 0.0
    %2373 = vmatprep.subr.mxu0 0.0
    %2374 = vmatpush1.msra.mxu0 0.0
    %2375 = vmatprep.subr.mxu0 0.0
    %2376 = vmatpush1.msra.mxu0 0.0
    %2377 = vmatprep.subr.mxu0 0.0
    %2378 = vmatpush1.msra.mxu0 0.0
    %2379 = vmatprep.subr.mxu0 0.0
    %2380 = vmatpush1.msra.mxu0 0.0
    %2381 = vmatprep.subr.mxu0 0.0
    %2382 = vmatpush1.msra.mxu0 0.0
    %2383 = vmatprep.subr.mxu0 0.0
    %2384 = vmatpush1.msra.mxu0 0.0
    %2385 = vmatprep.subr.mxu0 0.0
    %2386 = vmatpush1.msra.mxu0 0.0
    %2387 = vmatprep.subr.mxu0 0.0
    %2388 = vmatpush1.msra.mxu0 0.0
    %2389 = vmatprep.subr.mxu0 0.0
    %2390 = vmatpush1.msra.mxu0 0.0
    %2391 = vmatprep.subr.mxu0 0.0
    %2392 = vmatpush1.msra.mxu0 0.0
    %2393 = vmatprep.subr.mxu0 0.0
    %2394 = vmatpush1.msra.mxu0 0.0
    %2395 = vmatprep.subr.mxu0 0.0
    %2396 = vmatpush1.msra.mxu0 0.0
    %2397 = vmatprep.subr.mxu0 0.0
    %2398 = vmatpush1.msra.mxu0 0.0
    %2399 = vmatprep.subr.mxu0 0.0
    %2400 = vmatpush1.msra.mxu0 0.0
    %2401 = vmatprep.subr.mxu0 0.0
    %2402 = vmatpush1.msra.mxu0 0.0
    %2403 = vmatprep.subr.mxu0 0.0
    %2404 = vmatpush1.msra.mxu0 0.0
    %2405 = vmatprep.subr.mxu0 0.0
    %2406 = vmatpush1.msra.mxu0 0.0
    %2407 = vmatprep.subr.mxu0 0.0
    %2408 = vmatpush1.msra.mxu0 0.0
    %2409 = vmatprep.subr.mxu0 0.0
    %2410 = vmatpush1.msra.mxu0 0.0
    %2411 = vmatprep.subr.mxu0 0.0
    %2412 = vmatpush1.msra.mxu0 0.0
    %2413 = vmatprep.subr.mxu0 0.0
    %2414 = vmatpush1.msra.mxu0 0.0
    %2415 = vmatprep.subr.mxu0 0.0
    %2416 = vmatpush1.msra.mxu0 0.0
    %2417 = vmatprep.subr.mxu0 0.0
    %2418 = vmatpush1.msra.mxu0 0.0
    %2419 = vmatprep.mubr.f32.mxu0 0.0
    %2420 = vmatmul.mubr.f32.gmra.mrb[0].mxu0 %v2282
    %v2421 = vpop.f32.mrb[0].mxu0
    %v2422 = vadd.f32 0.0, %v2421
    %v2423 = vpop.f32.mrb[0].mxu0
    %v2424 = vadd.f32 0.0, %v2423
    %2425 = vdwg.mxu0
    %v2426 = vadd.f32 %v2211, %v2351
    %v2427 = vadd.f32 %v2212, %v2353
    %v2428 = vadd.f32 %v2213, %v2422
    %v2429 = vadd.f32 %v2214, %v2424
    %v2430 = vld [vmem:[%s8] sm:$0xff]
    %2432 = vset.pattern.permute.xlu0 0
    %2433 = vperm.xlu0 %2432, %v2430
    %v2434 = vpop.permute.xlu0 %2433
    %v2436 = vadd.f32 %v2426, %v2434
    %v2437 = vadd.f32 %v2427, %v2434
    %v2438 = vadd.f32 %v2428, %v2434
    %v2439 = vadd.f32 %v2429, %v2434
    %v2440 = vmax.f32 %v2436, 0.0
    %v2441 = vmax.f32 %v2437, 0.0
    %v2442 = vmax.f32 %v2438, 0.0
    %v2443 = vmax.f32 %v2439, 0.0
    %2448 = vrot.lane.b32.xlu0 %v2440, 64
    %v2449 = vpop.permute.xlu0 %2448
    %2450 = vrot.lane.b32.xlu0 %v2441, 64
    %v2451 = vpop.permute.xlu0 %2450
    %2452 = vrot.lane.b32.xlu0 %v2442, 64
    %v2453 = vpop.permute.xlu0 %2452
    %2454 = vrot.lane.b32.xlu0 %v2443, 64
    %v2455 = vpop.permute.xlu0 %2454
    %v2456 = vsel %vm1412, %v2449, %v2451
    %v2457 = vsel %vm1412, %v2451, %v2453
    %v2458 = vsel %vm1412, %v2453, %v2455
    %vm2464 = vcmask 1048064
    %2465 = vst.msk [vmem:[#allocation2] sm:$0xff] %vm2464, %v2449
    %2466 = vst [vmem:[#allocation2 + $0x8] sm:$0xff] %v2456
    %2467 = vst [vmem:[#allocation2 + $0x10] sm:$0xff] %v2457
    %2468 = vst [vmem:[#allocation2 + $0x18] sm:$0xff] %v2458
    %2469 = vst.msk [vmem:[#allocation2 + $0x20] sm:$0xff] %vm1412, %v2455
    %v2470 = vld [vmem:[#allocation2] sm:$0xff]
    %v2471 = vld [vmem:[#allocation2 + $0x8] sm:$0xff]
    %v2472 = vld [vmem:[#allocation2 + $0x10] sm:$0xff]
    %v2473 = vld [vmem:[#allocation2 + $0x18] sm:$0xff]
    %v2474 = vld [vmem:[#allocation2 + $0x20] sm:$0xff]
    %v2475 = vmul.f32 %v2470, %v557
    %v2476 = vmul.f32 %v2471, %v565
    %v2477 = vmul.f32 %v2472, %v566
    %v2478 = vmul.f32 %v2473, %v567
    %v2479 = vmul.f32 %v2474, %v563
    %v2480 = vld [vmem:[%s9] sm:$0xff]
    %v2481 = vmul.f32 %v2470, %v600
    %v2482 = vmul.f32 %v2471, %v607
    %v2483 = vmul.f32 %v2472, %v608
    %v2484 = vmul.f32 %v2473, %v609
    %v2485 = vmul.f32 %v2474, %v606
    %s2486 = scalar_lea.vmem %s9, 8
    %v2487 = vld [vmem:[%s2486] sm:$0xff]
    %2493 = vrot.lane.b32.xlu0 %v2481, 96
    %v2494 = vpop.permute.xlu0 %2493
    %2495 = vrot.lane.b32.xlu0 %v2482, 96
    %v2496 = vpop.permute.xlu0 %2495
    %2497 = vrot.lane.b32.xlu0 %v2483, 96
    %v2498 = vpop.permute.xlu0 %2497
    %2499 = vrot.lane.b32.xlu0 %v2484, 96
    %v2500 = vpop.permute.xlu0 %2499
    %2501 = vrot.lane.b32.xlu0 %v2485, 96
    %v2502 = vpop.permute.xlu0 %2501
    %v2503 = vsel %vm637, %v2494, %v2496
    %v2504 = vsel %vm637, %v2496, %v2498
    %v2505 = vsel %vm637, %v2498, %v2500
    %v2506 = vsel %vm637, %v2500, %v2502
    %v2512 = vsel %vm646, %v2487, 0
    %2514 = vmatprep.subr.mxu0 %v2504
    %2515 = vmatpush1.msra.mxu0 %v2503
    %2516 = vmatprep.subr.mxu0 0.0
    %2517 = vmatpush1.msra.mxu0 0.0
    %2518 = vmatprep.subr.mxu0 0.0
    %2519 = vmatpush1.msra.mxu0 0.0
    %2520 = vmatprep.subr.mxu0 0.0
    %2521 = vmatpush1.msra.mxu0 0.0
    %2522 = vmatprep.subr.mxu0 0.0
    %2523 = vmatpush1.msra.mxu0 0.0
    %2524 = vmatprep.subr.mxu0 0.0
    %2525 = vmatpush1.msra.mxu0 0.0
    %2526 = vmatprep.subr.mxu0 0.0
    %2527 = vmatpush1.msra.mxu0 0.0
    %2528 = vmatprep.subr.mxu0 0.0
    %2529 = vmatpush1.msra.mxu0 0.0
    %2530 = vmatprep.subr.mxu0 0.0
    %2531 = vmatpush1.msra.mxu0 0.0
    %2532 = vmatprep.subr.mxu0 0.0
    %2533 = vmatpush1.msra.mxu0 0.0
    %2534 = vmatprep.subr.mxu0 0.0
    %2535 = vmatpush1.msra.mxu0 0.0
    %2536 = vmatprep.subr.mxu0 0.0
    %2537 = vmatpush1.msra.mxu0 0.0
    %2538 = vmatprep.subr.mxu0 0.0
    %2539 = vmatpush1.msra.mxu0 0.0
    %2540 = vmatprep.subr.mxu0 0.0
    %2541 = vmatpush1.msra.mxu0 0.0
    %2542 = vmatprep.subr.mxu0 0.0
    %2543 = vmatpush1.msra.mxu0 0.0
    %2544 = vmatprep.subr.mxu0 0.0
    %2545 = vmatpush1.msra.mxu0 0.0
    %2546 = vmatprep.subr.mxu0 0.0
    %2547 = vmatpush1.msra.mxu0 0.0
    %2548 = vmatprep.subr.mxu0 0.0
    %2549 = vmatpush1.msra.mxu0 0.0
    %2550 = vmatprep.subr.mxu0 0.0
    %2551 = vmatpush1.msra.mxu0 0.0
    %2552 = vmatprep.subr.mxu0 0.0
    %2553 = vmatpush1.msra.mxu0 0.0
    %2554 = vmatprep.subr.mxu0 0.0
    %2555 = vmatpush1.msra.mxu0 0.0
    %2556 = vmatprep.subr.mxu0 0.0
    %2557 = vmatpush1.msra.mxu0 0.0
    %2558 = vmatprep.subr.mxu0 0.0
    %2559 = vmatpush1.msra.mxu0 0.0
    %2560 = vmatprep.subr.mxu0 0.0
    %2561 = vmatpush1.msra.mxu0 0.0
    %2562 = vmatprep.subr.mxu0 0.0
    %2563 = vmatpush1.msra.mxu0 0.0
    %2564 = vmatprep.subr.mxu0 0.0
    %2565 = vmatpush1.msra.mxu0 0.0
    %2566 = vmatprep.subr.mxu0 0.0
    %2567 = vmatpush1.msra.mxu0 0.0
    %2568 = vmatprep.subr.mxu0 0.0
    %2569 = vmatpush1.msra.mxu0 0.0
    %2570 = vmatprep.subr.mxu0 0.0
    %2571 = vmatpush1.msra.mxu0 0.0
    %2572 = vmatprep.subr.mxu0 0.0
    %2573 = vmatpush1.msra.mxu0 0.0
    %2574 = vmatprep.subr.mxu0 0.0
    %2575 = vmatpush1.msra.mxu0 0.0
    %2576 = vmatprep.subr.mxu0 0.0
    %2577 = vmatpush1.msra.mxu0 0.0
    %2578 = vmatprep.mubr.f32.mxu0 0.0
    %2579 = vmatmul.mubr.f32.gmra.mrb[0].mxu0 %v2512
    %v2580 = vpop.f32.mrb[0].mxu0
    %v2581 = vadd.f32 0.0, %v2580
    %v2582 = vpop.f32.mrb[0].mxu0
    %v2583 = vadd.f32 0.0, %v2582
    %2584 = vdwg.mxu0
    %2585 = vmatprep.subr.mxu0 %v2506
    %2586 = vmatpush1.msra.mxu0 %v2505
    %2587 = vmatprep.subr.mxu0 0.0
    %2588 = vmatpush1.msra.mxu0 0.0
    %2589 = vmatprep.subr.mxu0 0.0
    %2590 = vmatpush1.msra.mxu0 0.0
    %2591 = vmatprep.subr.mxu0 0.0
    %2592 = vmatpush1.msra.mxu0 0.0
    %2593 = vmatprep.subr.mxu0 0.0
    %2594 = vmatpush1.msra.mxu0 0.0
    %2595 = vmatprep.subr.mxu0 0.0
    %2596 = vmatpush1.msra.mxu0 0.0
    %2597 = vmatprep.subr.mxu0 0.0
    %2598 = vmatpush1.msra.mxu0 0.0
    %2599 = vmatprep.subr.mxu0 0.0
    %2600 = vmatpush1.msra.mxu0 0.0
    %2601 = vmatprep.subr.mxu0 0.0
    %2602 = vmatpush1.msra.mxu0 0.0
    %2603 = vmatprep.subr.mxu0 0.0
    %2604 = vmatpush1.msra.mxu0 0.0
    %2605 = vmatprep.subr.mxu0 0.0
    %2606 = vmatpush1.msra.mxu0 0.0
    %2607 = vmatprep.subr.mxu0 0.0
    %2608 = vmatpush1.msra.mxu0 0.0
    %2609 = vmatprep.subr.mxu0 0.0
    %2610 = vmatpush1.msra.mxu0 0.0
    %2611 = vmatprep.subr.mxu0 0.0
    %2612 = vmatpush1.msra.mxu0 0.0
    %2613 = vmatprep.subr.mxu0 0.0
    %2614 = vmatpush1.msra.mxu0 0.0
    %2615 = vmatprep.subr.mxu0 0.0
    %2616 = vmatpush1.msra.mxu0 0.0
    %2617 = vmatprep.subr.mxu0 0.0
    %2618 = vmatpush1.msra.mxu0 0.0
    %2619 = vmatprep.subr.mxu0 0.0
    %2620 = vmatpush1.msra.mxu0 0.0
    %2621 = vmatprep.subr.mxu0 0.0
    %2622 = vmatpush1.msra.mxu0 0.0
    %2623 = vmatprep.subr.mxu0 0.0
    %2624 = vmatpush1.msra.mxu0 0.0
    %2625 = vmatprep.subr.mxu0 0.0
    %2626 = vmatpush1.msra.mxu0 0.0
    %2627 = vmatprep.subr.mxu0 0.0
    %2628 = vmatpush1.msra.mxu0 0.0
    %2629 = vmatprep.subr.mxu0 0.0
    %2630 = vmatpush1.msra.mxu0 0.0
    %2631 = vmatprep.subr.mxu0 0.0
    %2632 = vmatpush1.msra.mxu0 0.0
    %2633 = vmatprep.subr.mxu0 0.0
    %2634 = vmatpush1.msra.mxu0 0.0
    %2635 = vmatprep.subr.mxu0 0.0
    %2636 = vmatpush1.msra.mxu0 0.0
    %2637 = vmatprep.subr.mxu0 0.0
    %2638 = vmatpush1.msra.mxu0 0.0
    %2639 = vmatprep.subr.mxu0 0.0
    %2640 = vmatpush1.msra.mxu0 0.0
    %2641 = vmatprep.subr.mxu0 0.0
    %2642 = vmatpush1.msra.mxu0 0.0
    %2643 = vmatprep.subr.mxu0 0.0
    %2644 = vmatpush1.msra.mxu0 0.0
    %2645 = vmatprep.subr.mxu0 0.0
    %2646 = vmatpush1.msra.mxu0 0.0
    %2647 = vmatprep.subr.mxu0 0.0
    %2648 = vmatpush1.msra.mxu0 0.0
    %2649 = vmatprep.mubr.f32.mxu0 0.0
    %2650 = vmatmul.mubr.f32.gmra.mrb[0].mxu0 %v2512
    %v2651 = vpop.f32.mrb[0].mxu0
    %v2652 = vadd.f32 0.0, %v2651
    %v2653 = vpop.f32.mrb[0].mxu0
    %v2654 = vadd.f32 0.0, %v2653
    %2655 = vdwg.mxu0
    %2661 = vrot.lane.b32.xlu0 %v2475, 97
    %v2662 = vpop.permute.xlu0 %2661
    %2663 = vrot.lane.b32.xlu0 %v2476, 97
    %v2664 = vpop.permute.xlu0 %2663
    %2665 = vrot.lane.b32.xlu0 %v2477, 97
    %v2666 = vpop.permute.xlu0 %2665
    %2667 = vrot.lane.b32.xlu0 %v2478, 97
    %v2668 = vpop.permute.xlu0 %2667
    %2669 = vrot.lane.b32.xlu0 %v2479, 97
    %v2670 = vpop.permute.xlu0 %2669
    %v2671 = vsel %vm807, %v2662, %v2664
    %v2672 = vsel %vm807, %v2664, %v2666
    %v2673 = vsel %vm807, %v2666, %v2668
    %v2674 = vsel %vm807, %v2668, %v2670
    %v2680 = vsel %vm646, %v2480, 0
    %2682 = vmatprep.subr.mxu0 %v2672
    %2683 = vmatpush1.msra.mxu0 %v2671
    %2684 = vmatprep.subr.mxu0 0.0
    %2685 = vmatpush1.msra.mxu0 0.0
    %2686 = vmatprep.subr.mxu0 0.0
    %2687 = vmatpush1.msra.mxu0 0.0
    %2688 = vmatprep.subr.mxu0 0.0
    %2689 = vmatpush1.msra.mxu0 0.0
    %2690 = vmatprep.subr.mxu0 0.0
    %2691 = vmatpush1.msra.mxu0 0.0
    %2692 = vmatprep.subr.mxu0 0.0
    %2693 = vmatpush1.msra.mxu0 0.0
    %2694 = vmatprep.subr.mxu0 0.0
    %2695 = vmatpush1.msra.mxu0 0.0
    %2696 = vmatprep.subr.mxu0 0.0
    %2697 = vmatpush1.msra.mxu0 0.0
    %2698 = vmatprep.subr.mxu0 0.0
    %2699 = vmatpush1.msra.mxu0 0.0
    %2700 = vmatprep.subr.mxu0 0.0
    %2701 = vmatpush1.msra.mxu0 0.0
    %2702 = vmatprep.subr.mxu0 0.0
    %2703 = vmatpush1.msra.mxu0 0.0
    %2704 = vmatprep.subr.mxu0 0.0
    %2705 = vmatpush1.msra.mxu0 0.0
    %2706 = vmatprep.subr.mxu0 0.0
    %2707 = vmatpush1.msra.mxu0 0.0
    %2708 = vmatprep.subr.mxu0 0.0
    %2709 = vmatpush1.msra.mxu0 0.0
    %2710 = vmatprep.subr.mxu0 0.0
    %2711 = vmatpush1.msra.mxu0 0.0
    %2712 = vmatprep.subr.mxu0 0.0
    %2713 = vmatpush1.msra.mxu0 0.0
    %2714 = vmatprep.subr.mxu0 0.0
    %2715 = vmatpush1.msra.mxu0 0.0
    %2716 = vmatprep.subr.mxu0 0.0
    %2717 = vmatpush1.msra.mxu0 0.0
    %2718 = vmatprep.subr.mxu0 0.0
    %2719 = vmatpush1.msra.mxu0 0.0
    %2720 = vmatprep.subr.mxu0 0.0
    %2721 = vmatpush1.msra.mxu0 0.0
    %2722 = vmatprep.subr.mxu0 0.0
    %2723 = vmatpush1.msra.mxu0 0.0
    %2724 = vmatprep.subr.mxu0 0.0
    %2725 = vmatpush1.msra.mxu0 0.0
    %2726 = vmatprep.subr.mxu0 0.0
    %2727 = vmatpush1.msra.mxu0 0.0
    %2728 = vmatprep.subr.mxu0 0.0
    %2729 = vmatpush1.msra.mxu0 0.0
    %2730 = vmatprep.subr.mxu0 0.0
    %2731 = vmatpush1.msra.mxu0 0.0
    %2732 = vmatprep.subr.mxu0 0.0
    %2733 = vmatpush1.msra.mxu0 0.0
    %2734 = vmatprep.subr.mxu0 0.0
    %2735 = vmatpush1.msra.mxu0 0.0
    %2736 = vmatprep.subr.mxu0 0.0
    %2737 = vmatpush1.msra.mxu0 0.0
    %2738 = vmatprep.subr.mxu0 0.0
    %2739 = vmatpush1.msra.mxu0 0.0
    %2740 = vmatprep.subr.mxu0 0.0
    %2741 = vmatpush1.msra.mxu0 0.0
    %2742 = vmatprep.subr.mxu0 0.0
    %2743 = vmatpush1.msra.mxu0 0.0
    %2744 = vmatprep.subr.mxu0 0.0
    %2745 = vmatpush1.msra.mxu0 0.0
    %2746 = vmatprep.mubr.f32.mxu0 0.0
    %2747 = vmatmul.mubr.f32.gmra.mrb[0].mxu0 %v2680
    %v2748 = vpop.f32.mrb[0].mxu0
    %v2749 = vadd.f32 %v2581, %v2748
    %v2750 = vpop.f32.mrb[0].mxu0
    %v2751 = vadd.f32 %v2583, %v2750
    %2752 = vdwg.mxu0
    %2753 = vmatprep.subr.mxu0 %v2674
    %2754 = vmatpush1.msra.mxu0 %v2673
    %2755 = vmatprep.subr.mxu0 0.0
    %2756 = vmatpush1.msra.mxu0 0.0
    %2757 = vmatprep.subr.mxu0 0.0
    %2758 = vmatpush1.msra.mxu0 0.0
    %2759 = vmatprep.subr.mxu0 0.0
    %2760 = vmatpush1.msra.mxu0 0.0
    %2761 = vmatprep.subr.mxu0 0.0
    %2762 = vmatpush1.msra.mxu0 0.0
    %2763 = vmatprep.subr.mxu0 0.0
    %2764 = vmatpush1.msra.mxu0 0.0
    %2765 = vmatprep.subr.mxu0 0.0
    %2766 = vmatpush1.msra.mxu0 0.0
    %2767 = vmatprep.subr.mxu0 0.0
    %2768 = vmatpush1.msra.mxu0 0.0
    %2769 = vmatprep.subr.mxu0 0.0
    %2770 = vmatpush1.msra.mxu0 0.0
    %2771 = vmatprep.subr.mxu0 0.0
    %2772 = vmatpush1.msra.mxu0 0.0
    %2773 = vmatprep.subr.mxu0 0.0
    %2774 = vmatpush1.msra.mxu0 0.0
    %2775 = vmatprep.subr.mxu0 0.0
    %2776 = vmatpush1.msra.mxu0 0.0
    %2777 = vmatprep.subr.mxu0 0.0
    %2778 = vmatpush1.msra.mxu0 0.0
    %2779 = vmatprep.subr.mxu0 0.0
    %2780 = vmatpush1.msra.mxu0 0.0
    %2781 = vmatprep.subr.mxu0 0.0
    %2782 = vmatpush1.msra.mxu0 0.0
    %2783 = vmatprep.subr.mxu0 0.0
    %2784 = vmatpush1.msra.mxu0 0.0
    %2785 = vmatprep.subr.mxu0 0.0
    %2786 = vmatpush1.msra.mxu0 0.0
    %2787 = vmatprep.subr.mxu0 0.0
    %2788 = vmatpush1.msra.mxu0 0.0
    %2789 = vmatprep.subr.mxu0 0.0
    %2790 = vmatpush1.msra.mxu0 0.0
    %2791 = vmatprep.subr.mxu0 0.0
    %2792 = vmatpush1.msra.mxu0 0.0
    %2793 = vmatprep.subr.mxu0 0.0
    %2794 = vmatpush1.msra.mxu0 0.0
    %2795 = vmatprep.subr.mxu0 0.0
    %2796 = vmatpush1.msra.mxu0 0.0
    %2797 = vmatprep.subr.mxu0 0.0
    %2798 = vmatpush1.msra.mxu0 0.0
    %2799 = vmatprep.subr.mxu0 0.0
    %2800 = vmatpush1.msra.mxu0 0.0
    %2801 = vmatprep.subr.mxu0 0.0
    %2802 = vmatpush1.msra.mxu0 0.0
    %2803 = vmatprep.subr.mxu0 0.0
    %2804 = vmatpush1.msra.mxu0 0.0
    %2805 = vmatprep.subr.mxu0 0.0
    %2806 = vmatpush1.msra.mxu0 0.0
    %2807 = vmatprep.subr.mxu0 0.0
    %2808 = vmatpush1.msra.mxu0 0.0
    %2809 = vmatprep.subr.mxu0 0.0
    %2810 = vmatpush1.msra.mxu0 0.0
    %2811 = vmatprep.subr.mxu0 0.0
    %2812 = vmatpush1.msra.mxu0 0.0
    %2813 = vmatprep.subr.mxu0 0.0
    %2814 = vmatpush1.msra.mxu0 0.0
    %2815 = vmatprep.subr.mxu0 0.0
    %2816 = vmatpush1.msra.mxu0 0.0
    %2817 = vmatprep.mubr.f32.mxu0 0.0
    %2818 = vmatmul.mubr.f32.gmra.mrb[0].mxu0 %v2680
    %v2819 = vpop.f32.mrb[0].mxu0
    %v2820 = vadd.f32 %v2652, %v2819
    %v2821 = vpop.f32.mrb[0].mxu0
    %v2822 = vadd.f32 %v2654, %v2821
    %2823 = vdwg.mxu0
    %v2824 = vmul.f32 %v2470, %v982
    %v2825 = vmul.f32 %v2471, %v990
    %v2826 = vmul.f32 %v2472, %v991
    %v2827 = vmul.f32 %v2473, %v992
    %v2828 = vmul.f32 %v2474, %v988
    %s2829 = scalar_lea.vmem %s9, 16
    %v2830 = vld [vmem:[%s2829] sm:$0xff]
    %2836 = vrot.lane.b32.xlu0 %v2824, 95
    %v2837 = vpop.permute.xlu0 %2836
    %2838 = vrot.lane.b32.xlu0 %v2825, 95
    %v2839 = vpop.permute.xlu0 %2838
    %2840 = vrot.lane.b32.xlu0 %v2826, 95
    %v2841 = vpop.permute.xlu0 %2840
    %2842 = vrot.lane.b32.xlu0 %v2827, 95
    %v2843 = vpop.permute.xlu0 %2842
    %2844 = vrot.lane.b32.xlu0 %v2828, 95
    %v2845 = vpop.permute.xlu0 %2844
    %v2846 = vsel %vm1020, %v2837, %v2839
    %v2847 = vsel %vm1020, %v2839, %v2841
    %v2848 = vsel %vm1020, %v2841, %v2843
    %v2849 = vsel %vm1020, %v2843, %v2845
    %v2855 = vsel %vm646, %v2830, 0
    %2857 = vmatprep.subr.mxu0 %v2847
    %2858 = vmatpush1.msra.mxu0 %v2846
    %2859 = vmatprep.subr.mxu0 0.0
    %2860 = vmatpush1.msra.mxu0 0.0
    %2861 = vmatprep.subr.mxu0 0.0
    %2862 = vmatpush1.msra.mxu0 0.0
    %2863 = vmatprep.subr.mxu0 0.0
    %2864 = vmatpush1.msra.mxu0 0.0
    %2865 = vmatprep.subr.mxu0 0.0
    %2866 = vmatpush1.msra.mxu0 0.0
    %2867 = vmatprep.subr.mxu0 0.0
    %2868 = vmatpush1.msra.mxu0 0.0
    %2869 = vmatprep.subr.mxu0 0.0
    %2870 = vmatpush1.msra.mxu0 0.0
    %2871 = vmatprep.subr.mxu0 0.0
    %2872 = vmatpush1.msra.mxu0 0.0
    %2873 = vmatprep.subr.mxu0 0.0
    %2874 = vmatpush1.msra.mxu0 0.0
    %2875 = vmatprep.subr.mxu0 0.0
    %2876 = vmatpush1.msra.mxu0 0.0
    %2877 = vmatprep.subr.mxu0 0.0
    %2878 = vmatpush1.msra.mxu0 0.0
    %2879 = vmatprep.subr.mxu0 0.0
    %2880 = vmatpush1.msra.mxu0 0.0
    %2881 = vmatprep.subr.mxu0 0.0
    %2882 = vmatpush1.msra.mxu0 0.0
    %2883 = vmatprep.subr.mxu0 0.0
    %2884 = vmatpush1.msra.mxu0 0.0
    %2885 = vmatprep.subr.mxu0 0.0
    %2886 = vmatpush1.msra.mxu0 0.0
    %2887 = vmatprep.subr.mxu0 0.0
    %2888 = vmatpush1.msra.mxu0 0.0
    %2889 = vmatprep.subr.mxu0 0.0
    %2890 = vmatpush1.msra.mxu0 0.0
    %2891 = vmatprep.subr.mxu0 0.0
    %2892 = vmatpush1.msra.mxu0 0.0
    %2893 = vmatprep.subr.mxu0 0.0
    %2894 = vmatpush1.msra.mxu0 0.0
    %2895 = vmatprep.subr.mxu0 0.0
    %2896 = vmatpush1.msra.mxu0 0.0
    %2897 = vmatprep.subr.mxu0 0.0
    %2898 = vmatpush1.msra.mxu0 0.0
    %2899 = vmatprep.subr.mxu0 0.0
    %2900 = vmatpush1.msra.mxu0 0.0
    %2901 = vmatprep.subr.mxu0 0.0
    %2902 = vmatpush1.msra.mxu0 0.0
    %2903 = vmatprep.subr.mxu0 0.0
    %2904 = vmatpush1.msra.mxu0 0.0
    %2905 = vmatprep.subr.mxu0 0.0
    %2906 = vmatpush1.msra.mxu0 0.0
    %2907 = vmatprep.subr.mxu0 0.0
    %2908 = vmatpush1.msra.mxu0 0.0
    %2909 = vmatprep.subr.mxu0 0.0
    %2910 = vmatpush1.msra.mxu0 0.0
    %2911 = vmatprep.subr.mxu0 0.0
    %2912 = vmatpush1.msra.mxu0 0.0
    %2913 = vmatprep.subr.mxu0 0.0
    %2914 = vmatpush1.msra.mxu0 0.0
    %2915 = vmatprep.subr.mxu0 0.0
    %2916 = vmatpush1.msra.mxu0 0.0
    %2917 = vmatprep.subr.mxu0 0.0
    %2918 = vmatpush1.msra.mxu0 0.0
    %2919 = vmatprep.subr.mxu0 0.0
    %2920 = vmatpush1.msra.mxu0 0.0
    %2921 = vmatprep.mubr.f32.mxu0 0.0
    %2922 = vmatmul.mubr.f32.gmra.mrb[0].mxu0 %v2855
    %v2923 = vpop.f32.mrb[0].mxu0
    %v2924 = vadd.f32 0.0, %v2923
    %v2925 = vpop.f32.mrb[0].mxu0
    %v2926 = vadd.f32 0.0, %v2925
    %2927 = vdwg.mxu0
    %2928 = vmatprep.subr.mxu0 %v2849
    %2929 = vmatpush1.msra.mxu0 %v2848
    %2930 = vmatprep.subr.mxu0 0.0
    %2931 = vmatpush1.msra.mxu0 0.0
    %2932 = vmatprep.subr.mxu0 0.0
    %2933 = vmatpush1.msra.mxu0 0.0
    %2934 = vmatprep.subr.mxu0 0.0
    %2935 = vmatpush1.msra.mxu0 0.0
    %2936 = vmatprep.subr.mxu0 0.0
    %2937 = vmatpush1.msra.mxu0 0.0
    %2938 = vmatprep.subr.mxu0 0.0
    %2939 = vmatpush1.msra.mxu0 0.0
    %2940 = vmatprep.subr.mxu0 0.0
    %2941 = vmatpush1.msra.mxu0 0.0
    %2942 = vmatprep.subr.mxu0 0.0
    %2943 = vmatpush1.msra.mxu0 0.0
    %2944 = vmatprep.subr.mxu0 0.0
    %2945 = vmatpush1.msra.mxu0 0.0
    %2946 = vmatprep.subr.mxu0 0.0
    %2947 = vmatpush1.msra.mxu0 0.0
    %2948 = vmatprep.subr.mxu0 0.0
    %2949 = vmatpush1.msra.mxu0 0.0
    %2950 = vmatprep.subr.mxu0 0.0
    %2951 = vmatpush1.msra.mxu0 0.0
    %2952 = vmatprep.subr.mxu0 0.0
    %2953 = vmatpush1.msra.mxu0 0.0
    %2954 = vmatprep.subr.mxu0 0.0
    %2955 = vmatpush1.msra.mxu0 0.0
    %2956 = vmatprep.subr.mxu0 0.0
    %2957 = vmatpush1.msra.mxu0 0.0
    %2958 = vmatprep.subr.mxu0 0.0
    %2959 = vmatpush1.msra.mxu0 0.0
    %2960 = vmatprep.subr.mxu0 0.0
    %2961 = vmatpush1.msra.mxu0 0.0
    %2962 = vmatprep.subr.mxu0 0.0
    %2963 = vmatpush1.msra.mxu0 0.0
    %2964 = vmatprep.subr.mxu0 0.0
    %2965 = vmatpush1.msra.mxu0 0.0
    %2966 = vmatprep.subr.mxu0 0.0
    %2967 = vmatpush1.msra.mxu0 0.0
    %2968 = vmatprep.subr.mxu0 0.0
    %2969 = vmatpush1.msra.mxu0 0.0
    %2970 = vmatprep.subr.mxu0 0.0
    %2971 = vmatpush1.msra.mxu0 0.0
    %2972 = vmatprep.subr.mxu0 0.0
    %2973 = vmatpush1.msra.mxu0 0.0
    %2974 = vmatprep.subr.mxu0 0.0
    %2975 = vmatpush1.msra.mxu0 0.0
    %2976 = vmatprep.subr.mxu0 0.0
    %2977 = vmatpush1.msra.mxu0 0.0
    %2978 = vmatprep.subr.mxu0 0.0
    %2979 = vmatpush1.msra.mxu0 0.0
    %2980 = vmatprep.subr.mxu0 0.0
    %2981 = vmatpush1.msra.mxu0 0.0
    %2982 = vmatprep.subr.mxu0 0.0
    %2983 = vmatpush1.msra.mxu0 0.0
    %2984 = vmatprep.subr.mxu0 0.0
    %2985 = vmatpush1.msra.mxu0 0.0
    %2986 = vmatprep.subr.mxu0 0.0
    %2987 = vmatpush1.msra.mxu0 0.0
    %2988 = vmatprep.subr.mxu0 0.0
    %2989 = vmatpush1.msra.mxu0 0.0
    %2990 = vmatprep.subr.mxu0 0.0
    %2991 = vmatpush1.msra.mxu0 0.0
    %2992 = vmatprep.mubr.f32.mxu0 0.0
    %2993 = vmatmul.mubr.f32.gmra.mrb[0].mxu0 %v2855
    %v2994 = vpop.f32.mrb[0].mxu0
    %v2995 = vadd.f32 0.0, %v2994
    %v2996 = vpop.f32.mrb[0].mxu0
    %v2997 = vadd.f32 0.0, %v2996
    %2998 = vdwg.mxu0
    %v2999 = vadd.f32 %v2749, %v2924
    %v3000 = vadd.f32 %v2751, %v2926
    %v3001 = vadd.f32 %v2820, %v2995
    %v3002 = vadd.f32 %v2822, %v2997
    %v3003 = vmul.f32 %v2470, %v1199
    %v3004 = vmul.f32 %v2471, %v1207
    %v3005 = vmul.f32 %v2472, %v1208
    %v3006 = vmul.f32 %v2473, %v1209
    %v3007 = vmul.f32 %v2474, %v1205
    %s3008 = scalar_lea.vmem %s9, 24
    %v3009 = vld [vmem:[%s3008] sm:$0xff]
    %3015 = vrot.lane.b32.xlu0 %v3003, 65
    %v3016 = vpop.permute.xlu0 %3015
    %3017 = vrot.lane.b32.xlu0 %v3004, 65
    %v3018 = vpop.permute.xlu0 %3017
    %3019 = vrot.lane.b32.xlu0 %v3005, 65
    %v3020 = vpop.permute.xlu0 %3019
    %3021 = vrot.lane.b32.xlu0 %v3006, 65
    %v3022 = vpop.permute.xlu0 %3021
    %3023 = vrot.lane.b32.xlu0 %v3007, 65
    %v3024 = vpop.permute.xlu0 %3023
    %v3025 = vsel %vm1237, %v3016, %v3018
    %v3026 = vsel %vm1237, %v3018, %v3020
    %v3027 = vsel %vm1237, %v3020, %v3022
    %v3028 = vsel %vm1237, %v3022, %v3024
    %v3034 = vsel %vm646, %v3009, 0
    %3036 = vmatprep.subr.mxu0 %v3026
    %3037 = vmatpush1.msra.mxu0 %v3025
    %3038 = vmatprep.subr.mxu0 0.0
    %3039 = vmatpush1.msra.mxu0 0.0
    %3040 = vmatprep.subr.mxu0 0.0
    %3041 = vmatpush1.msra.mxu0 0.0
    %3042 = vmatprep.subr.mxu0 0.0
    %3043 = vmatpush1.msra.mxu0 0.0
    %3044 = vmatprep.subr.mxu0 0.0
    %3045 = vmatpush1.msra.mxu0 0.0
    %3046 = vmatprep.subr.mxu0 0.0
    %3047 = vmatpush1.msra.mxu0 0.0
    %3048 = vmatprep.subr.mxu0 0.0
    %3049 = vmatpush1.msra.mxu0 0.0
    %3050 = vmatprep.subr.mxu0 0.0
    %3051 = vmatpush1.msra.mxu0 0.0
    %3052 = vmatprep.subr.mxu0 0.0
    %3053 = vmatpush1.msra.mxu0 0.0
    %3054 = vmatprep.subr.mxu0 0.0
    %3055 = vmatpush1.msra.mxu0 0.0
    %3056 = vmatprep.subr.mxu0 0.0
    %3057 = vmatpush1.msra.mxu0 0.0
    %3058 = vmatprep.subr.mxu0 0.0
    %3059 = vmatpush1.msra.mxu0 0.0
    %3060 = vmatprep.subr.mxu0 0.0
    %3061 = vmatpush1.msra.mxu0 0.0
    %3062 = vmatprep.subr.mxu0 0.0
    %3063 = vmatpush1.msra.mxu0 0.0
    %3064 = vmatprep.subr.mxu0 0.0
    %3065 = vmatpush1.msra.mxu0 0.0
    %3066 = vmatprep.subr.mxu0 0.0
    %3067 = vmatpush1.msra.mxu0 0.0
    %3068 = vmatprep.subr.mxu0 0.0
    %3069 = vmatpush1.msra.mxu0 0.0
    %3070 = vmatprep.subr.mxu0 0.0
    %3071 = vmatpush1.msra.mxu0 0.0
    %3072 = vmatprep.subr.mxu0 0.0
    %3073 = vmatpush1.msra.mxu0 0.0
    %3074 = vmatprep.subr.mxu0 0.0
    %3075 = vmatpush1.msra.mxu0 0.0
    %3076 = vmatprep.subr.mxu0 0.0
    %3077 = vmatpush1.msra.mxu0 0.0
    %3078 = vmatprep.subr.mxu0 0.0
    %3079 = vmatpush1.msra.mxu0 0.0
    %3080 = vmatprep.subr.mxu0 0.0
    %3081 = vmatpush1.msra.mxu0 0.0
    %3082 = vmatprep.subr.mxu0 0.0
    %3083 = vmatpush1.msra.mxu0 0.0
    %3084 = vmatprep.subr.mxu0 0.0
    %3085 = vmatpush1.msra.mxu0 0.0
    %3086 = vmatprep.subr.mxu0 0.0
    %3087 = vmatpush1.msra.mxu0 0.0
    %3088 = vmatprep.subr.mxu0 0.0
    %3089 = vmatpush1.msra.mxu0 0.0
    %3090 = vmatprep.subr.mxu0 0.0
    %3091 = vmatpush1.msra.mxu0 0.0
    %3092 = vmatprep.subr.mxu0 0.0
    %3093 = vmatpush1.msra.mxu0 0.0
    %3094 = vmatprep.subr.mxu0 0.0
    %3095 = vmatpush1.msra.mxu0 0.0
    %3096 = vmatprep.subr.mxu0 0.0
    %3097 = vmatpush1.msra.mxu0 0.0
    %3098 = vmatprep.subr.mxu0 0.0
    %3099 = vmatpush1.msra.mxu0 0.0
    %3100 = vmatprep.mubr.f32.mxu0 0.0
    %3101 = vmatmul.mubr.f32.gmra.mrb[0].mxu0 %v3034
    %v3102 = vpop.f32.mrb[0].mxu0
    %v3103 = vadd.f32 0.0, %v3102
    %v3104 = vpop.f32.mrb[0].mxu0
    %v3105 = vadd.f32 0.0, %v3104
    %3106 = vdwg.mxu0
    %3107 = vmatprep.subr.mxu0 %v3028
    %3108 = vmatpush1.msra.mxu0 %v3027
    %3109 = vmatprep.subr.mxu0 0.0
    %3110 = vmatpush1.msra.mxu0 0.0
    %3111 = vmatprep.subr.mxu0 0.0
    %3112 = vmatpush1.msra.mxu0 0.0
    %3113 = vmatprep.subr.mxu0 0.0
    %3114 = vmatpush1.msra.mxu0 0.0
    %3115 = vmatprep.subr.mxu0 0.0
    %3116 = vmatpush1.msra.mxu0 0.0
    %3117 = vmatprep.subr.mxu0 0.0
    %3118 = vmatpush1.msra.mxu0 0.0
    %3119 = vmatprep.subr.mxu0 0.0
    %3120 = vmatpush1.msra.mxu0 0.0
    %3121 = vmatprep.subr.mxu0 0.0
    %3122 = vmatpush1.msra.mxu0 0.0
    %3123 = vmatprep.subr.mxu0 0.0
    %3124 = vmatpush1.msra.mxu0 0.0
    %3125 = vmatprep.subr.mxu0 0.0
    %3126 = vmatpush1.msra.mxu0 0.0
    %3127 = vmatprep.subr.mxu0 0.0
    %3128 = vmatpush1.msra.mxu0 0.0
    %3129 = vmatprep.subr.mxu0 0.0
    %3130 = vmatpush1.msra.mxu0 0.0
    %3131 = vmatprep.subr.mxu0 0.0
    %3132 = vmatpush1.msra.mxu0 0.0
    %3133 = vmatprep.subr.mxu0 0.0
    %3134 = vmatpush1.msra.mxu0 0.0
    %3135 = vmatprep.subr.mxu0 0.0
    %3136 = vmatpush1.msra.mxu0 0.0
    %3137 = vmatprep.subr.mxu0 0.0
    %3138 = vmatpush1.msra.mxu0 0.0
    %3139 = vmatprep.subr.mxu0 0.0
    %3140 = vmatpush1.msra.mxu0 0.0
    %3141 = vmatprep.subr.mxu0 0.0
    %3142 = vmatpush1.msra.mxu0 0.0
    %3143 = vmatprep.subr.mxu0 0.0
    %3144 = vmatpush1.msra.mxu0 0.0
    %3145 = vmatprep.subr.mxu0 0.0
    %3146 = vmatpush1.msra.mxu0 0.0
    %3147 = vmatprep.subr.mxu0 0.0
    %3148 = vmatpush1.msra.mxu0 0.0
    %3149 = vmatprep.subr.mxu0 0.0
    %3150 = vmatpush1.msra.mxu0 0.0
    %3151 = vmatprep.subr.mxu0 0.0
    %3152 = vmatpush1.msra.mxu0 0.0
    %3153 = vmatprep.subr.mxu0 0.0
    %3154 = vmatpush1.msra.mxu0 0.0
    %3155 = vmatprep.subr.mxu0 0.0
    %3156 = vmatpush1.msra.mxu0 0.0
    %3157 = vmatprep.subr.mxu0 0.0
    %3158 = vmatpush1.msra.mxu0 0.0
    %3159 = vmatprep.subr.mxu0 0.0
    %3160 = vmatpush1.msra.mxu0 0.0
    %3161 = vmatprep.subr.mxu0 0.0
    %3162 = vmatpush1.msra.mxu0 0.0
    %3163 = vmatprep.subr.mxu0 0.0
    %3164 = vmatpush1.msra.mxu0 0.0
    %3165 = vmatprep.subr.mxu0 0.0
    %3166 = vmatpush1.msra.mxu0 0.0
    %3167 = vmatprep.subr.mxu0 0.0
    %3168 = vmatpush1.msra.mxu0 0.0
    %3169 = vmatprep.subr.mxu0 0.0
    %3170 = vmatpush1.msra.mxu0 0.0
    %3171 = vmatprep.mubr.f32.mxu0 0.0
    %3172 = vmatmul.mubr.f32.gmra.mrb[0].mxu0 %v3034
    %v3173 = vpop.f32.mrb[0].mxu0
    %v3174 = vadd.f32 0.0, %v3173
    %v3175 = vpop.f32.mrb[0].mxu0
    %v3176 = vadd.f32 0.0, %v3175
    %3177 = vdwg.mxu0
    %v3178 = vadd.f32 %v2999, %v3103
    %v3179 = vadd.f32 %v3000, %v3105
    %v3180 = vadd.f32 %v3001, %v3174
    %v3181 = vadd.f32 %v3002, %v3176
    %s3182 = scalar_lea.vmem %s9, 32
    %v3183 = vld [vmem:[%s3182] sm:$0xff]
    %3189 = vrot.lane.b32.xlu0 %v2470, 64
    %v3190 = vpop.permute.xlu0 %3189
    %3191 = vrot.lane.b32.xlu0 %v2471, 64
    %v3192 = vpop.permute.xlu0 %3191
    %3193 = vrot.lane.b32.xlu0 %v2472, 64
    %v3194 = vpop.permute.xlu0 %3193
    %3195 = vrot.lane.b32.xlu0 %v2473, 64
    %v3196 = vpop.permute.xlu0 %3195
    %3197 = vrot.lane.b32.xlu0 %v2474, 64
    %v3198 = vpop.permute.xlu0 %3197
    %v3199 = vsel %vm1412, %v3190, %v3192
    %v3200 = vsel %vm1412, %v3192, %v3194
    %v3201 = vsel %vm1412, %v3194, %v3196
    %v3202 = vsel %vm1412, %v3196, %v3198
    %v3208 = vsel %vm646, %v3183, 0
    %3210 = vmatprep.subr.mxu0 %v3200
    %3211 = vmatpush1.msra.mxu0 %v3199
    %3212 = vmatprep.subr.mxu0 0.0
    %3213 = vmatpush1.msra.mxu0 0.0
    %3214 = vmatprep.subr.mxu0 0.0
    %3215 = vmatpush1.msra.mxu0 0.0
    %3216 = vmatprep.subr.mxu0 0.0
    %3217 = vmatpush1.msra.mxu0 0.0
    %3218 = vmatprep.subr.mxu0 0.0
    %3219 = vmatpush1.msra.mxu0 0.0
    %3220 = vmatprep.subr.mxu0 0.0
    %3221 = vmatpush1.msra.mxu0 0.0
    %3222 = vmatprep.subr.mxu0 0.0
    %3223 = vmatpush1.msra.mxu0 0.0
    %3224 = vmatprep.subr.mxu0 0.0
    %3225 = vmatpush1.msra.mxu0 0.0
    %3226 = vmatprep.subr.mxu0 0.0
    %3227 = vmatpush1.msra.mxu0 0.0
    %3228 = vmatprep.subr.mxu0 0.0
    %3229 = vmatpush1.msra.mxu0 0.0
    %3230 = vmatprep.subr.mxu0 0.0
    %3231 = vmatpush1.msra.mxu0 0.0
    %3232 = vmatprep.subr.mxu0 0.0
    %3233 = vmatpush1.msra.mxu0 0.0
    %3234 = vmatprep.subr.mxu0 0.0
    %3235 = vmatpush1.msra.mxu0 0.0
    %3236 = vmatprep.subr.mxu0 0.0
    %3237 = vmatpush1.msra.mxu0 0.0
    %3238 = vmatprep.subr.mxu0 0.0
    %3239 = vmatpush1.msra.mxu0 0.0
    %3240 = vmatprep.subr.mxu0 0.0
    %3241 = vmatpush1.msra.mxu0 0.0
    %3242 = vmatprep.subr.mxu0 0.0
    %3243 = vmatpush1.msra.mxu0 0.0
    %3244 = vmatprep.subr.mxu0 0.0
    %3245 = vmatpush1.msra.mxu0 0.0
    %3246 = vmatprep.subr.mxu0 0.0
    %3247 = vmatpush1.msra.mxu0 0.0
    %3248 = vmatprep.subr.mxu0 0.0
    %3249 = vmatpush1.msra.mxu0 0.0
    %3250 = vmatprep.subr.mxu0 0.0
    %3251 = vmatpush1.msra.mxu0 0.0
    %3252 = vmatprep.subr.mxu0 0.0
    %3253 = vmatpush1.msra.mxu0 0.0
    %3254 = vmatprep.subr.mxu0 0.0
    %3255 = vmatpush1.msra.mxu0 0.0
    %3256 = vmatprep.subr.mxu0 0.0
    %3257 = vmatpush1.msra.mxu0 0.0
    %3258 = vmatprep.subr.mxu0 0.0
    %3259 = vmatpush1.msra.mxu0 0.0
    %3260 = vmatprep.subr.mxu0 0.0
    %3261 = vmatpush1.msra.mxu0 0.0
    %3262 = vmatprep.subr.mxu0 0.0
    %3263 = vmatpush1.msra.mxu0 0.0
    %3264 = vmatprep.subr.mxu0 0.0
    %3265 = vmatpush1.msra.mxu0 0.0
    %3266 = vmatprep.subr.mxu0 0.0
    %3267 = vmatpush1.msra.mxu0 0.0
    %3268 = vmatprep.subr.mxu0 0.0
    %3269 = vmatpush1.msra.mxu0 0.0
    %3270 = vmatprep.subr.mxu0 0.0
    %3271 = vmatpush1.msra.mxu0 0.0
    %3272 = vmatprep.subr.mxu0 0.0
    %3273 = vmatpush1.msra.mxu0 0.0
    %3274 = vmatprep.mubr.f32.mxu0 0.0
    %3275 = vmatmul.mubr.f32.gmra.mrb[0].mxu0 %v3208
    %v3276 = vpop.f32.mrb[0].mxu0
    %v3277 = vadd.f32 0.0, %v3276
    %v3278 = vpop.f32.mrb[0].mxu0
    %v3279 = vadd.f32 0.0, %v3278
    %3280 = vdwg.mxu0
    %3281 = vmatprep.subr.mxu0 %v3202
    %3282 = vmatpush1.msra.mxu0 %v3201
    %3283 = vmatprep.subr.mxu0 0.0
    %3284 = vmatpush1.msra.mxu0 0.0
    %3285 = vmatprep.subr.mxu0 0.0
    %3286 = vmatpush1.msra.mxu0 0.0
    %3287 = vmatprep.subr.mxu0 0.0
    %3288 = vmatpush1.msra.mxu0 0.0
    %3289 = vmatprep.subr.mxu0 0.0
    %3290 = vmatpush1.msra.mxu0 0.0
    %3291 = vmatprep.subr.mxu0 0.0
    %3292 = vmatpush1.msra.mxu0 0.0
    %3293 = vmatprep.subr.mxu0 0.0
    %3294 = vmatpush1.msra.mxu0 0.0
    %3295 = vmatprep.subr.mxu0 0.0
    %3296 = vmatpush1.msra.mxu0 0.0
    %3297 = vmatprep.subr.mxu0 0.0
    %3298 = vmatpush1.msra.mxu0 0.0
    %3299 = vmatprep.subr.mxu0 0.0
    %3300 = vmatpush1.msra.mxu0 0.0
    %3301 = vmatprep.subr.mxu0 0.0
    %3302 = vmatpush1.msra.mxu0 0.0
    %3303 = vmatprep.subr.mxu0 0.0
    %3304 = vmatpush1.msra.mxu0 0.0
    %3305 = vmatprep.subr.mxu0 0.0
    %3306 = vmatpush1.msra.mxu0 0.0
    %3307 = vmatprep.subr.mxu0 0.0
    %3308 = vmatpush1.msra.mxu0 0.0
    %3309 = vmatprep.subr.mxu0 0.0
    %3310 = vmatpush1.msra.mxu0 0.0
    %3311 = vmatprep.subr.mxu0 0.0
    %3312 = vmatpush1.msra.mxu0 0.0
    %3313 = vmatprep.subr.mxu0 0.0
    %3314 = vmatpush1.msra.mxu0 0.0
    %3315 = vmatprep.subr.mxu0 0.0
    %3316 = vmatpush1.msra.mxu0 0.0
    %3317 = vmatprep.subr.mxu0 0.0
    %3318 = vmatpush1.msra.mxu0 0.0
    %3319 = vmatprep.subr.mxu0 0.0
    %3320 = vmatpush1.msra.mxu0 0.0
    %3321 = vmatprep.subr.mxu0 0.0
    %3322 = vmatpush1.msra.mxu0 0.0
    %3323 = vmatprep.subr.mxu0 0.0
    %3324 = vmatpush1.msra.mxu0 0.0
    %3325 = vmatprep.subr.mxu0 0.0
    %3326 = vmatpush1.msra.mxu0 0.0
    %3327 = vmatprep.subr.mxu0 0.0
    %3328 = vmatpush1.msra.mxu0 0.0
    %3329 = vmatprep.subr.mxu0 0.0
    %3330 = vmatpush1.msra.mxu0 0.0
    %3331 = vmatprep.subr.mxu0 0.0
    %3332 = vmatpush1.msra.mxu0 0.0
    %3333 = vmatprep.subr.mxu0 0.0
    %3334 = vmatpush1.msra.mxu0 0.0
    %3335 = vmatprep.subr.mxu0 0.0
    %3336 = vmatpush1.msra.mxu0 0.0
    %3337 = vmatprep.subr.mxu0 0.0
    %3338 = vmatpush1.msra.mxu0 0.0
    %3339 = vmatprep.subr.mxu0 0.0
    %3340 = vmatpush1.msra.mxu0 0.0
    %3341 = vmatprep.subr.mxu0 0.0
    %3342 = vmatpush1.msra.mxu0 0.0
    %3343 = vmatprep.subr.mxu0 0.0
    %3344 = vmatpush1.msra.mxu0 0.0
    %3345 = vmatprep.mubr.f32.mxu0 0.0
    %3346 = vmatmul.mubr.f32.gmra.mrb[0].mxu0 %v3208
    %v3347 = vpop.f32.mrb[0].mxu0
    %v3348 = vadd.f32 0.0, %v3347
    %v3349 = vpop.f32.mrb[0].mxu0
    %v3350 = vadd.f32 0.0, %v3349
    %3351 = vdwg.mxu0
    %v3352 = vadd.f32 %v3178, %v3277
    %v3353 = vadd.f32 %v3179, %v3279
    %v3354 = vadd.f32 %v3180, %v3348
    %v3355 = vadd.f32 %v3181, %v3350
    %v3356 = vmul.f32 %v2470, %v1591
    %v3357 = vmul.f32 %v2471, %v1598
    %v3358 = vmul.f32 %v2472, %v1599
    %v3359 = vmul.f32 %v2473, %v1600
    %v3360 = vmul.f32 %v2474, %v1597
    %s3361 = scalar_lea.vmem %s9, 40
    %v3362 = vld [vmem:[%s3361] sm:$0xff]
    %3368 = vrot.lane.b32.xlu0 %v3356, 63
    %v3369 = vpop.permute.xlu0 %3368
    %3370 = vrot.lane.b32.xlu0 %v3357, 63
    %v3371 = vpop.permute.xlu0 %3370
    %3372 = vrot.lane.b32.xlu0 %v3358, 63
    %v3373 = vpop.permute.xlu0 %3372
    %3374 = vrot.lane.b32.xlu0 %v3359, 63
    %v3375 = vpop.permute.xlu0 %3374
    %3376 = vrot.lane.b32.xlu0 %v3360, 63
    %v3377 = vpop.permute.xlu0 %3376
    %v3378 = vsel %vm1206, %v3369, %v3371
    %v3379 = vsel %vm1206, %v3371, %v3373
    %v3380 = vsel %vm1206, %v3373, %v3375
    %v3381 = vsel %vm1206, %v3375, %v3377
    %v3387 = vsel %vm646, %v3362, 0
    %3389 = vmatprep.subr.mxu0 %v3379
    %3390 = vmatpush1.msra.mxu0 %v3378
    %3391 = vmatprep.subr.mxu0 0.0
    %3392 = vmatpush1.msra.mxu0 0.0
    %3393 = vmatprep.subr.mxu0 0.0
    %3394 = vmatpush1.msra.mxu0 0.0
    %3395 = vmatprep.subr.mxu0 0.0
    %3396 = vmatpush1.msra.mxu0 0.0
    %3397 = vmatprep.subr.mxu0 0.0
    %3398 = vmatpush1.msra.mxu0 0.0
    %3399 = vmatprep.subr.mxu0 0.0
    %3400 = vmatpush1.msra.mxu0 0.0
    %3401 = vmatprep.subr.mxu0 0.0
    %3402 = vmatpush1.msra.mxu0 0.0
    %3403 = vmatprep.subr.mxu0 0.0
    %3404 = vmatpush1.msra.mxu0 0.0
    %3405 = vmatprep.subr.mxu0 0.0
    %3406 = vmatpush1.msra.mxu0 0.0
    %3407 = vmatprep.subr.mxu0 0.0
    %3408 = vmatpush1.msra.mxu0 0.0
    %3409 = vmatprep.subr.mxu0 0.0
    %3410 = vmatpush1.msra.mxu0 0.0
    %3411 = vmatprep.subr.mxu0 0.0
    %3412 = vmatpush1.msra.mxu0 0.0
    %3413 = vmatprep.subr.mxu0 0.0
    %3414 = vmatpush1.msra.mxu0 0.0
    %3415 = vmatprep.subr.mxu0 0.0
    %3416 = vmatpush1.msra.mxu0 0.0
    %3417 = vmatprep.subr.mxu0 0.0
    %3418 = vmatpush1.msra.mxu0 0.0
    %3419 = vmatprep.subr.mxu0 0.0
    %3420 = vmatpush1.msra.mxu0 0.0
    %3421 = vmatprep.subr.mxu0 0.0
    %3422 = vmatpush1.msra.mxu0 0.0
    %3423 = vmatprep.subr.mxu0 0.0
    %3424 = vmatpush1.msra.mxu0 0.0
    %3425 = vmatprep.subr.mxu0 0.0
    %3426 = vmatpush1.msra.mxu0 0.0
    %3427 = vmatprep.subr.mxu0 0.0
    %3428 = vmatpush1.msra.mxu0 0.0
    %3429 = vmatprep.subr.mxu0 0.0
    %3430 = vmatpush1.msra.mxu0 0.0
    %3431 = vmatprep.subr.mxu0 0.0
    %3432 = vmatpush1.msra.mxu0 0.0
    %3433 = vmatprep.subr.mxu0 0.0
    %3434 = vmatpush1.msra.mxu0 0.0
    %3435 = vmatprep.subr.mxu0 0.0
    %3436 = vmatpush1.msra.mxu0 0.0
    %3437 = vmatprep.subr.mxu0 0.0
    %3438 = vmatpush1.msra.mxu0 0.0
    %3439 = vmatprep.subr.mxu0 0.0
    %3440 = vmatpush1.msra.mxu0 0.0
    %3441 = vmatprep.subr.mxu0 0.0
    %3442 = vmatpush1.msra.mxu0 0.0
    %3443 = vmatprep.subr.mxu0 0.0
    %3444 = vmatpush1.msra.mxu0 0.0
    %3445 = vmatprep.subr.mxu0 0.0
    %3446 = vmatpush1.msra.mxu0 0.0
    %3447 = vmatprep.subr.mxu0 0.0
    %3448 = vmatpush1.msra.mxu0 0.0
    %3449 = vmatprep.subr.mxu0 0.0
    %3450 = vmatpush1.msra.mxu0 0.0
    %3451 = vmatprep.subr.mxu0 0.0
    %3452 = vmatpush1.msra.mxu0 0.0
    %3453 = vmatprep.mubr.f32.mxu0 0.0
    %3454 = vmatmul.mubr.f32.gmra.mrb[0].mxu0 %v3387
    %v3455 = vpop.f32.mrb[0].mxu0
    %v3456 = vadd.f32 0.0, %v3455
    %v3457 = vpop.f32.mrb[0].mxu0
    %v3458 = vadd.f32 0.0, %v3457
    %3459 = vdwg.mxu0
    %3460 = vmatprep.subr.mxu0 %v3381
    %3461 = vmatpush1.msra.mxu0 %v3380
    %3462 = vmatprep.subr.mxu0 0.0
    %3463 = vmatpush1.msra.mxu0 0.0
    %3464 = vmatprep.subr.mxu0 0.0
    %3465 = vmatpush1.msra.mxu0 0.0
    %3466 = vmatprep.subr.mxu0 0.0
    %3467 = vmatpush1.msra.mxu0 0.0
    %3468 = vmatprep.subr.mxu0 0.0
    %3469 = vmatpush1.msra.mxu0 0.0
    %3470 = vmatprep.subr.mxu0 0.0
    %3471 = vmatpush1.msra.mxu0 0.0
    %3472 = vmatprep.subr.mxu0 0.0
    %3473 = vmatpush1.msra.mxu0 0.0
    %3474 = vmatprep.subr.mxu0 0.0
    %3475 = vmatpush1.msra.mxu0 0.0
    %3476 = vmatprep.subr.mxu0 0.0
    %3477 = vmatpush1.msra.mxu0 0.0
    %3478 = vmatprep.subr.mxu0 0.0
    %3479 = vmatpush1.msra.mxu0 0.0
    %3480 = vmatprep.subr.mxu0 0.0
    %3481 = vmatpush1.msra.mxu0 0.0
    %3482 = vmatprep.subr.mxu0 0.0
    %3483 = vmatpush1.msra.mxu0 0.0
    %3484 = vmatprep.subr.mxu0 0.0
    %3485 = vmatpush1.msra.mxu0 0.0
    %3486 = vmatprep.subr.mxu0 0.0
    %3487 = vmatpush1.msra.mxu0 0.0
    %3488 = vmatprep.subr.mxu0 0.0
    %3489 = vmatpush1.msra.mxu0 0.0
    %3490 = vmatprep.subr.mxu0 0.0
    %3491 = vmatpush1.msra.mxu0 0.0
    %3492 = vmatprep.subr.mxu0 0.0
    %3493 = vmatpush1.msra.mxu0 0.0
    %3494 = vmatprep.subr.mxu0 0.0
    %3495 = vmatpush1.msra.mxu0 0.0
    %3496 = vmatprep.subr.mxu0 0.0
    %3497 = vmatpush1.msra.mxu0 0.0
    %3498 = vmatprep.subr.mxu0 0.0
    %3499 = vmatpush1.msra.mxu0 0.0
    %3500 = vmatprep.subr.mxu0 0.0
    %3501 = vmatpush1.msra.mxu0 0.0
    %3502 = vmatprep.subr.mxu0 0.0
    %3503 = vmatpush1.msra.mxu0 0.0
    %3504 = vmatprep.subr.mxu0 0.0
    %3505 = vmatpush1.msra.mxu0 0.0
    %3506 = vmatprep.subr.mxu0 0.0
    %3507 = vmatpush1.msra.mxu0 0.0
    %3508 = vmatprep.subr.mxu0 0.0
    %3509 = vmatpush1.msra.mxu0 0.0
    %3510 = vmatprep.subr.mxu0 0.0
    %3511 = vmatpush1.msra.mxu0 0.0
    %3512 = vmatprep.subr.mxu0 0.0
    %3513 = vmatpush1.msra.mxu0 0.0
    %3514 = vmatprep.subr.mxu0 0.0
    %3515 = vmatpush1.msra.mxu0 0.0
    %3516 = vmatprep.subr.mxu0 0.0
    %3517 = vmatpush1.msra.mxu0 0.0
    %3518 = vmatprep.subr.mxu0 0.0
    %3519 = vmatpush1.msra.mxu0 0.0
    %3520 = vmatprep.subr.mxu0 0.0
    %3521 = vmatpush1.msra.mxu0 0.0
    %3522 = vmatprep.subr.mxu0 0.0
    %3523 = vmatpush1.msra.mxu0 0.0
    %3524 = vmatprep.mubr.f32.mxu0 0.0
    %3525 = vmatmul.mubr.f32.gmra.mrb[0].mxu0 %v3387
    %v3526 = vpop.f32.mrb[0].mxu0
    %v3527 = vadd.f32 0.0, %v3526
    %v3528 = vpop.f32.mrb[0].mxu0
    %v3529 = vadd.f32 0.0, %v3528
    %3530 = vdwg.mxu0
    %v3531 = vadd.f32 %v3352, %v3456
    %v3532 = vadd.f32 %v3353, %v3458
    %v3533 = vadd.f32 %v3354, %v3527
    %v3534 = vadd.f32 %v3355, %v3529
    %v3535 = vmul.f32 %v2470, %v1806
    %v3536 = vmul.f32 %v2471, %v1813
    %v3537 = vmul.f32 %v2472, %v1814
    %v3538 = vmul.f32 %v2473, %v1815
    %v3539 = vmul.f32 %v2474, %v1812
    %s3540 = scalar_lea.vmem %s9, 48
    %v3541 = vld [vmem:[%s3540] sm:$0xff]
    %3547 = vrot.lane.b32.xlu0 %v3535, 33
    %v3548 = vpop.permute.xlu0 %3547
    %3549 = vrot.lane.b32.xlu0 %v3536, 33
    %v3550 = vpop.permute.xlu0 %3549
    %3551 = vrot.lane.b32.xlu0 %v3537, 33
    %v3552 = vpop.permute.xlu0 %3551
    %3553 = vrot.lane.b32.xlu0 %v3538, 33
    %v3554 = vpop.permute.xlu0 %3553
    %3555 = vrot.lane.b32.xlu0 %v3539, 33
    %v3556 = vpop.permute.xlu0 %3555
    %v3557 = vsel %vm989, %v3548, %v3550
    %v3558 = vsel %vm989, %v3550, %v3552
    %v3559 = vsel %vm989, %v3552, %v3554
    %v3560 = vsel %vm989, %v3554, %v3556
    %v3566 = vsel %vm646, %v3541, 0
    %3568 = vmatprep.subr.mxu0 %v3558
    %3569 = vmatpush1.msra.mxu0 %v3557
    %3570 = vmatprep.subr.mxu0 0.0
    %3571 = vmatpush1.msra.mxu0 0.0
    %3572 = vmatprep.subr.mxu0 0.0
    %3573 = vmatpush1.msra.mxu0 0.0
    %3574 = vmatprep.subr.mxu0 0.0
    %3575 = vmatpush1.msra.mxu0 0.0
    %3576 = vmatprep.subr.mxu0 0.0
    %3577 = vmatpush1.msra.mxu0 0.0
    %3578 = vmatprep.subr.mxu0 0.0
    %3579 = vmatpush1.msra.mxu0 0.0
    %3580 = vmatprep.subr.mxu0 0.0
    %3581 = vmatpush1.msra.mxu0 0.0
    %3582 = vmatprep.subr.mxu0 0.0
    %3583 = vmatpush1.msra.mxu0 0.0
    %3584 = vmatprep.subr.mxu0 0.0
    %3585 = vmatpush1.msra.mxu0 0.0
    %3586 = vmatprep.subr.mxu0 0.0
    %3587 = vmatpush1.msra.mxu0 0.0
    %3588 = vmatprep.subr.mxu0 0.0
    %3589 = vmatpush1.msra.mxu0 0.0
    %3590 = vmatprep.subr.mxu0 0.0
    %3591 = vmatpush1.msra.mxu0 0.0
    %3592 = vmatprep.subr.mxu0 0.0
    %3593 = vmatpush1.msra.mxu0 0.0
    %3594 = vmatprep.subr.mxu0 0.0
    %3595 = vmatpush1.msra.mxu0 0.0
    %3596 = vmatprep.subr.mxu0 0.0
    %3597 = vmatpush1.msra.mxu0 0.0
    %3598 = vmatprep.subr.mxu0 0.0
    %3599 = vmatpush1.msra.mxu0 0.0
    %3600 = vmatprep.subr.mxu0 0.0
    %3601 = vmatpush1.msra.mxu0 0.0
    %3602 = vmatprep.subr.mxu0 0.0
    %3603 = vmatpush1.msra.mxu0 0.0
    %3604 = vmatprep.subr.mxu0 0.0
    %3605 = vmatpush1.msra.mxu0 0.0
    %3606 = vmatprep.subr.mxu0 0.0
    %3607 = vmatpush1.msra.mxu0 0.0
    %3608 = vmatprep.subr.mxu0 0.0
    %3609 = vmatpush1.msra.mxu0 0.0
    %3610 = vmatprep.subr.mxu0 0.0
    %3611 = vmatpush1.msra.mxu0 0.0
    %3612 = vmatprep.subr.mxu0 0.0
    %3613 = vmatpush1.msra.mxu0 0.0
    %3614 = vmatprep.subr.mxu0 0.0
    %3615 = vmatpush1.msra.mxu0 0.0
    %3616 = vmatprep.subr.mxu0 0.0
    %3617 = vmatpush1.msra.mxu0 0.0
    %3618 = vmatprep.subr.mxu0 0.0
    %3619 = vmatpush1.msra.mxu0 0.0
    %3620 = vmatprep.subr.mxu0 0.0
    %3621 = vmatpush1.msra.mxu0 0.0
    %3622 = vmatprep.subr.mxu0 0.0
    %3623 = vmatpush1.msra.mxu0 0.0
    %3624 = vmatprep.subr.mxu0 0.0
    %3625 = vmatpush1.msra.mxu0 0.0
    %3626 = vmatprep.subr.mxu0 0.0
    %3627 = vmatpush1.msra.mxu0 0.0
    %3628 = vmatprep.subr.mxu0 0.0
    %3629 = vmatpush1.msra.mxu0 0.0
    %3630 = vmatprep.subr.mxu0 0.0
    %3631 = vmatpush1.msra.mxu0 0.0
    %3632 = vmatprep.mubr.f32.mxu0 0.0
    %3633 = vmatmul.mubr.f32.gmra.mrb[0].mxu0 %v3566
    %v3634 = vpop.f32.mrb[0].mxu0
    %v3635 = vadd.f32 0.0, %v3634
    %v3636 = vpop.f32.mrb[0].mxu0
    %v3637 = vadd.f32 0.0, %v3636
    %3638 = vdwg.mxu0
    %3639 = vmatprep.subr.mxu0 %v3560
    %3640 = vmatpush1.msra.mxu0 %v3559
    %3641 = vmatprep.subr.mxu0 0.0
    %3642 = vmatpush1.msra.mxu0 0.0
    %3643 = vmatprep.subr.mxu0 0.0
    %3644 = vmatpush1.msra.mxu0 0.0
    %3645 = vmatprep.subr.mxu0 0.0
    %3646 = vmatpush1.msra.mxu0 0.0
    %3647 = vmatprep.subr.mxu0 0.0
    %3648 = vmatpush1.msra.mxu0 0.0
    %3649 = vmatprep.subr.mxu0 0.0
    %3650 = vmatpush1.msra.mxu0 0.0
    %3651 = vmatprep.subr.mxu0 0.0
    %3652 = vmatpush1.msra.mxu0 0.0
    %3653 = vmatprep.subr.mxu0 0.0
    %3654 = vmatpush1.msra.mxu0 0.0
    %3655 = vmatprep.subr.mxu0 0.0
    %3656 = vmatpush1.msra.mxu0 0.0
    %3657 = vmatprep.subr.mxu0 0.0
    %3658 = vmatpush1.msra.mxu0 0.0
    %3659 = vmatprep.subr.mxu0 0.0
    %3660 = vmatpush1.msra.mxu0 0.0
    %3661 = vmatprep.subr.mxu0 0.0
    %3662 = vmatpush1.msra.mxu0 0.0
    %3663 = vmatprep.subr.mxu0 0.0
    %3664 = vmatpush1.msra.mxu0 0.0
    %3665 = vmatprep.subr.mxu0 0.0
    %3666 = vmatpush1.msra.mxu0 0.0
    %3667 = vmatprep.subr.mxu0 0.0
    %3668 = vmatpush1.msra.mxu0 0.0
    %3669 = vmatprep.subr.mxu0 0.0
    %3670 = vmatpush1.msra.mxu0 0.0
    %3671 = vmatprep.subr.mxu0 0.0
    %3672 = vmatpush1.msra.mxu0 0.0
    %3673 = vmatprep.subr.mxu0 0.0
    %3674 = vmatpush1.msra.mxu0 0.0
    %3675 = vmatprep.subr.mxu0 0.0
    %3676 = vmatpush1.msra.mxu0 0.0
    %3677 = vmatprep.subr.mxu0 0.0
    %3678 = vmatpush1.msra.mxu0 0.0
    %3679 = vmatprep.subr.mxu0 0.0
    %3680 = vmatpush1.msra.mxu0 0.0
    %3681 = vmatprep.subr.mxu0 0.0
    %3682 = vmatpush1.msra.mxu0 0.0
    %3683 = vmatprep.subr.mxu0 0.0
    %3684 = vmatpush1.msra.mxu0 0.0
    %3685 = vmatprep.subr.mxu0 0.0
    %3686 = vmatpush1.msra.mxu0 0.0
    %3687 = vmatprep.subr.mxu0 0.0
    %3688 = vmatpush1.msra.mxu0 0.0
    %3689 = vmatprep.subr.mxu0 0.0
    %3690 = vmatpush1.msra.mxu0 0.0
    %3691 = vmatprep.subr.mxu0 0.0
    %3692 = vmatpush1.msra.mxu0 0.0
    %3693 = vmatprep.subr.mxu0 0.0
    %3694 = vmatpush1.msra.mxu0 0.0
    %3695 = vmatprep.subr.mxu0 0.0
    %3696 = vmatpush1.msra.mxu0 0.0
    %3697 = vmatprep.subr.mxu0 0.0
    %3698 = vmatpush1.msra.mxu0 0.0
    %3699 = vmatprep.subr.mxu0 0.0
    %3700 = vmatpush1.msra.mxu0 0.0
    %3701 = vmatprep.subr.mxu0 0.0
    %3702 = vmatpush1.msra.mxu0 0.0
    %3703 = vmatprep.mubr.f32.mxu0 0.0
    %3704 = vmatmul.mubr.f32.gmra.mrb[0].mxu0 %v3566
    %v3705 = vpop.f32.mrb[0].mxu0
    %v3706 = vadd.f32 0.0, %v3705
    %v3707 = vpop.f32.mrb[0].mxu0
    %v3708 = vadd.f32 0.0, %v3707
    %3709 = vdwg.mxu0
    %v3710 = vadd.f32 %v3531, %v3635
    %v3711 = vadd.f32 %v3532, %v3637
    %v3712 = vadd.f32 %v3533, %v3706
    %v3713 = vadd.f32 %v3534, %v3708
    %v3714 = vmul.f32 %v2470, %v2021
    %v3715 = vmul.f32 %v2471, %v2028
    %v3716 = vmul.f32 %v2472, %v2029
    %v3717 = vmul.f32 %v2473, %v2030
    %v3718 = vmul.f32 %v2474, %v2027
    %s3719 = scalar_lea.vmem %s9, 56
    %v3720 = vld [vmem:[%s3719] sm:$0xff]
    %3726 = vrot.lane.b32.xlu0 %v3714, 32
    %v3727 = vpop.permute.xlu0 %3726
    %3728 = vrot.lane.b32.xlu0 %v3715, 32
    %v3729 = vpop.permute.xlu0 %3728
    %3730 = vrot.lane.b32.xlu0 %v3716, 32
    %v3731 = vpop.permute.xlu0 %3730
    %3732 = vrot.lane.b32.xlu0 %v3717, 32
    %v3733 = vpop.permute.xlu0 %3732
    %3734 = vrot.lane.b32.xlu0 %v3718, 32
    %v3735 = vpop.permute.xlu0 %3734
    %v3736 = vsel %vm181, %v3727, %v3729
    %v3737 = vsel %vm181, %v3729, %v3731
    %v3738 = vsel %vm181, %v3731, %v3733
    %v3739 = vsel %vm181, %v3733, %v3735
    %v3745 = vsel %vm646, %v3720, 0
    %3747 = vmatprep.subr.mxu0 %v3737
    %3748 = vmatpush1.msra.mxu0 %v3736
    %3749 = vmatprep.subr.mxu0 0.0
    %3750 = vmatpush1.msra.mxu0 0.0
    %3751 = vmatprep.subr.mxu0 0.0
    %3752 = vmatpush1.msra.mxu0 0.0
    %3753 = vmatprep.subr.mxu0 0.0
    %3754 = vmatpush1.msra.mxu0 0.0
    %3755 = vmatprep.subr.mxu0 0.0
    %3756 = vmatpush1.msra.mxu0 0.0
    %3757 = vmatprep.subr.mxu0 0.0
    %3758 = vmatpush1.msra.mxu0 0.0
    %3759 = vmatprep.subr.mxu0 0.0
    %3760 = vmatpush1.msra.mxu0 0.0
    %3761 = vmatprep.subr.mxu0 0.0
    %3762 = vmatpush1.msra.mxu0 0.0
    %3763 = vmatprep.subr.mxu0 0.0
    %3764 = vmatpush1.msra.mxu0 0.0
    %3765 = vmatprep.subr.mxu0 0.0
    %3766 = vmatpush1.msra.mxu0 0.0
    %3767 = vmatprep.subr.mxu0 0.0
    %3768 = vmatpush1.msra.mxu0 0.0
    %3769 = vmatprep.subr.mxu0 0.0
    %3770 = vmatpush1.msra.mxu0 0.0
    %3771 = vmatprep.subr.mxu0 0.0
    %3772 = vmatpush1.msra.mxu0 0.0
    %3773 = vmatprep.subr.mxu0 0.0
    %3774 = vmatpush1.msra.mxu0 0.0
    %3775 = vmatprep.subr.mxu0 0.0
    %3776 = vmatpush1.msra.mxu0 0.0
    %3777 = vmatprep.subr.mxu0 0.0
    %3778 = vmatpush1.msra.mxu0 0.0
    %3779 = vmatprep.subr.mxu0 0.0
    %3780 = vmatpush1.msra.mxu0 0.0
    %3781 = vmatprep.subr.mxu0 0.0
    %3782 = vmatpush1.msra.mxu0 0.0
    %3783 = vmatprep.subr.mxu0 0.0
    %3784 = vmatpush1.msra.mxu0 0.0
    %3785 = vmatprep.subr.mxu0 0.0
    %3786 = vmatpush1.msra.mxu0 0.0
    %3787 = vmatprep.subr.mxu0 0.0
    %3788 = vmatpush1.msra.mxu0 0.0
    %3789 = vmatprep.subr.mxu0 0.0
    %3790 = vmatpush1.msra.mxu0 0.0
    %3791 = vmatprep.subr.mxu0 0.0
    %3792 = vmatpush1.msra.mxu0 0.0
    %3793 = vmatprep.subr.mxu0 0.0
    %3794 = vmatpush1.msra.mxu0 0.0
    %3795 = vmatprep.subr.mxu0 0.0
    %3796 = vmatpush1.msra.mxu0 0.0
    %3797 = vmatprep.subr.mxu0 0.0
    %3798 = vmatpush1.msra.mxu0 0.0
    %3799 = vmatprep.subr.mxu0 0.0
    %3800 = vmatpush1.msra.mxu0 0.0
    %3801 = vmatprep.subr.mxu0 0.0
    %3802 = vmatpush1.msra.mxu0 0.0
    %3803 = vmatprep.subr.mxu0 0.0
    %3804 = vmatpush1.msra.mxu0 0.0
    %3805 = vmatprep.subr.mxu0 0.0
    %3806 = vmatpush1.msra.mxu0 0.0
    %3807 = vmatprep.subr.mxu0 0.0
    %3808 = vmatpush1.msra.mxu0 0.0
    %3809 = vmatprep.subr.mxu0 0.0
    %3810 = vmatpush1.msra.mxu0 0.0
    %3811 = vmatprep.mubr.f32.mxu0 0.0
    %3812 = vmatmul.mubr.f32.gmra.mrb[0].mxu0 %v3745
    %v3813 = vpop.f32.mrb[0].mxu0
    %v3814 = vadd.f32 0.0, %v3813
    %v3815 = vpop.f32.mrb[0].mxu0
    %v3816 = vadd.f32 0.0, %v3815
    %3817 = vdwg.mxu0
    %3818 = vmatprep.subr.mxu0 %v3739
    %3819 = vmatpush1.msra.mxu0 %v3738
    %3820 = vmatprep.subr.mxu0 0.0
    %3821 = vmatpush1.msra.mxu0 0.0
    %3822 = vmatprep.subr.mxu0 0.0
    %3823 = vmatpush1.msra.mxu0 0.0
    %3824 = vmatprep.subr.mxu0 0.0
    %3825 = vmatpush1.msra.mxu0 0.0
    %3826 = vmatprep.subr.mxu0 0.0
    %3827 = vmatpush1.msra.mxu0 0.0
    %3828 = vmatprep.subr.mxu0 0.0
    %3829 = vmatpush1.msra.mxu0 0.0
    %3830 = vmatprep.subr.mxu0 0.0
    %3831 = vmatpush1.msra.mxu0 0.0
    %3832 = vmatprep.subr.mxu0 0.0
    %3833 = vmatpush1.msra.mxu0 0.0
    %3834 = vmatprep.subr.mxu0 0.0
    %3835 = vmatpush1.msra.mxu0 0.0
    %3836 = vmatprep.subr.mxu0 0.0
    %3837 = vmatpush1.msra.mxu0 0.0
    %3838 = vmatprep.subr.mxu0 0.0
    %3839 = vmatpush1.msra.mxu0 0.0
    %3840 = vmatprep.subr.mxu0 0.0
    %3841 = vmatpush1.msra.mxu0 0.0
    %3842 = vmatprep.subr.mxu0 0.0
    %3843 = vmatpush1.msra.mxu0 0.0
    %3844 = vmatprep.subr.mxu0 0.0
    %3845 = vmatpush1.msra.mxu0 0.0
    %3846 = vmatprep.subr.mxu0 0.0
    %3847 = vmatpush1.msra.mxu0 0.0
    %3848 = vmatprep.subr.mxu0 0.0
    %3849 = vmatpush1.msra.mxu0 0.0
    %3850 = vmatprep.subr.mxu0 0.0
    %3851 = vmatpush1.msra.mxu0 0.0
    %3852 = vmatprep.subr.mxu0 0.0
    %3853 = vmatpush1.msra.mxu0 0.0
    %3854 = vmatprep.subr.mxu0 0.0
    %3855 = vmatpush1.msra.mxu0 0.0
    %3856 = vmatprep.subr.mxu0 0.0
    %3857 = vmatpush1.msra.mxu0 0.0
    %3858 = vmatprep.subr.mxu0 0.0
    %3859 = vmatpush1.msra.mxu0 0.0
    %3860 = vmatprep.subr.mxu0 0.0
    %3861 = vmatpush1.msra.mxu0 0.0
    %3862 = vmatprep.subr.mxu0 0.0
    %3863 = vmatpush1.msra.mxu0 0.0
    %3864 = vmatprep.subr.mxu0 0.0
    %3865 = vmatpush1.msra.mxu0 0.0
    %3866 = vmatprep.subr.mxu0 0.0
    %3867 = vmatpush1.msra.mxu0 0.0
    %3868 = vmatprep.subr.mxu0 0.0
    %3869 = vmatpush1.msra.mxu0 0.0
    %3870 = vmatprep.subr.mxu0 0.0
    %3871 = vmatpush1.msra.mxu0 0.0
    %3872 = vmatprep.subr.mxu0 0.0
    %3873 = vmatpush1.msra.mxu0 0.0
    %3874 = vmatprep.subr.mxu0 0.0
    %3875 = vmatpush1.msra.mxu0 0.0
    %3876 = vmatprep.subr.mxu0 0.0
    %3877 = vmatpush1.msra.mxu0 0.0
    %3878 = vmatprep.subr.mxu0 0.0
    %3879 = vmatpush1.msra.mxu0 0.0
    %3880 = vmatprep.subr.mxu0 0.0
    %3881 = vmatpush1.msra.mxu0 0.0
    %3882 = vmatprep.mubr.f32.mxu0 0.0
    %3883 = vmatmul.mubr.f32.gmra.mrb[0].mxu0 %v3745
    %v3884 = vpop.f32.mrb[0].mxu0
    %v3885 = vadd.f32 0.0, %v3884
    %v3886 = vpop.f32.mrb[0].mxu0
    %v3887 = vadd.f32 0.0, %v3886
    %3888 = vdwg.mxu0
    %v3889 = vadd.f32 %v3710, %v3814
    %v3890 = vadd.f32 %v3711, %v3816
    %v3891 = vadd.f32 %v3712, %v3885
    %v3892 = vadd.f32 %v3713, %v3887
    %v3893 = vmul.f32 %v2470, %v2236
    %v3894 = vmul.f32 %v2471, %v2243
    %v3895 = vmul.f32 %v2472, %v2244
    %v3896 = vmul.f32 %v2473, %v2245
    %v3897 = vmul.f32 %v2474, %v2242
    %s3898 = scalar_lea.vmem %s9, 64
    %v3899 = vld [vmem:[%s3898] sm:$0xff]
    %3905 = vrot.lane.b32.xlu0 %v3893, 31
    %v3906 = vpop.permute.xlu0 %3905
    %3907 = vrot.lane.b32.xlu0 %v3894, 31
    %v3908 = vpop.permute.xlu0 %3907
    %3909 = vrot.lane.b32.xlu0 %v3895, 31
    %v3910 = vpop.permute.xlu0 %3909
    %3911 = vrot.lane.b32.xlu0 %v3896, 31
    %v3912 = vpop.permute.xlu0 %3911
    %3913 = vrot.lane.b32.xlu0 %v3897, 31
    %v3914 = vpop.permute.xlu0 %3913
    %v3915 = vsel %vm564, %v3906, %v3908
    %v3916 = vsel %vm564, %v3908, %v3910
    %v3917 = vsel %vm564, %v3910, %v3912
    %v3918 = vsel %vm564, %v3912, %v3914
    %v3924 = vsel %vm646, %v3899, 0
    %3926 = vmatprep.subr.mxu0 %v3916
    %3927 = vmatpush1.msra.mxu0 %v3915
    %3928 = vmatprep.subr.mxu0 0.0
    %3929 = vmatpush1.msra.mxu0 0.0
    %3930 = vmatprep.subr.mxu0 0.0
    %3931 = vmatpush1.msra.mxu0 0.0
    %3932 = vmatprep.subr.mxu0 0.0
    %3933 = vmatpush1.msra.mxu0 0.0
    %3934 = vmatprep.subr.mxu0 0.0
    %3935 = vmatpush1.msra.mxu0 0.0
    %3936 = vmatprep.subr.mxu0 0.0
    %3937 = vmatpush1.msra.mxu0 0.0
    %3938 = vmatprep.subr.mxu0 0.0
    %3939 = vmatpush1.msra.mxu0 0.0
    %3940 = vmatprep.subr.mxu0 0.0
    %3941 = vmatpush1.msra.mxu0 0.0
    %3942 = vmatprep.subr.mxu0 0.0
    %3943 = vmatpush1.msra.mxu0 0.0
    %3944 = vmatprep.subr.mxu0 0.0
    %3945 = vmatpush1.msra.mxu0 0.0
    %3946 = vmatprep.subr.mxu0 0.0
    %3947 = vmatpush1.msra.mxu0 0.0
    %3948 = vmatprep.subr.mxu0 0.0
    %3949 = vmatpush1.msra.mxu0 0.0
    %3950 = vmatprep.subr.mxu0 0.0
    %3951 = vmatpush1.msra.mxu0 0.0
    %3952 = vmatprep.subr.mxu0 0.0
    %3953 = vmatpush1.msra.mxu0 0.0
    %3954 = vmatprep.subr.mxu0 0.0
    %3955 = vmatpush1.msra.mxu0 0.0
    %3956 = vmatprep.subr.mxu0 0.0
    %3957 = vmatpush1.msra.mxu0 0.0
    %3958 = vmatprep.subr.mxu0 0.0
    %3959 = vmatpush1.msra.mxu0 0.0
    %3960 = vmatprep.subr.mxu0 0.0
    %3961 = vmatpush1.msra.mxu0 0.0
    %3962 = vmatprep.subr.mxu0 0.0
    %3963 = vmatpush1.msra.mxu0 0.0
    %3964 = vmatprep.subr.mxu0 0.0
    %3965 = vmatpush1.msra.mxu0 0.0
    %3966 = vmatprep.subr.mxu0 0.0
    %3967 = vmatpush1.msra.mxu0 0.0
    %3968 = vmatprep.subr.mxu0 0.0
    %3969 = vmatpush1.msra.mxu0 0.0
    %3970 = vmatprep.subr.mxu0 0.0
    %3971 = vmatpush1.msra.mxu0 0.0
    %3972 = vmatprep.subr.mxu0 0.0
    %3973 = vmatpush1.msra.mxu0 0.0
    %3974 = vmatprep.subr.mxu0 0.0
    %3975 = vmatpush1.msra.mxu0 0.0
    %3976 = vmatprep.subr.mxu0 0.0
    %3977 = vmatpush1.msra.mxu0 0.0
    %3978 = vmatprep.subr.mxu0 0.0
    %3979 = vmatpush1.msra.mxu0 0.0
    %3980 = vmatprep.subr.mxu0 0.0
    %3981 = vmatpush1.msra.mxu0 0.0
    %3982 = vmatprep.subr.mxu0 0.0
    %3983 = vmatpush1.msra.mxu0 0.0
    %3984 = vmatprep.subr.mxu0 0.0
    %3985 = vmatpush1.msra.mxu0 0.0
    %3986 = vmatprep.subr.mxu0 0.0
    %3987 = vmatpush1.msra.mxu0 0.0
    %3988 = vmatprep.subr.mxu0 0.0
    %3989 = vmatpush1.msra.mxu0 0.0
    %3990 = vmatprep.mubr.f32.mxu0 0.0
    %3991 = vmatmul.mubr.f32.gmra.mrb[0].mxu0 %v3924
    %v3992 = vpop.f32.mrb[0].mxu0
    %v3993 = vadd.f32 0.0, %v3992
    %v3994 = vpop.f32.mrb[0].mxu0
    %v3995 = vadd.f32 0.0, %v3994
    %3996 = vdwg.mxu0
    %3997 = vmatprep.subr.mxu0 %v3918
    %3998 = vmatpush1.msra.mxu0 %v3917
    %3999 = vmatprep.subr.mxu0 0.0
    %4000 = vmatpush1.msra.mxu0 0.0
    %4001 = vmatprep.subr.mxu0 0.0
    %4002 = vmatpush1.msra.mxu0 0.0
    %4003 = vmatprep.subr.mxu0 0.0
    %4004 = vmatpush1.msra.mxu0 0.0
    %4005 = vmatprep.subr.mxu0 0.0
    %4006 = vmatpush1.msra.mxu0 0.0
    %4007 = vmatprep.subr.mxu0 0.0
    %4008 = vmatpush1.msra.mxu0 0.0
    %4009 = vmatprep.subr.mxu0 0.0
    %4010 = vmatpush1.msra.mxu0 0.0
    %4011 = vmatprep.subr.mxu0 0.0
    %4012 = vmatpush1.msra.mxu0 0.0
    %4013 = vmatprep.subr.mxu0 0.0
    %4014 = vmatpush1.msra.mxu0 0.0
    %4015 = vmatprep.subr.mxu0 0.0
    %4016 = vmatpush1.msra.mxu0 0.0
    %4017 = vmatprep.subr.mxu0 0.0
    %4018 = vmatpush1.msra.mxu0 0.0
    %4019 = vmatprep.subr.mxu0 0.0
    %4020 = vmatpush1.msra.mxu0 0.0
    %4021 = vmatprep.subr.mxu0 0.0
    %4022 = vmatpush1.msra.mxu0 0.0
    %4023 = vmatprep.subr.mxu0 0.0
    %4024 = vmatpush1.msra.mxu0 0.0
    %4025 = vmatprep.subr.mxu0 0.0
    %4026 = vmatpush1.msra.mxu0 0.0
    %4027 = vmatprep.subr.mxu0 0.0
    %4028 = vmatpush1.msra.mxu0 0.0
    %4029 = vmatprep.subr.mxu0 0.0
    %4030 = vmatpush1.msra.mxu0 0.0
    %4031 = vmatprep.subr.mxu0 0.0
    %4032 = vmatpush1.msra.mxu0 0.0
    %4033 = vmatprep.subr.mxu0 0.0
    %4034 = vmatpush1.msra.mxu0 0.0
    %4035 = vmatprep.subr.mxu0 0.0
    %4036 = vmatpush1.msra.mxu0 0.0
    %4037 = vmatprep.subr.mxu0 0.0
    %4038 = vmatpush1.msra.mxu0 0.0
    %4039 = vmatprep.subr.mxu0 0.0
    %4040 = vmatpush1.msra.mxu0 0.0
    %4041 = vmatprep.subr.mxu0 0.0
    %4042 = vmatpush1.msra.mxu0 0.0
    %4043 = vmatprep.subr.mxu0 0.0
    %4044 = vmatpush1.msra.mxu0 0.0
    %4045 = vmatprep.subr.mxu0 0.0
    %4046 = vmatpush1.msra.mxu0 0.0
    %4047 = vmatprep.subr.mxu0 0.0
    %4048 = vmatpush1.msra.mxu0 0.0
    %4049 = vmatprep.subr.mxu0 0.0
    %4050 = vmatpush1.msra.mxu0 0.0
    %4051 = vmatprep.subr.mxu0 0.0
    %4052 = vmatpush1.msra.mxu0 0.0
    %4053 = vmatprep.subr.mxu0 0.0
    %4054 = vmatpush1.msra.mxu0 0.0
    %4055 = vmatprep.subr.mxu0 0.0
    %4056 = vmatpush1.msra.mxu0 0.0
    %4057 = vmatprep.subr.mxu0 0.0
    %4058 = vmatpush1.msra.mxu0 0.0
    %4059 = vmatprep.subr.mxu0 0.0
    %4060 = vmatpush1.msra.mxu0 0.0
    %4061 = vmatprep.mubr.f32.mxu0 0.0
    %4062 = vmatmul.mubr.f32.gmra.mrb[0].mxu0 %v3924
    %v4063 = vpop.f32.mrb[0].mxu0
    %v4064 = vadd.f32 0.0, %v4063
    %v4065 = vpop.f32.mrb[0].mxu0
    %v4066 = vadd.f32 0.0, %v4065
    %4067 = vdwg.mxu0
    %v4068 = vadd.f32 %v3889, %v3993
    %v4069 = vadd.f32 %v3890, %v3995
    %v4070 = vadd.f32 %v3891, %v4064
    %v4071 = vadd.f32 %v3892, %v4066
    %v4072 = vld [vmem:[%s10] sm:$0xff]
    %4074 = vset.pattern.permute.xlu0 0
    %4075 = vperm.xlu0 %4074, %v4072
    %v4076 = vpop.permute.xlu0 %4075
    %v4078 = vadd.f32 %v4068, %v4076
    %v4079 = vadd.f32 %v4069, %v4076
    %v4080 = vadd.f32 %v4070, %v4076
    %v4081 = vadd.f32 %v4071, %v4076
    %v4082 = vmax.f32 %v4078, 0.0
    %v4083 = vmax.f32 %v4079, 0.0
    %v4084 = vmax.f32 %v4080, 0.0
    %v4085 = vmax.f32 %v4081, 0.0
    %4090 = vrot.lane.b32.xlu0 %v4082, 64
    %v4091 = vpop.permute.xlu0 %4090
    %4092 = vrot.lane.b32.xlu0 %v4083, 64
    %v4093 = vpop.permute.xlu0 %4092
    %4094 = vrot.lane.b32.xlu0 %v4084, 64
    %v4095 = vpop.permute.xlu0 %4094
    %4096 = vrot.lane.b32.xlu0 %v4085, 64
    %v4097 = vpop.permute.xlu0 %4096
    %v4098 = vsel %vm1412, %v4091, %v4093
    %v4099 = vsel %vm1412, %v4093, %v4095
    %v4100 = vsel %vm1412, %v4095, %v4097
    %4106 = vst.msk [vmem:[#allocation2] sm:$0xff] %vm2464, %v4091
    %4107 = vst [vmem:[#allocation2 + $0x8] sm:$0xff] %v4098
    %4108 = vst [vmem:[#allocation2 + $0x10] sm:$0xff] %v4099
    %4109 = vst [vmem:[#allocation2 + $0x18] sm:$0xff] %v4100
    %4110 = vst.msk [vmem:[#allocation2 + $0x20] sm:$0xff] %vm1412, %v4097
    %v4111 = vld [vmem:[#allocation2] sm:$0xff]
    %v4112 = vld [vmem:[#allocation2 + $0x8] sm:$0xff]
    %v4113 = vld [vmem:[#allocation2 + $0x10] sm:$0xff]
    %v4114 = vld [vmem:[#allocation2 + $0x18] sm:$0xff]
    %v4115 = vld [vmem:[#allocation2 + $0x20] sm:$0xff]
    %v4116 = vmul.f32 %v4111, %v557
    %v4117 = vmul.f32 %v4112, %v565
    %v4118 = vmul.f32 %v4113, %v566
    %v4119 = vmul.f32 %v4114, %v567
    %v4120 = vmul.f32 %v4115, %v563
    %v4121 = vld [vmem:[%s11] sm:$0xff]
    %v4122 = vmul.f32 %v4111, %v600
    %v4123 = vmul.f32 %v4112, %v607
    %v4124 = vmul.f32 %v4113, %v608
    %v4125 = vmul.f32 %v4114, %v609
    %v4126 = vmul.f32 %v4115, %v606
    %s4127 = scalar_lea.vmem %s11, 8
    %v4128 = vld [vmem:[%s4127] sm:$0xff]
    %4134 = vrot.lane.b32.xlu0 %v4122, 96
    %v4135 = vpop.permute.xlu0 %4134
    %4136 = vrot.lane.b32.xlu0 %v4123, 96
    %v4137 = vpop.permute.xlu0 %4136
    %4138 = vrot.lane.b32.xlu0 %v4124, 96
    %v4139 = vpop.permute.xlu0 %4138
    %4140 = vrot.lane.b32.xlu0 %v4125, 96
    %v4141 = vpop.permute.xlu0 %4140
    %4142 = vrot.lane.b32.xlu0 %v4126, 96
    %v4143 = vpop.permute.xlu0 %4142
    %v4144 = vsel %vm637, %v4135, %v4137
    %v4145 = vsel %vm637, %v4137, %v4139
    %v4146 = vsel %vm637, %v4139, %v4141
    %v4147 = vsel %vm637, %v4141, %v4143
    %v4153 = vsel %vm646, %v4128, 0
    %4155 = vmatprep.subr.mxu0 %v4145
    %4156 = vmatpush1.msra.mxu0 %v4144
    %4157 = vmatprep.subr.mxu0 0.0
    %4158 = vmatpush1.msra.mxu0 0.0
    %4159 = vmatprep.subr.mxu0 0.0
    %4160 = vmatpush1.msra.mxu0 0.0
    %4161 = vmatprep.subr.mxu0 0.0
    %4162 = vmatpush1.msra.mxu0 0.0
    %4163 = vmatprep.subr.mxu0 0.0
    %4164 = vmatpush1.msra.mxu0 0.0
    %4165 = vmatprep.subr.mxu0 0.0
    %4166 = vmatpush1.msra.mxu0 0.0
    %4167 = vmatprep.subr.mxu0 0.0
    %4168 = vmatpush1.msra.mxu0 0.0
    %4169 = vmatprep.subr.mxu0 0.0
    %4170 = vmatpush1.msra.mxu0 0.0
    %4171 = vmatprep.subr.mxu0 0.0
    %4172 = vmatpush1.msra.mxu0 0.0
    %4173 = vmatprep.subr.mxu0 0.0
    %4174 = vmatpush1.msra.mxu0 0.0
    %4175 = vmatprep.subr.mxu0 0.0
    %4176 = vmatpush1.msra.mxu0 0.0
    %4177 = vmatprep.subr.mxu0 0.0
    %4178 = vmatpush1.msra.mxu0 0.0
    %4179 = vmatprep.subr.mxu0 0.0
    %4180 = vmatpush1.msra.mxu0 0.0
    %4181 = vmatprep.subr.mxu0 0.0
    %4182 = vmatpush1.msra.mxu0 0.0
    %4183 = vmatprep.subr.mxu0 0.0
    %4184 = vmatpush1.msra.mxu0 0.0
    %4185 = vmatprep.subr.mxu0 0.0
    %4186 = vmatpush1.msra.mxu0 0.0
    %4187 = vmatprep.subr.mxu0 0.0
    %4188 = vmatpush1.msra.mxu0 0.0
    %4189 = vmatprep.subr.mxu0 0.0
    %4190 = vmatpush1.msra.mxu0 0.0
    %4191 = vmatprep.subr.mxu0 0.0
    %4192 = vmatpush1.msra.mxu0 0.0
    %4193 = vmatprep.subr.mxu0 0.0
    %4194 = vmatpush1.msra.mxu0 0.0
    %4195 = vmatprep.subr.mxu0 0.0
    %4196 = vmatpush1.msra.mxu0 0.0
    %4197 = vmatprep.subr.mxu0 0.0
    %4198 = vmatpush1.msra.mxu0 0.0
    %4199 = vmatprep.subr.mxu0 0.0
    %4200 = vmatpush1.msra.mxu0 0.0
    %4201 = vmatprep.subr.mxu0 0.0
    %4202 = vmatpush1.msra.mxu0 0.0
    %4203 = vmatprep.subr.mxu0 0.0
    %4204 = vmatpush1.msra.mxu0 0.0
    %4205 = vmatprep.subr.mxu0 0.0
    %4206 = vmatpush1.msra.mxu0 0.0
    %4207 = vmatprep.subr.mxu0 0.0
    %4208 = vmatpush1.msra.mxu0 0.0
    %4209 = vmatprep.subr.mxu0 0.0
    %4210 = vmatpush1.msra.mxu0 0.0
    %4211 = vmatprep.subr.mxu0 0.0
    %4212 = vmatpush1.msra.mxu0 0.0
    %4213 = vmatprep.subr.mxu0 0.0
    %4214 = vmatpush1.msra.mxu0 0.0
    %4215 = vmatprep.subr.mxu0 0.0
    %4216 = vmatpush1.msra.mxu0 0.0
    %4217 = vmatprep.subr.mxu0 0.0
    %4218 = vmatpush1.msra.mxu0 0.0
    %4219 = vmatprep.mubr.f32.mxu0 0.0
    %4220 = vmatmul.mubr.f32.gmra.mrb[0].mxu0 %v4153
    %v4221 = vpop.f32.mrb[0].mxu0
    %v4222 = vadd.f32 0.0, %v4221
    %v4223 = vpop.f32.mrb[0].mxu0
    %v4224 = vadd.f32 0.0, %v4223
    %4225 = vdwg.mxu0
    %4226 = vmatprep.subr.mxu0 %v4147
    %4227 = vmatpush1.msra.mxu0 %v4146
    %4228 = vmatprep.subr.mxu0 0.0
    %4229 = vmatpush1.msra.mxu0 0.0
    %4230 = vmatprep.subr.mxu0 0.0
    %4231 = vmatpush1.msra.mxu0 0.0
    %4232 = vmatprep.subr.mxu0 0.0
    %4233 = vmatpush1.msra.mxu0 0.0
    %4234 = vmatprep.subr.mxu0 0.0
    %4235 = vmatpush1.msra.mxu0 0.0
    %4236 = vmatprep.subr.mxu0 0.0
    %4237 = vmatpush1.msra.mxu0 0.0
    %4238 = vmatprep.subr.mxu0 0.0
    %4239 = vmatpush1.msra.mxu0 0.0
    %4240 = vmatprep.subr.mxu0 0.0
    %4241 = vmatpush1.msra.mxu0 0.0
    %4242 = vmatprep.subr.mxu0 0.0
    %4243 = vmatpush1.msra.mxu0 0.0
    %4244 = vmatprep.subr.mxu0 0.0
    %4245 = vmatpush1.msra.mxu0 0.0
    %4246 = vmatprep.subr.mxu0 0.0
    %4247 = vmatpush1.msra.mxu0 0.0
    %4248 = vmatprep.subr.mxu0 0.0
    %4249 = vmatpush1.msra.mxu0 0.0
    %4250 = vmatprep.subr.mxu0 0.0
    %4251 = vmatpush1.msra.mxu0 0.0
    %4252 = vmatprep.subr.mxu0 0.0
    %4253 = vmatpush1.msra.mxu0 0.0
    %4254 = vmatprep.subr.mxu0 0.0
    %4255 = vmatpush1.msra.mxu0 0.0
    %4256 = vmatprep.subr.mxu0 0.0
    %4257 = vmatpush1.msra.mxu0 0.0
    %4258 = vmatprep.subr.mxu0 0.0
    %4259 = vmatpush1.msra.mxu0 0.0
    %4260 = vmatprep.subr.mxu0 0.0
    %4261 = vmatpush1.msra.mxu0 0.0
    %4262 = vmatprep.subr.mxu0 0.0
    %4263 = vmatpush1.msra.mxu0 0.0
    %4264 = vmatprep.subr.mxu0 0.0
    %4265 = vmatpush1.msra.mxu0 0.0
    %4266 = vmatprep.subr.mxu0 0.0
    %4267 = vmatpush1.msra.mxu0 0.0
    %4268 = vmatprep.subr.mxu0 0.0
    %4269 = vmatpush1.msra.mxu0 0.0
    %4270 = vmatprep.subr.mxu0 0.0
    %4271 = vmatpush1.msra.mxu0 0.0
    %4272 = vmatprep.subr.mxu0 0.0
    %4273 = vmatpush1.msra.mxu0 0.0
    %4274 = vmatprep.subr.mxu0 0.0
    %4275 = vmatpush1.msra.mxu0 0.0
    %4276 = vmatprep.subr.mxu0 0.0
    %4277 = vmatpush1.msra.mxu0 0.0
    %4278 = vmatprep.subr.mxu0 0.0
    %4279 = vmatpush1.msra.mxu0 0.0
    %4280 = vmatprep.subr.mxu0 0.0
    %4281 = vmatpush1.msra.mxu0 0.0
    %4282 = vmatprep.subr.mxu0 0.0
    %4283 = vmatpush1.msra.mxu0 0.0
    %4284 = vmatprep.subr.mxu0 0.0
    %4285 = vmatpush1.msra.mxu0 0.0
    %4286 = vmatprep.subr.mxu0 0.0
    %4287 = vmatpush1.msra.mxu0 0.0
    %4288 = vmatprep.subr.mxu0 0.0
    %4289 = vmatpush1.msra.mxu0 0.0
    %4290 = vmatprep.mubr.f32.mxu0 0.0
    %4291 = vmatmul.mubr.f32.gmra.mrb[0].mxu0 %v4153
    %v4292 = vpop.f32.mrb[0].mxu0
    %v4293 = vadd.f32 0.0, %v4292
    %v4294 = vpop.f32.mrb[0].mxu0
    %v4295 = vadd.f32 0.0, %v4294
    %4296 = vdwg.mxu0
    %4302 = vrot.lane.b32.xlu0 %v4116, 97
    %v4303 = vpop.permute.xlu0 %4302
    %4304 = vrot.lane.b32.xlu0 %v4117, 97
    %v4305 = vpop.permute.xlu0 %4304
    %4306 = vrot.lane.b32.xlu0 %v4118, 97
    %v4307 = vpop.permute.xlu0 %4306
    %4308 = vrot.lane.b32.xlu0 %v4119, 97
    %v4309 = vpop.permute.xlu0 %4308
    %4310 = vrot.lane.b32.xlu0 %v4120, 97
    %v4311 = vpop.permute.xlu0 %4310
    %v4312 = vsel %vm807, %v4303, %v4305
    %v4313 = vsel %vm807, %v4305, %v4307
    %v4314 = vsel %vm807, %v4307, %v4309
    %v4315 = vsel %vm807, %v4309, %v4311
    %v4321 = vsel %vm646, %v4121, 0
    %4323 = vmatprep.subr.mxu0 %v4313
    %4324 = vmatpush1.msra.mxu0 %v4312
    %4325 = vmatprep.subr.mxu0 0.0
    %4326 = vmatpush1.msra.mxu0 0.0
    %4327 = vmatprep.subr.mxu0 0.0
    %4328 = vmatpush1.msra.mxu0 0.0
    %4329 = vmatprep.subr.mxu0 0.0
    %4330 = vmatpush1.msra.mxu0 0.0
    %4331 = vmatprep.subr.mxu0 0.0
    %4332 = vmatpush1.msra.mxu0 0.0
    %4333 = vmatprep.subr.mxu0 0.0
    %4334 = vmatpush1.msra.mxu0 0.0
    %4335 = vmatprep.subr.mxu0 0.0
    %4336 = vmatpush1.msra.mxu0 0.0
    %4337 = vmatprep.subr.mxu0 0.0
    %4338 = vmatpush1.msra.mxu0 0.0
    %4339 = vmatprep.subr.mxu0 0.0
    %4340 = vmatpush1.msra.mxu0 0.0
    %4341 = vmatprep.subr.mxu0 0.0
    %4342 = vmatpush1.msra.mxu0 0.0
    %4343 = vmatprep.subr.mxu0 0.0
    %4344 = vmatpush1.msra.mxu0 0.0
    %4345 = vmatprep.subr.mxu0 0.0
    %4346 = vmatpush1.msra.mxu0 0.0
    %4347 = vmatprep.subr.mxu0 0.0
    %4348 = vmatpush1.msra.mxu0 0.0
    %4349 = vmatprep.subr.mxu0 0.0
    %4350 = vmatpush1.msra.mxu0 0.0
    %4351 = vmatprep.subr.mxu0 0.0
    %4352 = vmatpush1.msra.mxu0 0.0
    %4353 = vmatprep.subr.mxu0 0.0
    %4354 = vmatpush1.msra.mxu0 0.0
    %4355 = vmatprep.subr.mxu0 0.0
    %4356 = vmatpush1.msra.mxu0 0.0
    %4357 = vmatprep.subr.mxu0 0.0
    %4358 = vmatpush1.msra.mxu0 0.0
    %4359 = vmatprep.subr.mxu0 0.0
    %4360 = vmatpush1.msra.mxu0 0.0
    %4361 = vmatprep.subr.mxu0 0.0
    %4362 = vmatpush1.msra.mxu0 0.0
    %4363 = vmatprep.subr.mxu0 0.0
    %4364 = vmatpush1.msra.mxu0 0.0
    %4365 = vmatprep.subr.mxu0 0.0
    %4366 = vmatpush1.msra.mxu0 0.0
    %4367 = vmatprep.subr.mxu0 0.0
    %4368 = vmatpush1.msra.mxu0 0.0
    %4369 = vmatprep.subr.mxu0 0.0
    %4370 = vmatpush1.msra.mxu0 0.0
    %4371 = vmatprep.subr.mxu0 0.0
    %4372 = vmatpush1.msra.mxu0 0.0
    %4373 = vmatprep.subr.mxu0 0.0
    %4374 = vmatpush1.msra.mxu0 0.0
    %4375 = vmatprep.subr.mxu0 0.0
    %4376 = vmatpush1.msra.mxu0 0.0
    %4377 = vmatprep.subr.mxu0 0.0
    %4378 = vmatpush1.msra.mxu0 0.0
    %4379 = vmatprep.subr.mxu0 0.0
    %4380 = vmatpush1.msra.mxu0 0.0
    %4381 = vmatprep.subr.mxu0 0.0
    %4382 = vmatpush1.msra.mxu0 0.0
    %4383 = vmatprep.subr.mxu0 0.0
    %4384 = vmatpush1.msra.mxu0 0.0
    %4385 = vmatprep.subr.mxu0 0.0
    %4386 = vmatpush1.msra.mxu0 0.0
    %4387 = vmatprep.mubr.f32.mxu0 0.0
    %4388 = vmatmul.mubr.f32.gmra.mrb[0].mxu0 %v4321
    %v4389 = vpop.f32.mrb[0].mxu0
    %v4390 = vadd.f32 %v4222, %v4389
    %v4391 = vpop.f32.mrb[0].mxu0
    %v4392 = vadd.f32 %v4224, %v4391
    %4393 = vdwg.mxu0
    %4394 = vmatprep.subr.mxu0 %v4315
    %4395 = vmatpush1.msra.mxu0 %v4314
    %4396 = vmatprep.subr.mxu0 0.0
    %4397 = vmatpush1.msra.mxu0 0.0
    %4398 = vmatprep.subr.mxu0 0.0
    %4399 = vmatpush1.msra.mxu0 0.0
    %4400 = vmatprep.subr.mxu0 0.0
    %4401 = vmatpush1.msra.mxu0 0.0
    %4402 = vmatprep.subr.mxu0 0.0
    %4403 = vmatpush1.msra.mxu0 0.0
    %4404 = vmatprep.subr.mxu0 0.0
    %4405 = vmatpush1.msra.mxu0 0.0
    %4406 = vmatprep.subr.mxu0 0.0
    %4407 = vmatpush1.msra.mxu0 0.0
    %4408 = vmatprep.subr.mxu0 0.0
    %4409 = vmatpush1.msra.mxu0 0.0
    %4410 = vmatprep.subr.mxu0 0.0
    %4411 = vmatpush1.msra.mxu0 0.0
    %4412 = vmatprep.subr.mxu0 0.0
    %4413 = vmatpush1.msra.mxu0 0.0
    %4414 = vmatprep.subr.mxu0 0.0
    %4415 = vmatpush1.msra.mxu0 0.0
    %4416 = vmatprep.subr.mxu0 0.0
    %4417 = vmatpush1.msra.mxu0 0.0
    %4418 = vmatprep.subr.mxu0 0.0
    %4419 = vmatpush1.msra.mxu0 0.0
    %4420 = vmatprep.subr.mxu0 0.0
    %4421 = vmatpush1.msra.mxu0 0.0
    %4422 = vmatprep.subr.mxu0 0.0
    %4423 = vmatpush1.msra.mxu0 0.0
    %4424 = vmatprep.subr.mxu0 0.0
    %4425 = vmatpush1.msra.mxu0 0.0
    %4426 = vmatprep.subr.mxu0 0.0
    %4427 = vmatpush1.msra.mxu0 0.0
    %4428 = vmatprep.subr.mxu0 0.0
    %4429 = vmatpush1.msra.mxu0 0.0
    %4430 = vmatprep.subr.mxu0 0.0
    %4431 = vmatpush1.msra.mxu0 0.0
    %4432 = vmatprep.subr.mxu0 0.0
    %4433 = vmatpush1.msra.mxu0 0.0
    %4434 = vmatprep.subr.mxu0 0.0
    %4435 = vmatpush1.msra.mxu0 0.0
    %4436 = vmatprep.subr.mxu0 0.0
    %4437 = vmatpush1.msra.mxu0 0.0
    %4438 = vmatprep.subr.mxu0 0.0
    %4439 = vmatpush1.msra.mxu0 0.0
    %4440 = vmatprep.subr.mxu0 0.0
    %4441 = vmatpush1.msra.mxu0 0.0
    %4442 = vmatprep.subr.mxu0 0.0
    %4443 = vmatpush1.msra.mxu0 0.0
    %4444 = vmatprep.subr.mxu0 0.0
    %4445 = vmatpush1.msra.mxu0 0.0
    %4446 = vmatprep.subr.mxu0 0.0
    %4447 = vmatpush1.msra.mxu0 0.0
    %4448 = vmatprep.subr.mxu0 0.0
    %4449 = vmatpush1.msra.mxu0 0.0
    %4450 = vmatprep.subr.mxu0 0.0
    %4451 = vmatpush1.msra.mxu0 0.0
    %4452 = vmatprep.subr.mxu0 0.0
    %4453 = vmatpush1.msra.mxu0 0.0
    %4454 = vmatprep.subr.mxu0 0.0
    %4455 = vmatpush1.msra.mxu0 0.0
    %4456 = vmatprep.subr.mxu0 0.0
    %4457 = vmatpush1.msra.mxu0 0.0
    %4458 = vmatprep.mubr.f32.mxu0 0.0
    %4459 = vmatmul.mubr.f32.gmra.mrb[0].mxu0 %v4321
    %v4460 = vpop.f32.mrb[0].mxu0
    %v4461 = vadd.f32 %v4293, %v4460
    %v4462 = vpop.f32.mrb[0].mxu0
    %v4463 = vadd.f32 %v4295, %v4462
    %4464 = vdwg.mxu0
    %v4465 = vmul.f32 %v4111, %v982
    %v4466 = vmul.f32 %v4112, %v990
    %v4467 = vmul.f32 %v4113, %v991
    %v4468 = vmul.f32 %v4114, %v992
    %v4469 = vmul.f32 %v4115, %v988
    %s4470 = scalar_lea.vmem %s11, 16
    %v4471 = vld [vmem:[%s4470] sm:$0xff]
    %4477 = vrot.lane.b32.xlu0 %v4465, 95
    %v4478 = vpop.permute.xlu0 %4477
    %4479 = vrot.lane.b32.xlu0 %v4466, 95
    %v4480 = vpop.permute.xlu0 %4479
    %4481 = vrot.lane.b32.xlu0 %v4467, 95
    %v4482 = vpop.permute.xlu0 %4481
    %4483 = vrot.lane.b32.xlu0 %v4468, 95
    %v4484 = vpop.permute.xlu0 %4483
    %4485 = vrot.lane.b32.xlu0 %v4469, 95
    %v4486 = vpop.permute.xlu0 %4485
    %v4487 = vsel %vm1020, %v4478, %v4480
    %v4488 = vsel %vm1020, %v4480, %v4482
    %v4489 = vsel %vm1020, %v4482, %v4484
    %v4490 = vsel %vm1020, %v4484, %v4486
    %v4496 = vsel %vm646, %v4471, 0
    %4498 = vmatprep.subr.mxu0 %v4488
    %4499 = vmatpush1.msra.mxu0 %v4487
    %4500 = vmatprep.subr.mxu0 0.0
    %4501 = vmatpush1.msra.mxu0 0.0
    %4502 = vmatprep.subr.mxu0 0.0
    %4503 = vmatpush1.msra.mxu0 0.0
    %4504 = vmatprep.subr.mxu0 0.0
    %4505 = vmatpush1.msra.mxu0 0.0
    %4506 = vmatprep.subr.mxu0 0.0
    %4507 = vmatpush1.msra.mxu0 0.0
    %4508 = vmatprep.subr.mxu0 0.0
    %4509 = vmatpush1.msra.mxu0 0.0
    %4510 = vmatprep.subr.mxu0 0.0
    %4511 = vmatpush1.msra.mxu0 0.0
    %4512 = vmatprep.subr.mxu0 0.0
    %4513 = vmatpush1.msra.mxu0 0.0
    %4514 = vmatprep.subr.mxu0 0.0
    %4515 = vmatpush1.msra.mxu0 0.0
    %4516 = vmatprep.subr.mxu0 0.0
    %4517 = vmatpush1.msra.mxu0 0.0
    %4518 = vmatprep.subr.mxu0 0.0
    %4519 = vmatpush1.msra.mxu0 0.0
    %4520 = vmatprep.subr.mxu0 0.0
    %4521 = vmatpush1.msra.mxu0 0.0
    %4522 = vmatprep.subr.mxu0 0.0
    %4523 = vmatpush1.msra.mxu0 0.0
    %4524 = vmatprep.subr.mxu0 0.0
    %4525 = vmatpush1.msra.mxu0 0.0
    %4526 = vmatprep.subr.mxu0 0.0
    %4527 = vmatpush1.msra.mxu0 0.0
    %4528 = vmatprep.subr.mxu0 0.0
    %4529 = vmatpush1.msra.mxu0 0.0
    %4530 = vmatprep.subr.mxu0 0.0
    %4531 = vmatpush1.msra.mxu0 0.0
    %4532 = vmatprep.subr.mxu0 0.0
    %4533 = vmatpush1.msra.mxu0 0.0
    %4534 = vmatprep.subr.mxu0 0.0
    %4535 = vmatpush1.msra.mxu0 0.0
    %4536 = vmatprep.subr.mxu0 0.0
    %4537 = vmatpush1.msra.mxu0 0.0
    %4538 = vmatprep.subr.mxu0 0.0
    %4539 = vmatpush1.msra.mxu0 0.0
    %4540 = vmatprep.subr.mxu0 0.0
    %4541 = vmatpush1.msra.mxu0 0.0
    %4542 = vmatprep.subr.mxu0 0.0
    %4543 = vmatpush1.msra.mxu0 0.0
    %4544 = vmatprep.subr.mxu0 0.0
    %4545 = vmatpush1.msra.mxu0 0.0
    %4546 = vmatprep.subr.mxu0 0.0
    %4547 = vmatpush1.msra.mxu0 0.0
    %4548 = vmatprep.subr.mxu0 0.0
    %4549 = vmatpush1.msra.mxu0 0.0
    %4550 = vmatprep.subr.mxu0 0.0
    %4551 = vmatpush1.msra.mxu0 0.0
    %4552 = vmatprep.subr.mxu0 0.0
    %4553 = vmatpush1.msra.mxu0 0.0
    %4554 = vmatprep.subr.mxu0 0.0
    %4555 = vmatpush1.msra.mxu0 0.0
    %4556 = vmatprep.subr.mxu0 0.0
    %4557 = vmatpush1.msra.mxu0 0.0
    %4558 = vmatprep.subr.mxu0 0.0
    %4559 = vmatpush1.msra.mxu0 0.0
    %4560 = vmatprep.subr.mxu0 0.0
    %4561 = vmatpush1.msra.mxu0 0.0
    %4562 = vmatprep.mubr.f32.mxu0 0.0
    %4563 = vmatmul.mubr.f32.gmra.mrb[0].mxu0 %v4496
    %v4564 = vpop.f32.mrb[0].mxu0
    %v4565 = vadd.f32 0.0, %v4564
    %v4566 = vpop.f32.mrb[0].mxu0
    %v4567 = vadd.f32 0.0, %v4566
    %4568 = vdwg.mxu0
    %4569 = vmatprep.subr.mxu0 %v4490
    %4570 = vmatpush1.msra.mxu0 %v4489
    %4571 = vmatprep.subr.mxu0 0.0
    %4572 = vmatpush1.msra.mxu0 0.0
    %4573 = vmatprep.subr.mxu0 0.0
    %4574 = vmatpush1.msra.mxu0 0.0
    %4575 = vmatprep.subr.mxu0 0.0
    %4576 = vmatpush1.msra.mxu0 0.0
    %4577 = vmatprep.subr.mxu0 0.0
    %4578 = vmatpush1.msra.mxu0 0.0
    %4579 = vmatprep.subr.mxu0 0.0
    %4580 = vmatpush1.msra.mxu0 0.0
    %4581 = vmatprep.subr.mxu0 0.0
    %4582 = vmatpush1.msra.mxu0 0.0
    %4583 = vmatprep.subr.mxu0 0.0
    %4584 = vmatpush1.msra.mxu0 0.0
    %4585 = vmatprep.subr.mxu0 0.0
    %4586 = vmatpush1.msra.mxu0 0.0
    %4587 = vmatprep.subr.mxu0 0.0
    %4588 = vmatpush1.msra.mxu0 0.0
    %4589 = vmatprep.subr.mxu0 0.0
    %4590 = vmatpush1.msra.mxu0 0.0
    %4591 = vmatprep.subr.mxu0 0.0
    %4592 = vmatpush1.msra.mxu0 0.0
    %4593 = vmatprep.subr.mxu0 0.0
    %4594 = vmatpush1.msra.mxu0 0.0
    %4595 = vmatprep.subr.mxu0 0.0
    %4596 = vmatpush1.msra.mxu0 0.0
    %4597 = vmatprep.subr.mxu0 0.0
    %4598 = vmatpush1.msra.mxu0 0.0
    %4599 = vmatprep.subr.mxu0 0.0
    %4600 = vmatpush1.msra.mxu0 0.0
    %4601 = vmatprep.subr.mxu0 0.0
    %4602 = vmatpush1.msra.mxu0 0.0
    %4603 = vmatprep.subr.mxu0 0.0
    %4604 = vmatpush1.msra.mxu0 0.0
    %4605 = vmatprep.subr.mxu0 0.0
    %4606 = vmatpush1.msra.mxu0 0.0
    %4607 = vmatprep.subr.mxu0 0.0
    %4608 = vmatpush1.msra.mxu0 0.0
    %4609 = vmatprep.subr.mxu0 0.0
    %4610 = vmatpush1.msra.mxu0 0.0
    %4611 = vmatprep.subr.mxu0 0.0
    %4612 = vmatpush1.msra.mxu0 0.0
    %4613 = vmatprep.subr.mxu0 0.0
    %4614 = vmatpush1.msra.mxu0 0.0
    %4615 = vmatprep.subr.mxu0 0.0
    %4616 = vmatpush1.msra.mxu0 0.0
    %4617 = vmatprep.subr.mxu0 0.0
    %4618 = vmatpush1.msra.mxu0 0.0
    %4619 = vmatprep.subr.mxu0 0.0
    %4620 = vmatpush1.msra.mxu0 0.0
    %4621 = vmatprep.subr.mxu0 0.0
    %4622 = vmatpush1.msra.mxu0 0.0
    %4623 = vmatprep.subr.mxu0 0.0
    %4624 = vmatpush1.msra.mxu0 0.0
    %4625 = vmatprep.subr.mxu0 0.0
    %4626 = vmatpush1.msra.mxu0 0.0
    %4627 = vmatprep.subr.mxu0 0.0
    %4628 = vmatpush1.msra.mxu0 0.0
    %4629 = vmatprep.subr.mxu0 0.0
    %4630 = vmatpush1.msra.mxu0 0.0
    %4631 = vmatprep.subr.mxu0 0.0
    %4632 = vmatpush1.msra.mxu0 0.0
    %4633 = vmatprep.mubr.f32.mxu0 0.0
    %4634 = vmatmul.mubr.f32.gmra.mrb[0].mxu0 %v4496
    %v4635 = vpop.f32.mrb[0].mxu0
    %v4636 = vadd.f32 0.0, %v4635
    %v4637 = vpop.f32.mrb[0].mxu0
    %v4638 = vadd.f32 0.0, %v4637
    %4639 = vdwg.mxu0
    %v4640 = vadd.f32 %v4390, %v4565
    %v4641 = vadd.f32 %v4392, %v4567
    %v4642 = vadd.f32 %v4461, %v4636
    %v4643 = vadd.f32 %v4463, %v4638
    %v4644 = vmul.f32 %v4111, %v1199
    %v4645 = vmul.f32 %v4112, %v1207
    %v4646 = vmul.f32 %v4113, %v1208
    %v4647 = vmul.f32 %v4114, %v1209
    %v4648 = vmul.f32 %v4115, %v1205
    %s4649 = scalar_lea.vmem %s11, 24
    %v4650 = vld [vmem:[%s4649] sm:$0xff]
    %4656 = vrot.lane.b32.xlu0 %v4644, 65
    %v4657 = vpop.permute.xlu0 %4656
    %4658 = vrot.lane.b32.xlu0 %v4645, 65
    %v4659 = vpop.permute.xlu0 %4658
    %4660 = vrot.lane.b32.xlu0 %v4646, 65
    %v4661 = vpop.permute.xlu0 %4660
    %4662 = vrot.lane.b32.xlu0 %v4647, 65
    %v4663 = vpop.permute.xlu0 %4662
    %4664 = vrot.lane.b32.xlu0 %v4648, 65
    %v4665 = vpop.permute.xlu0 %4664
    %v4666 = vsel %vm1237, %v4657, %v4659
    %v4667 = vsel %vm1237, %v4659, %v4661
    %v4668 = vsel %vm1237, %v4661, %v4663
    %v4669 = vsel %vm1237, %v4663, %v4665
    %v4675 = vsel %vm646, %v4650, 0
    %4677 = vmatprep.subr.mxu0 %v4667
    %4678 = vmatpush1.msra.mxu0 %v4666
    %4679 = vmatprep.subr.mxu0 0.0
    %4680 = vmatpush1.msra.mxu0 0.0
    %4681 = vmatprep.subr.mxu0 0.0
    %4682 = vmatpush1.msra.mxu0 0.0
    %4683 = vmatprep.subr.mxu0 0.0
    %4684 = vmatpush1.msra.mxu0 0.0
    %4685 = vmatprep.subr.mxu0 0.0
    %4686 = vmatpush1.msra.mxu0 0.0
    %4687 = vmatprep.subr.mxu0 0.0
    %4688 = vmatpush1.msra.mxu0 0.0
    %4689 = vmatprep.subr.mxu0 0.0
    %4690 = vmatpush1.msra.mxu0 0.0
    %4691 = vmatprep.subr.mxu0 0.0
    %4692 = vmatpush1.msra.mxu0 0.0
    %4693 = vmatprep.subr.mxu0 0.0
    %4694 = vmatpush1.msra.mxu0 0.0
    %4695 = vmatprep.subr.mxu0 0.0
    %4696 = vmatpush1.msra.mxu0 0.0
    %4697 = vmatprep.subr.mxu0 0.0
    %4698 = vmatpush1.msra.mxu0 0.0
    %4699 = vmatprep.subr.mxu0 0.0
    %4700 = vmatpush1.msra.mxu0 0.0
    %4701 = vmatprep.subr.mxu0 0.0
    %4702 = vmatpush1.msra.mxu0 0.0
    %4703 = vmatprep.subr.mxu0 0.0
    %4704 = vmatpush1.msra.mxu0 0.0
    %4705 = vmatprep.subr.mxu0 0.0
    %4706 = vmatpush1.msra.mxu0 0.0
    %4707 = vmatprep.subr.mxu0 0.0
    %4708 = vmatpush1.msra.mxu0 0.0
    %4709 = vmatprep.subr.mxu0 0.0
    %4710 = vmatpush1.msra.mxu0 0.0
    %4711 = vmatprep.subr.mxu0 0.0
    %4712 = vmatpush1.msra.mxu0 0.0
    %4713 = vmatprep.subr.mxu0 0.0
    %4714 = vmatpush1.msra.mxu0 0.0
    %4715 = vmatprep.subr.mxu0 0.0
    %4716 = vmatpush1.msra.mxu0 0.0
    %4717 = vmatprep.subr.mxu0 0.0
    %4718 = vmatpush1.msra.mxu0 0.0
    %4719 = vmatprep.subr.mxu0 0.0
    %4720 = vmatpush1.msra.mxu0 0.0
    %4721 = vmatprep.subr.mxu0 0.0
    %4722 = vmatpush1.msra.mxu0 0.0
    %4723 = vmatprep.subr.mxu0 0.0
    %4724 = vmatpush1.msra.mxu0 0.0
    %4725 = vmatprep.subr.mxu0 0.0
    %4726 = vmatpush1.msra.mxu0 0.0
    %4727 = vmatprep.subr.mxu0 0.0
    %4728 = vmatpush1.msra.mxu0 0.0
    %4729 = vmatprep.subr.mxu0 0.0
    %4730 = vmatpush1.msra.mxu0 0.0
    %4731 = vmatprep.subr.mxu0 0.0
    %4732 = vmatpush1.msra.mxu0 0.0
    %4733 = vmatprep.subr.mxu0 0.0
    %4734 = vmatpush1.msra.mxu0 0.0
    %4735 = vmatprep.subr.mxu0 0.0
    %4736 = vmatpush1.msra.mxu0 0.0
    %4737 = vmatprep.subr.mxu0 0.0
    %4738 = vmatpush1.msra.mxu0 0.0
    %4739 = vmatprep.subr.mxu0 0.0
    %4740 = vmatpush1.msra.mxu0 0.0
    %4741 = vmatprep.mubr.f32.mxu0 0.0
    %4742 = vmatmul.mubr.f32.gmra.mrb[0].mxu0 %v4675
    %v4743 = vpop.f32.mrb[0].mxu0
    %v4744 = vadd.f32 0.0, %v4743
    %v4745 = vpop.f32.mrb[0].mxu0
    %v4746 = vadd.f32 0.0, %v4745
    %4747 = vdwg.mxu0
    %4748 = vmatprep.subr.mxu0 %v4669
    %4749 = vmatpush1.msra.mxu0 %v4668
    %4750 = vmatprep.subr.mxu0 0.0
    %4751 = vmatpush1.msra.mxu0 0.0
    %4752 = vmatprep.subr.mxu0 0.0
    %4753 = vmatpush1.msra.mxu0 0.0
    %4754 = vmatprep.subr.mxu0 0.0
    %4755 = vmatpush1.msra.mxu0 0.0
    %4756 = vmatprep.subr.mxu0 0.0
    %4757 = vmatpush1.msra.mxu0 0.0
    %4758 = vmatprep.subr.mxu0 0.0
    %4759 = vmatpush1.msra.mxu0 0.0
    %4760 = vmatprep.subr.mxu0 0.0
    %4761 = vmatpush1.msra.mxu0 0.0
    %4762 = vmatprep.subr.mxu0 0.0
    %4763 = vmatpush1.msra.mxu0 0.0
    %4764 = vmatprep.subr.mxu0 0.0
    %4765 = vmatpush1.msra.mxu0 0.0
    %4766 = vmatprep.subr.mxu0 0.0
    %4767 = vmatpush1.msra.mxu0 0.0
    %4768 = vmatprep.subr.mxu0 0.0
    %4769 = vmatpush1.msra.mxu0 0.0
    %4770 = vmatprep.subr.mxu0 0.0
    %4771 = vmatpush1.msra.mxu0 0.0
    %4772 = vmatprep.subr.mxu0 0.0
    %4773 = vmatpush1.msra.mxu0 0.0
    %4774 = vmatprep.subr.mxu0 0.0
    %4775 = vmatpush1.msra.mxu0 0.0
    %4776 = vmatprep.subr.mxu0 0.0
    %4777 = vmatpush1.msra.mxu0 0.0
    %4778 = vmatprep.subr.mxu0 0.0
    %4779 = vmatpush1.msra.mxu0 0.0
    %4780 = vmatprep.subr.mxu0 0.0
    %4781 = vmatpush1.msra.mxu0 0.0
    %4782 = vmatprep.subr.mxu0 0.0
    %4783 = vmatpush1.msra.mxu0 0.0
    %4784 = vmatprep.subr.mxu0 0.0
    %4785 = vmatpush1.msra.mxu0 0.0
    %4786 = vmatprep.subr.mxu0 0.0
    %4787 = vmatpush1.msra.mxu0 0.0
    %4788 = vmatprep.subr.mxu0 0.0
    %4789 = vmatpush1.msra.mxu0 0.0
    %4790 = vmatprep.subr.mxu0 0.0
    %4791 = vmatpush1.msra.mxu0 0.0
    %4792 = vmatprep.subr.mxu0 0.0
    %4793 = vmatpush1.msra.mxu0 0.0
    %4794 = vmatprep.subr.mxu0 0.0
    %4795 = vmatpush1.msra.mxu0 0.0
    %4796 = vmatprep.subr.mxu0 0.0
    %4797 = vmatpush1.msra.mxu0 0.0
    %4798 = vmatprep.subr.mxu0 0.0
    %4799 = vmatpush1.msra.mxu0 0.0
    %4800 = vmatprep.subr.mxu0 0.0
    %4801 = vmatpush1.msra.mxu0 0.0
    %4802 = vmatprep.subr.mxu0 0.0
    %4803 = vmatpush1.msra.mxu0 0.0
    %4804 = vmatprep.subr.mxu0 0.0
    %4805 = vmatpush1.msra.mxu0 0.0
    %4806 = vmatprep.subr.mxu0 0.0
    %4807 = vmatpush1.msra.mxu0 0.0
    %4808 = vmatprep.subr.mxu0 0.0
    %4809 = vmatpush1.msra.mxu0 0.0
    %4810 = vmatprep.subr.mxu0 0.0
    %4811 = vmatpush1.msra.mxu0 0.0
    %4812 = vmatprep.mubr.f32.mxu0 0.0
    %4813 = vmatmul.mubr.f32.gmra.mrb[0].mxu0 %v4675
    %v4814 = vpop.f32.mrb[0].mxu0
    %v4815 = vadd.f32 0.0, %v4814
    %v4816 = vpop.f32.mrb[0].mxu0
    %v4817 = vadd.f32 0.0, %v4816
    %4818 = vdwg.mxu0
    %v4819 = vadd.f32 %v4640, %v4744
    %v4820 = vadd.f32 %v4641, %v4746
    %v4821 = vadd.f32 %v4642, %v4815
    %v4822 = vadd.f32 %v4643, %v4817
    %s4823 = scalar_lea.vmem %s11, 32
    %v4824 = vld [vmem:[%s4823] sm:$0xff]
    %4830 = vrot.lane.b32.xlu0 %v4111, 64
    %v4831 = vpop.permute.xlu0 %4830
    %4832 = vrot.lane.b32.xlu0 %v4112, 64
    %v4833 = vpop.permute.xlu0 %4832
    %4834 = vrot.lane.b32.xlu0 %v4113, 64
    %v4835 = vpop.permute.xlu0 %4834
    %4836 = vrot.lane.b32.xlu0 %v4114, 64
    %v4837 = vpop.permute.xlu0 %4836
    %4838 = vrot.lane.b32.xlu0 %v4115, 64
    %v4839 = vpop.permute.xlu0 %4838
    %v4840 = vsel %vm1412, %v4831, %v4833
    %v4841 = vsel %vm1412, %v4833, %v4835
    %v4842 = vsel %vm1412, %v4835, %v4837
    %v4843 = vsel %vm1412, %v4837, %v4839
    %v4849 = vsel %vm646, %v4824, 0
    %4851 = vmatprep.subr.mxu0 %v4841
    %4852 = vmatpush1.msra.mxu0 %v4840
    %4853 = vmatprep.subr.mxu0 0.0
    %4854 = vmatpush1.msra.mxu0 0.0
    %4855 = vmatprep.subr.mxu0 0.0
    %4856 = vmatpush1.msra.mxu0 0.0
    %4857 = vmatprep.subr.mxu0 0.0
    %4858 = vmatpush1.msra.mxu0 0.0
    %4859 = vmatprep.subr.mxu0 0.0
    %4860 = vmatpush1.msra.mxu0 0.0
    %4861 = vmatprep.subr.mxu0 0.0
    %4862 = vmatpush1.msra.mxu0 0.0
    %4863 = vmatprep.subr.mxu0 0.0
    %4864 = vmatpush1.msra.mxu0 0.0
    %4865 = vmatprep.subr.mxu0 0.0
    %4866 = vmatpush1.msra.mxu0 0.0
    %4867 = vmatprep.subr.mxu0 0.0
    %4868 = vmatpush1.msra.mxu0 0.0
    %4869 = vmatprep.subr.mxu0 0.0
    %4870 = vmatpush1.msra.mxu0 0.0
    %4871 = vmatprep.subr.mxu0 0.0
    %4872 = vmatpush1.msra.mxu0 0.0
    %4873 = vmatprep.subr.mxu0 0.0
    %4874 = vmatpush1.msra.mxu0 0.0
    %4875 = vmatprep.subr.mxu0 0.0
    %4876 = vmatpush1.msra.mxu0 0.0
    %4877 = vmatprep.subr.mxu0 0.0
    %4878 = vmatpush1.msra.mxu0 0.0
    %4879 = vmatprep.subr.mxu0 0.0
    %4880 = vmatpush1.msra.mxu0 0.0
    %4881 = vmatprep.subr.mxu0 0.0
    %4882 = vmatpush1.msra.mxu0 0.0
    %4883 = vmatprep.subr.mxu0 0.0
    %4884 = vmatpush1.msra.mxu0 0.0
    %4885 = vmatprep.subr.mxu0 0.0
    %4886 = vmatpush1.msra.mxu0 0.0
    %4887 = vmatprep.subr.mxu0 0.0
    %4888 = vmatpush1.msra.mxu0 0.0
    %4889 = vmatprep.subr.mxu0 0.0
    %4890 = vmatpush1.msra.mxu0 0.0
    %4891 = vmatprep.subr.mxu0 0.0
    %4892 = vmatpush1.msra.mxu0 0.0
    %4893 = vmatprep.subr.mxu0 0.0
    %4894 = vmatpush1.msra.mxu0 0.0
    %4895 = vmatprep.subr.mxu0 0.0
    %4896 = vmatpush1.msra.mxu0 0.0
    %4897 = vmatprep.subr.mxu0 0.0
    %4898 = vmatpush1.msra.mxu0 0.0
    %4899 = vmatprep.subr.mxu0 0.0
    %4900 = vmatpush1.msra.mxu0 0.0
    %4901 = vmatprep.subr.mxu0 0.0
    %4902 = vmatpush1.msra.mxu0 0.0
    %4903 = vmatprep.subr.mxu0 0.0
    %4904 = vmatpush1.msra.mxu0 0.0
    %4905 = vmatprep.subr.mxu0 0.0
    %4906 = vmatpush1.msra.mxu0 0.0
    %4907 = vmatprep.subr.mxu0 0.0
    %4908 = vmatpush1.msra.mxu0 0.0
    %4909 = vmatprep.subr.mxu0 0.0
    %4910 = vmatpush1.msra.mxu0 0.0
    %4911 = vmatprep.subr.mxu0 0.0
    %4912 = vmatpush1.msra.mxu0 0.0
    %4913 = vmatprep.subr.mxu0 0.0
    %4914 = vmatpush1.msra.mxu0 0.0
    %4915 = vmatprep.mubr.f32.mxu0 0.0
    %4916 = vmatmul.mubr.f32.gmra.mrb[0].mxu0 %v4849
    %v4917 = vpop.f32.mrb[0].mxu0
    %v4918 = vadd.f32 0.0, %v4917
    %v4919 = vpop.f32.mrb[0].mxu0
    %v4920 = vadd.f32 0.0, %v4919
    %4921 = vdwg.mxu0
    %4922 = vmatprep.subr.mxu0 %v4843
    %4923 = vmatpush1.msra.mxu0 %v4842
    %4924 = vmatprep.subr.mxu0 0.0
    %4925 = vmatpush1.msra.mxu0 0.0
    %4926 = vmatprep.subr.mxu0 0.0
    %4927 = vmatpush1.msra.mxu0 0.0
    %4928 = vmatprep.subr.mxu0 0.0
    %4929 = vmatpush1.msra.mxu0 0.0
    %4930 = vmatprep.subr.mxu0 0.0
    %4931 = vmatpush1.msra.mxu0 0.0
    %4932 = vmatprep.subr.mxu0 0.0
    %4933 = vmatpush1.msra.mxu0 0.0
    %4934 = vmatprep.subr.mxu0 0.0
    %4935 = vmatpush1.msra.mxu0 0.0
    %4936 = vmatprep.subr.mxu0 0.0
    %4937 = vmatpush1.msra.mxu0 0.0
    %4938 = vmatprep.subr.mxu0 0.0
    %4939 = vmatpush1.msra.mxu0 0.0
    %4940 = vmatprep.subr.mxu0 0.0
    %4941 = vmatpush1.msra.mxu0 0.0
    %4942 = vmatprep.subr.mxu0 0.0
    %4943 = vmatpush1.msra.mxu0 0.0
    %4944 = vmatprep.subr.mxu0 0.0
    %4945 = vmatpush1.msra.mxu0 0.0
    %4946 = vmatprep.subr.mxu0 0.0
    %4947 = vmatpush1.msra.mxu0 0.0
    %4948 = vmatprep.subr.mxu0 0.0
    %4949 = vmatpush1.msra.mxu0 0.0
    %4950 = vmatprep.subr.mxu0 0.0
    %4951 = vmatpush1.msra.mxu0 0.0
    %4952 = vmatprep.subr.mxu0 0.0
    %4953 = vmatpush1.msra.mxu0 0.0
    %4954 = vmatprep.subr.mxu0 0.0
    %4955 = vmatpush1.msra.mxu0 0.0
    %4956 = vmatprep.subr.mxu0 0.0
    %4957 = vmatpush1.msra.mxu0 0.0
    %4958 = vmatprep.subr.mxu0 0.0
    %4959 = vmatpush1.msra.mxu0 0.0
    %4960 = vmatprep.subr.mxu0 0.0
    %4961 = vmatpush1.msra.mxu0 0.0
    %4962 = vmatprep.subr.mxu0 0.0
    %4963 = vmatpush1.msra.mxu0 0.0
    %4964 = vmatprep.subr.mxu0 0.0
    %4965 = vmatpush1.msra.mxu0 0.0
    %4966 = vmatprep.subr.mxu0 0.0
    %4967 = vmatpush1.msra.mxu0 0.0
    %4968 = vmatprep.subr.mxu0 0.0
    %4969 = vmatpush1.msra.mxu0 0.0
    %4970 = vmatprep.subr.mxu0 0.0
    %4971 = vmatpush1.msra.mxu0 0.0
    %4972 = vmatprep.subr.mxu0 0.0
    %4973 = vmatpush1.msra.mxu0 0.0
    %4974 = vmatprep.subr.mxu0 0.0
    %4975 = vmatpush1.msra.mxu0 0.0
    %4976 = vmatprep.subr.mxu0 0.0
    %4977 = vmatpush1.msra.mxu0 0.0
    %4978 = vmatprep.subr.mxu0 0.0
    %4979 = vmatpush1.msra.mxu0 0.0
    %4980 = vmatprep.subr.mxu0 0.0
    %4981 = vmatpush1.msra.mxu0 0.0
    %4982 = vmatprep.subr.mxu0 0.0
    %4983 = vmatpush1.msra.mxu0 0.0
    %4984 = vmatprep.subr.mxu0 0.0
    %4985 = vmatpush1.msra.mxu0 0.0
    %4986 = vmatprep.mubr.f32.mxu0 0.0
    %4987 = vmatmul.mubr.f32.gmra.mrb[0].mxu0 %v4849
    %v4988 = vpop.f32.mrb[0].mxu0
    %v4989 = vadd.f32 0.0, %v4988
    %v4990 = vpop.f32.mrb[0].mxu0
    %v4991 = vadd.f32 0.0, %v4990
    %4992 = vdwg.mxu0
    %v4993 = vadd.f32 %v4819, %v4918
    %v4994 = vadd.f32 %v4820, %v4920
    %v4995 = vadd.f32 %v4821, %v4989
    %v4996 = vadd.f32 %v4822, %v4991
    %v4997 = vmul.f32 %v4111, %v1591
    %v4998 = vmul.f32 %v4112, %v1598
    %v4999 = vmul.f32 %v4113, %v1599
    %v5000 = vmul.f32 %v4114, %v1600
    %v5001 = vmul.f32 %v4115, %v1597
    %s5002 = scalar_lea.vmem %s11, 40
    %v5003 = vld [vmem:[%s5002] sm:$0xff]
    %5009 = vrot.lane.b32.xlu0 %v4997, 63
    %v5010 = vpop.permute.xlu0 %5009
    %5011 = vrot.lane.b32.xlu0 %v4998, 63
    %v5012 = vpop.permute.xlu0 %5011
    %5013 = vrot.lane.b32.xlu0 %v4999, 63
    %v5014 = vpop.permute.xlu0 %5013
    %5015 = vrot.lane.b32.xlu0 %v5000, 63
    %v5016 = vpop.permute.xlu0 %5015
    %5017 = vrot.lane.b32.xlu0 %v5001, 63
    %v5018 = vpop.permute.xlu0 %5017
    %v5019 = vsel %vm1206, %v5010, %v5012
    %v5020 = vsel %vm1206, %v5012, %v5014
    %v5021 = vsel %vm1206, %v5014, %v5016
    %v5022 = vsel %vm1206, %v5016, %v5018
    %v5028 = vsel %vm646, %v5003, 0
    %5030 = vmatprep.subr.mxu0 %v5020
    %5031 = vmatpush1.msra.mxu0 %v5019
    %5032 = vmatprep.subr.mxu0 0.0
    %5033 = vmatpush1.msra.mxu0 0.0
    %5034 = vmatprep.subr.mxu0 0.0
    %5035 = vmatpush1.msra.mxu0 0.0
    %5036 = vmatprep.subr.mxu0 0.0
    %5037 = vmatpush1.msra.mxu0 0.0
    %5038 = vmatprep.subr.mxu0 0.0
    %5039 = vmatpush1.msra.mxu0 0.0
    %5040 = vmatprep.subr.mxu0 0.0
    %5041 = vmatpush1.msra.mxu0 0.0
    %5042 = vmatprep.subr.mxu0 0.0
    %5043 = vmatpush1.msra.mxu0 0.0
    %5044 = vmatprep.subr.mxu0 0.0
    %5045 = vmatpush1.msra.mxu0 0.0
    %5046 = vmatprep.subr.mxu0 0.0
    %5047 = vmatpush1.msra.mxu0 0.0
    %5048 = vmatprep.subr.mxu0 0.0
    %5049 = vmatpush1.msra.mxu0 0.0
    %5050 = vmatprep.subr.mxu0 0.0
    %5051 = vmatpush1.msra.mxu0 0.0
    %5052 = vmatprep.subr.mxu0 0.0
    %5053 = vmatpush1.msra.mxu0 0.0
    %5054 = vmatprep.subr.mxu0 0.0
    %5055 = vmatpush1.msra.mxu0 0.0
    %5056 = vmatprep.subr.mxu0 0.0
    %5057 = vmatpush1.msra.mxu0 0.0
    %5058 = vmatprep.subr.mxu0 0.0
    %5059 = vmatpush1.msra.mxu0 0.0
    %5060 = vmatprep.subr.mxu0 0.0
    %5061 = vmatpush1.msra.mxu0 0.0
    %5062 = vmatprep.subr.mxu0 0.0
    %5063 = vmatpush1.msra.mxu0 0.0
    %5064 = vmatprep.subr.mxu0 0.0
    %5065 = vmatpush1.msra.mxu0 0.0
    %5066 = vmatprep.subr.mxu0 0.0
    %5067 = vmatpush1.msra.mxu0 0.0
    %5068 = vmatprep.subr.mxu0 0.0
    %5069 = vmatpush1.msra.mxu0 0.0
    %5070 = vmatprep.subr.mxu0 0.0
    %5071 = vmatpush1.msra.mxu0 0.0
    %5072 = vmatprep.subr.mxu0 0.0
    %5073 = vmatpush1.msra.mxu0 0.0
    %5074 = vmatprep.subr.mxu0 0.0
    %5075 = vmatpush1.msra.mxu0 0.0
    %5076 = vmatprep.subr.mxu0 0.0
    %5077 = vmatpush1.msra.mxu0 0.0
    %5078 = vmatprep.subr.mxu0 0.0
    %5079 = vmatpush1.msra.mxu0 0.0
    %5080 = vmatprep.subr.mxu0 0.0
    %5081 = vmatpush1.msra.mxu0 0.0
    %5082 = vmatprep.subr.mxu0 0.0
    %5083 = vmatpush1.msra.mxu0 0.0
    %5084 = vmatprep.subr.mxu0 0.0
    %5085 = vmatpush1.msra.mxu0 0.0
    %5086 = vmatprep.subr.mxu0 0.0
    %5087 = vmatpush1.msra.mxu0 0.0
    %5088 = vmatprep.subr.mxu0 0.0
    %5089 = vmatpush1.msra.mxu0 0.0
    %5090 = vmatprep.subr.mxu0 0.0
    %5091 = vmatpush1.msra.mxu0 0.0
    %5092 = vmatprep.subr.mxu0 0.0
    %5093 = vmatpush1.msra.mxu0 0.0
    %5094 = vmatprep.mubr.f32.mxu0 0.0
    %5095 = vmatmul.mubr.f32.gmra.mrb[0].mxu0 %v5028
    %v5096 = vpop.f32.mrb[0].mxu0
    %v5097 = vadd.f32 0.0, %v5096
    %v5098 = vpop.f32.mrb[0].mxu0
    %v5099 = vadd.f32 0.0, %v5098
    %5100 = vdwg.mxu0
    %5101 = vmatprep.subr.mxu0 %v5022
    %5102 = vmatpush1.msra.mxu0 %v5021
    %5103 = vmatprep.subr.mxu0 0.0
    %5104 = vmatpush1.msra.mxu0 0.0
    %5105 = vmatprep.subr.mxu0 0.0
    %5106 = vmatpush1.msra.mxu0 0.0
    %5107 = vmatprep.subr.mxu0 0.0
    %5108 = vmatpush1.msra.mxu0 0.0
    %5109 = vmatprep.subr.mxu0 0.0
    %5110 = vmatpush1.msra.mxu0 0.0
    %5111 = vmatprep.subr.mxu0 0.0
    %5112 = vmatpush1.msra.mxu0 0.0
    %5113 = vmatprep.subr.mxu0 0.0
    %5114 = vmatpush1.msra.mxu0 0.0
    %5115 = vmatprep.subr.mxu0 0.0
    %5116 = vmatpush1.msra.mxu0 0.0
    %5117 = vmatprep.subr.mxu0 0.0
    %5118 = vmatpush1.msra.mxu0 0.0
    %5119 = vmatprep.subr.mxu0 0.0
    %5120 = vmatpush1.msra.mxu0 0.0
    %5121 = vmatprep.subr.mxu0 0.0
    %5122 = vmatpush1.msra.mxu0 0.0
    %5123 = vmatprep.subr.mxu0 0.0
    %5124 = vmatpush1.msra.mxu0 0.0
    %5125 = vmatprep.subr.mxu0 0.0
    %5126 = vmatpush1.msra.mxu0 0.0
    %5127 = vmatprep.subr.mxu0 0.0
    %5128 = vmatpush1.msra.mxu0 0.0
    %5129 = vmatprep.subr.mxu0 0.0
    %5130 = vmatpush1.msra.mxu0 0.0
    %5131 = vmatprep.subr.mxu0 0.0
    %5132 = vmatpush1.msra.mxu0 0.0
    %5133 = vmatprep.subr.mxu0 0.0
    %5134 = vmatpush1.msra.mxu0 0.0
    %5135 = vmatprep.subr.mxu0 0.0
    %5136 = vmatpush1.msra.mxu0 0.0
    %5137 = vmatprep.subr.mxu0 0.0
    %5138 = vmatpush1.msra.mxu0 0.0
    %5139 = vmatprep.subr.mxu0 0.0
    %5140 = vmatpush1.msra.mxu0 0.0
    %5141 = vmatprep.subr.mxu0 0.0
    %5142 = vmatpush1.msra.mxu0 0.0
    %5143 = vmatprep.subr.mxu0 0.0
    %5144 = vmatpush1.msra.mxu0 0.0
    %5145 = vmatprep.subr.mxu0 0.0
    %5146 = vmatpush1.msra.mxu0 0.0
    %5147 = vmatprep.subr.mxu0 0.0
    %5148 = vmatpush1.msra.mxu0 0.0
    %5149 = vmatprep.subr.mxu0 0.0
    %5150 = vmatpush1.msra.mxu0 0.0
    %5151 = vmatprep.subr.mxu0 0.0
    %5152 = vmatpush1.msra.mxu0 0.0
    %5153 = vmatprep.subr.mxu0 0.0
    %5154 = vmatpush1.msra.mxu0 0.0
    %5155 = vmatprep.subr.mxu0 0.0
    %5156 = vmatpush1.msra.mxu0 0.0
    %5157 = vmatprep.subr.mxu0 0.0
    %5158 = vmatpush1.msra.mxu0 0.0
    %5159 = vmatprep.subr.mxu0 0.0
    %5160 = vmatpush1.msra.mxu0 0.0
    %5161 = vmatprep.subr.mxu0 0.0
    %5162 = vmatpush1.msra.mxu0 0.0
    %5163 = vmatprep.subr.mxu0 0.0
    %5164 = vmatpush1.msra.mxu0 0.0
    %5165 = vmatprep.mubr.f32.mxu0 0.0
    %5166 = vmatmul.mubr.f32.gmra.mrb[0].mxu0 %v5028
    %v5167 = vpop.f32.mrb[0].mxu0
    %v5168 = vadd.f32 0.0, %v5167
    %v5169 = vpop.f32.mrb[0].mxu0
    %v5170 = vadd.f32 0.0, %v5169
    %5171 = vdwg.mxu0
    %v5172 = vadd.f32 %v4993, %v5097
    %v5173 = vadd.f32 %v4994, %v5099
    %v5174 = vadd.f32 %v4995, %v5168
    %v5175 = vadd.f32 %v4996, %v5170
    %v5176 = vmul.f32 %v4111, %v1806
    %v5177 = vmul.f32 %v4112, %v1813
    %v5178 = vmul.f32 %v4113, %v1814
    %v5179 = vmul.f32 %v4114, %v1815
    %v5180 = vmul.f32 %v4115, %v1812
    %s5181 = scalar_lea.vmem %s11, 48
    %v5182 = vld [vmem:[%s5181] sm:$0xff]
    %5188 = vrot.lane.b32.xlu0 %v5176, 33
    %v5189 = vpop.permute.xlu0 %5188
    %5190 = vrot.lane.b32.xlu0 %v5177, 33
    %v5191 = vpop.permute.xlu0 %5190
    %5192 = vrot.lane.b32.xlu0 %v5178, 33
    %v5193 = vpop.permute.xlu0 %5192
    %5194 = vrot.lane.b32.xlu0 %v5179, 33
    %v5195 = vpop.permute.xlu0 %5194
    %5196 = vrot.lane.b32.xlu0 %v5180, 33
    %v5197 = vpop.permute.xlu0 %5196
    %v5198 = vsel %vm989, %v5189, %v5191
    %v5199 = vsel %vm989, %v5191, %v5193
    %v5200 = vsel %vm989, %v5193, %v5195
    %v5201 = vsel %vm989, %v5195, %v5197
    %v5207 = vsel %vm646, %v5182, 0
    %5209 = vmatprep.subr.mxu0 %v5199
    %5210 = vmatpush1.msra.mxu0 %v5198
    %5211 = vmatprep.subr.mxu0 0.0
    %5212 = vmatpush1.msra.mxu0 0.0
    %5213 = vmatprep.subr.mxu0 0.0
    %5214 = vmatpush1.msra.mxu0 0.0
    %5215 = vmatprep.subr.mxu0 0.0
    %5216 = vmatpush1.msra.mxu0 0.0
    %5217 = vmatprep.subr.mxu0 0.0
    %5218 = vmatpush1.msra.mxu0 0.0
    %5219 = vmatprep.subr.mxu0 0.0
    %5220 = vmatpush1.msra.mxu0 0.0
    %5221 = vmatprep.subr.mxu0 0.0
    %5222 = vmatpush1.msra.mxu0 0.0
    %5223 = vmatprep.subr.mxu0 0.0
    %5224 = vmatpush1.msra.mxu0 0.0
    %5225 = vmatprep.subr.mxu0 0.0
    %5226 = vmatpush1.msra.mxu0 0.0
    %5227 = vmatprep.subr.mxu0 0.0
    %5228 = vmatpush1.msra.mxu0 0.0
    %5229 = vmatprep.subr.mxu0 0.0
    %5230 = vmatpush1.msra.mxu0 0.0
    %5231 = vmatprep.subr.mxu0 0.0
    %5232 = vmatpush1.msra.mxu0 0.0
    %5233 = vmatprep.subr.mxu0 0.0
    %5234 = vmatpush1.msra.mxu0 0.0
    %5235 = vmatprep.subr.mxu0 0.0
    %5236 = vmatpush1.msra.mxu0 0.0
    %5237 = vmatprep.subr.mxu0 0.0
    %5238 = vmatpush1.msra.mxu0 0.0
    %5239 = vmatprep.subr.mxu0 0.0
    %5240 = vmatpush1.msra.mxu0 0.0
    %5241 = vmatprep.subr.mxu0 0.0
    %5242 = vmatpush1.msra.mxu0 0.0
    %5243 = vmatprep.subr.mxu0 0.0
    %5244 = vmatpush1.msra.mxu0 0.0
    %5245 = vmatprep.subr.mxu0 0.0
    %5246 = vmatpush1.msra.mxu0 0.0
    %5247 = vmatprep.subr.mxu0 0.0
    %5248 = vmatpush1.msra.mxu0 0.0
    %5249 = vmatprep.subr.mxu0 0.0
    %5250 = vmatpush1.msra.mxu0 0.0
    %5251 = vmatprep.subr.mxu0 0.0
    %5252 = vmatpush1.msra.mxu0 0.0
    %5253 = vmatprep.subr.mxu0 0.0
    %5254 = vmatpush1.msra.mxu0 0.0
    %5255 = vmatprep.subr.mxu0 0.0
    %5256 = vmatpush1.msra.mxu0 0.0
    %5257 = vmatprep.subr.mxu0 0.0
    %5258 = vmatpush1.msra.mxu0 0.0
    %5259 = vmatprep.subr.mxu0 0.0
    %5260 = vmatpush1.msra.mxu0 0.0
    %5261 = vmatprep.subr.mxu0 0.0
    %5262 = vmatpush1.msra.mxu0 0.0
    %5263 = vmatprep.subr.mxu0 0.0
    %5264 = vmatpush1.msra.mxu0 0.0
    %5265 = vmatprep.subr.mxu0 0.0
    %5266 = vmatpush1.msra.mxu0 0.0
    %5267 = vmatprep.subr.mxu0 0.0
    %5268 = vmatpush1.msra.mxu0 0.0
    %5269 = vmatprep.subr.mxu0 0.0
    %5270 = vmatpush1.msra.mxu0 0.0
    %5271 = vmatprep.subr.mxu0 0.0
    %5272 = vmatpush1.msra.mxu0 0.0
    %5273 = vmatprep.mubr.f32.mxu0 0.0
    %5274 = vmatmul.mubr.f32.gmra.mrb[0].mxu0 %v5207
    %v5275 = vpop.f32.mrb[0].mxu0
    %v5276 = vadd.f32 0.0, %v5275
    %v5277 = vpop.f32.mrb[0].mxu0
    %v5278 = vadd.f32 0.0, %v5277
    %5279 = vdwg.mxu0
    %5280 = vmatprep.subr.mxu0 %v5201
    %5281 = vmatpush1.msra.mxu0 %v5200
    %5282 = vmatprep.subr.mxu0 0.0
    %5283 = vmatpush1.msra.mxu0 0.0
    %5284 = vmatprep.subr.mxu0 0.0
    %5285 = vmatpush1.msra.mxu0 0.0
    %5286 = vmatprep.subr.mxu0 0.0
    %5287 = vmatpush1.msra.mxu0 0.0
    %5288 = vmatprep.subr.mxu0 0.0
    %5289 = vmatpush1.msra.mxu0 0.0
    %5290 = vmatprep.subr.mxu0 0.0
    %5291 = vmatpush1.msra.mxu0 0.0
    %5292 = vmatprep.subr.mxu0 0.0
    %5293 = vmatpush1.msra.mxu0 0.0
    %5294 = vmatprep.subr.mxu0 0.0
    %5295 = vmatpush1.msra.mxu0 0.0
    %5296 = vmatprep.subr.mxu0 0.0
    %5297 = vmatpush1.msra.mxu0 0.0
    %5298 = vmatprep.subr.mxu0 0.0
    %5299 = vmatpush1.msra.mxu0 0.0
    %5300 = vmatprep.subr.mxu0 0.0
    %5301 = vmatpush1.msra.mxu0 0.0
    %5302 = vmatprep.subr.mxu0 0.0
    %5303 = vmatpush1.msra.mxu0 0.0
    %5304 = vmatprep.subr.mxu0 0.0
    %5305 = vmatpush1.msra.mxu0 0.0
    %5306 = vmatprep.subr.mxu0 0.0
    %5307 = vmatpush1.msra.mxu0 0.0
    %5308 = vmatprep.subr.mxu0 0.0
    %5309 = vmatpush1.msra.mxu0 0.0
    %5310 = vmatprep.subr.mxu0 0.0
    %5311 = vmatpush1.msra.mxu0 0.0
    %5312 = vmatprep.subr.mxu0 0.0
    %5313 = vmatpush1.msra.mxu0 0.0
    %5314 = vmatprep.subr.mxu0 0.0
    %5315 = vmatpush1.msra.mxu0 0.0
    %5316 = vmatprep.subr.mxu0 0.0
    %5317 = vmatpush1.msra.mxu0 0.0
    %5318 = vmatprep.subr.mxu0 0.0
    %5319 = vmatpush1.msra.mxu0 0.0
    %5320 = vmatprep.subr.mxu0 0.0
    %5321 = vmatpush1.msra.mxu0 0.0
    %5322 = vmatprep.subr.mxu0 0.0
    %5323 = vmatpush1.msra.mxu0 0.0
    %5324 = vmatprep.subr.mxu0 0.0
    %5325 = vmatpush1.msra.mxu0 0.0
    %5326 = vmatprep.subr.mxu0 0.0
    %5327 = vmatpush1.msra.mxu0 0.0
    %5328 = vmatprep.subr.mxu0 0.0
    %5329 = vmatpush1.msra.mxu0 0.0
    %5330 = vmatprep.subr.mxu0 0.0
    %5331 = vmatpush1.msra.mxu0 0.0
    %5332 = vmatprep.subr.mxu0 0.0
    %5333 = vmatpush1.msra.mxu0 0.0
    %5334 = vmatprep.subr.mxu0 0.0
    %5335 = vmatpush1.msra.mxu0 0.0
    %5336 = vmatprep.subr.mxu0 0.0
    %5337 = vmatpush1.msra.mxu0 0.0
    %5338 = vmatprep.subr.mxu0 0.0
    %5339 = vmatpush1.msra.mxu0 0.0
    %5340 = vmatprep.subr.mxu0 0.0
    %5341 = vmatpush1.msra.mxu0 0.0
    %5342 = vmatprep.subr.mxu0 0.0
    %5343 = vmatpush1.msra.mxu0 0.0
    %5344 = vmatprep.mubr.f32.mxu0 0.0
    %5345 = vmatmul.mubr.f32.gmra.mrb[0].mxu0 %v5207
    %v5346 = vpop.f32.mrb[0].mxu0
    %v5347 = vadd.f32 0.0, %v5346
    %v5348 = vpop.f32.mrb[0].mxu0
    %v5349 = vadd.f32 0.0, %v5348
    %5350 = vdwg.mxu0
    %v5351 = vadd.f32 %v5172, %v5276
    %v5352 = vadd.f32 %v5173, %v5278
    %v5353 = vadd.f32 %v5174, %v5347
    %v5354 = vadd.f32 %v5175, %v5349
    %v5355 = vmul.f32 %v4111, %v2021
    %v5356 = vmul.f32 %v4112, %v2028
    %v5357 = vmul.f32 %v4113, %v2029
    %v5358 = vmul.f32 %v4114, %v2030
    %v5359 = vmul.f32 %v4115, %v2027
    %s5360 = scalar_lea.vmem %s11, 56
    %v5361 = vld [vmem:[%s5360] sm:$0xff]
    %5367 = vrot.lane.b32.xlu0 %v5355, 32
    %v5368 = vpop.permute.xlu0 %5367
    %5369 = vrot.lane.b32.xlu0 %v5356, 32
    %v5370 = vpop.permute.xlu0 %5369
    %5371 = vrot.lane.b32.xlu0 %v5357, 32
    %v5372 = vpop.permute.xlu0 %5371
    %5373 = vrot.lane.b32.xlu0 %v5358, 32
    %v5374 = vpop.permute.xlu0 %5373
    %5375 = vrot.lane.b32.xlu0 %v5359, 32
    %v5376 = vpop.permute.xlu0 %5375
    %v5377 = vsel %vm181, %v5368, %v5370
    %v5378 = vsel %vm181, %v5370, %v5372
    %v5379 = vsel %vm181, %v5372, %v5374
    %v5380 = vsel %vm181, %v5374, %v5376
    %v5386 = vsel %vm646, %v5361, 0
    %5388 = vmatprep.subr.mxu0 %v5378
    %5389 = vmatpush1.msra.mxu0 %v5377
    %5390 = vmatprep.subr.mxu0 0.0
    %5391 = vmatpush1.msra.mxu0 0.0
    %5392 = vmatprep.subr.mxu0 0.0
    %5393 = vmatpush1.msra.mxu0 0.0
    %5394 = vmatprep.subr.mxu0 0.0
    %5395 = vmatpush1.msra.mxu0 0.0
    %5396 = vmatprep.subr.mxu0 0.0
    %5397 = vmatpush1.msra.mxu0 0.0
    %5398 = vmatprep.subr.mxu0 0.0
    %5399 = vmatpush1.msra.mxu0 0.0
    %5400 = vmatprep.subr.mxu0 0.0
    %5401 = vmatpush1.msra.mxu0 0.0
    %5402 = vmatprep.subr.mxu0 0.0
    %5403 = vmatpush1.msra.mxu0 0.0
    %5404 = vmatprep.subr.mxu0 0.0
    %5405 = vmatpush1.msra.mxu0 0.0
    %5406 = vmatprep.subr.mxu0 0.0
    %5407 = vmatpush1.msra.mxu0 0.0
    %5408 = vmatprep.subr.mxu0 0.0
    %5409 = vmatpush1.msra.mxu0 0.0
    %5410 = vmatprep.subr.mxu0 0.0
    %5411 = vmatpush1.msra.mxu0 0.0
    %5412 = vmatprep.subr.mxu0 0.0
    %5413 = vmatpush1.msra.mxu0 0.0
    %5414 = vmatprep.subr.mxu0 0.0
    %5415 = vmatpush1.msra.mxu0 0.0
    %5416 = vmatprep.subr.mxu0 0.0
    %5417 = vmatpush1.msra.mxu0 0.0
    %5418 = vmatprep.subr.mxu0 0.0
    %5419 = vmatpush1.msra.mxu0 0.0
    %5420 = vmatprep.subr.mxu0 0.0
    %5421 = vmatpush1.msra.mxu0 0.0
    %5422 = vmatprep.subr.mxu0 0.0
    %5423 = vmatpush1.msra.mxu0 0.0
    %5424 = vmatprep.subr.mxu0 0.0
    %5425 = vmatpush1.msra.mxu0 0.0
    %5426 = vmatprep.subr.mxu0 0.0
    %5427 = vmatpush1.msra.mxu0 0.0
    %5428 = vmatprep.subr.mxu0 0.0
    %5429 = vmatpush1.msra.mxu0 0.0
    %5430 = vmatprep.subr.mxu0 0.0
    %5431 = vmatpush1.msra.mxu0 0.0
    %5432 = vmatprep.subr.mxu0 0.0
    %5433 = vmatpush1.msra.mxu0 0.0
    %5434 = vmatprep.subr.mxu0 0.0
    %5435 = vmatpush1.msra.mxu0 0.0
    %5436 = vmatprep.subr.mxu0 0.0
    %5437 = vmatpush1.msra.mxu0 0.0
    %5438 = vmatprep.subr.mxu0 0.0
    %5439 = vmatpush1.msra.mxu0 0.0
    %5440 = vmatprep.subr.mxu0 0.0
    %5441 = vmatpush1.msra.mxu0 0.0
    %5442 = vmatprep.subr.mxu0 0.0
    %5443 = vmatpush1.msra.mxu0 0.0
    %5444 = vmatprep.subr.mxu0 0.0
    %5445 = vmatpush1.msra.mxu0 0.0
    %5446 = vmatprep.subr.mxu0 0.0
    %5447 = vmatpush1.msra.mxu0 0.0
    %5448 = vmatprep.subr.mxu0 0.0
    %5449 = vmatpush1.msra.mxu0 0.0
    %5450 = vmatprep.subr.mxu0 0.0
    %5451 = vmatpush1.msra.mxu0 0.0
    %5452 = vmatprep.mubr.f32.mxu0 0.0
    %5453 = vmatmul.mubr.f32.gmra.mrb[0].mxu0 %v5386
    %v5454 = vpop.f32.mrb[0].mxu0
    %v5455 = vadd.f32 0.0, %v5454
    %v5456 = vpop.f32.mrb[0].mxu0
    %v5457 = vadd.f32 0.0, %v5456
    %5458 = vdwg.mxu0
    %5459 = vmatprep.subr.mxu0 %v5380
    %5460 = vmatpush1.msra.mxu0 %v5379
    %5461 = vmatprep.subr.mxu0 0.0
    %5462 = vmatpush1.msra.mxu0 0.0
    %5463 = vmatprep.subr.mxu0 0.0
    %5464 = vmatpush1.msra.mxu0 0.0
    %5465 = vmatprep.subr.mxu0 0.0
    %5466 = vmatpush1.msra.mxu0 0.0
    %5467 = vmatprep.subr.mxu0 0.0
    %5468 = vmatpush1.msra.mxu0 0.0
    %5469 = vmatprep.subr.mxu0 0.0
    %5470 = vmatpush1.msra.mxu0 0.0
    %5471 = vmatprep.subr.mxu0 0.0
    %5472 = vmatpush1.msra.mxu0 0.0
    %5473 = vmatprep.subr.mxu0 0.0
    %5474 = vmatpush1.msra.mxu0 0.0
    %5475 = vmatprep.subr.mxu0 0.0
    %5476 = vmatpush1.msra.mxu0 0.0
    %5477 = vmatprep.subr.mxu0 0.0
    %5478 = vmatpush1.msra.mxu0 0.0
    %5479 = vmatprep.subr.mxu0 0.0
    %5480 = vmatpush1.msra.mxu0 0.0
    %5481 = vmatprep.subr.mxu0 0.0
    %5482 = vmatpush1.msra.mxu0 0.0
    %5483 = vmatprep.subr.mxu0 0.0
    %5484 = vmatpush1.msra.mxu0 0.0
    %5485 = vmatprep.subr.mxu0 0.0
    %5486 = vmatpush1.msra.mxu0 0.0
    %5487 = vmatprep.subr.mxu0 0.0
    %5488 = vmatpush1.msra.mxu0 0.0
    %5489 = vmatprep.subr.mxu0 0.0
    %5490 = vmatpush1.msra.mxu0 0.0
    %5491 = vmatprep.subr.mxu0 0.0
    %5492 = vmatpush1.msra.mxu0 0.0
    %5493 = vmatprep.subr.mxu0 0.0
    %5494 = vmatpush1.msra.mxu0 0.0
    %5495 = vmatprep.subr.mxu0 0.0
    %5496 = vmatpush1.msra.mxu0 0.0
    %5497 = vmatprep.subr.mxu0 0.0
    %5498 = vmatpush1.msra.mxu0 0.0
    %5499 = vmatprep.subr.mxu0 0.0
    %5500 = vmatpush1.msra.mxu0 0.0
    %5501 = vmatprep.subr.mxu0 0.0
    %5502 = vmatpush1.msra.mxu0 0.0
    %5503 = vmatprep.subr.mxu0 0.0
    %5504 = vmatpush1.msra.mxu0 0.0
    %5505 = vmatprep.subr.mxu0 0.0
    %5506 = vmatpush1.msra.mxu0 0.0
    %5507 = vmatprep.subr.mxu0 0.0
    %5508 = vmatpush1.msra.mxu0 0.0
    %5509 = vmatprep.subr.mxu0 0.0
    %5510 = vmatpush1.msra.mxu0 0.0
    %5511 = vmatprep.subr.mxu0 0.0
    %5512 = vmatpush1.msra.mxu0 0.0
    %5513 = vmatprep.subr.mxu0 0.0
    %5514 = vmatpush1.msra.mxu0 0.0
    %5515 = vmatprep.subr.mxu0 0.0
    %5516 = vmatpush1.msra.mxu0 0.0
    %5517 = vmatprep.subr.mxu0 0.0
    %5518 = vmatpush1.msra.mxu0 0.0
    %5519 = vmatprep.subr.mxu0 0.0
    %5520 = vmatpush1.msra.mxu0 0.0
    %5521 = vmatprep.subr.mxu0 0.0
    %5522 = vmatpush1.msra.mxu0 0.0
    %5523 = vmatprep.mubr.f32.mxu0 0.0
    %5524 = vmatmul.mubr.f32.gmra.mrb[0].mxu0 %v5386
    %v5525 = vpop.f32.mrb[0].mxu0
    %v5526 = vadd.f32 0.0, %v5525
    %v5527 = vpop.f32.mrb[0].mxu0
    %v5528 = vadd.f32 0.0, %v5527
    %5529 = vdwg.mxu0
    %v5530 = vadd.f32 %v5351, %v5455
    %v5531 = vadd.f32 %v5352, %v5457
    %v5532 = vadd.f32 %v5353, %v5526
    %v5533 = vadd.f32 %v5354, %v5528
    %v5534 = vmul.f32 %v4111, %v2236
    %v5535 = vmul.f32 %v4112, %v2243
    %v5536 = vmul.f32 %v4113, %v2244
    %v5537 = vmul.f32 %v4114, %v2245
    %v5538 = vmul.f32 %v4115, %v2242
    %s5539 = scalar_lea.vmem %s11, 64
    %v5540 = vld [vmem:[%s5539] sm:$0xff]
    %5546 = vrot.lane.b32.xlu0 %v5534, 31
    %v5547 = vpop.permute.xlu0 %5546
    %5548 = vrot.lane.b32.xlu0 %v5535, 31
    %v5549 = vpop.permute.xlu0 %5548
    %5550 = vrot.lane.b32.xlu0 %v5536, 31
    %v5551 = vpop.permute.xlu0 %5550
    %5552 = vrot.lane.b32.xlu0 %v5537, 31
    %v5553 = vpop.permute.xlu0 %5552
    %5554 = vrot.lane.b32.xlu0 %v5538, 31
    %v5555 = vpop.permute.xlu0 %5554
    %v5556 = vsel %vm564, %v5547, %v5549
    %v5557 = vsel %vm564, %v5549, %v5551
    %v5558 = vsel %vm564, %v5551, %v5553
    %v5559 = vsel %vm564, %v5553, %v5555
    %v5565 = vsel %vm646, %v5540, 0
    %5567 = vmatprep.subr.mxu0 %v5557
    %5568 = vmatpush1.msra.mxu0 %v5556
    %5569 = vmatprep.subr.mxu0 0.0
    %5570 = vmatpush1.msra.mxu0 0.0
    %5571 = vmatprep.subr.mxu0 0.0
    %5572 = vmatpush1.msra.mxu0 0.0
    %5573 = vmatprep.subr.mxu0 0.0
    %5574 = vmatpush1.msra.mxu0 0.0
    %5575 = vmatprep.subr.mxu0 0.0
    %5576 = vmatpush1.msra.mxu0 0.0
    %5577 = vmatprep.subr.mxu0 0.0
    %5578 = vmatpush1.msra.mxu0 0.0
    %5579 = vmatprep.subr.mxu0 0.0
    %5580 = vmatpush1.msra.mxu0 0.0
    %5581 = vmatprep.subr.mxu0 0.0
    %5582 = vmatpush1.msra.mxu0 0.0
    %5583 = vmatprep.subr.mxu0 0.0
    %5584 = vmatpush1.msra.mxu0 0.0
    %5585 = vmatprep.subr.mxu0 0.0
    %5586 = vmatpush1.msra.mxu0 0.0
    %5587 = vmatprep.subr.mxu0 0.0
    %5588 = vmatpush1.msra.mxu0 0.0
    %5589 = vmatprep.subr.mxu0 0.0
    %5590 = vmatpush1.msra.mxu0 0.0
    %5591 = vmatprep.subr.mxu0 0.0
    %5592 = vmatpush1.msra.mxu0 0.0
    %5593 = vmatprep.subr.mxu0 0.0
    %5594 = vmatpush1.msra.mxu0 0.0
    %5595 = vmatprep.subr.mxu0 0.0
    %5596 = vmatpush1.msra.mxu0 0.0
    %5597 = vmatprep.subr.mxu0 0.0
    %5598 = vmatpush1.msra.mxu0 0.0
    %5599 = vmatprep.subr.mxu0 0.0
    %5600 = vmatpush1.msra.mxu0 0.0
    %5601 = vmatprep.subr.mxu0 0.0
    %5602 = vmatpush1.msra.mxu0 0.0
    %5603 = vmatprep.subr.mxu0 0.0
    %5604 = vmatpush1.msra.mxu0 0.0
    %5605 = vmatprep.subr.mxu0 0.0
    %5606 = vmatpush1.msra.mxu0 0.0
    %5607 = vmatprep.subr.mxu0 0.0
    %5608 = vmatpush1.msra.mxu0 0.0
    %5609 = vmatprep.subr.mxu0 0.0
    %5610 = vmatpush1.msra.mxu0 0.0
    %5611 = vmatprep.subr.mxu0 0.0
    %5612 = vmatpush1.msra.mxu0 0.0
    %5613 = vmatprep.subr.mxu0 0.0
    %5614 = vmatpush1.msra.mxu0 0.0
    %5615 = vmatprep.subr.mxu0 0.0
    %5616 = vmatpush1.msra.mxu0 0.0
    %5617 = vmatprep.subr.mxu0 0.0
    %5618 = vmatpush1.msra.mxu0 0.0
    %5619 = vmatprep.subr.mxu0 0.0
    %5620 = vmatpush1.msra.mxu0 0.0
    %5621 = vmatprep.subr.mxu0 0.0
    %5622 = vmatpush1.msra.mxu0 0.0
    %5623 = vmatprep.subr.mxu0 0.0
    %5624 = vmatpush1.msra.mxu0 0.0
    %5625 = vmatprep.subr.mxu0 0.0
    %5626 = vmatpush1.msra.mxu0 0.0
    %5627 = vmatprep.subr.mxu0 0.0
    %5628 = vmatpush1.msra.mxu0 0.0
    %5629 = vmatprep.subr.mxu0 0.0
    %5630 = vmatpush1.msra.mxu0 0.0
    %5631 = vmatprep.mubr.f32.mxu0 0.0
    %5632 = vmatmul.mubr.f32.gmra.mrb[0].mxu0 %v5565
    %v5633 = vpop.f32.mrb[0].mxu0
    %v5634 = vadd.f32 0.0, %v5633
    %v5635 = vpop.f32.mrb[0].mxu0
    %v5636 = vadd.f32 0.0, %v5635
    %5637 = vdwg.mxu0
    %5638 = vmatprep.subr.mxu0 %v5559
    %5639 = vmatpush1.msra.mxu0 %v5558
    %5640 = vmatprep.subr.mxu0 0.0
    %5641 = vmatpush1.msra.mxu0 0.0
    %5642 = vmatprep.subr.mxu0 0.0
    %5643 = vmatpush1.msra.mxu0 0.0
    %5644 = vmatprep.subr.mxu0 0.0
    %5645 = vmatpush1.msra.mxu0 0.0
    %5646 = vmatprep.subr.mxu0 0.0
    %5647 = vmatpush1.msra.mxu0 0.0
    %5648 = vmatprep.subr.mxu0 0.0
    %5649 = vmatpush1.msra.mxu0 0.0
    %5650 = vmatprep.subr.mxu0 0.0
    %5651 = vmatpush1.msra.mxu0 0.0
    %5652 = vmatprep.subr.mxu0 0.0
    %5653 = vmatpush1.msra.mxu0 0.0
    %5654 = vmatprep.subr.mxu0 0.0
    %5655 = vmatpush1.msra.mxu0 0.0
    %5656 = vmatprep.subr.mxu0 0.0
    %5657 = vmatpush1.msra.mxu0 0.0
    %5658 = vmatprep.subr.mxu0 0.0
    %5659 = vmatpush1.msra.mxu0 0.0
    %5660 = vmatprep.subr.mxu0 0.0
    %5661 = vmatpush1.msra.mxu0 0.0
    %5662 = vmatprep.subr.mxu0 0.0
    %5663 = vmatpush1.msra.mxu0 0.0
    %5664 = vmatprep.subr.mxu0 0.0
    %5665 = vmatpush1.msra.mxu0 0.0
    %5666 = vmatprep.subr.mxu0 0.0
    %5667 = vmatpush1.msra.mxu0 0.0
    %5668 = vmatprep.subr.mxu0 0.0
    %5669 = vmatpush1.msra.mxu0 0.0
    %5670 = vmatprep.subr.mxu0 0.0
    %5671 = vmatpush1.msra.mxu0 0.0
    %5672 = vmatprep.subr.mxu0 0.0
    %5673 = vmatpush1.msra.mxu0 0.0
    %5674 = vmatprep.subr.mxu0 0.0
    %5675 = vmatpush1.msra.mxu0 0.0
    %5676 = vmatprep.subr.mxu0 0.0
    %5677 = vmatpush1.msra.mxu0 0.0
    %5678 = vmatprep.subr.mxu0 0.0
    %5679 = vmatpush1.msra.mxu0 0.0
    %5680 = vmatprep.subr.mxu0 0.0
    %5681 = vmatpush1.msra.mxu0 0.0
    %5682 = vmatprep.subr.mxu0 0.0
    %5683 = vmatpush1.msra.mxu0 0.0
    %5684 = vmatprep.subr.mxu0 0.0
    %5685 = vmatpush1.msra.mxu0 0.0
    %5686 = vmatprep.subr.mxu0 0.0
    %5687 = vmatpush1.msra.mxu0 0.0
    %5688 = vmatprep.subr.mxu0 0.0
    %5689 = vmatpush1.msra.mxu0 0.0
    %5690 = vmatprep.subr.mxu0 0.0
    %5691 = vmatpush1.msra.mxu0 0.0
    %5692 = vmatprep.subr.mxu0 0.0
    %5693 = vmatpush1.msra.mxu0 0.0
    %5694 = vmatprep.subr.mxu0 0.0
    %5695 = vmatpush1.msra.mxu0 0.0
    %5696 = vmatprep.subr.mxu0 0.0
    %5697 = vmatpush1.msra.mxu0 0.0
    %5698 = vmatprep.subr.mxu0 0.0
    %5699 = vmatpush1.msra.mxu0 0.0
    %5700 = vmatprep.subr.mxu0 0.0
    %5701 = vmatpush1.msra.mxu0 0.0
    %5702 = vmatprep.mubr.f32.mxu0 0.0
    %5703 = vmatmul.mubr.f32.gmra.mrb[0].mxu0 %v5565
    %v5704 = vpop.f32.mrb[0].mxu0
    %v5705 = vadd.f32 0.0, %v5704
    %v5706 = vpop.f32.mrb[0].mxu0
    %v5707 = vadd.f32 0.0, %v5706
    %5708 = vdwg.mxu0
    %v5709 = vadd.f32 %v5530, %v5634
    %v5710 = vadd.f32 %v5531, %v5636
    %v5711 = vadd.f32 %v5532, %v5705
    %v5712 = vadd.f32 %v5533, %v5707
    %v5713 = vld [vmem:[%s12] sm:$0xff]
    %5715 = vset.pattern.permute.xlu0 0
    %5716 = vperm.xlu0 %5715, %v5713
    %v5717 = vpop.permute.xlu0 %5716
    %v5719 = vadd.f32 %v5709, %v5717
    %v5720 = vadd.f32 %v5710, %v5717
    %v5721 = vadd.f32 %v5711, %v5717
    %v5722 = vadd.f32 %v5712, %v5717
    %v5723 = vadd.f32 %v5719, %v2440
    %v5724 = vadd.f32 %v5720, %v2441
    %v5725 = vadd.f32 %v5721, %v2442
    %v5726 = vadd.f32 %v5722, %v2443
    %v5727 = vmax.f32 %v5723, 0.0
    %v5728 = vmax.f32 %v5724, 0.0
    %v5729 = vmax.f32 %v5725, 0.0
    %v5730 = vmax.f32 %v5726, 0.0
    %v5731 = vld [vmem:[%s14] sm:$0xff]
    %v5733 = vcombine.high %v5731, %v5731
    %v5735 = vunpack.c.l.s4 1983009808
    %v5736 = vunpack.c.0.s8 %v5735
    %v5737 = vlaneseq
    %v5738 = vshrl.u32 %v5737, 7
    %v5739 = vsub.s32 %v5736, %v5738
    %v5740 = vrot.slane %v5731, %v5739
    %v5742 = vunpack.c.l.s4 1983009808
    %v5743 = vunpack.c.0.s8 %v5742
    %v5744 = vlaneseq
    %v5745 = vshrl.u32 %v5744, 7
    %v5746 = vsub.s32 %v5743, %v5745
    %v5747 = vrot.slane %v5733, %v5746
    %v5748 = vcombine.high %v5740, %v5740
    %v5749 = vcombine.high %v5747, %v5747
    %5754 = vmatprep.subr.mxu0 %v5728
    %5755 = vmatpush1.xpose.msra.mxu0 %v5727
    %5756 = vmatprep.subr.mxu0 0.0
    %5757 = vmatpush1.xpose.msra.mxu0 0.0
    %5758 = vmatprep.subr.mxu0 0.0
    %5759 = vmatpush1.xpose.msra.mxu0 0.0
    %5760 = vmatprep.subr.mxu0 0.0
    %5761 = vmatpush1.xpose.msra.mxu0 0.0
    %5762 = vmatprep.subr.mxu0 0.0
    %5763 = vmatpush1.xpose.msra.mxu0 0.0
    %5764 = vmatprep.subr.mxu0 0.0
    %5765 = vmatpush1.xpose.msra.mxu0 0.0
    %5766 = vmatprep.subr.mxu0 0.0
    %5767 = vmatpush1.xpose.msra.mxu0 0.0
    %5768 = vmatprep.subr.mxu0 0.0
    %5769 = vmatpush1.xpose.msra.mxu0 0.0
    %5770 = vmatprep.subr.mxu0 0.0
    %5771 = vmatpush1.xpose.msra.mxu0 0.0
    %5772 = vmatprep.subr.mxu0 0.0
    %5773 = vmatpush1.xpose.msra.mxu0 0.0
    %5774 = vmatprep.subr.mxu0 0.0
    %5775 = vmatpush1.xpose.msra.mxu0 0.0
    %5776 = vmatprep.subr.mxu0 0.0
    %5777 = vmatpush1.xpose.msra.mxu0 0.0
    %5778 = vmatprep.subr.mxu0 0.0
    %5779 = vmatpush1.xpose.msra.mxu0 0.0
    %5780 = vmatprep.subr.mxu0 0.0
    %5781 = vmatpush1.xpose.msra.mxu0 0.0
    %5782 = vmatprep.subr.mxu0 0.0
    %5783 = vmatpush1.xpose.msra.mxu0 0.0
    %5784 = vmatprep.subr.mxu0 0.0
    %5785 = vmatpush1.xpose.msra.mxu0 0.0
    %5786 = vmatprep.subr.mxu0 0.0
    %5787 = vmatpush1.xpose.msra.mxu0 0.0
    %5788 = vmatprep.subr.mxu0 0.0
    %5789 = vmatpush1.xpose.msra.mxu0 0.0
    %5790 = vmatprep.subr.mxu0 0.0
    %5791 = vmatpush1.xpose.msra.mxu0 0.0
    %5792 = vmatprep.subr.mxu0 0.0
    %5793 = vmatpush1.xpose.msra.mxu0 0.0
    %5794 = vmatprep.subr.mxu0 0.0
    %5795 = vmatpush1.xpose.msra.mxu0 0.0
    %5796 = vmatprep.subr.mxu0 0.0
    %5797 = vmatpush1.xpose.msra.mxu0 0.0
    %5798 = vmatprep.subr.mxu0 0.0
    %5799 = vmatpush1.xpose.msra.mxu0 0.0
    %5800 = vmatprep.subr.mxu0 0.0
    %5801 = vmatpush1.xpose.msra.mxu0 0.0
    %5802 = vmatprep.subr.mxu0 0.0
    %5803 = vmatpush1.xpose.msra.mxu0 0.0
    %5804 = vmatprep.subr.mxu0 0.0
    %5805 = vmatpush1.xpose.msra.mxu0 0.0
    %5806 = vmatprep.subr.mxu0 0.0
    %5807 = vmatpush1.xpose.msra.mxu0 0.0
    %5808 = vmatprep.subr.mxu0 0.0
    %5809 = vmatpush1.xpose.msra.mxu0 0.0
    %5810 = vmatprep.subr.mxu0 0.0
    %5811 = vmatpush1.xpose.msra.mxu0 0.0
    %5812 = vmatprep.subr.mxu0 0.0
    %5813 = vmatpush1.xpose.msra.mxu0 0.0
    %5814 = vmatprep.subr.mxu0 0.0
    %5815 = vmatpush1.xpose.msra.mxu0 0.0
    %5816 = vmatprep.subr.mxu0 0.0
    %5817 = vmatpush1.xpose.msra.mxu0 0.0
    %5818 = vmatprep.mubr.f32.mxu0 %v5748
    %5819 = vmatmul.mubr.f32.gmra.mrb[0].mxu0 %v5740
    %v5820 = vpop.f32.mrb[0].mxu0
    %v5821 = vadd.f32 0.0, %v5820
    %v5822 = vpop.f32.mrb[0].mxu0
    %5823 = vdwg.mxu0
    %5824 = vmatprep.subr.mxu0 %v5730
    %5825 = vmatpush1.xpose.msra.mxu0 %v5729
    %5826 = vmatprep.subr.mxu0 0.0
    %5827 = vmatpush1.xpose.msra.mxu0 0.0
    %5828 = vmatprep.subr.mxu0 0.0
    %5829 = vmatpush1.xpose.msra.mxu0 0.0
    %5830 = vmatprep.subr.mxu0 0.0
    %5831 = vmatpush1.xpose.msra.mxu0 0.0
    %5832 = vmatprep.subr.mxu0 0.0
    %5833 = vmatpush1.xpose.msra.mxu0 0.0
    %5834 = vmatprep.subr.mxu0 0.0
    %5835 = vmatpush1.xpose.msra.mxu0 0.0
    %5836 = vmatprep.subr.mxu0 0.0
    %5837 = vmatpush1.xpose.msra.mxu0 0.0
    %5838 = vmatprep.subr.mxu0 0.0
    %5839 = vmatpush1.xpose.msra.mxu0 0.0
    %5840 = vmatprep.subr.mxu0 0.0
    %5841 = vmatpush1.xpose.msra.mxu0 0.0
    %5842 = vmatprep.subr.mxu0 0.0
    %5843 = vmatpush1.xpose.msra.mxu0 0.0
    %5844 = vmatprep.subr.mxu0 0.0
    %5845 = vmatpush1.xpose.msra.mxu0 0.0
    %5846 = vmatprep.subr.mxu0 0.0
    %5847 = vmatpush1.xpose.msra.mxu0 0.0
    %5848 = vmatprep.subr.mxu0 0.0
    %5849 = vmatpush1.xpose.msra.mxu0 0.0
    %5850 = vmatprep.subr.mxu0 0.0
    %5851 = vmatpush1.xpose.msra.mxu0 0.0
    %5852 = vmatprep.subr.mxu0 0.0
    %5853 = vmatpush1.xpose.msra.mxu0 0.0
    %5854 = vmatprep.subr.mxu0 0.0
    %5855 = vmatpush1.xpose.msra.mxu0 0.0
    %5856 = vmatprep.subr.mxu0 0.0
    %5857 = vmatpush1.xpose.msra.mxu0 0.0
    %5858 = vmatprep.subr.mxu0 0.0
    %5859 = vmatpush1.xpose.msra.mxu0 0.0
    %5860 = vmatprep.subr.mxu0 0.0
    %5861 = vmatpush1.xpose.msra.mxu0 0.0
    %5862 = vmatprep.subr.mxu0 0.0
    %5863 = vmatpush1.xpose.msra.mxu0 0.0
    %5864 = vmatprep.subr.mxu0 0.0
    %5865 = vmatpush1.xpose.msra.mxu0 0.0
    %5866 = vmatprep.subr.mxu0 0.0
    %5867 = vmatpush1.xpose.msra.mxu0 0.0
    %5868 = vmatprep.subr.mxu0 0.0
    %5869 = vmatpush1.xpose.msra.mxu0 0.0
    %5870 = vmatprep.subr.mxu0 0.0
    %5871 = vmatpush1.xpose.msra.mxu0 0.0
    %5872 = vmatprep.subr.mxu0 0.0
    %5873 = vmatpush1.xpose.msra.mxu0 0.0
    %5874 = vmatprep.subr.mxu0 0.0
    %5875 = vmatpush1.xpose.msra.mxu0 0.0
    %5876 = vmatprep.subr.mxu0 0.0
    %5877 = vmatpush1.xpose.msra.mxu0 0.0
    %5878 = vmatprep.subr.mxu0 0.0
    %5879 = vmatpush1.xpose.msra.mxu0 0.0
    %5880 = vmatprep.subr.mxu0 0.0
    %5881 = vmatpush1.xpose.msra.mxu0 0.0
    %5882 = vmatprep.subr.mxu0 0.0
    %5883 = vmatpush1.xpose.msra.mxu0 0.0
    %5884 = vmatprep.subr.mxu0 0.0
    %5885 = vmatpush1.xpose.msra.mxu0 0.0
    %5886 = vmatprep.subr.mxu0 0.0
    %5887 = vmatpush1.xpose.msra.mxu0 0.0
    %5888 = vmatprep.mubr.f32.mxu0 %v5749
    %5889 = vmatmul.mubr.f32.gmra.mrb[0].mxu0 %v5747
    %v5890 = vpop.f32.mrb[0].mxu0
    %v5891 = vadd.f32 %v5821, %v5890
    %v5892 = vpop.f32.mrb[0].mxu0
    %5893 = vdwg.mxu0
    %v5894 = vld [vmem:[%s15] sm:$0xff]
    %v5895 = vld [vmem:[%s16] sm:$0x1]
    %v5897 = vlaneseq
    %v5898 = vshrl.u32 %v5897, 7
    %v5899 = vsub.s32 0, %v5898
    %v5900 = vrot.slane %v5895, %v5899
    %v5903 = vsel %vm646, %v5891, 0
    %5905 = vmatprep.subr.mxu0 0.0
    %5906 = vmatpush1.msra.mxu0 %v5894
    %5907 = vmatprep.subr.mxu0 0.0
    %5908 = vmatpush1.msra.mxu0 0.0
    %5909 = vmatprep.subr.mxu0 0.0
    %5910 = vmatpush1.msra.mxu0 0.0
    %5911 = vmatprep.subr.mxu0 0.0
    %5912 = vmatpush1.msra.mxu0 0.0
    %5913 = vmatprep.subr.mxu0 0.0
    %5914 = vmatpush1.msra.mxu0 0.0
    %5915 = vmatprep.subr.mxu0 0.0
    %5916 = vmatpush1.msra.mxu0 0.0
    %5917 = vmatprep.subr.mxu0 0.0
    %5918 = vmatpush1.msra.mxu0 0.0
    %5919 = vmatprep.subr.mxu0 0.0
    %5920 = vmatpush1.msra.mxu0 0.0
    %5921 = vmatprep.subr.mxu0 0.0
    %5922 = vmatpush1.msra.mxu0 0.0
    %5923 = vmatprep.subr.mxu0 0.0
    %5924 = vmatpush1.msra.mxu0 0.0
    %5925 = vmatprep.subr.mxu0 0.0
    %5926 = vmatpush1.msra.mxu0 0.0
    %5927 = vmatprep.subr.mxu0 0.0
    %5928 = vmatpush1.msra.mxu0 0.0
    %5929 = vmatprep.subr.mxu0 0.0
    %5930 = vmatpush1.msra.mxu0 0.0
    %5931 = vmatprep.subr.mxu0 0.0
    %5932 = vmatpush1.msra.mxu0 0.0
    %5933 = vmatprep.subr.mxu0 0.0
    %5934 = vmatpush1.msra.mxu0 0.0
    %5935 = vmatprep.subr.mxu0 0.0
    %5936 = vmatpush1.msra.mxu0 0.0
    %5937 = vmatprep.subr.mxu0 0.0
    %5938 = vmatpush1.msra.mxu0 0.0
    %5939 = vmatprep.subr.mxu0 0.0
    %5940 = vmatpush1.msra.mxu0 0.0
    %5941 = vmatprep.subr.mxu0 0.0
    %5942 = vmatpush1.msra.mxu0 0.0
    %5943 = vmatprep.subr.mxu0 0.0
    %5944 = vmatpush1.msra.mxu0 0.0
    %5945 = vmatprep.subr.mxu0 0.0
    %5946 = vmatpush1.msra.mxu0 0.0
    %5947 = vmatprep.subr.mxu0 0.0
    %5948 = vmatpush1.msra.mxu0 0.0
    %5949 = vmatprep.subr.mxu0 0.0
    %5950 = vmatpush1.msra.mxu0 0.0
    %5951 = vmatprep.subr.mxu0 0.0
    %5952 = vmatpush1.msra.mxu0 0.0
    %5953 = vmatprep.subr.mxu0 0.0
    %5954 = vmatpush1.msra.mxu0 0.0
    %5955 = vmatprep.subr.mxu0 0.0
    %5956 = vmatpush1.msra.mxu0 0.0
    %5957 = vmatprep.subr.mxu0 0.0
    %5958 = vmatpush1.msra.mxu0 0.0
    %5959 = vmatprep.subr.mxu0 0.0
    %5960 = vmatpush1.msra.mxu0 0.0
    %5961 = vmatprep.subr.mxu0 0.0
    %5962 = vmatpush1.msra.mxu0 0.0
    %5963 = vmatprep.subr.mxu0 0.0
    %5964 = vmatpush1.msra.mxu0 0.0
    %5965 = vmatprep.subr.mxu0 0.0
    %5966 = vmatpush1.msra.mxu0 0.0
    %5967 = vmatprep.subr.mxu0 0.0
    %5968 = vmatpush1.msra.mxu0 0.0
    %5969 = vmatprep.mubr.f32.mxu0 0.0
    %5970 = vmatmul.mubr.f32.gmra.mrb[0].mxu0 %v5903
    %v5971 = vpop.f32.mrb[0].mxu0
    %v5972 = vadd.f32 %v5900, %v5971
    %v5973 = vpop.f32.mrb[0].mxu0
    %5974 = vdwg.mxu0
    %v5975 = vld [vmem:[%s17] sm:$0xff]
    %v5976 = vld [vmem:[%s17 + $0x8] sm:$0xff]
    %v5977 = vld [vmem:[%s18] sm:$0x1]
    %v5979 = vlaneseq
    %v5980 = vshrl.u32 %v5979, 7
    %v5981 = vsub.s32 0, %v5980
    %v5982 = vrot.slane %v5977, %v5981
    %vm5984 = vcmask 130048
    %v5986 = vsel %vm5984, %v5972, 0
    %5988 = vmatprep.subr.mxu0 0.0
    %5989 = vmatpush1.msra.mxu0 %v5975
    %5990 = vmatprep.subr.mxu0 0.0
    %5991 = vmatpush1.msra.mxu0 %v5976
    %5992 = vmatprep.subr.mxu0 0.0
    %5993 = vmatpush1.msra.mxu0 0.0
    %5994 = vmatprep.subr.mxu0 0.0
    %5995 = vmatpush1.msra.mxu0 0.0
    %5996 = vmatprep.subr.mxu0 0.0
    %5997 = vmatpush1.msra.mxu0 0.0
    %5998 = vmatprep.subr.mxu0 0.0
    %5999 = vmatpush1.msra.mxu0 0.0
    %6000 = vmatprep.subr.mxu0 0.0
    %6001 = vmatpush1.msra.mxu0 0.0
    %6002 = vmatprep.subr.mxu0 0.0
    %6003 = vmatpush1.msra.mxu0 0.0
    %6004 = vmatprep.subr.mxu0 0.0
    %6005 = vmatpush1.msra.mxu0 0.0
    %6006 = vmatprep.subr.mxu0 0.0
    %6007 = vmatpush1.msra.mxu0 0.0
    %6008 = vmatprep.subr.mxu0 0.0
    %6009 = vmatpush1.msra.mxu0 0.0
    %6010 = vmatprep.subr.mxu0 0.0
    %6011 = vmatpush1.msra.mxu0 0.0
    %6012 = vmatprep.subr.mxu0 0.0
    %6013 = vmatpush1.msra.mxu0 0.0
    %6014 = vmatprep.subr.mxu0 0.0
    %6015 = vmatpush1.msra.mxu0 0.0
    %6016 = vmatprep.subr.mxu0 0.0
    %6017 = vmatpush1.msra.mxu0 0.0
    %6018 = vmatprep.subr.mxu0 0.0
    %6019 = vmatpush1.msra.mxu0 0.0
    %6020 = vmatprep.subr.mxu0 0.0
    %6021 = vmatpush1.msra.mxu0 0.0
    %6022 = vmatprep.subr.mxu0 0.0
    %6023 = vmatpush1.msra.mxu0 0.0
    %6024 = vmatprep.subr.mxu0 0.0
    %6025 = vmatpush1.msra.mxu0 0.0
    %6026 = vmatprep.subr.mxu0 0.0
    %6027 = vmatpush1.msra.mxu0 0.0
    %6028 = vmatprep.subr.mxu0 0.0
    %6029 = vmatpush1.msra.mxu0 0.0
    %6030 = vmatprep.subr.mxu0 0.0
    %6031 = vmatpush1.msra.mxu0 0.0
    %6032 = vmatprep.subr.mxu0 0.0
    %6033 = vmatpush1.msra.mxu0 0.0
    %6034 = vmatprep.subr.mxu0 0.0
    %6035 = vmatpush1.msra.mxu0 0.0
    %6036 = vmatprep.subr.mxu0 0.0
    %6037 = vmatpush1.msra.mxu0 0.0
    %6038 = vmatprep.subr.mxu0 0.0
    %6039 = vmatpush1.msra.mxu0 0.0
    %6040 = vmatprep.subr.mxu0 0.0
    %6041 = vmatpush1.msra.mxu0 0.0
    %6042 = vmatprep.subr.mxu0 0.0
    %6043 = vmatpush1.msra.mxu0 0.0
    %6044 = vmatprep.subr.mxu0 0.0
    %6045 = vmatpush1.msra.mxu0 0.0
    %6046 = vmatprep.subr.mxu0 0.0
    %6047 = vmatpush1.msra.mxu0 0.0
    %6048 = vmatprep.subr.mxu0 0.0
    %6049 = vmatpush1.msra.mxu0 0.0
    %6050 = vmatprep.subr.mxu0 0.0
    %6051 = vmatpush1.msra.mxu0 0.0
    %6052 = vmatprep.mubr.f32.mxu0 0.0
    %6053 = vmatmul.mubr.f32.gmra.mrb[0].mxu0 %v5986
    %v6054 = vpop.f32.mrb[0].mxu0
    %v6055 = vadd.f32 %v5982, %v6054
    %v6056 = vpop.f32.mrb[0].mxu0
    %6057 = vdwg.mxu0
    %vm6058 = vcmask 25600
    %6059 = vst.msk [vmem:[#allocation3] sm:$0x3] %vm6058, %v6055
    // Predicated region
    $region78: #{word_resnet_forward.1} parent=1 // pred_check
      _
    $region79: #{word_resnet_forward.1} parent=1 // pred_check_branch
      %6061 = sbr.rel (0) target = $region81
    $region80: #{word_resnet_forward.1} parent=1 // pred_region
      %s6063 = ssub.s32 32, 32
      %6064 = vsyncadd [#allocation4], %s6063
      %s6066 = sshll.u32 [#allocation3], 4
      %s6067 = int_to_ptr.vmem [resolvable:$true] %s6066
      %6069 = dma.vmem_to_hbm [thread:$0]  %s6067, 32, %s19, [#allocation4]
    $region81: #{word_resnet_forward.1} parent=1 // pred_fallthru
      _
    // Predicated region
    $region82: #{word_resnet_forward.1} parent=1 // pred_check
      _
    $region83: #{word_resnet_forward.1} parent=1 // pred_check_branch
      %6071 = sbr.rel (0) target = $region85
    $region84: #{word_resnet_forward.1} parent=1 // pred_region
      %6072 = dma.done [#allocation4], 32
    $region85: #{word_resnet_forward.1} parent=1 // pred_fallthru
      _
    %6073 = vsyncpa [#allocation4], 1

</llo_original>
